<compile_context>
chip_gen: v7x
topology: tpu7x:2x2x1
jax: 0.10.0
libtpu: 0.0.40
codegen_flags: <defaults>
</compile_context>

<pallas_src>
import jax
import jax.numpy as jnp
import numpy as np
from jax.experimental import pallas as pl
from jax.experimental.pallas import tpu as pltpu

PLANES = 64
DILATIONS = (1, 2, 3, 4)
NBRANCH = len(DILATIONS)
PAD = max(DILATIONS)      # common padded-scratch halo (covers all dilations)
EPS = 1e-5


def aspp_kernel(x_ref, wpw_ref, bpw_ref, wdw_ref, bdw_ref, w1_ref, b1_ref,
                out_ref, pad_ref):
    # x_ref   : (1, H, W, Cin)             current batch element (NHWC)
    # wpw_ref : (Cin, 256)                 BN-folded pointwise weights, branches packed
    # bpw_ref : (1, 256)                   folded BN bias after pointwise conv
    # wdw_ref : (4, 3, 3, 64)              BN-folded depthwise conv weights
    # bdw_ref : (4, 64)                    folded BN bias after depthwise conv
    # w1_ref  : (4, 64)                    BN-folded final 1x1 conv weights (per-branch slice)
    # b1_ref  : (1, 1)                     folded final BN bias
    # out_ref : (1, H, W)                  lane-dense output (W on lanes)
    # pad_ref : (4, H+2*PAD, W+2*PAD, 64)  per-branch zero-padded depthwise staging
    _, H, W, Cin = x_ref.shape
    Hp = H + 2 * PAD
    Wp = W + 2 * PAD

    # ---- fused pointwise 1x1 conv (+ folded BN) + ReLU for ALL branches ------
    x2d = x_ref[...].reshape(H * W, Cin)
    pw = jnp.dot(x2d, wpw_ref[...], preferred_element_type=jnp.float32)  # (HW, 256)
    pw = jnp.maximum(pw + bpw_ref[...], 0.0)

    # ---- zero ONLY the halo; the interior is fully overwritten below. --------
    pad_ref[:, 0:PAD, :, :] = jnp.zeros((NBRANCH, PAD, Wp, PLANES), jnp.float32)
    pad_ref[:, PAD + H:Hp, :, :] = jnp.zeros((NBRANCH, PAD, Wp, PLANES), jnp.float32)
    pad_ref[:, PAD:PAD + H, 0:PAD, :] = jnp.zeros((NBRANCH, H, PAD, PLANES), jnp.float32)
    pad_ref[:, PAD:PAD + H, PAD + W:Wp, :] = jnp.zeros((NBRANCH, H, PAD, PLANES), jnp.float32)

    wdw = wdw_ref[...]          # (4, 3, 3, 64)
    bdw = bdw_ref[...]          # (4, 64)
    w1 = w1_ref[...]            # (4, 64)

    acc = jnp.zeros((H, W), jnp.float32)

    for bi, d in enumerate(DILATIONS):
        c0 = bi * PLANES
        # branch slice of the fused pointwise result -> padded scratch interior
        pad_ref[bi, PAD:PAD + H, PAD:PAD + W, :] = (
            pw[:, c0:c0 + PLANES].reshape(H, W, PLANES))

        # ---- 3x3 dilated depthwise conv (padding == dilation) ----------------
        dw = None
        for ky in range(3):
            for kx in range(3):
                sy = PAD + (ky - 1) * d
                sx = PAD + (kx - 1) * d
                tap = pad_ref[bi, sy:sy + H, sx:sx + W, :]       # (H, W, 64)
                contrib = tap * wdw[bi, ky, kx, :][None, None, :]
                dw = contrib if dw is None else dw + contrib
        dw = jnp.maximum(dw + bdw[bi][None, None, :], 0.0)

        # ---- branch slice of concat + final 1x1 conv: VPU mul + lane reduce --
        acc = acc + jnp.sum(dw * w1[bi][None, None, :], axis=-1)

    y = jnp.maximum(acc + b1_ref[0, 0], 0.0)          # (H, W)
    out_ref[...] = y.reshape(1, H, W)


def aspp_pallas(x_nchw, p):
    x = jnp.transpose(x_nchw, (0, 2, 3, 1)).astype(jnp.float32)   # NHWC
    N, H, W, Cin = x.shape
    C = NBRANCH * PLANES

    # ---- fold BatchNorm (inference mode) into conv weights / biases ----------
    s1 = p["g1"] / jnp.sqrt(p["v1"] + EPS)                    # (4, 64)
    wpw_f = p["wpw"] * s1[:, None, :]                         # (4, Cin, 64)
    wpw_packed = jnp.transpose(wpw_f, (1, 0, 2)).reshape(Cin, C)   # (Cin, 256)
    bpw_packed = (p["b1"] - p["m1"] * s1).reshape(1, C)       # (1, 256)

    s2 = p["g2"] / jnp.sqrt(p["v2"] + EPS)                    # (4, 64)
    wdw_f = p["wdw"] * s2[:, None, None, :]                   # (4, 3, 3, 64)
    bdw_f = p["b2"] - p["m2"] * s2                            # (4, 64)

    sf = p["gf"] / jnp.sqrt(p["vf"] + EPS)                    # (1,)
    w1_f = p["w1"][..., 0] * sf[0]                            # (4, 64)
    b1_f = (p["bf"] - p["mf"] * sf).reshape(1, 1)             # (1, 1)

    out = pl.pallas_call(
        aspp_kernel,
        out_shape=jax.ShapeDtypeStruct((N, H, W), jnp.float32),
        grid=(N,),
        in_specs=[
            pl.BlockSpec((1, H, W, Cin), lambda n: (n, 0, 0, 0)),
            pl.BlockSpec((Cin, C), lambda n: (0, 0)),
            pl.BlockSpec((1, C), lambda n: (0, 0)),
            pl.BlockSpec((NBRANCH, 3, 3, PLANES), lambda n: (0, 0, 0, 0)),
            pl.BlockSpec((NBRANCH, PLANES), lambda n: (0, 0)),
            pl.BlockSpec((NBRANCH, PLANES), lambda n: (0, 0)),
            pl.BlockSpec((1, 1), lambda n: (0, 0)),
        ],
        out_specs=pl.BlockSpec((1, H, W), lambda n: (n, 0, 0)),
        scratch_shapes=[pltpu.VMEM(
            (NBRANCH, H + 2 * PAD, W + 2 * PAD, PLANES), jnp.float32)],
        compiler_params=pltpu.CompilerParams(
            dimension_semantics=("parallel",),
            vmem_limit_bytes=64 * 1024 * 1024),
    )(x, wpw_packed, bpw_packed, wdw_f, bdw_f, w1_f, b1_f)

    return out.reshape(N, 1, H, W)                            # NCHW (N, 1, H, W)


def aspp_reference(x_nchw, p):
    """Pure-JAX (lax.conv) reference of the same forward pass, NHWC."""
    x = jnp.transpose(x_nchw, (0, 2, 3, 1)).astype(jnp.float32)
    outs = []
    for bi, d in enumerate(DILATIONS):
        w = p["wpw"][bi][None, None]                          # (1,1,Cin,64)
        y = jax.lax.conv_general_dilated(
            x, w, (1, 1), "VALID", dimension_numbers=("NHWC", "HWIO", "NHWC"))
        s = p["g1"][bi] / jnp.sqrt(p["v1"][bi] + EPS)
        y = jnp.maximum(y * s + (p["b1"][bi] - p["m1"][bi] * s), 0.0)

        wd = p["wdw"][bi][:, :, None, :]                      # (3,3,1,64)
        y = jax.lax.conv_general_dilated(
            y, wd, (1, 1), [(d, d), (d, d)], rhs_dilation=(d, d),
            feature_group_count=PLANES,
            dimension_numbers=("NHWC", "HWIO", "NHWC"))
        s = p["g2"][bi] / jnp.sqrt(p["v2"][bi] + EPS)
        y = jnp.maximum(y * s + (p["b2"][bi] - p["m2"][bi] * s), 0.0)
        outs.append(y)

    y = jnp.concatenate(outs, axis=-1)                        # (N,H,W,256)
    w1 = p["w1"].reshape(4 * PLANES, 1)[None, None]           # (1,1,256,1)
    y = jax.lax.conv_general_dilated(
        y, w1, (1, 1), "VALID", dimension_numbers=("NHWC", "HWIO", "NHWC"))
    sf = p["gf"] / jnp.sqrt(p["vf"] + EPS)
    y = jnp.maximum(y * sf + (p["bf"] - p["mf"] * sf), 0.0)
    return jnp.transpose(y, (0, 3, 1, 2))


def make_params(key, cin):
    ks = jax.random.split(key, 16)
    u = lambda k, s: jax.random.uniform(k, s, jnp.float32, 0.5, 1.5)
    n = lambda k, s, sc=0.1: jax.random.normal(k, s, jnp.float32) * sc
    return {
        "wpw": n(ks[0], (4, cin, PLANES)),
        "g1": u(ks[1], (4, PLANES)), "b1": n(ks[2], (4, PLANES)),
        "m1": n(ks[3], (4, PLANES)), "v1": u(ks[4], (4, PLANES)),
        "wdw": n(ks[5], (4, 3, 3, PLANES)),
        "g2": u(ks[6], (4, PLANES)), "b2": n(ks[7], (4, PLANES)),
        "m2": n(ks[8], (4, PLANES)), "v2": u(ks[9], (4, PLANES)),
        "w1": n(ks[10], (4, PLANES, 1)),
        "gf": u(ks[11], (1,)), "bf": n(ks[12], (1,)),
        "mf": n(ks[13], (1,)), "vf": u(ks[14], (1,)),
    }


if __name__ == "__main__":
    key = jax.random.PRNGKey(0)
    kx, kp = jax.random.split(key)

    N, Cin, H, W = 2, 4, 16, 16
    x = jax.random.normal(kx, (N, Cin, H, W), jnp.float32)
    params = make_params(kp, Cin)

    out = jax.block_until_ready(aspp_pallas(x, params))
    ref = jax.block_until_ready(aspp_reference(x, params))

    assert out.shape == (N, 1, H, W), out.shape
    np.testing.assert_allclose(np.asarray(out), np.asarray(ref),
                               rtol=1e-4, atol=1e-4)
    print("KERNEL_OK")
</pallas_src>

<mosaic_0001>
module attributes {stable_mosaic.version = 11 : i64} {
  func.func @aspp_kernel(%arg0: i32, %arg1: memref<1x16x16x4xf32, #tpu.memory_space<vmem>>, %arg2: memref<4x256xf32, #tpu.memory_space<vmem>>, %arg3: memref<1x256xf32, #tpu.memory_space<vmem>>, %arg4: memref<4x3x3x64xf32, #tpu.memory_space<vmem>>, %arg5: memref<4x64xf32, #tpu.memory_space<vmem>>, %arg6: memref<4x64xf32, #tpu.memory_space<vmem>>, %arg7: memref<1x1xf32, #tpu.memory_space<vmem>>, %arg8: memref<1x16x16xf32, #tpu.memory_space<vmem>>, %arg9: memref<4x24x24x64xf32, #tpu.memory_space<vmem>>) attributes {dimension_semantics = [#tpu.dimension_semantics<parallel>], iteration_bounds = array<i64: 2>, scalar_prefetch = 0 : i64, scratch_operands = 1 : i64, tpu.core_type = #tpu.core_type<tc>, window_params = [{transform_indices = @transform_0, window_bounds = array<i64: 1, 16, 16, 4>}, {pipeline_mode = #tpu.pipeline_mode<synchronous>, transform_indices = @transform_1, window_bounds = array<i64: 4, 256>}, {pipeline_mode = #tpu.pipeline_mode<synchronous>, transform_indices = @transform_2, window_bounds = array<i64: 1, 256>}, {pipeline_mode = #tpu.pipeline_mode<synchronous>, transform_indices = @transform_3, window_bounds = array<i64: 4, 3, 3, 64>}, {pipeline_mode = #tpu.pipeline_mode<synchronous>, transform_indices = @transform_4, window_bounds = array<i64: 4, 64>}, {pipeline_mode = #tpu.pipeline_mode<synchronous>, transform_indices = @transform_5, window_bounds = array<i64: 4, 64>}, {pipeline_mode = #tpu.pipeline_mode<synchronous>, transform_indices = @transform_6, window_bounds = array<i64: 1, 1>}, {transform_indices = @transform_7, window_bounds = array<i64: 1, 16, 16>}]} {
    %c0 = arith.constant 0 : index
    %c0_0 = arith.constant 0 : index
    %c0_1 = arith.constant 0 : index
    %c0_2 = arith.constant 0 : index
    %0 = vector.load %arg1[%c0, %c0_0, %c0_1, %c0_2] : memref<1x16x16x4xf32, #tpu.memory_space<vmem>>, vector<1x16x16x4xf32>
    %1 = vector.shape_cast %0 : vector<1x16x16x4xf32> to vector<256x4xf32>
    %c0_3 = arith.constant 0 : index
    %c0_4 = arith.constant 0 : index
    %2 = vector.load %arg2[%c0_3, %c0_4] : memref<4x256xf32, #tpu.memory_space<vmem>>, vector<4x256xf32>
    %cst = arith.constant dense<0.000000e+00> : vector<256x256xf32>
    %3 = tpu.matmul %1, %2, %cst {dimension_numbers = #tpu.dot_dimension_numbers<[1], [0], [0], [1], [0, 0, 1, 1], [], []>} : vector<256x4xf32>, vector<4x256xf32>, vector<256x256xf32> -> vector<256x256xf32>
    %c0_5 = arith.constant 0 : index
    %c0_6 = arith.constant 0 : index
    %4 = vector.load %arg3[%c0_5, %c0_6] : memref<1x256xf32, #tpu.memory_space<vmem>>, vector<1x256xf32>
    %5 = vector.broadcast %4 : vector<1x256xf32> to vector<256x256xf32>
    %6 = arith.addf %3, %5 : vector<256x256xf32>
    %cst_7 = arith.constant 0.000000e+00 : f32
    %7 = vector.broadcast %cst_7 : f32 to vector<256x256xf32>
    %8 = arith.maximumf %6, %7 : vector<256x256xf32>
    %cst_8 = arith.constant 0.000000e+00 : f32
    %9 = vector.broadcast %cst_8 : f32 to vector<4x4x24x64xf32>
    %c0_9 = arith.constant 0 : index
    %c0_10 = arith.constant 0 : index
    %c0_11 = arith.constant 0 : index
    %c0_12 = arith.constant 0 : index
    %10 = vector.load %arg9[%c0_9, %c0_10, %c0_11, %c0_12] : memref<4x24x24x64xf32, #tpu.memory_space<vmem>>, vector<4x4x24x64xf32>
    tpu.vector_store %arg9[%c0_9, %c0_10, %c0_11, %c0_12], %9 {strides = array<i32>} : memref<4x24x24x64xf32, #tpu.memory_space<vmem>>, vector<4x4x24x64xf32>,
    %cst_13 = arith.constant 0.000000e+00 : f32
    %11 = vector.broadcast %cst_13 : f32 to vector<4x4x24x64xf32>
    %c0_14 = arith.constant 0 : index
    %c20 = arith.constant 20 : index
    %c0_15 = arith.constant 0 : index
    %c0_16 = arith.constant 0 : index
    %12 = vector.load %arg9[%c0_14, %c20, %c0_15, %c0_16] : memref<4x24x24x64xf32, #tpu.memory_space<vmem>>, vector<4x4x24x64xf32>
    tpu.vector_store %arg9[%c0_14, %c20, %c0_15, %c0_16], %11 {strides = array<i32>} : memref<4x24x24x64xf32, #tpu.memory_space<vmem>>, vector<4x4x24x64xf32>,
    %cst_17 = arith.constant 0.000000e+00 : f32
    %13 = vector.broadcast %cst_17 : f32 to vector<4x16x4x64xf32>
    %c0_18 = arith.constant 0 : index
    %c4 = arith.constant 4 : index
    %c0_19 = arith.constant 0 : index
    %c0_20 = arith.constant 0 : index
    %14 = vector.load %arg9[%c0_18, %c4, %c0_19, %c0_20] : memref<4x24x24x64xf32, #tpu.memory_space<vmem>>, vector<4x16x4x64xf32>
    tpu.vector_store %arg9[%c0_18, %c4, %c0_19, %c0_20], %13 {strides = array<i32>} : memref<4x24x24x64xf32, #tpu.memory_space<vmem>>, vector<4x16x4x64xf32>,
    %cst_21 = arith.constant 0.000000e+00 : f32
    %15 = vector.broadcast %cst_21 : f32 to vector<4x16x4x64xf32>
    %c0_22 = arith.constant 0 : index
    %c4_23 = arith.constant 4 : index
    %c20_24 = arith.constant 20 : index
    %c0_25 = arith.constant 0 : index
    %16 = vector.load %arg9[%c0_22, %c4_23, %c20_24, %c0_25] : memref<4x24x24x64xf32, #tpu.memory_space<vmem>>, vector<4x16x4x64xf32>
    tpu.vector_store %arg9[%c0_22, %c4_23, %c20_24, %c0_25], %15 {strides = array<i32>} : memref<4x24x24x64xf32, #tpu.memory_space<vmem>>, vector<4x16x4x64xf32>,
    %c0_26 = arith.constant 0 : index
    %c0_27 = arith.constant 0 : index
    %c0_28 = arith.constant 0 : index
    %c0_29 = arith.constant 0 : index
    %17 = vector.load %arg4[%c0_26, %c0_27, %c0_28, %c0_29] : memref<4x3x3x64xf32, #tpu.memory_space<vmem>>, vector<4x3x3x64xf32>
    %c0_30 = arith.constant 0 : index
    %c0_31 = arith.constant 0 : index
    %18 = vector.load %arg5[%c0_30, %c0_31] : memref<4x64xf32, #tpu.memory_space<vmem>>, vector<4x64xf32>
    %c0_32 = arith.constant 0 : index
    %c0_33 = arith.constant 0 : index
    %19 = vector.load %arg6[%c0_32, %c0_33] : memref<4x64xf32, #tpu.memory_space<vmem>>, vector<4x64xf32>
    %cst_34 = arith.constant 0.000000e+00 : f32
    %20 = vector.broadcast %cst_34 : f32 to vector<16x16xf32>
    %21 = vector.extract_strided_slice %8 {offsets = [0, 0], sizes = [256, 64], strides = [1, 1]} : vector<256x256xf32> to vector<256x64xf32>
    %22 = vector.shape_cast %21 : vector<256x64xf32> to vector<16x16x64xf32>
    %c0_35 = arith.constant 0 : index
    %c4_36 = arith.constant 4 : index
    %c4_37 = arith.constant 4 : index
    %c0_38 = arith.constant 0 : index
    %23 = vector.load %arg9[%c0_35, %c4_36, %c4_37, %c0_38] : memref<4x24x24x64xf32, #tpu.memory_space<vmem>>, vector<1x16x16x64xf32>
    %24 = vector.shape_cast %23 : vector<1x16x16x64xf32> to vector<16x16x64xf32>
    %25 = vector.shape_cast %22 : vector<16x16x64xf32> to vector<1x16x16x64xf32>
    tpu.vector_store %arg9[%c0_35, %c4_36, %c4_37, %c0_38], %25 {strides = array<i32>} : memref<4x24x24x64xf32, #tpu.memory_space<vmem>>, vector<1x16x16x64xf32>,
    %c0_39 = arith.constant 0 : index
    %c3 = arith.constant 3 : index
    %c3_40 = arith.constant 3 : index
    %c0_41 = arith.constant 0 : index
    %26 = vector.load %arg9[%c0_39, %c3, %c3_40, %c0_41] : memref<4x24x24x64xf32, #tpu.memory_space<vmem>>, vector<1x16x16x64xf32>
    %27 = vector.shape_cast %26 : vector<1x16x16x64xf32> to vector<16x16x64xf32>
    %28 = vector.extract_strided_slice %17 {offsets = [0, 0, 0, 0], sizes = [1, 1, 1, 64], strides = [1, 1, 1, 1]} : vector<4x3x3x64xf32> to vector<1x1x1x64xf32>
    %29 = vector.shape_cast %28 : vector<1x1x1x64xf32> to vector<64xf32>
    %30 = vector.shape_cast %29 : vector<64xf32> to vector<1x1x64xf32>
    %31 = vector.broadcast %30 : vector<1x1x64xf32> to vector<16x16x64xf32>
    %32 = arith.mulf %27, %31 : vector<16x16x64xf32>
    %c0_42 = arith.constant 0 : index
    %c3_43 = arith.constant 3 : index
    %c4_44 = arith.constant 4 : index
    %c0_45 = arith.constant 0 : index
    %33 = vector.load %arg9[%c0_42, %c3_43, %c4_44, %c0_45] : memref<4x24x24x64xf32, #tpu.memory_space<vmem>>, vector<1x16x16x64xf32>
    %34 = vector.shape_cast %33 : vector<1x16x16x64xf32> to vector<16x16x64xf32>
    %35 = vector.extract_strided_slice %17 {offsets = [0, 0, 1, 0], sizes = [1, 1, 1, 64], strides = [1, 1, 1, 1]} : vector<4x3x3x64xf32> to vector<1x1x1x64xf32>
    %36 = vector.shape_cast %35 : vector<1x1x1x64xf32> to vector<64xf32>
    %37 = vector.shape_cast %36 : vector<64xf32> to vector<1x1x64xf32>
    %38 = vector.broadcast %37 : vector<1x1x64xf32> to vector<16x16x64xf32>
    %39 = arith.mulf %34, %38 : vector<16x16x64xf32>
    %40 = arith.addf %32, %39 : vector<16x16x64xf32>
    %c0_46 = arith.constant 0 : index
    %c3_47 = arith.constant 3 : index
    %c5 = arith.constant 5 : index
    %c0_48 = arith.constant 0 : index
    %41 = vector.load %arg9[%c0_46, %c3_47, %c5, %c0_48] : memref<4x24x24x64xf32, #tpu.memory_space<vmem>>, vector<1x16x16x64xf32>
    %42 = vector.shape_cast %41 : vector<1x16x16x64xf32> to vector<16x16x64xf32>
    %43 = vector.extract_strided_slice %17 {offsets = [0, 0, 2, 0], sizes = [1, 1, 1, 64], strides = [1, 1, 1, 1]} : vector<4x3x3x64xf32> to vector<1x1x1x64xf32>
    %44 = vector.shape_cast %43 : vector<1x1x1x64xf32> to vector<64xf32>
    %45 = vector.shape_cast %44 : vector<64xf32> to vector<1x1x64xf32>
    %46 = vector.broadcast %45 : vector<1x1x64xf32> to vector<16x16x64xf32>
    %47 = arith.mulf %42, %46 : vector<16x16x64xf32>
    %48 = arith.addf %40, %47 : vector<16x16x64xf32>
    %c0_49 = arith.constant 0 : index
    %c4_50 = arith.constant 4 : index
    %c3_51 = arith.constant 3 : index
    %c0_52 = arith.constant 0 : index
    %49 = vector.load %arg9[%c0_49, %c4_50, %c3_51, %c0_52] : memref<4x24x24x64xf32, #tpu.memory_space<vmem>>, vector<1x16x16x64xf32>
    %50 = vector.shape_cast %49 : vector<1x16x16x64xf32> to vector<16x16x64xf32>
    %51 = vector.extract_strided_slice %17 {offsets = [0, 1, 0, 0], sizes = [1, 1, 1, 64], strides = [1, 1, 1, 1]} : vector<4x3x3x64xf32> to vector<1x1x1x64xf32>
    %52 = vector.shape_cast %51 : vector<1x1x1x64xf32> to vector<64xf32>
    %53 = vector.shape_cast %52 : vector<64xf32> to vector<1x1x64xf32>
    %54 = vector.broadcast %53 : vector<1x1x64xf32> to vector<16x16x64xf32>
    %55 = arith.mulf %50, %54 : vector<16x16x64xf32>
    %56 = arith.addf %48, %55 : vector<16x16x64xf32>
    %c0_53 = arith.constant 0 : index
    %c4_54 = arith.constant 4 : index
    %c4_55 = arith.constant 4 : index
    %c0_56 = arith.constant 0 : index
    %57 = vector.load %arg9[%c0_53, %c4_54, %c4_55, %c0_56] : memref<4x24x24x64xf32, #tpu.memory_space<vmem>>, vector<1x16x16x64xf32>
    %58 = vector.shape_cast %57 : vector<1x16x16x64xf32> to vector<16x16x64xf32>
    %59 = vector.extract_strided_slice %17 {offsets = [0, 1, 1, 0], sizes = [1, 1, 1, 64], strides = [1, 1, 1, 1]} : vector<4x3x3x64xf32> to vector<1x1x1x64xf32>
    %60 = vector.shape_cast %59 : vector<1x1x1x64xf32> to vector<64xf32>
    %61 = vector.shape_cast %60 : vector<64xf32> to vector<1x1x64xf32>
    %62 = vector.broadcast %61 : vector<1x1x64xf32> to vector<16x16x64xf32>
    %63 = arith.mulf %58, %62 : vector<16x16x64xf32>
    %64 = arith.addf %56, %63 : vector<16x16x64xf32>
    %c0_57 = arith.constant 0 : index
    %c4_58 = arith.constant 4 : index
    %c5_59 = arith.constant 5 : index
    %c0_60 = arith.constant 0 : index
    %65 = vector.load %arg9[%c0_57, %c4_58, %c5_59, %c0_60] : memref<4x24x24x64xf32, #tpu.memory_space<vmem>>, vector<1x16x16x64xf32>
    %66 = vector.shape_cast %65 : vector<1x16x16x64xf32> to vector<16x16x64xf32>
    %67 = vector.extract_strided_slice %17 {offsets = [0, 1, 2, 0], sizes = [1, 1, 1, 64], strides = [1, 1, 1, 1]} : vector<4x3x3x64xf32> to vector<1x1x1x64xf32>
    %68 = vector.shape_cast %67 : vector<1x1x1x64xf32> to vector<64xf32>
    %69 = vector.shape_cast %68 : vector<64xf32> to vector<1x1x64xf32>
    %70 = vector.broadcast %69 : vector<1x1x64xf32> to vector<16x16x64xf32>
    %71 = arith.mulf %66, %70 : vector<16x16x64xf32>
    %72 = arith.addf %64, %71 : vector<16x16x64xf32>
    %c0_61 = arith.constant 0 : index
    %c5_62 = arith.constant 5 : index
    %c3_63 = arith.constant 3 : index
    %c0_64 = arith.constant 0 : index
    %73 = vector.load %arg9[%c0_61, %c5_62, %c3_63, %c0_64] : memref<4x24x24x64xf32, #tpu.memory_space<vmem>>, vector<1x16x16x64xf32>
    %74 = vector.shape_cast %73 : vector<1x16x16x64xf32> to vector<16x16x64xf32>
    %75 = vector.extract_strided_slice %17 {offsets = [0, 2, 0, 0], sizes = [1, 1, 1, 64], strides = [1, 1, 1, 1]} : vector<4x3x3x64xf32> to vector<1x1x1x64xf32>
    %76 = vector.shape_cast %75 : vector<1x1x1x64xf32> to vector<64xf32>
    %77 = vector.shape_cast %76 : vector<64xf32> to vector<1x1x64xf32>
    %78 = vector.broadcast %77 : vector<1x1x64xf32> to vector<16x16x64xf32>
    %79 = arith.mulf %74, %78 : vector<16x16x64xf32>
    %80 = arith.addf %72, %79 : vector<16x16x64xf32>
    %c0_65 = arith.constant 0 : index
    %c5_66 = arith.constant 5 : index
    %c4_67 = arith.constant 4 : index
    %c0_68 = arith.constant 0 : index
    %81 = vector.load %arg9[%c0_65, %c5_66, %c4_67, %c0_68] : memref<4x24x24x64xf32, #tpu.memory_space<vmem>>, vector<1x16x16x64xf32>
    %82 = vector.shape_cast %81 : vector<1x16x16x64xf32> to vector<16x16x64xf32>
    %83 = vector.extract_strided_slice %17 {offsets = [0, 2, 1, 0], sizes = [1, 1, 1, 64], strides = [1, 1, 1, 1]} : vector<4x3x3x64xf32> to vector<1x1x1x64xf32>
    %84 = vector.shape_cast %83 : vector<1x1x1x64xf32> to vector<64xf32>
    %85 = vector.shape_cast %84 : vector<64xf32> to vector<1x1x64xf32>
    %86 = vector.broadcast %85 : vector<1x1x64xf32> to vector<16x16x64xf32>
    %87 = arith.mulf %82, %86 : vector<16x16x64xf32>
    %88 = arith.addf %80, %87 : vector<16x16x64xf32>
    %c0_69 = arith.constant 0 : index
    %c5_70 = arith.constant 5 : index
    %c5_71 = arith.constant 5 : index
    %c0_72 = arith.constant 0 : index
    %89 = vector.load %arg9[%c0_69, %c5_70, %c5_71, %c0_72] : memref<4x24x24x64xf32, #tpu.memory_space<vmem>>, vector<1x16x16x64xf32>
    %90 = vector.shape_cast %89 : vector<1x16x16x64xf32> to vector<16x16x64xf32>
    %91 = vector.extract_strided_slice %17 {offsets = [0, 2, 2, 0], sizes = [1, 1, 1, 64], strides = [1, 1, 1, 1]} : vector<4x3x3x64xf32> to vector<1x1x1x64xf32>
    %92 = vector.shape_cast %91 : vector<1x1x1x64xf32> to vector<64xf32>
    %93 = vector.shape_cast %92 : vector<64xf32> to vector<1x1x64xf32>
    %94 = vector.broadcast %93 : vector<1x1x64xf32> to vector<16x16x64xf32>
    %95 = arith.mulf %90, %94 : vector<16x16x64xf32>
    %96 = arith.addf %88, %95 : vector<16x16x64xf32>
    %97 = vector.extract_strided_slice %18 {offsets = [0, 0], sizes = [1, 64], strides = [1, 1]} : vector<4x64xf32> to vector<1x64xf32>
    %98 = vector.shape_cast %97 : vector<1x64xf32> to vector<64xf32>
    %99 = vector.shape_cast %98 : vector<64xf32> to vector<1x1x64xf32>
    %100 = vector.broadcast %99 : vector<1x1x64xf32> to vector<16x16x64xf32>
    %101 = arith.addf %96, %100 : vector<16x16x64xf32>
    %cst_73 = arith.constant 0.000000e+00 : f32
    %102 = vector.broadcast %cst_73 : f32 to vector<16x16x64xf32>
    %103 = arith.maximumf %101, %102 : vector<16x16x64xf32>
    %104 = vector.extract_strided_slice %19 {offsets = [0, 0], sizes = [1, 64], strides = [1, 1]} : vector<4x64xf32> to vector<1x64xf32>
    %105 = vector.shape_cast %104 : vector<1x64xf32> to vector<64xf32>
    %106 = vector.shape_cast %105 : vector<64xf32> to vector<1x1x64xf32>
    %107 = vector.broadcast %106 : vector<1x1x64xf32> to vector<16x16x64xf32>
    %108 = arith.mulf %103, %107 : vector<16x16x64xf32>
    %cst_74 = arith.constant dense<0.000000e+00> : vector<16x16xf32>
    %109 = vector.multi_reduction <add>, %108, %cst_74 [2] : vector<16x16x64xf32> to vector<16x16xf32>
    %110 = arith.addf %20, %109 : vector<16x16xf32>
    %111 = vector.extract_strided_slice %8 {offsets = [0, 64], sizes = [256, 64], strides = [1, 1]} : vector<256x256xf32> to vector<256x64xf32>
    %112 = vector.shape_cast %111 : vector<256x64xf32> to vector<16x16x64xf32>
    %c1 = arith.constant 1 : index
    %c4_75 = arith.constant 4 : index
    %c4_76 = arith.constant 4 : index
    %c0_77 = arith.constant 0 : index
    %113 = vector.load %arg9[%c1, %c4_75, %c4_76, %c0_77] : memref<4x24x24x64xf32, #tpu.memory_space<vmem>>, vector<1x16x16x64xf32>
    %114 = vector.shape_cast %113 : vector<1x16x16x64xf32> to vector<16x16x64xf32>
    %115 = vector.shape_cast %112 : vector<16x16x64xf32> to vector<1x16x16x64xf32>
    tpu.vector_store %arg9[%c1, %c4_75, %c4_76, %c0_77], %115 {strides = array<i32>} : memref<4x24x24x64xf32, #tpu.memory_space<vmem>>, vector<1x16x16x64xf32>,
    %c1_78 = arith.constant 1 : index
    %c2 = arith.constant 2 : index
    %c2_79 = arith.constant 2 : index
    %c0_80 = arith.constant 0 : index
    %116 = vector.load %arg9[%c1_78, %c2, %c2_79, %c0_80] : memref<4x24x24x64xf32, #tpu.memory_space<vmem>>, vector<1x16x16x64xf32>
    %117 = vector.shape_cast %116 : vector<1x16x16x64xf32> to vector<16x16x64xf32>
    %118 = vector.extract_strided_slice %17 {offsets = [1, 0, 0, 0], sizes = [1, 1, 1, 64], strides = [1, 1, 1, 1]} : vector<4x3x3x64xf32> to vector<1x1x1x64xf32>
    %119 = vector.shape_cast %118 : vector<1x1x1x64xf32> to vector<64xf32>
    %120 = vector.shape_cast %119 : vector<64xf32> to vector<1x1x64xf32>
    %121 = vector.broadcast %120 : vector<1x1x64xf32> to vector<16x16x64xf32>
    %122 = arith.mulf %117, %121 : vector<16x16x64xf32>
    %c1_81 = arith.constant 1 : index
    %c2_82 = arith.constant 2 : index
    %c4_83 = arith.constant 4 : index
    %c0_84 = arith.constant 0 : index
    %123 = vector.load %arg9[%c1_81, %c2_82, %c4_83, %c0_84] : memref<4x24x24x64xf32, #tpu.memory_space<vmem>>, vector<1x16x16x64xf32>
    %124 = vector.shape_cast %123 : vector<1x16x16x64xf32> to vector<16x16x64xf32>
    %125 = vector.extract_strided_slice %17 {offsets = [1, 0, 1, 0], sizes = [1, 1, 1, 64], strides = [1, 1, 1, 1]} : vector<4x3x3x64xf32> to vector<1x1x1x64xf32>
    %126 = vector.shape_cast %125 : vector<1x1x1x64xf32> to vector<64xf32>
    %127 = vector.shape_cast %126 : vector<64xf32> to vector<1x1x64xf32>
    %128 = vector.broadcast %127 : vector<1x1x64xf32> to vector<16x16x64xf32>
    %129 = arith.mulf %124, %128 : vector<16x16x64xf32>
    %130 = arith.addf %122, %129 : vector<16x16x64xf32>
    %c1_85 = arith.constant 1 : index
    %c2_86 = arith.constant 2 : index
    %c6 = arith.constant 6 : index
    %c0_87 = arith.constant 0 : index
    %131 = vector.load %arg9[%c1_85, %c2_86, %c6, %c0_87] : memref<4x24x24x64xf32, #tpu.memory_space<vmem>>, vector<1x16x16x64xf32>
    %132 = vector.shape_cast %131 : vector<1x16x16x64xf32> to vector<16x16x64xf32>
    %133 = vector.extract_strided_slice %17 {offsets = [1, 0, 2, 0], sizes = [1, 1, 1, 64], strides = [1, 1, 1, 1]} : vector<4x3x3x64xf32> to vector<1x1x1x64xf32>
    %134 = vector.shape_cast %133 : vector<1x1x1x64xf32> to vector<64xf32>
    %135 = vector.shape_cast %134 : vector<64xf32> to vector<1x1x64xf32>
    %136 = vector.broadcast %135 : vector<1x1x64xf32> to vector<16x16x64xf32>
    %137 = arith.mulf %132, %136 : vector<16x16x64xf32>
    %138 = arith.addf %130, %137 : vector<16x16x64xf32>
    %c1_88 = arith.constant 1 : index
    %c4_89 = arith.constant 4 : index
    %c2_90 = arith.constant 2 : index
    %c0_91 = arith.constant 0 : index
    %139 = vector.load %arg9[%c1_88, %c4_89, %c2_90, %c0_91] : memref<4x24x24x64xf32, #tpu.memory_space<vmem>>, vector<1x16x16x64xf32>
    %140 = vector.shape_cast %139 : vector<1x16x16x64xf32> to vector<16x16x64xf32>
    %141 = vector.extract_strided_slice %17 {offsets = [1, 1, 0, 0], sizes = [1, 1, 1, 64], strides = [1, 1, 1, 1]} : vector<4x3x3x64xf32> to vector<1x1x1x64xf32>
    %142 = vector.shape_cast %141 : vector<1x1x1x64xf32> to vector<64xf32>
    %143 = vector.shape_cast %142 : vector<64xf32> to vector<1x1x64xf32>
    %144 = vector.broadcast %143 : vector<1x1x64xf32> to vector<16x16x64xf32>
    %145 = arith.mulf %140, %144 : vector<16x16x64xf32>
    %146 = arith.addf %138, %145 : vector<16x16x64xf32>
    %c1_92 = arith.constant 1 : index
    %c4_93 = arith.constant 4 : index
    %c4_94 = arith.constant 4 : index
    %c0_95 = arith.constant 0 : index
    %147 = vector.load %arg9[%c1_92, %c4_93, %c4_94, %c0_95] : memref<4x24x24x64xf32, #tpu.memory_space<vmem>>, vector<1x16x16x64xf32>
    %148 = vector.shape_cast %147 : vector<1x16x16x64xf32> to vector<16x16x64xf32>
    %149 = vector.extract_strided_slice %17 {offsets = [1, 1, 1, 0], sizes = [1, 1, 1, 64], strides = [1, 1, 1, 1]} : vector<4x3x3x64xf32> to vector<1x1x1x64xf32>
    %150 = vector.shape_cast %149 : vector<1x1x1x64xf32> to vector<64xf32>
    %151 = vector.shape_cast %150 : vector<64xf32> to vector<1x1x64xf32>
    %152 = vector.broadcast %151 : vector<1x1x64xf32> to vector<16x16x64xf32>
    %153 = arith.mulf %148, %152 : vector<16x16x64xf32>
    %154 = arith.addf %146, %153 : vector<16x16x64xf32>
    %c1_96 = arith.constant 1 : index
    %c4_97 = arith.constant 4 : index
    %c6_98 = arith.constant 6 : index
    %c0_99 = arith.constant 0 : index
    %155 = vector.load %arg9[%c1_96, %c4_97, %c6_98, %c0_99] : memref<4x24x24x64xf32, #tpu.memory_space<vmem>>, vector<1x16x16x64xf32>
    %156 = vector.shape_cast %155 : vector<1x16x16x64xf32> to vector<16x16x64xf32>
    %157 = vector.extract_strided_slice %17 {offsets = [1, 1, 2, 0], sizes = [1, 1, 1, 64], strides = [1, 1, 1, 1]} : vector<4x3x3x64xf32> to vector<1x1x1x64xf32>
    %158 = vector.shape_cast %157 : vector<1x1x1x64xf32> to vector<64xf32>
    %159 = vector.shape_cast %158 : vector<64xf32> to vector<1x1x64xf32>
    %160 = vector.broadcast %159 : vector<1x1x64xf32> to vector<16x16x64xf32>
    %161 = arith.mulf %156, %160 : vector<16x16x64xf32>
    %162 = arith.addf %154, %161 : vector<16x16x64xf32>
    %c1_100 = arith.constant 1 : index
    %c6_101 = arith.constant 6 : index
    %c2_102 = arith.constant 2 : index
    %c0_103 = arith.constant 0 : index
    %163 = vector.load %arg9[%c1_100, %c6_101, %c2_102, %c0_103] : memref<4x24x24x64xf32, #tpu.memory_space<vmem>>, vector<1x16x16x64xf32>
    %164 = vector.shape_cast %163 : vector<1x16x16x64xf32> to vector<16x16x64xf32>
    %165 = vector.extract_strided_slice %17 {offsets = [1, 2, 0, 0], sizes = [1, 1, 1, 64], strides = [1, 1, 1, 1]} : vector<4x3x3x64xf32> to vector<1x1x1x64xf32>
    %166 = vector.shape_cast %165 : vector<1x1x1x64xf32> to vector<64xf32>
    %167 = vector.shape_cast %166 : vector<64xf32> to vector<1x1x64xf32>
    %168 = vector.broadcast %167 : vector<1x1x64xf32> to vector<16x16x64xf32>
    %169 = arith.mulf %164, %168 : vector<16x16x64xf32>
    %170 = arith.addf %162, %169 : vector<16x16x64xf32>
    %c1_104 = arith.constant 1 : index
    %c6_105 = arith.constant 6 : index
    %c4_106 = arith.constant 4 : index
    %c0_107 = arith.constant 0 : index
    %171 = vector.load %arg9[%c1_104, %c6_105, %c4_106, %c0_107] : memref<4x24x24x64xf32, #tpu.memory_space<vmem>>, vector<1x16x16x64xf32>
    %172 = vector.shape_cast %171 : vector<1x16x16x64xf32> to vector<16x16x64xf32>
    %173 = vector.extract_strided_slice %17 {offsets = [1, 2, 1, 0], sizes = [1, 1, 1, 64], strides = [1, 1, 1, 1]} : vector<4x3x3x64xf32> to vector<1x1x1x64xf32>
    %174 = vector.shape_cast %173 : vector<1x1x1x64xf32> to vector<64xf32>
    %175 = vector.shape_cast %174 : vector<64xf32> to vector<1x1x64xf32>
    %176 = vector.broadcast %175 : vector<1x1x64xf32> to vector<16x16x64xf32>
    %177 = arith.mulf %172, %176 : vector<16x16x64xf32>
    %178 = arith.addf %170, %177 : vector<16x16x64xf32>
    %c1_108 = arith.constant 1 : index
    %c6_109 = arith.constant 6 : index
    %c6_110 = arith.constant 6 : index
    %c0_111 = arith.constant 0 : index
    %179 = vector.load %arg9[%c1_108, %c6_109, %c6_110, %c0_111] : memref<4x24x24x64xf32, #tpu.memory_space<vmem>>, vector<1x16x16x64xf32>
    %180 = vector.shape_cast %179 : vector<1x16x16x64xf32> to vector<16x16x64xf32>
    %181 = vector.extract_strided_slice %17 {offsets = [1, 2, 2, 0], sizes = [1, 1, 1, 64], strides = [1, 1, 1, 1]} : vector<4x3x3x64xf32> to vector<1x1x1x64xf32>
    %182 = vector.shape_cast %181 : vector<1x1x1x64xf32> to vector<64xf32>
    %183 = vector.shape_cast %182 : vector<64xf32> to vector<1x1x64xf32>
    %184 = vector.broadcast %183 : vector<1x1x64xf32> to vector<16x16x64xf32>
    %185 = arith.mulf %180, %184 : vector<16x16x64xf32>
    %186 = arith.addf %178, %185 : vector<16x16x64xf32>
    %187 = vector.extract_strided_slice %18 {offsets = [1, 0], sizes = [1, 64], strides = [1, 1]} : vector<4x64xf32> to vector<1x64xf32>
    %188 = vector.shape_cast %187 : vector<1x64xf32> to vector<64xf32>
    %189 = vector.shape_cast %188 : vector<64xf32> to vector<1x1x64xf32>
    %190 = vector.broadcast %189 : vector<1x1x64xf32> to vector<16x16x64xf32>
    %191 = arith.addf %186, %190 : vector<16x16x64xf32>
    %cst_112 = arith.constant 0.000000e+00 : f32
    %192 = vector.broadcast %cst_112 : f32 to vector<16x16x64xf32>
    %193 = arith.maximumf %191, %192 : vector<16x16x64xf32>
    %194 = vector.extract_strided_slice %19 {offsets = [1, 0], sizes = [1, 64], strides = [1, 1]} : vector<4x64xf32> to vector<1x64xf32>
    %195 = vector.shape_cast %194 : vector<1x64xf32> to vector<64xf32>
    %196 = vector.shape_cast %195 : vector<64xf32> to vector<1x1x64xf32>
    %197 = vector.broadcast %196 : vector<1x1x64xf32> to vector<16x16x64xf32>
    %198 = arith.mulf %193, %197 : vector<16x16x64xf32>
    %cst_113 = arith.constant dense<0.000000e+00> : vector<16x16xf32>
    %199 = vector.multi_reduction <add>, %198, %cst_113 [2] : vector<16x16x64xf32> to vector<16x16xf32>
    %200 = arith.addf %110, %199 : vector<16x16xf32>
    %201 = vector.extract_strided_slice %8 {offsets = [0, 128], sizes = [256, 64], strides = [1, 1]} : vector<256x256xf32> to vector<256x64xf32>
    %202 = vector.shape_cast %201 : vector<256x64xf32> to vector<16x16x64xf32>
    %c2_114 = arith.constant 2 : index
    %c4_115 = arith.constant 4 : index
    %c4_116 = arith.constant 4 : index
    %c0_117 = arith.constant 0 : index
    %203 = vector.load %arg9[%c2_114, %c4_115, %c4_116, %c0_117] : memref<4x24x24x64xf32, #tpu.memory_space<vmem>>, vector<1x16x16x64xf32>
    %204 = vector.shape_cast %203 : vector<1x16x16x64xf32> to vector<16x16x64xf32>
    %205 = vector.shape_cast %202 : vector<16x16x64xf32> to vector<1x16x16x64xf32>
    tpu.vector_store %arg9[%c2_114, %c4_115, %c4_116, %c0_117], %205 {strides = array<i32>} : memref<4x24x24x64xf32, #tpu.memory_space<vmem>>, vector<1x16x16x64xf32>,
    %c2_118 = arith.constant 2 : index
    %c1_119 = arith.constant 1 : index
    %c1_120 = arith.constant 1 : index
    %c0_121 = arith.constant 0 : index
    %206 = vector.load %arg9[%c2_118, %c1_119, %c1_120, %c0_121] : memref<4x24x24x64xf32, #tpu.memory_space<vmem>>, vector<1x16x16x64xf32>
    %207 = vector.shape_cast %206 : vector<1x16x16x64xf32> to vector<16x16x64xf32>
    %208 = vector.extract_strided_slice %17 {offsets = [2, 0, 0, 0], sizes = [1, 1, 1, 64], strides = [1, 1, 1, 1]} : vector<4x3x3x64xf32> to vector<1x1x1x64xf32>
    %209 = vector.shape_cast %208 : vector<1x1x1x64xf32> to vector<64xf32>
    %210 = vector.shape_cast %209 : vector<64xf32> to vector<1x1x64xf32>
    %211 = vector.broadcast %210 : vector<1x1x64xf32> to vector<16x16x64xf32>
    %212 = arith.mulf %207, %211 : vector<16x16x64xf32>
    %c2_122 = arith.constant 2 : index
    %c1_123 = arith.constant 1 : index
    %c4_124 = arith.constant 4 : index
    %c0_125 = arith.constant 0 : index
    %213 = vector.load %arg9[%c2_122, %c1_123, %c4_124, %c0_125] : memref<4x24x24x64xf32, #tpu.memory_space<vmem>>, vector<1x16x16x64xf32>
    %214 = vector.shape_cast %213 : vector<1x16x16x64xf32> to vector<16x16x64xf32>
    %215 = vector.extract_strided_slice %17 {offsets = [2, 0, 1, 0], sizes = [1, 1, 1, 64], strides = [1, 1, 1, 1]} : vector<4x3x3x64xf32> to vector<1x1x1x64xf32>
    %216 = vector.shape_cast %215 : vector<1x1x1x64xf32> to vector<64xf32>
    %217 = vector.shape_cast %216 : vector<64xf32> to vector<1x1x64xf32>
    %218 = vector.broadcast %217 : vector<1x1x64xf32> to vector<16x16x64xf32>
    %219 = arith.mulf %214, %218 : vector<16x16x64xf32>
    %220 = arith.addf %212, %219 : vector<16x16x64xf32>
    %c2_126 = arith.constant 2 : index
    %c1_127 = arith.constant 1 : index
    %c7 = arith.constant 7 : index
    %c0_128 = arith.constant 0 : index
    %221 = vector.load %arg9[%c2_126, %c1_127, %c7, %c0_128] : memref<4x24x24x64xf32, #tpu.memory_space<vmem>>, vector<1x16x16x64xf32>
    %222 = vector.shape_cast %221 : vector<1x16x16x64xf32> to vector<16x16x64xf32>
    %223 = vector.extract_strided_slice %17 {offsets = [2, 0, 2, 0], sizes = [1, 1, 1, 64], strides = [1, 1, 1, 1]} : vector<4x3x3x64xf32> to vector<1x1x1x64xf32>
    %224 = vector.shape_cast %223 : vector<1x1x1x64xf32> to vector<64xf32>
    %225 = vector.shape_cast %224 : vector<64xf32> to vector<1x1x64xf32>
    %226 = vector.broadcast %225 : vector<1x1x64xf32> to vector<16x16x64xf32>
    %227 = arith.mulf %222, %226 : vector<16x16x64xf32>
    %228 = arith.addf %220, %227 : vector<16x16x64xf32>
    %c2_129 = arith.constant 2 : index
    %c4_130 = arith.constant 4 : index
    %c1_131 = arith.constant 1 : index
    %c0_132 = arith.constant 0 : index
    %229 = vector.load %arg9[%c2_129, %c4_130, %c1_131, %c0_132] : memref<4x24x24x64xf32, #tpu.memory_space<vmem>>, vector<1x16x16x64xf32>
    %230 = vector.shape_cast %229 : vector<1x16x16x64xf32> to vector<16x16x64xf32>
    %231 = vector.extract_strided_slice %17 {offsets = [2, 1, 0, 0], sizes = [1, 1, 1, 64], strides = [1, 1, 1, 1]} : vector<4x3x3x64xf32> to vector<1x1x1x64xf32>
    %232 = vector.shape_cast %231 : vector<1x1x1x64xf32> to vector<64xf32>
    %233 = vector.shape_cast %232 : vector<64xf32> to vector<1x1x64xf32>
    %234 = vector.broadcast %233 : vector<1x1x64xf32> to vector<16x16x64xf32>
    %235 = arith.mulf %230, %234 : vector<16x16x64xf32>
    %236 = arith.addf %228, %235 : vector<16x16x64xf32>
    %c2_133 = arith.constant 2 : index
    %c4_134 = arith.constant 4 : index
    %c4_135 = arith.constant 4 : index
    %c0_136 = arith.constant 0 : index
    %237 = vector.load %arg9[%c2_133, %c4_134, %c4_135, %c0_136] : memref<4x24x24x64xf32, #tpu.memory_space<vmem>>, vector<1x16x16x64xf32>
    %238 = vector.shape_cast %237 : vector<1x16x16x64xf32> to vector<16x16x64xf32>
    %239 = vector.extract_strided_slice %17 {offsets = [2, 1, 1, 0], sizes = [1, 1, 1, 64], strides = [1, 1, 1, 1]} : vector<4x3x3x64xf32> to vector<1x1x1x64xf32>
    %240 = vector.shape_cast %239 : vector<1x1x1x64xf32> to vector<64xf32>
    %241 = vector.shape_cast %240 : vector<64xf32> to vector<1x1x64xf32>
    %242 = vector.broadcast %241 : vector<1x1x64xf32> to vector<16x16x64xf32>
    %243 = arith.mulf %238, %242 : vector<16x16x64xf32>
    %244 = arith.addf %236, %243 : vector<16x16x64xf32>
    %c2_137 = arith.constant 2 : index
    %c4_138 = arith.constant 4 : index
    %c7_139 = arith.constant 7 : index
    %c0_140 = arith.constant 0 : index
    %245 = vector.load %arg9[%c2_137, %c4_138, %c7_139, %c0_140] : memref<4x24x24x64xf32, #tpu.memory_space<vmem>>, vector<1x16x16x64xf32>
    %246 = vector.shape_cast %245 : vector<1x16x16x64xf32> to vector<16x16x64xf32>
    %247 = vector.extract_strided_slice %17 {offsets = [2, 1, 2, 0], sizes = [1, 1, 1, 64], strides = [1, 1, 1, 1]} : vector<4x3x3x64xf32> to vector<1x1x1x64xf32>
    %248 = vector.shape_cast %247 : vector<1x1x1x64xf32> to vector<64xf32>
    %249 = vector.shape_cast %248 : vector<64xf32> to vector<1x1x64xf32>
    %250 = vector.broadcast %249 : vector<1x1x64xf32> to vector<16x16x64xf32>
    %251 = arith.mulf %246, %250 : vector<16x16x64xf32>
    %252 = arith.addf %244, %251 : vector<16x16x64xf32>
    %c2_141 = arith.constant 2 : index
    %c7_142 = arith.constant 7 : index
    %c1_143 = arith.constant 1 : index
    %c0_144 = arith.constant 0 : index
    %253 = vector.load %arg9[%c2_141, %c7_142, %c1_143, %c0_144] : memref<4x24x24x64xf32, #tpu.memory_space<vmem>>, vector<1x16x16x64xf32>
    %254 = vector.shape_cast %253 : vector<1x16x16x64xf32> to vector<16x16x64xf32>
    %255 = vector.extract_strided_slice %17 {offsets = [2, 2, 0, 0], sizes = [1, 1, 1, 64], strides = [1, 1, 1, 1]} : vector<4x3x3x64xf32> to vector<1x1x1x64xf32>
    %256 = vector.shape_cast %255 : vector<1x1x1x64xf32> to vector<64xf32>
    %257 = vector.shape_cast %256 : vector<64xf32> to vector<1x1x64xf32>
    %258 = vector.broadcast %257 : vector<1x1x64xf32> to vector<16x16x64xf32>
    %259 = arith.mulf %254, %258 : vector<16x16x64xf32>
    %260 = arith.addf %252, %259 : vector<16x16x64xf32>
    %c2_145 = arith.constant 2 : index
    %c7_146 = arith.constant 7 : index
    %c4_147 = arith.constant 4 : index
    %c0_148 = arith.constant 0 : index
    %261 = vector.load %arg9[%c2_145, %c7_146, %c4_147, %c0_148] : memref<4x24x24x64xf32, #tpu.memory_space<vmem>>, vector<1x16x16x64xf32>
    %262 = vector.shape_cast %261 : vector<1x16x16x64xf32> to vector<16x16x64xf32>
    %263 = vector.extract_strided_slice %17 {offsets = [2, 2, 1, 0], sizes = [1, 1, 1, 64], strides = [1, 1, 1, 1]} : vector<4x3x3x64xf32> to vector<1x1x1x64xf32>
    %264 = vector.shape_cast %263 : vector<1x1x1x64xf32> to vector<64xf32>
    %265 = vector.shape_cast %264 : vector<64xf32> to vector<1x1x64xf32>
    %266 = vector.broadcast %265 : vector<1x1x64xf32> to vector<16x16x64xf32>
    %267 = arith.mulf %262, %266 : vector<16x16x64xf32>
    %268 = arith.addf %260, %267 : vector<16x16x64xf32>
    %c2_149 = arith.constant 2 : index
    %c7_150 = arith.constant 7 : index
    %c7_151 = arith.constant 7 : index
    %c0_152 = arith.constant 0 : index
    %269 = vector.load %arg9[%c2_149, %c7_150, %c7_151, %c0_152] : memref<4x24x24x64xf32, #tpu.memory_space<vmem>>, vector<1x16x16x64xf32>
    %270 = vector.shape_cast %269 : vector<1x16x16x64xf32> to vector<16x16x64xf32>
    %271 = vector.extract_strided_slice %17 {offsets = [2, 2, 2, 0], sizes = [1, 1, 1, 64], strides = [1, 1, 1, 1]} : vector<4x3x3x64xf32> to vector<1x1x1x64xf32>
    %272 = vector.shape_cast %271 : vector<1x1x1x64xf32> to vector<64xf32>
    %273 = vector.shape_cast %272 : vector<64xf32> to vector<1x1x64xf32>
    %274 = vector.broadcast %273 : vector<1x1x64xf32> to vector<16x16x64xf32>
    %275 = arith.mulf %270, %274 : vector<16x16x64xf32>
    %276 = arith.addf %268, %275 : vector<16x16x64xf32>
    %277 = vector.extract_strided_slice %18 {offsets = [2, 0], sizes = [1, 64], strides = [1, 1]} : vector<4x64xf32> to vector<1x64xf32>
    %278 = vector.shape_cast %277 : vector<1x64xf32> to vector<64xf32>
    %279 = vector.shape_cast %278 : vector<64xf32> to vector<1x1x64xf32>
    %280 = vector.broadcast %279 : vector<1x1x64xf32> to vector<16x16x64xf32>
    %281 = arith.addf %276, %280 : vector<16x16x64xf32>
    %cst_153 = arith.constant 0.000000e+00 : f32
    %282 = vector.broadcast %cst_153 : f32 to vector<16x16x64xf32>
    %283 = arith.maximumf %281, %282 : vector<16x16x64xf32>
    %284 = vector.extract_strided_slice %19 {offsets = [2, 0], sizes = [1, 64], strides = [1, 1]} : vector<4x64xf32> to vector<1x64xf32>
    %285 = vector.shape_cast %284 : vector<1x64xf32> to vector<64xf32>
    %286 = vector.shape_cast %285 : vector<64xf32> to vector<1x1x64xf32>
    %287 = vector.broadcast %286 : vector<1x1x64xf32> to vector<16x16x64xf32>
    %288 = arith.mulf %283, %287 : vector<16x16x64xf32>
    %cst_154 = arith.constant dense<0.000000e+00> : vector<16x16xf32>
    %289 = vector.multi_reduction <add>, %288, %cst_154 [2] : vector<16x16x64xf32> to vector<16x16xf32>
    %290 = arith.addf %200, %289 : vector<16x16xf32>
    %291 = vector.extract_strided_slice %8 {offsets = [0, 192], sizes = [256, 64], strides = [1, 1]} : vector<256x256xf32> to vector<256x64xf32>
    %292 = vector.shape_cast %291 : vector<256x64xf32> to vector<16x16x64xf32>
    %c3_155 = arith.constant 3 : index
    %c4_156 = arith.constant 4 : index
    %c4_157 = arith.constant 4 : index
    %c0_158 = arith.constant 0 : index
    %293 = vector.load %arg9[%c3_155, %c4_156, %c4_157, %c0_158] : memref<4x24x24x64xf32, #tpu.memory_space<vmem>>, vector<1x16x16x64xf32>
    %294 = vector.shape_cast %293 : vector<1x16x16x64xf32> to vector<16x16x64xf32>
    %295 = vector.shape_cast %292 : vector<16x16x64xf32> to vector<1x16x16x64xf32>
    tpu.vector_store %arg9[%c3_155, %c4_156, %c4_157, %c0_158], %295 {strides = array<i32>} : memref<4x24x24x64xf32, #tpu.memory_space<vmem>>, vector<1x16x16x64xf32>,
    %c3_159 = arith.constant 3 : index
    %c0_160 = arith.constant 0 : index
    %c0_161 = arith.constant 0 : index
    %c0_162 = arith.constant 0 : index
    %296 = vector.load %arg9[%c3_159, %c0_160, %c0_161, %c0_162] : memref<4x24x24x64xf32, #tpu.memory_space<vmem>>, vector<1x16x16x64xf32>
    %297 = vector.shape_cast %296 : vector<1x16x16x64xf32> to vector<16x16x64xf32>
    %298 = vector.extract_strided_slice %17 {offsets = [3, 0, 0, 0], sizes = [1, 1, 1, 64], strides = [1, 1, 1, 1]} : vector<4x3x3x64xf32> to vector<1x1x1x64xf32>
    %299 = vector.shape_cast %298 : vector<1x1x1x64xf32> to vector<64xf32>
    %300 = vector.shape_cast %299 : vector<64xf32> to vector<1x1x64xf32>
    %301 = vector.broadcast %300 : vector<1x1x64xf32> to vector<16x16x64xf32>
    %302 = arith.mulf %297, %301 : vector<16x16x64xf32>
    %c3_163 = arith.constant 3 : index
    %c0_164 = arith.constant 0 : index
    %c4_165 = arith.constant 4 : index
    %c0_166 = arith.constant 0 : index
    %303 = vector.load %arg9[%c3_163, %c0_164, %c4_165, %c0_166] : memref<4x24x24x64xf32, #tpu.memory_space<vmem>>, vector<1x16x16x64xf32>
    %304 = vector.shape_cast %303 : vector<1x16x16x64xf32> to vector<16x16x64xf32>
    %305 = vector.extract_strided_slice %17 {offsets = [3, 0, 1, 0], sizes = [1, 1, 1, 64], strides = [1, 1, 1, 1]} : vector<4x3x3x64xf32> to vector<1x1x1x64xf32>
    %306 = vector.shape_cast %305 : vector<1x1x1x64xf32> to vector<64xf32>
    %307 = vector.shape_cast %306 : vector<64xf32> to vector<1x1x64xf32>
    %308 = vector.broadcast %307 : vector<1x1x64xf32> to vector<16x16x64xf32>
    %309 = arith.mulf %304, %308 : vector<16x16x64xf32>
    %310 = arith.addf %302, %309 : vector<16x16x64xf32>
    %c3_167 = arith.constant 3 : index
    %c0_168 = arith.constant 0 : index
    %c8 = arith.constant 8 : index
    %c0_169 = arith.constant 0 : index
    %311 = vector.load %arg9[%c3_167, %c0_168, %c8, %c0_169] : memref<4x24x24x64xf32, #tpu.memory_space<vmem>>, vector<1x16x16x64xf32>
    %312 = vector.shape_cast %311 : vector<1x16x16x64xf32> to vector<16x16x64xf32>
    %313 = vector.extract_strided_slice %17 {offsets = [3, 0, 2, 0], sizes = [1, 1, 1, 64], strides = [1, 1, 1, 1]} : vector<4x3x3x64xf32> to vector<1x1x1x64xf32>
    %314 = vector.shape_cast %313 : vector<1x1x1x64xf32> to vector<64xf32>
    %315 = vector.shape_cast %314 : vector<64xf32> to vector<1x1x64xf32>
    %316 = vector.broadcast %315 : vector<1x1x64xf32> to vector<16x16x64xf32>
    %317 = arith.mulf %312, %316 : vector<16x16x64xf32>
    %318 = arith.addf %310, %317 : vector<16x16x64xf32>
    %c3_170 = arith.constant 3 : index
    %c4_171 = arith.constant 4 : index
    %c0_172 = arith.constant 0 : index
    %c0_173 = arith.constant 0 : index
    %319 = vector.load %arg9[%c3_170, %c4_171, %c0_172, %c0_173] : memref<4x24x24x64xf32, #tpu.memory_space<vmem>>, vector<1x16x16x64xf32>
    %320 = vector.shape_cast %319 : vector<1x16x16x64xf32> to vector<16x16x64xf32>
    %321 = vector.extract_strided_slice %17 {offsets = [3, 1, 0, 0], sizes = [1, 1, 1, 64], strides = [1, 1, 1, 1]} : vector<4x3x3x64xf32> to vector<1x1x1x64xf32>
    %322 = vector.shape_cast %321 : vector<1x1x1x64xf32> to vector<64xf32>
    %323 = vector.shape_cast %322 : vector<64xf32> to vector<1x1x64xf32>
    %324 = vector.broadcast %323 : vector<1x1x64xf32> to vector<16x16x64xf32>
    %325 = arith.mulf %320, %324 : vector<16x16x64xf32>
    %326 = arith.addf %318, %325 : vector<16x16x64xf32>
    %c3_174 = arith.constant 3 : index
    %c4_175 = arith.constant 4 : index
    %c4_176 = arith.constant 4 : index
    %c0_177 = arith.constant 0 : index
    %327 = vector.load %arg9[%c3_174, %c4_175, %c4_176, %c0_177] : memref<4x24x24x64xf32, #tpu.memory_space<vmem>>, vector<1x16x16x64xf32>
    %328 = vector.shape_cast %327 : vector<1x16x16x64xf32> to vector<16x16x64xf32>
    %329 = vector.extract_strided_slice %17 {offsets = [3, 1, 1, 0], sizes = [1, 1, 1, 64], strides = [1, 1, 1, 1]} : vector<4x3x3x64xf32> to vector<1x1x1x64xf32>
    %330 = vector.shape_cast %329 : vector<1x1x1x64xf32> to vector<64xf32>
    %331 = vector.shape_cast %330 : vector<64xf32> to vector<1x1x64xf32>
    %332 = vector.broadcast %331 : vector<1x1x64xf32> to vector<16x16x64xf32>
    %333 = arith.mulf %328, %332 : vector<16x16x64xf32>
    %334 = arith.addf %326, %333 : vector<16x16x64xf32>
    %c3_178 = arith.constant 3 : index
    %c4_179 = arith.constant 4 : index
    %c8_180 = arith.constant 8 : index
    %c0_181 = arith.constant 0 : index
    %335 = vector.load %arg9[%c3_178, %c4_179, %c8_180, %c0_181] : memref<4x24x24x64xf32, #tpu.memory_space<vmem>>, vector<1x16x16x64xf32>
    %336 = vector.shape_cast %335 : vector<1x16x16x64xf32> to vector<16x16x64xf32>
    %337 = vector.extract_strided_slice %17 {offsets = [3, 1, 2, 0], sizes = [1, 1, 1, 64], strides = [1, 1, 1, 1]} : vector<4x3x3x64xf32> to vector<1x1x1x64xf32>
    %338 = vector.shape_cast %337 : vector<1x1x1x64xf32> to vector<64xf32>
    %339 = vector.shape_cast %338 : vector<64xf32> to vector<1x1x64xf32>
    %340 = vector.broadcast %339 : vector<1x1x64xf32> to vector<16x16x64xf32>
    %341 = arith.mulf %336, %340 : vector<16x16x64xf32>
    %342 = arith.addf %334, %341 : vector<16x16x64xf32>
    %c3_182 = arith.constant 3 : index
    %c8_183 = arith.constant 8 : index
    %c0_184 = arith.constant 0 : index
    %c0_185 = arith.constant 0 : index
    %343 = vector.load %arg9[%c3_182, %c8_183, %c0_184, %c0_185] : memref<4x24x24x64xf32, #tpu.memory_space<vmem>>, vector<1x16x16x64xf32>
    %344 = vector.shape_cast %343 : vector<1x16x16x64xf32> to vector<16x16x64xf32>
    %345 = vector.extract_strided_slice %17 {offsets = [3, 2, 0, 0], sizes = [1, 1, 1, 64], strides = [1, 1, 1, 1]} : vector<4x3x3x64xf32> to vector<1x1x1x64xf32>
    %346 = vector.shape_cast %345 : vector<1x1x1x64xf32> to vector<64xf32>
    %347 = vector.shape_cast %346 : vector<64xf32> to vector<1x1x64xf32>
    %348 = vector.broadcast %347 : vector<1x1x64xf32> to vector<16x16x64xf32>
    %349 = arith.mulf %344, %348 : vector<16x16x64xf32>
    %350 = arith.addf %342, %349 : vector<16x16x64xf32>
    %c3_186 = arith.constant 3 : index
    %c8_187 = arith.constant 8 : index
    %c4_188 = arith.constant 4 : index
    %c0_189 = arith.constant 0 : index
    %351 = vector.load %arg9[%c3_186, %c8_187, %c4_188, %c0_189] : memref<4x24x24x64xf32, #tpu.memory_space<vmem>>, vector<1x16x16x64xf32>
    %352 = vector.shape_cast %351 : vector<1x16x16x64xf32> to vector<16x16x64xf32>
    %353 = vector.extract_strided_slice %17 {offsets = [3, 2, 1, 0], sizes = [1, 1, 1, 64], strides = [1, 1, 1, 1]} : vector<4x3x3x64xf32> to vector<1x1x1x64xf32>
    %354 = vector.shape_cast %353 : vector<1x1x1x64xf32> to vector<64xf32>
    %355 = vector.shape_cast %354 : vector<64xf32> to vector<1x1x64xf32>
    %356 = vector.broadcast %355 : vector<1x1x64xf32> to vector<16x16x64xf32>
    %357 = arith.mulf %352, %356 : vector<16x16x64xf32>
    %358 = arith.addf %350, %357 : vector<16x16x64xf32>
    %c3_190 = arith.constant 3 : index
    %c8_191 = arith.constant 8 : index
    %c8_192 = arith.constant 8 : index
    %c0_193 = arith.constant 0 : index
    %359 = vector.load %arg9[%c3_190, %c8_191, %c8_192, %c0_193] : memref<4x24x24x64xf32, #tpu.memory_space<vmem>>, vector<1x16x16x64xf32>
    %360 = vector.shape_cast %359 : vector<1x16x16x64xf32> to vector<16x16x64xf32>
    %361 = vector.extract_strided_slice %17 {offsets = [3, 2, 2, 0], sizes = [1, 1, 1, 64], strides = [1, 1, 1, 1]} : vector<4x3x3x64xf32> to vector<1x1x1x64xf32>
    %362 = vector.shape_cast %361 : vector<1x1x1x64xf32> to vector<64xf32>
    %363 = vector.shape_cast %362 : vector<64xf32> to vector<1x1x64xf32>
    %364 = vector.broadcast %363 : vector<1x1x64xf32> to vector<16x16x64xf32>
    %365 = arith.mulf %360, %364 : vector<16x16x64xf32>
    %366 = arith.addf %358, %365 : vector<16x16x64xf32>
    %367 = vector.extract_strided_slice %18 {offsets = [3, 0], sizes = [1, 64], strides = [1, 1]} : vector<4x64xf32> to vector<1x64xf32>
    %368 = vector.shape_cast %367 : vector<1x64xf32> to vector<64xf32>
    %369 = vector.shape_cast %368 : vector<64xf32> to vector<1x1x64xf32>
    %370 = vector.broadcast %369 : vector<1x1x64xf32> to vector<16x16x64xf32>
    %371 = arith.addf %366, %370 : vector<16x16x64xf32>
    %cst_194 = arith.constant 0.000000e+00 : f32
    %372 = vector.broadcast %cst_194 : f32 to vector<16x16x64xf32>
    %373 = arith.maximumf %371, %372 : vector<16x16x64xf32>
    %374 = vector.extract_strided_slice %19 {offsets = [3, 0], sizes = [1, 64], strides = [1, 1]} : vector<4x64xf32> to vector<1x64xf32>
    %375 = vector.shape_cast %374 : vector<1x64xf32> to vector<64xf32>
    %376 = vector.shape_cast %375 : vector<64xf32> to vector<1x1x64xf32>
    %377 = vector.broadcast %376 : vector<1x1x64xf32> to vector<16x16x64xf32>
    %378 = arith.mulf %373, %377 : vector<16x16x64xf32>
    %cst_195 = arith.constant dense<0.000000e+00> : vector<16x16xf32>
    %379 = vector.multi_reduction <add>, %378, %cst_195 [2] : vector<16x16x64xf32> to vector<16x16xf32>
    %380 = arith.addf %290, %379 : vector<16x16xf32>
    %c0_196 = arith.constant 0 : index
    %c0_197 = arith.constant 0 : index
    %381 = vector.load %arg7[%c0_196, %c0_197] : memref<1x1xf32, #tpu.memory_space<vmem>>, vector<1x1xf32>
    %382 = vector.extract %381[0, 0] : f32 from vector<1x1xf32>
    %383 = vector.broadcast %382 : f32 to vector<16x16xf32>
    %384 = arith.addf %380, %383 : vector<16x16xf32>
    %cst_198 = arith.constant 0.000000e+00 : f32
    %385 = vector.broadcast %cst_198 : f32 to vector<16x16xf32>
    %386 = arith.maximumf %384, %385 : vector<16x16xf32>
    %387 = vector.shape_cast %386 : vector<16x16xf32> to vector<1x16x16xf32>
    %c0_199 = arith.constant 0 : index
    %c0_200 = arith.constant 0 : index
    %c0_201 = arith.constant 0 : index
    %388 = vector.load %arg8[%c0_199, %c0_200, %c0_201] : memref<1x16x16xf32, #tpu.memory_space<vmem>>, vector<1x16x16xf32>
    tpu.vector_store %arg8[%c0_199, %c0_200, %c0_201], %387 {strides = array<i32>} : memref<1x16x16xf32, #tpu.memory_space<vmem>>, vector<1x16x16xf32>,
    return
  }
  func.func @transform_0(%arg0: i32) -> (i32, i32, i32, i32) {
    %c0_i32 = arith.constant 0 : i32
    %c0_i32_0 = arith.constant 0 : i32
    %c0_i32_1 = arith.constant 0 : i32
    %c0_i32_2 = arith.constant 0 : i32
    return %arg0, %c0_i32, %c0_i32_0, %c0_i32_1 : i32, i32, i32, i32
  }
  func.func @transform_1(%arg0: i32) -> (i32, i32) {
    %c0_i32 = arith.constant 0 : i32
    %c0_i32_0 = arith.constant 0 : i32
    %c0_i32_1 = arith.constant 0 : i32
    return %c0_i32, %c0_i32_0 : i32, i32
  }
  func.func @transform_2(%arg0: i32) -> (i32, i32) {
    %c0_i32 = arith.constant 0 : i32
    %c0_i32_0 = arith.constant 0 : i32
    %c0_i32_1 = arith.constant 0 : i32
    return %c0_i32, %c0_i32_0 : i32, i32
  }
  func.func @transform_3(%arg0: i32) -> (i32, i32, i32, i32) {
    %c0_i32 = arith.constant 0 : i32
    %c0_i32_0 = arith.constant 0 : i32
    %c0_i32_1 = arith.constant 0 : i32
    %c0_i32_2 = arith.constant 0 : i32
    %c0_i32_3 = arith.constant 0 : i32
    return %c0_i32, %c0_i32_0, %c0_i32_1, %c0_i32_2 : i32, i32, i32, i32
  }
  func.func @transform_4(%arg0: i32) -> (i32, i32) {
    %c0_i32 = arith.constant 0 : i32
    %c0_i32_0 = arith.constant 0 : i32
    %c0_i32_1 = arith.constant 0 : i32
    return %c0_i32, %c0_i32_0 : i32, i32
  }
  func.func @transform_5(%arg0: i32) -> (i32, i32) {
    %c0_i32 = arith.constant 0 : i32
    %c0_i32_0 = arith.constant 0 : i32
    %c0_i32_1 = arith.constant 0 : i32
    return %c0_i32, %c0_i32_0 : i32, i32
  }
  func.func @transform_6(%arg0: i32) -> (i32, i32) {
    %c0_i32 = arith.constant 0 : i32
    %c0_i32_0 = arith.constant 0 : i32
    %c0_i32_1 = arith.constant 0 : i32
    return %c0_i32, %c0_i32_0 : i32, i32
  }
  func.func @transform_7(%arg0: i32) -> (i32, i32, i32) {
    %c0_i32 = arith.constant 0 : i32
    %c0_i32_0 = arith.constant 0 : i32
    %c0_i32_1 = arith.constant 0 : i32
    return %arg0, %c0_i32, %c0_i32_0 : i32, i32, i32
  }
}

</mosaic_0001>

<llo_original>
// kernel: tpu_custom_call.1
$region0: #{tpu_custom_call.1}
  #allocation0 [shape = 'u32[]', space=smem, size = 0x4, offset = 0x4, fixed_abs, tag = 'smem constant byte address 0x4 - core index']
  #allocation1 [shape = 'u32[144,128]{1,0:T(1,128)}', space=vmem, size = 0x12000, scoped, tag = 'internal scratch']
  #allocation2 [shape = 'f32[4,24,24,64]{3,2,1,0:T(8,128)}', space=vmem, size = 0x120000, scoped, tag = 'scratch operand']
  #allocation3 [shape = 'f32[1,1]{1,0:T(1,128)S(1)}', space=vmem, size = 0x200, scoped, tag = 'scoped memory for tpu_custom_call.1']
  %s0 = inlined_call_operand.hbm [shape: f32[2,16,16,4], index: 0, kind: input, shape index: {}]
  %s1 = inlined_call_operand.hbm [shape: f32[4,256], index: 1, kind: input, shape index: {}]
  %s2 = inlined_call_operand.hbm [shape: f32[1,256], index: 2, kind: input, shape index: {}]
  %s3 = inlined_call_operand.hbm [shape: f32[4,3,3,64], index: 3, kind: input, shape index: {}]
  %s4 = inlined_call_operand.hbm [shape: f32[4,64], index: 4, kind: input, shape index: {}]
  %s5 = inlined_call_operand.hbm [shape: f32[4,64], index: 5, kind: input, shape index: {}]
  %s6 = inlined_call_operand.<no memory space> [shape: f32[1,1], index: 6, kind: input, shape index: {}]
  %s7 = inlined_call_operand.hbm [shape: f32[2,16,16], index: 7, kind: output, shape index: {}]
  %s8 = sld [smem:[#allocation0]]
  $region85: #{tpu_custom_call.1} parent=0
    _
  %s10 = ssub.s32 1, %s8
  %s11 = scalar_select 0, %s10, %s8
  %v12 = vstv %s6
  %13 = vst [vmem:[#allocation3] sm:$0x1] %v12
  $region1: #{tpu_custom_call.1} parent=0
    #allocation4 [shape = 'u8[262144]{0}', space=vmem, size = 0x40000, scoped, tag = 'input window, operand 0']
    #allocation5 [shape = 's32[2]{0}', space=sflag, size = 0x8, scoped, tag = 'scoped memory for tpu_custom_call.1']
    #allocation6 [shape = 's32[2]{0}', space=sflag, size = 0x8, scoped, tag = 'scoped memory for tpu_custom_call.1']
    #allocation7 [shape = 'u8[4096]{0}', space=vmem, size = 0x1000, scoped, tag = 'input window, operand 1, single buffered']
    #allocation8 [shape = 's32[1]{0}', space=sflag, size = 0x4, scoped, tag = 'scoped memory for tpu_custom_call.1']
    #allocation9 [shape = 'u8[1024]{0}', space=vmem, size = 0x400, scoped, tag = 'input window, operand 2, single buffered']
    #allocation10 [shape = 'u8[24576]{0}', space=vmem, size = 0x6000, scoped, tag = 'input window, operand 3, single buffered']
    #allocation11 [shape = 's32[1]{0}', space=sflag, size = 0x4, scoped, tag = 'scoped memory for tpu_custom_call.1']
    #allocation12 [shape = 'u8[2048]{0}', space=vmem, size = 0x800, scoped, tag = 'input window, operand 4, single buffered']
    #allocation13 [shape = 'u8[2048]{0}', space=vmem, size = 0x800, scoped, tag = 'input window, operand 5, single buffered']
    #allocation14 [shape = 's32[1]{0}', space=sflag, size = 0x4, scoped, tag = 'scoped memory for tpu_custom_call.1']
    #allocation15 [shape = 'u8[16384]{0}', space=vmem, size = 0x4000, scoped, tag = 'output window, operand 0']
    %14 = vsyncpa [#allocation5], 0
    %s15 = scalar_lea.sflag [#allocation5], 1
    %16 = vsyncpa %s15, 0
    %17 = vsyncpa [#allocation8], 0
    %18 = vsyncpa [#allocation11], 0
    %19 = vsyncpa [#allocation14], 0
    %20 = vsyncpa [#allocation6], 0
    %s21 = scalar_lea.sflag [#allocation6], 1
    %22 = vsyncpa %s21, 0
    loop: start=0, step=1, limit=4
    $region2: #{tpu_custom_call.1} parent=1 // loop_pre_header
      _
    $region3: #{tpu_custom_call.1} parent=1 // loop_header
      %s24 = sphi 0, %s28
      %p25 = scmp.ge.s32.totalorder %s24, 4
      %s34 = sphi 0, %s36
      %s37 = sphi 0, %s34
      %s38 = sphi 0, %s37
      %s54 = sphi 0, %s38
      %s58 = sphi 0, %s58
      %s60 = sphi 0, %s58
      %s61 = sphi 0, %s60
      %s75 = sphi 0, %s61
      %s79 = sphi 0, %s79
      %s81 = sphi 0, %s79
      %s82 = sphi 0, %s81
      %s96 = sphi 0, %s82
      %s100 = sphi 0, %s100
      %s102 = sphi 0, %s100
      %s103 = sphi 0, %s102
      %s117 = sphi 0, %s103
      %s121 = sphi 0, %s121
      %s123 = sphi 0, %s121
      %s124 = sphi 0, %s123
      %s138 = sphi 0, %s124
      %s142 = sphi 0, %s142
      %s144 = sphi 0, %s142
      %s145 = sphi 0, %s144
      %s159 = sphi 0, %s145
      %s163 = sphi 0, %s163
      %s165 = sphi 0, %s163
      %s166 = sphi 0, %s165
      %s180 = sphi 0, %s166
      %s186 = sphi 0, %s188
      %s189 = sphi 0, %s186
      %s190 = sphi 0, %s189
      %s206 = sphi 0, %s190
    $region4: #{tpu_custom_call.1} parent=1 // loop_header_branch
      %27 = sbr.rel (%p25) target = $region8
    $region5: #{tpu_custom_call.1} parent=1 // loop_body
      %s29 = ssub.s32 %s24, 1
      %s30 = ssub.s32 %s24, 2
      %s31 = sadd.s32 %s24, 1
      %s32 = ssub.s32 %s24, %s31
      %p33 = scmp.eq.s32.totalorder %s32, 0
      %s35 = sadd.s32 %s34, 1
      %s36 = scalar_select %p33, %s34, %s35
      %p39 = pneg %p33
      %p40 = scmp.eq.s32.totalorder %s24, 1
      %p41 = por %p39, %p40
      %p42 = scmp.ne.s32.totalorder %s34, %s37
      %p43 = scmp.eq.s32.totalorder %s24, 0
      %p44 = por %p42, %p43
      %p45 = scmp.ne.s32.totalorder %s34, %s37
      %p46 = scmp.eq.s32.totalorder %s29, 1
      %p47 = por %p45, %p46
      %p48 = scmp.ne.s32.totalorder %s37, %s38
      %p49 = scmp.eq.s32.totalorder %s29, 0
      %p50 = por %p48, %p49
      %p51 = scmp.ne.s32.totalorder %s37, %s38
      %p52 = scmp.eq.s32.totalorder %s30, 1
      %p53 = por %p51, %p52
      %p55 = scmp.ne.s32.totalorder %s38, %s54
      %p56 = scmp.eq.s32.totalorder %s30, 0
      %p57 = por %p55, %p56
      %s59 = sadd.s32 %s58, 1
      %p62 = scmp.eq.s32.totalorder %s24, 1
      %p63 = scmp.ne.s32.totalorder %s58, %s60
      %p64 = scmp.eq.s32.totalorder %s24, 0
      %p65 = por %p63, %p64
      %p66 = scmp.ne.s32.totalorder %s58, %s60
      %p67 = scmp.eq.s32.totalorder %s29, 1
      %p68 = por %p66, %p67
      %p69 = scmp.ne.s32.totalorder %s60, %s61
      %p70 = scmp.eq.s32.totalorder %s29, 0
      %p71 = por %p69, %p70
      %p72 = scmp.ne.s32.totalorder %s60, %s61
      %p73 = scmp.eq.s32.totalorder %s30, 1
      %p74 = por %p72, %p73
      %p76 = scmp.ne.s32.totalorder %s61, %s75
      %p77 = scmp.eq.s32.totalorder %s30, 0
      %p78 = por %p76, %p77
      %s80 = sadd.s32 %s79, 1
      %p83 = scmp.eq.s32.totalorder %s24, 1
      %p84 = scmp.ne.s32.totalorder %s79, %s81
      %p85 = scmp.eq.s32.totalorder %s24, 0
      %p86 = por %p84, %p85
      %p87 = scmp.ne.s32.totalorder %s79, %s81
      %p88 = scmp.eq.s32.totalorder %s29, 1
      %p89 = por %p87, %p88
      %p90 = scmp.ne.s32.totalorder %s81, %s82
      %p91 = scmp.eq.s32.totalorder %s29, 0
      %p92 = por %p90, %p91
      %p93 = scmp.ne.s32.totalorder %s81, %s82
      %p94 = scmp.eq.s32.totalorder %s30, 1
      %p95 = por %p93, %p94
      %p97 = scmp.ne.s32.totalorder %s82, %s96
      %p98 = scmp.eq.s32.totalorder %s30, 0
      %p99 = por %p97, %p98
      %s101 = sadd.s32 %s100, 1
      %p104 = scmp.eq.s32.totalorder %s24, 1
      %p105 = scmp.ne.s32.totalorder %s100, %s102
      %p106 = scmp.eq.s32.totalorder %s24, 0
      %p107 = por %p105, %p106
      %p108 = scmp.ne.s32.totalorder %s100, %s102
      %p109 = scmp.eq.s32.totalorder %s29, 1
      %p110 = por %p108, %p109
      %p111 = scmp.ne.s32.totalorder %s102, %s103
      %p112 = scmp.eq.s32.totalorder %s29, 0
      %p113 = por %p111, %p112
      %p114 = scmp.ne.s32.totalorder %s102, %s103
      %p115 = scmp.eq.s32.totalorder %s30, 1
      %p116 = por %p114, %p115
      %p118 = scmp.ne.s32.totalorder %s103, %s117
      %p119 = scmp.eq.s32.totalorder %s30, 0
      %p120 = por %p118, %p119
      %s122 = sadd.s32 %s121, 1
      %p125 = scmp.eq.s32.totalorder %s24, 1
      %p126 = scmp.ne.s32.totalorder %s121, %s123
      %p127 = scmp.eq.s32.totalorder %s24, 0
      %p128 = por %p126, %p127
      %p129 = scmp.ne.s32.totalorder %s121, %s123
      %p130 = scmp.eq.s32.totalorder %s29, 1
      %p131 = por %p129, %p130
      %p132 = scmp.ne.s32.totalorder %s123, %s124
      %p133 = scmp.eq.s32.totalorder %s29, 0
      %p134 = por %p132, %p133
      %p135 = scmp.ne.s32.totalorder %s123, %s124
      %p136 = scmp.eq.s32.totalorder %s30, 1
      %p137 = por %p135, %p136
      %p139 = scmp.ne.s32.totalorder %s124, %s138
      %p140 = scmp.eq.s32.totalorder %s30, 0
      %p141 = por %p139, %p140
      %s143 = sadd.s32 %s142, 1
      %p146 = scmp.eq.s32.totalorder %s24, 1
      %p147 = scmp.ne.s32.totalorder %s142, %s144
      %p148 = scmp.eq.s32.totalorder %s24, 0
      %p149 = por %p147, %p148
      %p150 = scmp.ne.s32.totalorder %s142, %s144
      %p151 = scmp.eq.s32.totalorder %s29, 1
      %p152 = por %p150, %p151
      %p153 = scmp.ne.s32.totalorder %s144, %s145
      %p154 = scmp.eq.s32.totalorder %s29, 0
      %p155 = por %p153, %p154
      %p156 = scmp.ne.s32.totalorder %s144, %s145
      %p157 = scmp.eq.s32.totalorder %s30, 1
      %p158 = por %p156, %p157
      %p160 = scmp.ne.s32.totalorder %s145, %s159
      %p161 = scmp.eq.s32.totalorder %s30, 0
      %p162 = por %p160, %p161
      %s164 = sadd.s32 %s163, 1
      %p167 = scmp.eq.s32.totalorder %s24, 1
      %p168 = scmp.ne.s32.totalorder %s163, %s165
      %p169 = scmp.eq.s32.totalorder %s24, 0
      %p170 = por %p168, %p169
      %p171 = scmp.ne.s32.totalorder %s163, %s165
      %p172 = scmp.eq.s32.totalorder %s29, 1
      %p173 = por %p171, %p172
      %p174 = scmp.ne.s32.totalorder %s165, %s166
      %p175 = scmp.eq.s32.totalorder %s29, 0
      %p176 = por %p174, %p175
      %p177 = scmp.ne.s32.totalorder %s165, %s166
      %p178 = scmp.eq.s32.totalorder %s30, 1
      %p179 = por %p177, %p178
      %p181 = scmp.ne.s32.totalorder %s166, %s180
      %p182 = scmp.eq.s32.totalorder %s30, 0
      %p183 = por %p181, %p182
      %s184 = ssub.s32 %s24, %s31
      %p185 = scmp.eq.s32.totalorder %s184, 0
      %s187 = sadd.s32 %s186, 1
      %s188 = scalar_select %p185, %s186, %s187
      %p191 = pneg %p185
      %p192 = scmp.eq.s32.totalorder %s24, 1
      %p193 = por %p191, %p192
      %p194 = scmp.ne.s32.totalorder %s186, %s189
      %p195 = scmp.eq.s32.totalorder %s24, 0
      %p196 = por %p194, %p195
      %p197 = scmp.ne.s32.totalorder %s186, %s189
      %p198 = scmp.eq.s32.totalorder %s29, 1
      %p199 = por %p197, %p198
      %p200 = scmp.ne.s32.totalorder %s189, %s190
      %p201 = scmp.eq.s32.totalorder %s29, 0
      %p202 = por %p200, %p201
      %p203 = scmp.ne.s32.totalorder %s189, %s190
      %p204 = scmp.eq.s32.totalorder %s30, 1
      %p205 = por %p203, %p204
      %p207 = scmp.ne.s32.totalorder %s190, %s206
      %p208 = scmp.eq.s32.totalorder %s30, 0
      %p209 = por %p207, %p208
      %p210 = scmp.le.s32.totalorder 1, %s24
      %p211 = scmp.lt.s32.totalorder %s24, 3
      %p212 = pnand %p210, %p211
      %p213 = pneg %p212
      // Predicated region
      $region9: #{tpu_custom_call.1} parent=5 // pred_check
        _
      $region10: #{tpu_custom_call.1} parent=5 // pred_check_branch
        %215 = sbr.rel (%p212) target = $region12
      $region11: #{tpu_custom_call.1} parent=5 // pred_region
        %s216 = ssub.s32 %s24, 1
        // Predicated region
        $region13: #{tpu_custom_call.1} parent=11 // pred_check
          %p217 = pneg %p71
        $region14: #{tpu_custom_call.1} parent=11 // pred_check_branch
          %219 = sbr.rel (%p217) target = $region16
        $region15: #{tpu_custom_call.1} parent=11 // pred_region
          %s221 = ssub.s32 128, 128
          %222 = vsyncadd [#allocation8], %s221
          %s224 = sshll.u32 [#allocation7], 4
          %s225 = int_to_ptr.vmem [resolvable:$true] %s224
          %227 = dma.hbm_to_vmem [thread:$0]  %s1, 128, %s225, [#allocation8]
        $region16: #{tpu_custom_call.1} parent=11 // pred_fallthru
          _
        // Predicated region
        $region17: #{tpu_custom_call.1} parent=11 // pred_check
          %p228 = pneg %p92
        $region18: #{tpu_custom_call.1} parent=11 // pred_check_branch
          %230 = sbr.rel (%p228) target = $region20
        $region19: #{tpu_custom_call.1} parent=11 // pred_region
          %s232 = ssub.s32 32, 32
          %233 = vsyncadd [#allocation8], %s232
          %s235 = sshll.u32 [#allocation9], 4
          %s236 = int_to_ptr.vmem [resolvable:$true] %s235
          %238 = dma.hbm_to_vmem [thread:$0]  %s2, 32, %s236, [#allocation8]
        $region20: #{tpu_custom_call.1} parent=11 // pred_fallthru
          _
        // Predicated region
        $region21: #{tpu_custom_call.1} parent=11 // pred_check
          %p239 = pneg %p113
        $region22: #{tpu_custom_call.1} parent=11 // pred_check_branch
          %241 = sbr.rel (%p239) target = $region24
        $region23: #{tpu_custom_call.1} parent=11 // pred_region
          %s243 = ssub.s32 768, 768
          %244 = vsyncadd [#allocation11], %s243
          %s245 = sshll.u32 [#allocation10], 4
          %s246 = int_to_ptr.vmem [resolvable:$true] %s245
          %251 = dma.hbm_to_vmem [thread:$0]  %s3, 768, %s246, [#allocation11], 64, 64, 4
        $region24: #{tpu_custom_call.1} parent=11 // pred_fallthru
          _
        // Predicated region
        $region25: #{tpu_custom_call.1} parent=11 // pred_check
          %p252 = pneg %p134
        $region26: #{tpu_custom_call.1} parent=11 // pred_check_branch
          %254 = sbr.rel (%p252) target = $region28
        $region27: #{tpu_custom_call.1} parent=11 // pred_region
          %s256 = ssub.s32 64, 64
          %257 = vsyncadd [#allocation11], %s256
          %s259 = sshll.u32 [#allocation12], 4
          %s260 = int_to_ptr.vmem [resolvable:$true] %s259
          %262 = dma.hbm_to_vmem [thread:$0]  %s4, 64, %s260, [#allocation11]
        $region28: #{tpu_custom_call.1} parent=11 // pred_fallthru
          _
        // Predicated region
        $region29: #{tpu_custom_call.1} parent=11 // pred_check
          %p263 = pneg %p155
        $region30: #{tpu_custom_call.1} parent=11 // pred_check_branch
          %265 = sbr.rel (%p263) target = $region32
        $region31: #{tpu_custom_call.1} parent=11 // pred_region
          %s267 = ssub.s32 64, 64
          %268 = vsyncadd [#allocation14], %s267
          %s270 = sshll.u32 [#allocation13], 4
          %s271 = int_to_ptr.vmem [resolvable:$true] %s270
          %273 = dma.hbm_to_vmem [thread:$0]  %s5, 64, %s271, [#allocation14]
        $region32: #{tpu_custom_call.1} parent=11 // pred_fallthru
          _
        // Predicated region
        $region33: #{tpu_custom_call.1} parent=11 // pred_check
          %p274 = pneg %p176
        $region34: #{tpu_custom_call.1} parent=11 // pred_check_branch
          %276 = sbr.rel (%p274) target = $region36
        $region35: #{tpu_custom_call.1} parent=11 // pred_region
          _
        $region36: #{tpu_custom_call.1} parent=11 // pred_fallthru
          _
      $region12: #{tpu_custom_call.1} parent=5 // pred_fallthru
        _
      %p277 = scmp.lt.s32.totalorder %s24, 2
      // Predicated region
      $region37: #{tpu_custom_call.1} parent=5 // pred_check
        %p278 = pneg %p277
      $region38: #{tpu_custom_call.1} parent=5 // pred_check_branch
        %280 = sbr.rel (%p278) target = $region40
      $region39: #{tpu_custom_call.1} parent=5 // pred_region
        // Predicated region
        $region41: #{tpu_custom_call.1} parent=39 // pred_check
          %p281 = pneg %p44
        $region42: #{tpu_custom_call.1} parent=39 // pred_check_branch
          %283 = sbr.rel (%p281) target = $region44
        $region43: #{tpu_custom_call.1} parent=39 // pred_region
          %s284 = sand.u32 %s34, 1
          %s285 = scalar_lea.sflag [#allocation5], %s284
          %s286 = sand.u32 %s34, 1
          %s287 = smul.addr %s286, 256
          %s288 = scalar_lea.vmem [#allocation4], %s287
          %s290 = ssub.s32 4096, 4096
          %291 = vsyncadd %s285, %s290
          %s292 = smul.addr %s24, 32
          %s293 = smul.addr %s292, 128
          %s294 = scalar_lea.hbm %s0, %s293
          %s295 = sshll.u32 %s288, 4
          %s296 = int_to_ptr.vmem [resolvable:$true] %s295
          %301 = dma.hbm_to_vmem [thread:$0]  %s294, 4096, %s296, %s285, 128, 128, 8
        $region44: #{tpu_custom_call.1} parent=39 // pred_fallthru
          _
      $region40: #{tpu_custom_call.1} parent=5 // pred_fallthru
        _
      %p302 = scmp.le.s32.totalorder 1, %s24
      %p303 = scmp.lt.s32.totalorder %s24, 3
      %p304 = pnand %p302, %p303
      %p305 = pneg %p304
      // Predicated region
      $region45: #{tpu_custom_call.1} parent=5 // pred_check
        _
      $region46: #{tpu_custom_call.1} parent=5 // pred_check_branch
        %307 = sbr.rel (%p304) target = $region48
      $region47: #{tpu_custom_call.1} parent=5 // pred_region
        %s308 = ssub.s32 %s24, 1
        %s309 = sand.u32 %s37, 1
        %s310 = scalar_lea.sflag [#allocation5], %s309
        %s311 = sand.u32 %s37, 1
        %s312 = smul.addr %s311, 256
        %s313 = scalar_lea.vmem [#allocation4], %s312
        // Predicated region
        $region49: #{tpu_custom_call.1} parent=47 // pred_check
          %p314 = pneg %p50
        $region50: #{tpu_custom_call.1} parent=47 // pred_check_branch
          %316 = sbr.rel (%p314) target = $region52
        $region51: #{tpu_custom_call.1} parent=47 // pred_region
          %317 = dma.done %s310, 4096
        $region52: #{tpu_custom_call.1} parent=47 // pred_fallthru
          _
        // Predicated region
        $region53: #{tpu_custom_call.1} parent=47 // pred_check
          %p318 = pneg %p71
        $region54: #{tpu_custom_call.1} parent=47 // pred_check_branch
          %320 = sbr.rel (%p318) target = $region56
        $region55: #{tpu_custom_call.1} parent=47 // pred_region
          %321 = dma.done [#allocation8], 128
        $region56: #{tpu_custom_call.1} parent=47 // pred_fallthru
          _
        // Predicated region
        $region57: #{tpu_custom_call.1} parent=47 // pred_check
          %p322 = pneg %p92
        $region58: #{tpu_custom_call.1} parent=47 // pred_check_branch
          %324 = sbr.rel (%p322) target = $region60
        $region59: #{tpu_custom_call.1} parent=47 // pred_region
          %325 = dma.done [#allocation8], 32
        $region60: #{tpu_custom_call.1} parent=47 // pred_fallthru
          _
        // Predicated region
        $region61: #{tpu_custom_call.1} parent=47 // pred_check
          %p326 = pneg %p113
        $region62: #{tpu_custom_call.1} parent=47 // pred_check_branch
          %328 = sbr.rel (%p326) target = $region64
        $region63: #{tpu_custom_call.1} parent=47 // pred_region
          %329 = dma.done [#allocation11], 768
        $region64: #{tpu_custom_call.1} parent=47 // pred_fallthru
          _
        // Predicated region
        $region65: #{tpu_custom_call.1} parent=47 // pred_check
          %p330 = pneg %p134
        $region66: #{tpu_custom_call.1} parent=47 // pred_check_branch
          %332 = sbr.rel (%p330) target = $region68
        $region67: #{tpu_custom_call.1} parent=47 // pred_region
          %333 = dma.done [#allocation11], 64
        $region68: #{tpu_custom_call.1} parent=47 // pred_fallthru
          _
        // Predicated region
        $region69: #{tpu_custom_call.1} parent=47 // pred_check
          %p334 = pneg %p155
        $region70: #{tpu_custom_call.1} parent=47 // pred_check_branch
          %336 = sbr.rel (%p334) target = $region72
        $region71: #{tpu_custom_call.1} parent=47 // pred_region
          %337 = dma.done [#allocation14], 64
        $region72: #{tpu_custom_call.1} parent=47 // pred_fallthru
          _
        %s338 = sand.u32 %s37, 1
        %s339 = scalar_lea.sflag [#allocation5], %s338
        %s340 = sand.u32 %s37, 1
        %s341 = smul.addr %s340, 256
        %s342 = scalar_lea.vmem [#allocation4], %s341
        %p343 = pneg %p50
        %p344 = pneg %p47
        %p345 = pneg %p71
        %p346 = pneg %p68
        %p347 = pneg %p92
        %p348 = pneg %p89
        %p349 = pneg %p113
        %p350 = pneg %p110
        %p351 = pneg %p134
        %p352 = pneg %p131
        %p353 = pneg %p155
        %p354 = pneg %p152
        %p355 = pneg %p176
        %p356 = pneg %p173
        %p357 = pneg %p202
        %p358 = pneg %p199
        %s359 = sand.u32 %s189, 1
        %s360 = scalar_lea.sflag [#allocation6], %s359
        %s361 = sand.u32 %s189, 1
        %s362 = smul.addr %s361, 16
        %s363 = scalar_lea.vmem [#allocation15], %s362
        %v364 = vld [vmem:[%s313] sm:$0xff]
        %v365 = vld [vmem:[%s313 + $0x8] sm:$0xff]
        %v366 = vld [vmem:[%s313 + $0x10] sm:$0xff]
        %v367 = vld [vmem:[%s313 + $0x18] sm:$0xff]
        %v368 = vld [vmem:[%s313 + $0x20] sm:$0xff]
        %v369 = vld [vmem:[%s313 + $0x28] sm:$0xff]
        %v370 = vld [vmem:[%s313 + $0x30] sm:$0xff]
        %v371 = vld [vmem:[%s313 + $0x38] sm:$0xff]
        %v372 = vld [vmem:[%s313 + $0x40] sm:$0xff]
        %v373 = vld [vmem:[%s313 + $0x48] sm:$0xff]
        %v374 = vld [vmem:[%s313 + $0x50] sm:$0xff]
        %v375 = vld [vmem:[%s313 + $0x58] sm:$0xff]
        %v376 = vld [vmem:[%s313 + $0x60] sm:$0xff]
        %v377 = vld [vmem:[%s313 + $0x68] sm:$0xff]
        %v378 = vld [vmem:[%s313 + $0x70] sm:$0xff]
        %v379 = vld [vmem:[%s313 + $0x78] sm:$0xff]
        %v380 = vld [vmem:[%s313 + $0x80] sm:$0xff]
        %v381 = vld [vmem:[%s313 + $0x88] sm:$0xff]
        %v382 = vld [vmem:[%s313 + $0x90] sm:$0xff]
        %v383 = vld [vmem:[%s313 + $0x98] sm:$0xff]
        %v384 = vld [vmem:[%s313 + $0xa0] sm:$0xff]
        %v385 = vld [vmem:[%s313 + $0xa8] sm:$0xff]
        %v386 = vld [vmem:[%s313 + $0xb0] sm:$0xff]
        %v387 = vld [vmem:[%s313 + $0xb8] sm:$0xff]
        %v388 = vld [vmem:[%s313 + $0xc0] sm:$0xff]
        %v389 = vld [vmem:[%s313 + $0xc8] sm:$0xff]
        %v390 = vld [vmem:[%s313 + $0xd0] sm:$0xff]
        %v391 = vld [vmem:[%s313 + $0xd8] sm:$0xff]
        %v392 = vld [vmem:[%s313 + $0xe0] sm:$0xff]
        %v393 = vld [vmem:[%s313 + $0xe8] sm:$0xff]
        %v394 = vld [vmem:[%s313 + $0xf0] sm:$0xff]
        %v395 = vld [vmem:[%s313 + $0xf8] sm:$0xff]
        %v396 = vld [vmem:[#allocation7] sm:$0xff]
        %v397 = vld [vmem:[#allocation9] sm:$0x3]
        %v399 = vlaneseq
        %v400 = vshrl.u32 %v399, 7
        %v401 = vsub.s32 0, %v400
        %v402 = vrot.slane %v397, %v401
        %v403 = vlaneseq
        %v404 = vshrl.u32 %v403, 7
        %v405 = vsub.s32 1, %v404
        %v406 = vrot.slane %v397, %v405
        %v410 = vcombine.high %v396, %v396
        %vm411 = vcmask 31744
        %v413 = vsel %vm411, %v364, 0
        %v416 = vsel %vm411, %v365, 0
        %v419 = vsel %vm411, %v366, 0
        %v422 = vsel %vm411, %v367, 0
        %v425 = vsel %vm411, %v368, 0
        %v428 = vsel %vm411, %v369, 0
        %v431 = vsel %vm411, %v370, 0
        %v434 = vsel %vm411, %v371, 0
        %v437 = vsel %vm411, %v372, 0
        %v440 = vsel %vm411, %v373, 0
        %v443 = vsel %vm411, %v374, 0
        %v446 = vsel %vm411, %v375, 0
        %v449 = vsel %vm411, %v376, 0
        %v452 = vsel %vm411, %v377, 0
        %v455 = vsel %vm411, %v378, 0
        %v458 = vsel %vm411, %v379, 0
        %v461 = vsel %vm411, %v380, 0
        %v464 = vsel %vm411, %v381, 0
        %v467 = vsel %vm411, %v382, 0
        %v470 = vsel %vm411, %v383, 0
        %v473 = vsel %vm411, %v384, 0
        %v476 = vsel %vm411, %v385, 0
        %v479 = vsel %vm411, %v386, 0
        %v482 = vsel %vm411, %v387, 0
        %v485 = vsel %vm411, %v388, 0
        %v488 = vsel %vm411, %v389, 0
        %v491 = vsel %vm411, %v390, 0
        %v494 = vsel %vm411, %v391, 0
        %v497 = vsel %vm411, %v392, 0
        %v500 = vsel %vm411, %v393, 0
        %v503 = vsel %vm411, %v394, 0
        %v506 = vsel %vm411, %v395, 0
        %vm508 = vcmask 1043456
        %v509 = vsel %vm508, %v396, 0
        %v511 = vsel %vm508, %v410, 0
        %513 = vmatprep.subr.mxu0 %v511
        %514 = vmatpush1.msra.mxu0 %v509
        %515 = vmatprep.subr.mxu0 0.0
        %516 = vmatpush1.msra.mxu0 0.0
        %517 = vmatprep.subr.mxu0 0.0
        %518 = vmatpush1.msra.mxu0 0.0
        %519 = vmatprep.subr.mxu0 0.0
        %520 = vmatpush1.msra.mxu0 0.0
        %521 = vmatprep.subr.mxu0 0.0
        %522 = vmatpush1.msra.mxu0 0.0
        %523 = vmatprep.subr.mxu0 0.0
        %524 = vmatpush1.msra.mxu0 0.0
        %525 = vmatprep.subr.mxu0 0.0
        %526 = vmatpush1.msra.mxu0 0.0
        %527 = vmatprep.subr.mxu0 0.0
        %528 = vmatpush1.msra.mxu0 0.0
        %529 = vmatprep.subr.mxu0 0.0
        %530 = vmatpush1.msra.mxu0 0.0
        %531 = vmatprep.subr.mxu0 0.0
        %532 = vmatpush1.msra.mxu0 0.0
        %533 = vmatprep.subr.mxu0 0.0
        %534 = vmatpush1.msra.mxu0 0.0
        %535 = vmatprep.subr.mxu0 0.0
        %536 = vmatpush1.msra.mxu0 0.0
        %537 = vmatprep.subr.mxu0 0.0
        %538 = vmatpush1.msra.mxu0 0.0
        %539 = vmatprep.subr.mxu0 0.0
        %540 = vmatpush1.msra.mxu0 0.0
        %541 = vmatprep.subr.mxu0 0.0
        %542 = vmatpush1.msra.mxu0 0.0
        %543 = vmatprep.subr.mxu0 0.0
        %544 = vmatpush1.msra.mxu0 0.0
        %545 = vmatprep.subr.mxu0 0.0
        %546 = vmatpush1.msra.mxu0 0.0
        %547 = vmatprep.subr.mxu0 0.0
        %548 = vmatpush1.msra.mxu0 0.0
        %549 = vmatprep.subr.mxu0 0.0
        %550 = vmatpush1.msra.mxu0 0.0
        %551 = vmatprep.subr.mxu0 0.0
        %552 = vmatpush1.msra.mxu0 0.0
        %553 = vmatprep.subr.mxu0 0.0
        %554 = vmatpush1.msra.mxu0 0.0
        %555 = vmatprep.subr.mxu0 0.0
        %556 = vmatpush1.msra.mxu0 0.0
        %557 = vmatprep.subr.mxu0 0.0
        %558 = vmatpush1.msra.mxu0 0.0
        %559 = vmatprep.subr.mxu0 0.0
        %560 = vmatpush1.msra.mxu0 0.0
        %561 = vmatprep.subr.mxu0 0.0
        %562 = vmatpush1.msra.mxu0 0.0
        %563 = vmatprep.subr.mxu0 0.0
        %564 = vmatpush1.msra.mxu0 0.0
        %565 = vmatprep.subr.mxu0 0.0
        %566 = vmatpush1.msra.mxu0 0.0
        %567 = vmatprep.subr.mxu0 0.0
        %568 = vmatpush1.msra.mxu0 0.0
        %569 = vmatprep.subr.mxu0 0.0
        %570 = vmatpush1.msra.mxu0 0.0
        %571 = vmatprep.subr.mxu0 0.0
        %572 = vmatpush1.msra.mxu0 0.0
        %573 = vmatprep.subr.mxu0 0.0
        %574 = vmatpush1.msra.mxu0 0.0
        %575 = vmatprep.subr.mxu0 0.0
        %576 = vmatpush1.msra.mxu0 0.0
        %577 = vmatprep.mubr.f32.mxu0 0.0
        %578 = vmatmul.mubr.f32.gmra.mrb[0].mxu0 %v413
        %v579 = vpop.f32.mrb[0].mxu0
        %v580 = vadd.f32 %v402, %v579
        %v581 = vpop.f32.mrb[0].mxu0
        %v582 = vadd.f32 %v406, %v581
        %583 = vmatprep.mubr.f32.mxu0 0.0
        %584 = vmatmul.mubr.f32.gmra.mrb[0].mxu0 %v416
        %v585 = vpop.f32.mrb[0].mxu0
        %v586 = vadd.f32 %v402, %v585
        %v587 = vpop.f32.mrb[0].mxu0
        %v588 = vadd.f32 %v406, %v587
        %589 = vmatprep.mubr.f32.mxu0 0.0
        %590 = vmatmul.mubr.f32.gmra.mrb[0].mxu0 %v419
        %v591 = vpop.f32.mrb[0].mxu0
        %v592 = vadd.f32 %v402, %v591
        %v593 = vpop.f32.mrb[0].mxu0
        %v594 = vadd.f32 %v406, %v593
        %595 = vmatprep.mubr.f32.mxu0 0.0
        %596 = vmatmul.mubr.f32.gmra.mrb[0].mxu0 %v422
        %v597 = vpop.f32.mrb[0].mxu0
        %v598 = vadd.f32 %v402, %v597
        %v599 = vpop.f32.mrb[0].mxu0
        %v600 = vadd.f32 %v406, %v599
        %601 = vmatprep.mubr.f32.mxu0 0.0
        %602 = vmatmul.mubr.f32.gmra.mrb[0].mxu0 %v425
        %v603 = vpop.f32.mrb[0].mxu0
        %v604 = vadd.f32 %v402, %v603
        %v605 = vpop.f32.mrb[0].mxu0
        %v606 = vadd.f32 %v406, %v605
        %607 = vmatprep.mubr.f32.mxu0 0.0
        %608 = vmatmul.mubr.f32.gmra.mrb[0].mxu0 %v428
        %v609 = vpop.f32.mrb[0].mxu0
        %v610 = vadd.f32 %v402, %v609
        %v611 = vpop.f32.mrb[0].mxu0
        %v612 = vadd.f32 %v406, %v611
        %613 = vmatprep.mubr.f32.mxu0 0.0
        %614 = vmatmul.mubr.f32.gmra.mrb[0].mxu0 %v431
        %v615 = vpop.f32.mrb[0].mxu0
        %v616 = vadd.f32 %v402, %v615
        %v617 = vpop.f32.mrb[0].mxu0
        %v618 = vadd.f32 %v406, %v617
        %619 = vmatprep.mubr.f32.mxu0 0.0
        %620 = vmatmul.mubr.f32.gmra.mrb[0].mxu0 %v434
        %v621 = vpop.f32.mrb[0].mxu0
        %v622 = vadd.f32 %v402, %v621
        %v623 = vpop.f32.mrb[0].mxu0
        %v624 = vadd.f32 %v406, %v623
        %625 = vmatprep.mubr.f32.mxu0 0.0
        %626 = vmatmul.mubr.f32.gmra.mrb[0].mxu0 %v437
        %v627 = vpop.f32.mrb[0].mxu0
        %v628 = vadd.f32 %v402, %v627
        %v629 = vpop.f32.mrb[0].mxu0
        %v630 = vadd.f32 %v406, %v629
        %631 = vmatprep.mubr.f32.mxu0 0.0
        %632 = vmatmul.mubr.f32.gmra.mrb[0].mxu0 %v440
        %v633 = vpop.f32.mrb[0].mxu0
        %v634 = vadd.f32 %v402, %v633
        %v635 = vpop.f32.mrb[0].mxu0
        %v636 = vadd.f32 %v406, %v635
        %637 = vmatprep.mubr.f32.mxu0 0.0
        %638 = vmatmul.mubr.f32.gmra.mrb[0].mxu0 %v443
        %v639 = vpop.f32.mrb[0].mxu0
        %v640 = vadd.f32 %v402, %v639
        %v641 = vpop.f32.mrb[0].mxu0
        %v642 = vadd.f32 %v406, %v641
        %643 = vmatprep.mubr.f32.mxu0 0.0
        %644 = vmatmul.mubr.f32.gmra.mrb[0].mxu0 %v446
        %v645 = vpop.f32.mrb[0].mxu0
        %v646 = vadd.f32 %v402, %v645
        %v647 = vpop.f32.mrb[0].mxu0
        %v648 = vadd.f32 %v406, %v647
        %649 = vmatprep.mubr.f32.mxu0 0.0
        %650 = vmatmul.mubr.f32.gmra.mrb[0].mxu0 %v449
        %v651 = vpop.f32.mrb[0].mxu0
        %v652 = vadd.f32 %v402, %v651
        %v653 = vpop.f32.mrb[0].mxu0
        %v654 = vadd.f32 %v406, %v653
        %655 = vmatprep.mubr.f32.mxu0 0.0
        %656 = vmatmul.mubr.f32.gmra.mrb[0].mxu0 %v452
        %v657 = vpop.f32.mrb[0].mxu0
        %v658 = vadd.f32 %v402, %v657
        %v659 = vpop.f32.mrb[0].mxu0
        %v660 = vadd.f32 %v406, %v659
        %661 = vmatprep.mubr.f32.mxu0 0.0
        %662 = vmatmul.mubr.f32.gmra.mrb[0].mxu0 %v455
        %v663 = vpop.f32.mrb[0].mxu0
        %v664 = vadd.f32 %v402, %v663
        %v665 = vpop.f32.mrb[0].mxu0
        %v666 = vadd.f32 %v406, %v665
        %667 = vmatprep.mubr.f32.mxu0 0.0
        %668 = vmatmul.mubr.f32.gmra.mrb[0].mxu0 %v458
        %v669 = vpop.f32.mrb[0].mxu0
        %v670 = vadd.f32 %v402, %v669
        %v671 = vpop.f32.mrb[0].mxu0
        %v672 = vadd.f32 %v406, %v671
        %673 = vmatprep.mubr.f32.mxu0 0.0
        %674 = vmatmul.mubr.f32.gmra.mrb[0].mxu0 %v461
        %v675 = vpop.f32.mrb[0].mxu0
        %v676 = vadd.f32 %v402, %v675
        %v677 = vpop.f32.mrb[0].mxu0
        %v678 = vadd.f32 %v406, %v677
        %679 = vmatprep.mubr.f32.mxu0 0.0
        %680 = vmatmul.mubr.f32.gmra.mrb[0].mxu0 %v464
        %v681 = vpop.f32.mrb[0].mxu0
        %v682 = vadd.f32 %v402, %v681
        %v683 = vpop.f32.mrb[0].mxu0
        %v684 = vadd.f32 %v406, %v683
        %685 = vmatprep.mubr.f32.mxu0 0.0
        %686 = vmatmul.mubr.f32.gmra.mrb[0].mxu0 %v467
        %v687 = vpop.f32.mrb[0].mxu0
        %v688 = vadd.f32 %v402, %v687
        %v689 = vpop.f32.mrb[0].mxu0
        %v690 = vadd.f32 %v406, %v689
        %691 = vmatprep.mubr.f32.mxu0 0.0
        %692 = vmatmul.mubr.f32.gmra.mrb[0].mxu0 %v470
        %v693 = vpop.f32.mrb[0].mxu0
        %v694 = vadd.f32 %v402, %v693
        %v695 = vpop.f32.mrb[0].mxu0
        %v696 = vadd.f32 %v406, %v695
        %697 = vmatprep.mubr.f32.mxu0 0.0
        %698 = vmatmul.mubr.f32.gmra.mrb[0].mxu0 %v473
        %v699 = vpop.f32.mrb[0].mxu0
        %v700 = vadd.f32 %v402, %v699
        %v701 = vpop.f32.mrb[0].mxu0
        %v702 = vadd.f32 %v406, %v701
        %703 = vmatprep.mubr.f32.mxu0 0.0
        %704 = vmatmul.mubr.f32.gmra.mrb[0].mxu0 %v476
        %v705 = vpop.f32.mrb[0].mxu0
        %v706 = vadd.f32 %v402, %v705
        %v707 = vpop.f32.mrb[0].mxu0
        %v708 = vadd.f32 %v406, %v707
        %709 = vmatprep.mubr.f32.mxu0 0.0
        %710 = vmatmul.mubr.f32.gmra.mrb[0].mxu0 %v479
        %v711 = vpop.f32.mrb[0].mxu0
        %v712 = vadd.f32 %v402, %v711
        %v713 = vpop.f32.mrb[0].mxu0
        %v714 = vadd.f32 %v406, %v713
        %715 = vmatprep.mubr.f32.mxu0 0.0
        %716 = vmatmul.mubr.f32.gmra.mrb[0].mxu0 %v482
        %v717 = vpop.f32.mrb[0].mxu0
        %v718 = vadd.f32 %v402, %v717
        %v719 = vpop.f32.mrb[0].mxu0
        %v720 = vadd.f32 %v406, %v719
        %721 = vmatprep.mubr.f32.mxu0 0.0
        %722 = vmatmul.mubr.f32.gmra.mrb[0].mxu0 %v485
        %v723 = vpop.f32.mrb[0].mxu0
        %v724 = vadd.f32 %v402, %v723
        %v725 = vpop.f32.mrb[0].mxu0
        %v726 = vadd.f32 %v406, %v725
        %727 = vmatprep.mubr.f32.mxu0 0.0
        %728 = vmatmul.mubr.f32.gmra.mrb[0].mxu0 %v488
        %v729 = vpop.f32.mrb[0].mxu0
        %v730 = vadd.f32 %v402, %v729
        %v731 = vpop.f32.mrb[0].mxu0
        %v732 = vadd.f32 %v406, %v731
        %733 = vmatprep.mubr.f32.mxu0 0.0
        %734 = vmatmul.mubr.f32.gmra.mrb[0].mxu0 %v491
        %v735 = vpop.f32.mrb[0].mxu0
        %v736 = vadd.f32 %v402, %v735
        %v737 = vpop.f32.mrb[0].mxu0
        %v738 = vadd.f32 %v406, %v737
        %739 = vmatprep.mubr.f32.mxu0 0.0
        %740 = vmatmul.mubr.f32.gmra.mrb[0].mxu0 %v494
        %v741 = vpop.f32.mrb[0].mxu0
        %v742 = vadd.f32 %v402, %v741
        %v743 = vpop.f32.mrb[0].mxu0
        %v744 = vadd.f32 %v406, %v743
        %745 = vmatprep.mubr.f32.mxu0 0.0
        %746 = vmatmul.mubr.f32.gmra.mrb[0].mxu0 %v497
        %v747 = vpop.f32.mrb[0].mxu0
        %v748 = vadd.f32 %v402, %v747
        %v749 = vpop.f32.mrb[0].mxu0
        %v750 = vadd.f32 %v406, %v749
        %751 = vmatprep.mubr.f32.mxu0 0.0
        %752 = vmatmul.mubr.f32.gmra.mrb[0].mxu0 %v500
        %v753 = vpop.f32.mrb[0].mxu0
        %v754 = vadd.f32 %v402, %v753
        %v755 = vpop.f32.mrb[0].mxu0
        %v756 = vadd.f32 %v406, %v755
        %757 = vmatprep.mubr.f32.mxu0 0.0
        %758 = vmatmul.mubr.f32.gmra.mrb[0].mxu0 %v503
        %v759 = vpop.f32.mrb[0].mxu0
        %v760 = vadd.f32 %v402, %v759
        %v761 = vpop.f32.mrb[0].mxu0
        %v762 = vadd.f32 %v406, %v761
        %763 = vmatprep.mubr.f32.mxu0 0.0
        %764 = vmatmul.mubr.f32.gmra.mrb[0].mxu0 %v506
        %v765 = vpop.f32.mrb[0].mxu0
        %v766 = vadd.f32 %v402, %v765
        %v767 = vpop.f32.mrb[0].mxu0
        %v768 = vadd.f32 %v406, %v767
        %769 = vdwg.mxu0
        %v770 = vmax.f32 %v580, 0.0
        %v771 = vmax.f32 %v582, 0.0
        %v772 = vmax.f32 %v586, 0.0
        %v773 = vmax.f32 %v588, 0.0
        %v774 = vmax.f32 %v592, 0.0
        %v775 = vmax.f32 %v594, 0.0
        %v776 = vmax.f32 %v598, 0.0
        %v777 = vmax.f32 %v600, 0.0
        %v778 = vmax.f32 %v604, 0.0
        %v779 = vmax.f32 %v606, 0.0
        %v780 = vmax.f32 %v610, 0.0
        %v781 = vmax.f32 %v612, 0.0
        %v782 = vmax.f32 %v616, 0.0
        %v783 = vmax.f32 %v618, 0.0
        %v784 = vmax.f32 %v622, 0.0
        %v785 = vmax.f32 %v624, 0.0
        %v786 = vmax.f32 %v628, 0.0
        %v787 = vmax.f32 %v630, 0.0
        %v788 = vmax.f32 %v634, 0.0
        %v789 = vmax.f32 %v636, 0.0
        %v790 = vmax.f32 %v640, 0.0
        %v791 = vmax.f32 %v642, 0.0
        %v792 = vmax.f32 %v646, 0.0
        %v793 = vmax.f32 %v648, 0.0
        %v794 = vmax.f32 %v652, 0.0
        %v795 = vmax.f32 %v654, 0.0
        %v796 = vmax.f32 %v658, 0.0
        %v797 = vmax.f32 %v660, 0.0
        %v798 = vmax.f32 %v664, 0.0
        %v799 = vmax.f32 %v666, 0.0
        %v800 = vmax.f32 %v670, 0.0
        %v801 = vmax.f32 %v672, 0.0
        %v802 = vmax.f32 %v676, 0.0
        %v803 = vmax.f32 %v678, 0.0
        %v804 = vmax.f32 %v682, 0.0
        %v805 = vmax.f32 %v684, 0.0
        %v806 = vmax.f32 %v688, 0.0
        %v807 = vmax.f32 %v690, 0.0
        %v808 = vmax.f32 %v694, 0.0
        %v809 = vmax.f32 %v696, 0.0
        %v810 = vmax.f32 %v700, 0.0
        %v811 = vmax.f32 %v702, 0.0
        %v812 = vmax.f32 %v706, 0.0
        %v813 = vmax.f32 %v708, 0.0
        %v814 = vmax.f32 %v712, 0.0
        %v815 = vmax.f32 %v714, 0.0
        %v816 = vmax.f32 %v718, 0.0
        %v817 = vmax.f32 %v720, 0.0
        %v818 = vmax.f32 %v724, 0.0
        %v819 = vmax.f32 %v726, 0.0
        %v820 = vmax.f32 %v730, 0.0
        %v821 = vmax.f32 %v732, 0.0
        %v822 = vmax.f32 %v736, 0.0
        %v823 = vmax.f32 %v738, 0.0
        %v824 = vmax.f32 %v742, 0.0
        %v825 = vmax.f32 %v744, 0.0
        %v826 = vmax.f32 %v748, 0.0
        %v827 = vmax.f32 %v750, 0.0
        %v828 = vmax.f32 %v754, 0.0
        %v829 = vmax.f32 %v756, 0.0
        %v830 = vmax.f32 %v760, 0.0
        %v831 = vmax.f32 %v762, 0.0
        %v832 = vmax.f32 %v766, 0.0
        %v833 = vmax.f32 %v768, 0.0
        %vm834 = vcmask 523264
        %835 = vst.msk [vmem:[#allocation2] sm:$0xff] %vm834, 0.0
        %836 = vst.msk [vmem:[#allocation2 + $0x8] sm:$0xff] %vm834, 0.0
        %837 = vst.msk [vmem:[#allocation2 + $0x10] sm:$0xff] %vm834, 0.0
        %838 = vst.msk [vmem:[#allocation2 + $0x18] sm:$0xff] %vm834, 0.0
        %839 = vst.msk [vmem:[#allocation2 + $0x20] sm:$0xff] %vm834, 0.0
        %840 = vst.msk [vmem:[#allocation2 + $0x28] sm:$0xff] %vm834, 0.0
        %841 = vst.msk [vmem:[#allocation2 + $0x30] sm:$0xff] %vm834, 0.0
        %842 = vst.msk [vmem:[#allocation2 + $0x38] sm:$0xff] %vm834, 0.0
        %843 = vst.msk [vmem:[#allocation2 + $0x40] sm:$0xff] %vm834, 0.0
        %844 = vst.msk [vmem:[#allocation2 + $0x48] sm:$0xff] %vm834, 0.0
        %845 = vst.msk [vmem:[#allocation2 + $0x50] sm:$0xff] %vm834, 0.0
        %846 = vst.msk [vmem:[#allocation2 + $0x58] sm:$0xff] %vm834, 0.0
        %847 = vst.msk [vmem:[#allocation2 + $0x240] sm:$0xff] %vm834, 0.0
        %848 = vst.msk [vmem:[#allocation2 + $0x248] sm:$0xff] %vm834, 0.0
        %849 = vst.msk [vmem:[#allocation2 + $0x250] sm:$0xff] %vm834, 0.0
        %850 = vst.msk [vmem:[#allocation2 + $0x258] sm:$0xff] %vm834, 0.0
        %851 = vst.msk [vmem:[#allocation2 + $0x260] sm:$0xff] %vm834, 0.0
        %852 = vst.msk [vmem:[#allocation2 + $0x268] sm:$0xff] %vm834, 0.0
        %853 = vst.msk [vmem:[#allocation2 + $0x270] sm:$0xff] %vm834, 0.0
        %854 = vst.msk [vmem:[#allocation2 + $0x278] sm:$0xff] %vm834, 0.0
        %855 = vst.msk [vmem:[#allocation2 + $0x280] sm:$0xff] %vm834, 0.0
        %856 = vst.msk [vmem:[#allocation2 + $0x288] sm:$0xff] %vm834, 0.0
        %857 = vst.msk [vmem:[#allocation2 + $0x290] sm:$0xff] %vm834, 0.0
        %858 = vst.msk [vmem:[#allocation2 + $0x298] sm:$0xff] %vm834, 0.0
        %859 = vst.msk [vmem:[#allocation2 + $0x480] sm:$0xff] %vm834, 0.0
        %860 = vst.msk [vmem:[#allocation2 + $0x488] sm:$0xff] %vm834, 0.0
        %861 = vst.msk [vmem:[#allocation2 + $0x490] sm:$0xff] %vm834, 0.0
        %862 = vst.msk [vmem:[#allocation2 + $0x498] sm:$0xff] %vm834, 0.0
        %863 = vst.msk [vmem:[#allocation2 + $0x4a0] sm:$0xff] %vm834, 0.0
        %864 = vst.msk [vmem:[#allocation2 + $0x4a8] sm:$0xff] %vm834, 0.0
        %865 = vst.msk [vmem:[#allocation2 + $0x4b0] sm:$0xff] %vm834, 0.0
        %866 = vst.msk [vmem:[#allocation2 + $0x4b8] sm:$0xff] %vm834, 0.0
        %867 = vst.msk [vmem:[#allocation2 + $0x4c0] sm:$0xff] %vm834, 0.0
        %868 = vst.msk [vmem:[#allocation2 + $0x4c8] sm:$0xff] %vm834, 0.0
        %869 = vst.msk [vmem:[#allocation2 + $0x4d0] sm:$0xff] %vm834, 0.0
        %870 = vst.msk [vmem:[#allocation2 + $0x4d8] sm:$0xff] %vm834, 0.0
        %871 = vst.msk [vmem:[#allocation2 + $0x6c0] sm:$0xff] %vm834, 0.0
        %872 = vst.msk [vmem:[#allocation2 + $0x6c8] sm:$0xff] %vm834, 0.0
        %873 = vst.msk [vmem:[#allocation2 + $0x6d0] sm:$0xff] %vm834, 0.0
        %874 = vst.msk [vmem:[#allocation2 + $0x6d8] sm:$0xff] %vm834, 0.0
        %875 = vst.msk [vmem:[#allocation2 + $0x6e0] sm:$0xff] %vm834, 0.0
        %876 = vst.msk [vmem:[#allocation2 + $0x6e8] sm:$0xff] %vm834, 0.0
        %877 = vst.msk [vmem:[#allocation2 + $0x6f0] sm:$0xff] %vm834, 0.0
        %878 = vst.msk [vmem:[#allocation2 + $0x6f8] sm:$0xff] %vm834, 0.0
        %879 = vst.msk [vmem:[#allocation2 + $0x700] sm:$0xff] %vm834, 0.0
        %880 = vst.msk [vmem:[#allocation2 + $0x708] sm:$0xff] %vm834, 0.0
        %881 = vst.msk [vmem:[#allocation2 + $0x710] sm:$0xff] %vm834, 0.0
        %882 = vst.msk [vmem:[#allocation2 + $0x718] sm:$0xff] %vm834, 0.0
        %s883 = scalar_lea.vmem [#allocation2], 480
        %884 = vst.msk [vmem:[%s883] sm:$0xff] %vm834, 0.0
        %885 = vst.msk [vmem:[%s883 + $0x8] sm:$0xff] %vm834, 0.0
        %886 = vst.msk [vmem:[%s883 + $0x10] sm:$0xff] %vm834, 0.0
        %887 = vst.msk [vmem:[%s883 + $0x18] sm:$0xff] %vm834, 0.0
        %888 = vst.msk [vmem:[%s883 + $0x20] sm:$0xff] %vm834, 0.0
        %889 = vst.msk [vmem:[%s883 + $0x28] sm:$0xff] %vm834, 0.0
        %890 = vst.msk [vmem:[%s883 + $0x30] sm:$0xff] %vm834, 0.0
        %891 = vst.msk [vmem:[%s883 + $0x38] sm:$0xff] %vm834, 0.0
        %892 = vst.msk [vmem:[%s883 + $0x40] sm:$0xff] %vm834, 0.0
        %893 = vst.msk [vmem:[%s883 + $0x48] sm:$0xff] %vm834, 0.0
        %894 = vst.msk [vmem:[%s883 + $0x50] sm:$0xff] %vm834, 0.0
        %895 = vst.msk [vmem:[%s883 + $0x58] sm:$0xff] %vm834, 0.0
        %896 = vst.msk [vmem:[%s883 + $0x240] sm:$0xff] %vm834, 0.0
        %897 = vst.msk [vmem:[%s883 + $0x248] sm:$0xff] %vm834, 0.0
        %898 = vst.msk [vmem:[%s883 + $0x250] sm:$0xff] %vm834, 0.0
        %899 = vst.msk [vmem:[%s883 + $0x258] sm:$0xff] %vm834, 0.0
        %900 = vst.msk [vmem:[%s883 + $0x260] sm:$0xff] %vm834, 0.0
        %901 = vst.msk [vmem:[%s883 + $0x268] sm:$0xff] %vm834, 0.0
        %902 = vst.msk [vmem:[%s883 + $0x270] sm:$0xff] %vm834, 0.0
        %903 = vst.msk [vmem:[%s883 + $0x278] sm:$0xff] %vm834, 0.0
        %904 = vst.msk [vmem:[%s883 + $0x280] sm:$0xff] %vm834, 0.0
        %905 = vst.msk [vmem:[%s883 + $0x288] sm:$0xff] %vm834, 0.0
        %906 = vst.msk [vmem:[%s883 + $0x290] sm:$0xff] %vm834, 0.0
        %907 = vst.msk [vmem:[%s883 + $0x298] sm:$0xff] %vm834, 0.0
        %908 = vst.msk [vmem:[%s883 + $0x480] sm:$0xff] %vm834, 0.0
        %909 = vst.msk [vmem:[%s883 + $0x488] sm:$0xff] %vm834, 0.0
        %910 = vst.msk [vmem:[%s883 + $0x490] sm:$0xff] %vm834, 0.0
        %911 = vst.msk [vmem:[%s883 + $0x498] sm:$0xff] %vm834, 0.0
        %912 = vst.msk [vmem:[%s883 + $0x4a0] sm:$0xff] %vm834, 0.0
        %913 = vst.msk [vmem:[%s883 + $0x4a8] sm:$0xff] %vm834, 0.0
        %914 = vst.msk [vmem:[%s883 + $0x4b0] sm:$0xff] %vm834, 0.0
        %915 = vst.msk [vmem:[%s883 + $0x4b8] sm:$0xff] %vm834, 0.0
        %916 = vst.msk [vmem:[%s883 + $0x4c0] sm:$0xff] %vm834, 0.0
        %917 = vst.msk [vmem:[%s883 + $0x4c8] sm:$0xff] %vm834, 0.0
        %918 = vst.msk [vmem:[%s883 + $0x4d0] sm:$0xff] %vm834, 0.0
        %919 = vst.msk [vmem:[%s883 + $0x4d8] sm:$0xff] %vm834, 0.0
        %920 = vst.msk [vmem:[%s883 + $0x6c0] sm:$0xff] %vm834, 0.0
        %921 = vst.msk [vmem:[%s883 + $0x6c8] sm:$0xff] %vm834, 0.0
        %922 = vst.msk [vmem:[%s883 + $0x6d0] sm:$0xff] %vm834, 0.0
        %923 = vst.msk [vmem:[%s883 + $0x6d8] sm:$0xff] %vm834, 0.0
        %924 = vst.msk [vmem:[%s883 + $0x6e0] sm:$0xff] %vm834, 0.0
        %925 = vst.msk [vmem:[%s883 + $0x6e8] sm:$0xff] %vm834, 0.0
        %926 = vst.msk [vmem:[%s883 + $0x6f0] sm:$0xff] %vm834, 0.0
        %927 = vst.msk [vmem:[%s883 + $0x6f8] sm:$0xff] %vm834, 0.0
        %928 = vst.msk [vmem:[%s883 + $0x700] sm:$0xff] %vm834, 0.0
        %929 = vst.msk [vmem:[%s883 + $0x708] sm:$0xff] %vm834, 0.0
        %930 = vst.msk [vmem:[%s883 + $0x710] sm:$0xff] %vm834, 0.0
        %931 = vst.msk [vmem:[%s883 + $0x718] sm:$0xff] %vm834, 0.0
        %s932 = scalar_lea.vmem [#allocation2], 96
        %vm933 = vcmask 519168
        %934 = vst.msk [vmem:[%s932] sm:$0xf] %vm933, 0.0
        %935 = vst.msk [vmem:[%s932 + $0x18] sm:$0xf] %vm933, 0.0
        %936 = vst.msk [vmem:[%s932 + $0x30] sm:$0xf] %vm933, 0.0
        %937 = vst.msk [vmem:[%s932 + $0x48] sm:$0xf] %vm933, 0.0
        %938 = vst.msk [vmem:[%s932 + $0x60] sm:$0xf] %vm933, 0.0
        %939 = vst.msk [vmem:[%s932 + $0x78] sm:$0xf] %vm933, 0.0
        %940 = vst.msk [vmem:[%s932 + $0x90] sm:$0xf] %vm933, 0.0
        %941 = vst.msk [vmem:[%s932 + $0xa8] sm:$0xf] %vm933, 0.0
        %942 = vst.msk [vmem:[%s932 + $0xc0] sm:$0xf] %vm933, 0.0
        %943 = vst.msk [vmem:[%s932 + $0xd8] sm:$0xf] %vm933, 0.0
        %944 = vst.msk [vmem:[%s932 + $0xf0] sm:$0xf] %vm933, 0.0
        %945 = vst.msk [vmem:[%s932 + $0x108] sm:$0xf] %vm933, 0.0
        %946 = vst.msk [vmem:[%s932 + $0x120] sm:$0xf] %vm933, 0.0
        %947 = vst.msk [vmem:[%s932 + $0x138] sm:$0xf] %vm933, 0.0
        %948 = vst.msk [vmem:[%s932 + $0x150] sm:$0xf] %vm933, 0.0
        %949 = vst.msk [vmem:[%s932 + $0x168] sm:$0xf] %vm933, 0.0
        %950 = vst.msk [vmem:[%s932 + $0x240] sm:$0xf] %vm933, 0.0
        %951 = vst.msk [vmem:[%s932 + $0x258] sm:$0xf] %vm933, 0.0
        %952 = vst.msk [vmem:[%s932 + $0x270] sm:$0xf] %vm933, 0.0
        %953 = vst.msk [vmem:[%s932 + $0x288] sm:$0xf] %vm933, 0.0
        %954 = vst.msk [vmem:[%s932 + $0x2a0] sm:$0xf] %vm933, 0.0
        %955 = vst.msk [vmem:[%s932 + $0x2b8] sm:$0xf] %vm933, 0.0
        %956 = vst.msk [vmem:[%s932 + $0x2d0] sm:$0xf] %vm933, 0.0
        %957 = vst.msk [vmem:[%s932 + $0x2e8] sm:$0xf] %vm933, 0.0
        %958 = vst.msk [vmem:[%s932 + $0x300] sm:$0xf] %vm933, 0.0
        %959 = vst.msk [vmem:[%s932 + $0x318] sm:$0xf] %vm933, 0.0
        %960 = vst.msk [vmem:[%s932 + $0x330] sm:$0xf] %vm933, 0.0
        %961 = vst.msk [vmem:[%s932 + $0x348] sm:$0xf] %vm933, 0.0
        %962 = vst.msk [vmem:[%s932 + $0x360] sm:$0xf] %vm933, 0.0
        %963 = vst.msk [vmem:[%s932 + $0x378] sm:$0xf] %vm933, 0.0
        %964 = vst.msk [vmem:[%s932 + $0x390] sm:$0xf] %vm933, 0.0
        %965 = vst.msk [vmem:[%s932 + $0x3a8] sm:$0xf] %vm933, 0.0
        %966 = vst.msk [vmem:[%s932 + $0x480] sm:$0xf] %vm933, 0.0
        %967 = vst.msk [vmem:[%s932 + $0x498] sm:$0xf] %vm933, 0.0
        %968 = vst.msk [vmem:[%s932 + $0x4b0] sm:$0xf] %vm933, 0.0
        %969 = vst.msk [vmem:[%s932 + $0x4c8] sm:$0xf] %vm933, 0.0
        %970 = vst.msk [vmem:[%s932 + $0x4e0] sm:$0xf] %vm933, 0.0
        %971 = vst.msk [vmem:[%s932 + $0x4f8] sm:$0xf] %vm933, 0.0
        %972 = vst.msk [vmem:[%s932 + $0x510] sm:$0xf] %vm933, 0.0
        %973 = vst.msk [vmem:[%s932 + $0x528] sm:$0xf] %vm933, 0.0
        %974 = vst.msk [vmem:[%s932 + $0x540] sm:$0xf] %vm933, 0.0
        %975 = vst.msk [vmem:[%s932 + $0x558] sm:$0xf] %vm933, 0.0
        %976 = vst.msk [vmem:[%s932 + $0x570] sm:$0xf] %vm933, 0.0
        %977 = vst.msk [vmem:[%s932 + $0x588] sm:$0xf] %vm933, 0.0
        %978 = vst.msk [vmem:[%s932 + $0x5a0] sm:$0xf] %vm933, 0.0
        %979 = vst.msk [vmem:[%s932 + $0x5b8] sm:$0xf] %vm933, 0.0
        %980 = vst.msk [vmem:[%s932 + $0x5d0] sm:$0xf] %vm933, 0.0
        %981 = vst.msk [vmem:[%s932 + $0x5e8] sm:$0xf] %vm933, 0.0
        %982 = vst.msk [vmem:[%s932 + $0x6c0] sm:$0xf] %vm933, 0.0
        %983 = vst.msk [vmem:[%s932 + $0x6d8] sm:$0xf] %vm933, 0.0
        %984 = vst.msk [vmem:[%s932 + $0x6f0] sm:$0xf] %vm933, 0.0
        %985 = vst.msk [vmem:[%s932 + $0x708] sm:$0xf] %vm933, 0.0
        %986 = vst.msk [vmem:[%s932 + $0x720] sm:$0xf] %vm933, 0.0
        %987 = vst.msk [vmem:[%s932 + $0x738] sm:$0xf] %vm933, 0.0
        %988 = vst.msk [vmem:[%s932 + $0x750] sm:$0xf] %vm933, 0.0
        %989 = vst.msk [vmem:[%s932 + $0x768] sm:$0xf] %vm933, 0.0
        %990 = vst.msk [vmem:[%s932 + $0x780] sm:$0xf] %vm933, 0.0
        %991 = vst.msk [vmem:[%s932 + $0x798] sm:$0xf] %vm933, 0.0
        %992 = vst.msk [vmem:[%s932 + $0x7b0] sm:$0xf] %vm933, 0.0
        %993 = vst.msk [vmem:[%s932 + $0x7c8] sm:$0xf] %vm933, 0.0
        %994 = vst.msk [vmem:[%s932 + $0x7e0] sm:$0xf] %vm933, 0.0
        %995 = vst.msk [vmem:[%s932 + $0x7f8] sm:$0xf] %vm933, 0.0
        %996 = vst.msk [vmem:[%s932 + $0x810] sm:$0xf] %vm933, 0.0
        %997 = vst.msk [vmem:[%s932 + $0x828] sm:$0xf] %vm933, 0.0
        %998 = vst.msk [vmem:[%s932 + $0x14] sm:$0xf] %vm933, 0.0
        %999 = vst.msk [vmem:[%s932 + $0x2c] sm:$0xf] %vm933, 0.0
        %1000 = vst.msk [vmem:[%s932 + $0x44] sm:$0xf] %vm933, 0.0
        %1001 = vst.msk [vmem:[%s932 + $0x5c] sm:$0xf] %vm933, 0.0
        %1002 = vst.msk [vmem:[%s932 + $0x74] sm:$0xf] %vm933, 0.0
        %1003 = vst.msk [vmem:[%s932 + $0x8c] sm:$0xf] %vm933, 0.0
        %1004 = vst.msk [vmem:[%s932 + $0xa4] sm:$0xf] %vm933, 0.0
        %1005 = vst.msk [vmem:[%s932 + $0xbc] sm:$0xf] %vm933, 0.0
        %1006 = vst.msk [vmem:[%s932 + $0xd4] sm:$0xf] %vm933, 0.0
        %1007 = vst.msk [vmem:[%s932 + $0xec] sm:$0xf] %vm933, 0.0
        %1008 = vst.msk [vmem:[%s932 + $0x104] sm:$0xf] %vm933, 0.0
        %1009 = vst.msk [vmem:[%s932 + $0x11c] sm:$0xf] %vm933, 0.0
        %1010 = vst.msk [vmem:[%s932 + $0x134] sm:$0xf] %vm933, 0.0
        %1011 = vst.msk [vmem:[%s932 + $0x14c] sm:$0xf] %vm933, 0.0
        %1012 = vst.msk [vmem:[%s932 + $0x164] sm:$0xf] %vm933, 0.0
        %1013 = vst.msk [vmem:[%s932 + $0x17c] sm:$0xf] %vm933, 0.0
        %1014 = vst.msk [vmem:[%s932 + $0x254] sm:$0xf] %vm933, 0.0
        %1015 = vst.msk [vmem:[%s932 + $0x26c] sm:$0xf] %vm933, 0.0
        %1016 = vst.msk [vmem:[%s932 + $0x284] sm:$0xf] %vm933, 0.0
        %1017 = vst.msk [vmem:[%s932 + $0x29c] sm:$0xf] %vm933, 0.0
        %1018 = vst.msk [vmem:[%s932 + $0x2b4] sm:$0xf] %vm933, 0.0
        %1019 = vst.msk [vmem:[%s932 + $0x2cc] sm:$0xf] %vm933, 0.0
        %1020 = vst.msk [vmem:[%s932 + $0x2e4] sm:$0xf] %vm933, 0.0
        %1021 = vst.msk [vmem:[%s932 + $0x2fc] sm:$0xf] %vm933, 0.0
        %1022 = vst.msk [vmem:[%s932 + $0x314] sm:$0xf] %vm933, 0.0
        %1023 = vst.msk [vmem:[%s932 + $0x32c] sm:$0xf] %vm933, 0.0
        %1024 = vst.msk [vmem:[%s932 + $0x344] sm:$0xf] %vm933, 0.0
        %1025 = vst.msk [vmem:[%s932 + $0x35c] sm:$0xf] %vm933, 0.0
        %1026 = vst.msk [vmem:[%s932 + $0x374] sm:$0xf] %vm933, 0.0
        %1027 = vst.msk [vmem:[%s932 + $0x38c] sm:$0xf] %vm933, 0.0
        %1028 = vst.msk [vmem:[%s932 + $0x3a4] sm:$0xf] %vm933, 0.0
        %1029 = vst.msk [vmem:[%s932 + $0x3bc] sm:$0xf] %vm933, 0.0
        %1030 = vst.msk [vmem:[%s932 + $0x494] sm:$0xf] %vm933, 0.0
        %1031 = vst.msk [vmem:[%s932 + $0x4ac] sm:$0xf] %vm933, 0.0
        %1032 = vst.msk [vmem:[%s932 + $0x4c4] sm:$0xf] %vm933, 0.0
        %1033 = vst.msk [vmem:[%s932 + $0x4dc] sm:$0xf] %vm933, 0.0
        %1034 = vst.msk [vmem:[%s932 + $0x4f4] sm:$0xf] %vm933, 0.0
        %1035 = vst.msk [vmem:[%s932 + $0x50c] sm:$0xf] %vm933, 0.0
        %1036 = vst.msk [vmem:[%s932 + $0x524] sm:$0xf] %vm933, 0.0
        %1037 = vst.msk [vmem:[%s932 + $0x53c] sm:$0xf] %vm933, 0.0
        %1038 = vst.msk [vmem:[%s932 + $0x554] sm:$0xf] %vm933, 0.0
        %1039 = vst.msk [vmem:[%s932 + $0x56c] sm:$0xf] %vm933, 0.0
        %1040 = vst.msk [vmem:[%s932 + $0x584] sm:$0xf] %vm933, 0.0
        %1041 = vst.msk [vmem:[%s932 + $0x59c] sm:$0xf] %vm933, 0.0
        %1042 = vst.msk [vmem:[%s932 + $0x5b4] sm:$0xf] %vm933, 0.0
        %1043 = vst.msk [vmem:[%s932 + $0x5cc] sm:$0xf] %vm933, 0.0
        %1044 = vst.msk [vmem:[%s932 + $0x5e4] sm:$0xf] %vm933, 0.0
        %1045 = vst.msk [vmem:[%s932 + $0x5fc] sm:$0xf] %vm933, 0.0
        %1046 = vst.msk [vmem:[%s932 + $0x6d4] sm:$0xf] %vm933, 0.0
        %1047 = vst.msk [vmem:[%s932 + $0x6ec] sm:$0xf] %vm933, 0.0
        %1048 = vst.msk [vmem:[%s932 + $0x704] sm:$0xf] %vm933, 0.0
        %1049 = vst.msk [vmem:[%s932 + $0x71c] sm:$0xf] %vm933, 0.0
        %1050 = vst.msk [vmem:[%s932 + $0x734] sm:$0xf] %vm933, 0.0
        %1051 = vst.msk [vmem:[%s932 + $0x74c] sm:$0xf] %vm933, 0.0
        %1052 = vst.msk [vmem:[%s932 + $0x764] sm:$0xf] %vm933, 0.0
        %1053 = vst.msk [vmem:[%s932 + $0x77c] sm:$0xf] %vm933, 0.0
        %1054 = vst.msk [vmem:[%s932 + $0x794] sm:$0xf] %vm933, 0.0
        %1055 = vst.msk [vmem:[%s932 + $0x7ac] sm:$0xf] %vm933, 0.0
        %1056 = vst.msk [vmem:[%s932 + $0x7c4] sm:$0xf] %vm933, 0.0
        %1057 = vst.msk [vmem:[%s932 + $0x7dc] sm:$0xf] %vm933, 0.0
        %1058 = vst.msk [vmem:[%s932 + $0x7f4] sm:$0xf] %vm933, 0.0
        %1059 = vst.msk [vmem:[%s932 + $0x80c] sm:$0xf] %vm933, 0.0
        %1060 = vst.msk [vmem:[%s932 + $0x824] sm:$0xf] %vm933, 0.0
        %1061 = vst.msk [vmem:[%s932 + $0x83c] sm:$0xf] %vm933, 0.0
        %v1062 = vld [vmem:[#allocation10] sm:$0x7]
        %v1063 = vld [vmem:[#allocation10 + $0x4] sm:$0x7]
        %v1064 = vld [vmem:[#allocation10 + $0x8] sm:$0x7]
        %v1065 = vld [vmem:[#allocation10 + $0xc] sm:$0x7]
        %v1066 = vld [vmem:[#allocation10 + $0x10] sm:$0x7]
        %v1067 = vld [vmem:[#allocation10 + $0x14] sm:$0x7]
        %v1068 = vld [vmem:[#allocation10 + $0x18] sm:$0x7]
        %v1069 = vld [vmem:[#allocation10 + $0x1c] sm:$0x7]
        %v1070 = vld [vmem:[#allocation10 + $0x20] sm:$0x7]
        %v1071 = vld [vmem:[#allocation10 + $0x24] sm:$0x7]
        %v1072 = vld [vmem:[#allocation10 + $0x28] sm:$0x7]
        %v1073 = vld [vmem:[#allocation10 + $0x2c] sm:$0x7]
        %v1074 = vld [vmem:[#allocation12] sm:$0xf]
        %v1075 = vld [vmem:[#allocation13] sm:$0xf]
        %1076 = vst.msk [vmem:[%s932 + $0x4] sm:$0xff] %vm834, %v770
        %1077 = vst.msk [vmem:[%s932 + $0xc] sm:$0xff] %vm834, %v772
        %1078 = vst.msk [vmem:[%s932 + $0x1c] sm:$0xff] %vm834, %v774
        %1079 = vst.msk [vmem:[%s932 + $0x24] sm:$0xff] %vm834, %v776
        %1080 = vst.msk [vmem:[%s932 + $0x34] sm:$0xff] %vm834, %v778
        %1081 = vst.msk [vmem:[%s932 + $0x3c] sm:$0xff] %vm834, %v780
        %1082 = vst.msk [vmem:[%s932 + $0x4c] sm:$0xff] %vm834, %v782
        %1083 = vst.msk [vmem:[%s932 + $0x54] sm:$0xff] %vm834, %v784
        %1084 = vst.msk [vmem:[%s932 + $0x64] sm:$0xff] %vm834, %v786
        %1085 = vst.msk [vmem:[%s932 + $0x6c] sm:$0xff] %vm834, %v788
        %1086 = vst.msk [vmem:[%s932 + $0x7c] sm:$0xff] %vm834, %v790
        %1087 = vst.msk [vmem:[%s932 + $0x84] sm:$0xff] %vm834, %v792
        %1088 = vst.msk [vmem:[%s932 + $0x94] sm:$0xff] %vm834, %v794
        %1089 = vst.msk [vmem:[%s932 + $0x9c] sm:$0xff] %vm834, %v796
        %1090 = vst.msk [vmem:[%s932 + $0xac] sm:$0xff] %vm834, %v798
        %1091 = vst.msk [vmem:[%s932 + $0xb4] sm:$0xff] %vm834, %v800
        %1092 = vst.msk [vmem:[%s932 + $0xc4] sm:$0xff] %vm834, %v802
        %1093 = vst.msk [vmem:[%s932 + $0xcc] sm:$0xff] %vm834, %v804
        %1094 = vst.msk [vmem:[%s932 + $0xdc] sm:$0xff] %vm834, %v806
        %1095 = vst.msk [vmem:[%s932 + $0xe4] sm:$0xff] %vm834, %v808
        %1096 = vst.msk [vmem:[%s932 + $0xf4] sm:$0xff] %vm834, %v810
        %1097 = vst.msk [vmem:[%s932 + $0xfc] sm:$0xff] %vm834, %v812
        %1098 = vst.msk [vmem:[%s932 + $0x10c] sm:$0xff] %vm834, %v814
        %1099 = vst.msk [vmem:[%s932 + $0x114] sm:$0xff] %vm834, %v816
        %1100 = vst.msk [vmem:[%s932 + $0x124] sm:$0xff] %vm834, %v818
        %1101 = vst.msk [vmem:[%s932 + $0x12c] sm:$0xff] %vm834, %v820
        %1102 = vst.msk [vmem:[%s932 + $0x13c] sm:$0xff] %vm834, %v822
        %1103 = vst.msk [vmem:[%s932 + $0x144] sm:$0xff] %vm834, %v824
        %1104 = vst.msk [vmem:[%s932 + $0x154] sm:$0xff] %vm834, %v826
        %1105 = vst.msk [vmem:[%s932 + $0x15c] sm:$0xff] %vm834, %v828
        %1106 = vst.msk [vmem:[%s932 + $0x16c] sm:$0xff] %vm834, %v830
        %1107 = vst.msk [vmem:[%s932 + $0x174] sm:$0xff] %vm834, %v832
        %s1108 = scalar_lea.vmem [#allocation2], 72
        %v1109 = vld [vmem:[%s1108 + $0x3] sm:$0xff]
        %v1110 = vld [vmem:[%s1108 + $0xb] sm:$0xff]
        %v1111 = vld [vmem:[%s1108 + $0x1b] sm:$0xff]
        %v1112 = vld [vmem:[%s1108 + $0x23] sm:$0xff]
        %v1113 = vld [vmem:[%s1108 + $0x33] sm:$0xff]
        %v1114 = vld [vmem:[%s1108 + $0x3b] sm:$0xff]
        %v1115 = vld [vmem:[%s1108 + $0x4b] sm:$0xff]
        %v1116 = vld [vmem:[%s1108 + $0x53] sm:$0xff]
        %v1117 = vld [vmem:[%s1108 + $0x63] sm:$0xff]
        %v1118 = vld [vmem:[%s1108 + $0x6b] sm:$0xff]
        %v1119 = vld [vmem:[%s1108 + $0x7b] sm:$0xff]
        %v1120 = vld [vmem:[%s1108 + $0x83] sm:$0xff]
        %v1121 = vld [vmem:[%s1108 + $0x93] sm:$0xff]
        %v1122 = vld [vmem:[%s1108 + $0x9b] sm:$0xff]
        %v1123 = vld [vmem:[%s1108 + $0xab] sm:$0xff]
        %v1124 = vld [vmem:[%s1108 + $0xb3] sm:$0xff]
        %v1125 = vld [vmem:[%s1108 + $0xc3] sm:$0xff]
        %v1126 = vld [vmem:[%s1108 + $0xcb] sm:$0xff]
        %v1127 = vld [vmem:[%s1108 + $0xdb] sm:$0xff]
        %v1128 = vld [vmem:[%s1108 + $0xe3] sm:$0xff]
        %v1129 = vld [vmem:[%s1108 + $0xf3] sm:$0xff]
        %v1130 = vld [vmem:[%s1108 + $0xfb] sm:$0xff]
        %v1131 = vld [vmem:[%s1108 + $0x10b] sm:$0xff]
        %v1132 = vld [vmem:[%s1108 + $0x113] sm:$0xff]
        %v1133 = vld [vmem:[%s1108 + $0x123] sm:$0xff]
        %v1134 = vld [vmem:[%s1108 + $0x12b] sm:$0xff]
        %v1135 = vld [vmem:[%s1108 + $0x13b] sm:$0xff]
        %v1136 = vld [vmem:[%s1108 + $0x143] sm:$0xff]
        %v1137 = vld [vmem:[%s1108 + $0x153] sm:$0xff]
        %v1138 = vld [vmem:[%s1108 + $0x15b] sm:$0xff]
        %v1139 = vld [vmem:[%s1108 + $0x16b] sm:$0xff]
        %v1140 = vld [vmem:[%s1108 + $0x173] sm:$0xff]
        %v1141 = vlaneseq
        %v1142 = vshrl.u32 %v1141, 7
        %v1143 = vsub.s32 0, %v1142
        %v1144 = vrot.slane %v1062, %v1143
        %v1145 = vmul.f32 %v1109, %v1144
        %v1146 = vmul.f32 %v1110, %v1144
        %v1147 = vmul.f32 %v1111, %v1144
        %v1148 = vmul.f32 %v1112, %v1144
        %v1149 = vmul.f32 %v1113, %v1144
        %v1150 = vmul.f32 %v1114, %v1144
        %v1151 = vmul.f32 %v1115, %v1144
        %v1152 = vmul.f32 %v1116, %v1144
        %v1153 = vmul.f32 %v1117, %v1144
        %v1154 = vmul.f32 %v1118, %v1144
        %v1155 = vmul.f32 %v1119, %v1144
        %v1156 = vmul.f32 %v1120, %v1144
        %v1157 = vmul.f32 %v1121, %v1144
        %v1158 = vmul.f32 %v1122, %v1144
        %v1159 = vmul.f32 %v1123, %v1144
        %v1160 = vmul.f32 %v1124, %v1144
        %v1161 = vmul.f32 %v1125, %v1144
        %v1162 = vmul.f32 %v1126, %v1144
        %v1163 = vmul.f32 %v1127, %v1144
        %v1164 = vmul.f32 %v1128, %v1144
        %v1165 = vmul.f32 %v1129, %v1144
        %v1166 = vmul.f32 %v1130, %v1144
        %v1167 = vmul.f32 %v1131, %v1144
        %v1168 = vmul.f32 %v1132, %v1144
        %v1169 = vmul.f32 %v1133, %v1144
        %v1170 = vmul.f32 %v1134, %v1144
        %v1171 = vmul.f32 %v1135, %v1144
        %v1172 = vmul.f32 %v1136, %v1144
        %v1173 = vmul.f32 %v1137, %v1144
        %v1174 = vmul.f32 %v1138, %v1144
        %v1175 = vmul.f32 %v1139, %v1144
        %v1176 = vmul.f32 %v1140, %v1144
        %v1177 = vld [vmem:[%s1108 + $0x4] sm:$0xff]
        %v1178 = vld [vmem:[%s1108 + $0xc] sm:$0xff]
        %v1179 = vld [vmem:[%s1108 + $0x1c] sm:$0xff]
        %v1180 = vld [vmem:[%s1108 + $0x24] sm:$0xff]
        %v1181 = vld [vmem:[%s1108 + $0x34] sm:$0xff]
        %v1182 = vld [vmem:[%s1108 + $0x3c] sm:$0xff]
        %v1183 = vld [vmem:[%s1108 + $0x4c] sm:$0xff]
        %v1184 = vld [vmem:[%s1108 + $0x54] sm:$0xff]
        %v1185 = vld [vmem:[%s1108 + $0x64] sm:$0xff]
        %v1186 = vld [vmem:[%s1108 + $0x6c] sm:$0xff]
        %v1187 = vld [vmem:[%s1108 + $0x7c] sm:$0xff]
        %v1188 = vld [vmem:[%s1108 + $0x84] sm:$0xff]
        %v1189 = vld [vmem:[%s1108 + $0x94] sm:$0xff]
        %v1190 = vld [vmem:[%s1108 + $0x9c] sm:$0xff]
        %v1191 = vld [vmem:[%s1108 + $0xac] sm:$0xff]
        %v1192 = vld [vmem:[%s1108 + $0xb4] sm:$0xff]
        %v1193 = vld [vmem:[%s1108 + $0xc4] sm:$0xff]
        %v1194 = vld [vmem:[%s1108 + $0xcc] sm:$0xff]
        %v1195 = vld [vmem:[%s1108 + $0xdc] sm:$0xff]
        %v1196 = vld [vmem:[%s1108 + $0xe4] sm:$0xff]
        %v1197 = vld [vmem:[%s1108 + $0xf4] sm:$0xff]
        %v1198 = vld [vmem:[%s1108 + $0xfc] sm:$0xff]
        %v1199 = vld [vmem:[%s1108 + $0x10c] sm:$0xff]
        %v1200 = vld [vmem:[%s1108 + $0x114] sm:$0xff]
        %v1201 = vld [vmem:[%s1108 + $0x124] sm:$0xff]
        %v1202 = vld [vmem:[%s1108 + $0x12c] sm:$0xff]
        %v1203 = vld [vmem:[%s1108 + $0x13c] sm:$0xff]
        %v1204 = vld [vmem:[%s1108 + $0x144] sm:$0xff]
        %v1205 = vld [vmem:[%s1108 + $0x154] sm:$0xff]
        %v1206 = vld [vmem:[%s1108 + $0x15c] sm:$0xff]
        %v1207 = vld [vmem:[%s1108 + $0x16c] sm:$0xff]
        %v1208 = vld [vmem:[%s1108 + $0x174] sm:$0xff]
        %v1209 = vlaneseq
        %v1210 = vshrl.u32 %v1209, 7
        %v1211 = vsub.s32 1, %v1210
        %v1212 = vrot.slane %v1062, %v1211
        %v1213 = vmul.f32 %v1177, %v1212
        %v1214 = vmul.f32 %v1178, %v1212
        %v1215 = vmul.f32 %v1179, %v1212
        %v1216 = vmul.f32 %v1180, %v1212
        %v1217 = vmul.f32 %v1181, %v1212
        %v1218 = vmul.f32 %v1182, %v1212
        %v1219 = vmul.f32 %v1183, %v1212
        %v1220 = vmul.f32 %v1184, %v1212
        %v1221 = vmul.f32 %v1185, %v1212
        %v1222 = vmul.f32 %v1186, %v1212
        %v1223 = vmul.f32 %v1187, %v1212
        %v1224 = vmul.f32 %v1188, %v1212
        %v1225 = vmul.f32 %v1189, %v1212
        %v1226 = vmul.f32 %v1190, %v1212
        %v1227 = vmul.f32 %v1191, %v1212
        %v1228 = vmul.f32 %v1192, %v1212
        %v1229 = vmul.f32 %v1193, %v1212
        %v1230 = vmul.f32 %v1194, %v1212
        %v1231 = vmul.f32 %v1195, %v1212
        %v1232 = vmul.f32 %v1196, %v1212
        %v1233 = vmul.f32 %v1197, %v1212
        %v1234 = vmul.f32 %v1198, %v1212
        %v1235 = vmul.f32 %v1199, %v1212
        %v1236 = vmul.f32 %v1200, %v1212
        %v1237 = vmul.f32 %v1201, %v1212
        %v1238 = vmul.f32 %v1202, %v1212
        %v1239 = vmul.f32 %v1203, %v1212
        %v1240 = vmul.f32 %v1204, %v1212
        %v1241 = vmul.f32 %v1205, %v1212
        %v1242 = vmul.f32 %v1206, %v1212
        %v1243 = vmul.f32 %v1207, %v1212
        %v1244 = vmul.f32 %v1208, %v1212
        %v1245 = vadd.f32 %v1145, %v1213
        %v1246 = vadd.f32 %v1146, %v1214
        %v1247 = vadd.f32 %v1147, %v1215
        %v1248 = vadd.f32 %v1148, %v1216
        %v1249 = vadd.f32 %v1149, %v1217
        %v1250 = vadd.f32 %v1150, %v1218
        %v1251 = vadd.f32 %v1151, %v1219
        %v1252 = vadd.f32 %v1152, %v1220
        %v1253 = vadd.f32 %v1153, %v1221
        %v1254 = vadd.f32 %v1154, %v1222
        %v1255 = vadd.f32 %v1155, %v1223
        %v1256 = vadd.f32 %v1156, %v1224
        %v1257 = vadd.f32 %v1157, %v1225
        %v1258 = vadd.f32 %v1158, %v1226
        %v1259 = vadd.f32 %v1159, %v1227
        %v1260 = vadd.f32 %v1160, %v1228
        %v1261 = vadd.f32 %v1161, %v1229
        %v1262 = vadd.f32 %v1162, %v1230
        %v1263 = vadd.f32 %v1163, %v1231
        %v1264 = vadd.f32 %v1164, %v1232
        %v1265 = vadd.f32 %v1165, %v1233
        %v1266 = vadd.f32 %v1166, %v1234
        %v1267 = vadd.f32 %v1167, %v1235
        %v1268 = vadd.f32 %v1168, %v1236
        %v1269 = vadd.f32 %v1169, %v1237
        %v1270 = vadd.f32 %v1170, %v1238
        %v1271 = vadd.f32 %v1171, %v1239
        %v1272 = vadd.f32 %v1172, %v1240
        %v1273 = vadd.f32 %v1173, %v1241
        %v1274 = vadd.f32 %v1174, %v1242
        %v1275 = vadd.f32 %v1175, %v1243
        %v1276 = vadd.f32 %v1176, %v1244
        %v1277 = vld [vmem:[%s1108 + $0x5] sm:$0xff]
        %v1278 = vld [vmem:[%s1108 + $0xd] sm:$0xff]
        %v1279 = vld [vmem:[%s1108 + $0x1d] sm:$0xff]
        %v1280 = vld [vmem:[%s1108 + $0x25] sm:$0xff]
        %v1281 = vld [vmem:[%s1108 + $0x35] sm:$0xff]
        %v1282 = vld [vmem:[%s1108 + $0x3d] sm:$0xff]
        %v1283 = vld [vmem:[%s1108 + $0x4d] sm:$0xff]
        %v1284 = vld [vmem:[%s1108 + $0x55] sm:$0xff]
        %v1285 = vld [vmem:[%s1108 + $0x65] sm:$0xff]
        %v1286 = vld [vmem:[%s1108 + $0x6d] sm:$0xff]
        %v1287 = vld [vmem:[%s1108 + $0x7d] sm:$0xff]
        %v1288 = vld [vmem:[%s1108 + $0x85] sm:$0xff]
        %v1289 = vld [vmem:[%s1108 + $0x95] sm:$0xff]
        %v1290 = vld [vmem:[%s1108 + $0x9d] sm:$0xff]
        %v1291 = vld [vmem:[%s1108 + $0xad] sm:$0xff]
        %v1292 = vld [vmem:[%s1108 + $0xb5] sm:$0xff]
        %v1293 = vld [vmem:[%s1108 + $0xc5] sm:$0xff]
        %v1294 = vld [vmem:[%s1108 + $0xcd] sm:$0xff]
        %v1295 = vld [vmem:[%s1108 + $0xdd] sm:$0xff]
        %v1296 = vld [vmem:[%s1108 + $0xe5] sm:$0xff]
        %v1297 = vld [vmem:[%s1108 + $0xf5] sm:$0xff]
        %v1298 = vld [vmem:[%s1108 + $0xfd] sm:$0xff]
        %v1299 = vld [vmem:[%s1108 + $0x10d] sm:$0xff]
        %v1300 = vld [vmem:[%s1108 + $0x115] sm:$0xff]
        %v1301 = vld [vmem:[%s1108 + $0x125] sm:$0xff]
        %v1302 = vld [vmem:[%s1108 + $0x12d] sm:$0xff]
        %v1303 = vld [vmem:[%s1108 + $0x13d] sm:$0xff]
        %v1304 = vld [vmem:[%s1108 + $0x145] sm:$0xff]
        %v1305 = vld [vmem:[%s1108 + $0x155] sm:$0xff]
        %v1306 = vld [vmem:[%s1108 + $0x15d] sm:$0xff]
        %v1307 = vld [vmem:[%s1108 + $0x16d] sm:$0xff]
        %v1308 = vld [vmem:[%s1108 + $0x175] sm:$0xff]
        %v1309 = vlaneseq
        %v1310 = vshrl.u32 %v1309, 7
        %v1311 = vsub.s32 2, %v1310
        %v1312 = vrot.slane %v1062, %v1311
        %v1313 = vmul.f32 %v1277, %v1312
        %v1314 = vmul.f32 %v1278, %v1312
        %v1315 = vmul.f32 %v1279, %v1312
        %v1316 = vmul.f32 %v1280, %v1312
        %v1317 = vmul.f32 %v1281, %v1312
        %v1318 = vmul.f32 %v1282, %v1312
        %v1319 = vmul.f32 %v1283, %v1312
        %v1320 = vmul.f32 %v1284, %v1312
        %v1321 = vmul.f32 %v1285, %v1312
        %v1322 = vmul.f32 %v1286, %v1312
        %v1323 = vmul.f32 %v1287, %v1312
        %v1324 = vmul.f32 %v1288, %v1312
        %v1325 = vmul.f32 %v1289, %v1312
        %v1326 = vmul.f32 %v1290, %v1312
        %v1327 = vmul.f32 %v1291, %v1312
        %v1328 = vmul.f32 %v1292, %v1312
        %v1329 = vmul.f32 %v1293, %v1312
        %v1330 = vmul.f32 %v1294, %v1312
        %v1331 = vmul.f32 %v1295, %v1312
        %v1332 = vmul.f32 %v1296, %v1312
        %v1333 = vmul.f32 %v1297, %v1312
        %v1334 = vmul.f32 %v1298, %v1312
        %v1335 = vmul.f32 %v1299, %v1312
        %v1336 = vmul.f32 %v1300, %v1312
        %v1337 = vmul.f32 %v1301, %v1312
        %v1338 = vmul.f32 %v1302, %v1312
        %v1339 = vmul.f32 %v1303, %v1312
        %v1340 = vmul.f32 %v1304, %v1312
        %v1341 = vmul.f32 %v1305, %v1312
        %v1342 = vmul.f32 %v1306, %v1312
        %v1343 = vmul.f32 %v1307, %v1312
        %v1344 = vmul.f32 %v1308, %v1312
        %v1345 = vadd.f32 %v1245, %v1313
        %v1346 = vadd.f32 %v1246, %v1314
        %v1347 = vadd.f32 %v1247, %v1315
        %v1348 = vadd.f32 %v1248, %v1316
        %v1349 = vadd.f32 %v1249, %v1317
        %v1350 = vadd.f32 %v1250, %v1318
        %v1351 = vadd.f32 %v1251, %v1319
        %v1352 = vadd.f32 %v1252, %v1320
        %v1353 = vadd.f32 %v1253, %v1321
        %v1354 = vadd.f32 %v1254, %v1322
        %v1355 = vadd.f32 %v1255, %v1323
        %v1356 = vadd.f32 %v1256, %v1324
        %v1357 = vadd.f32 %v1257, %v1325
        %v1358 = vadd.f32 %v1258, %v1326
        %v1359 = vadd.f32 %v1259, %v1327
        %v1360 = vadd.f32 %v1260, %v1328
        %v1361 = vadd.f32 %v1261, %v1329
        %v1362 = vadd.f32 %v1262, %v1330
        %v1363 = vadd.f32 %v1263, %v1331
        %v1364 = vadd.f32 %v1264, %v1332
        %v1365 = vadd.f32 %v1265, %v1333
        %v1366 = vadd.f32 %v1266, %v1334
        %v1367 = vadd.f32 %v1267, %v1335
        %v1368 = vadd.f32 %v1268, %v1336
        %v1369 = vadd.f32 %v1269, %v1337
        %v1370 = vadd.f32 %v1270, %v1338
        %v1371 = vadd.f32 %v1271, %v1339
        %v1372 = vadd.f32 %v1272, %v1340
        %v1373 = vadd.f32 %v1273, %v1341
        %v1374 = vadd.f32 %v1274, %v1342
        %v1375 = vadd.f32 %v1275, %v1343
        %v1376 = vadd.f32 %v1276, %v1344
        %v1377 = vld [vmem:[%s932 + $0x3] sm:$0xff]
        %v1378 = vld [vmem:[%s932 + $0xb] sm:$0xff]
        %v1379 = vld [vmem:[%s932 + $0x1b] sm:$0xff]
        %v1380 = vld [vmem:[%s932 + $0x23] sm:$0xff]
        %v1381 = vld [vmem:[%s932 + $0x33] sm:$0xff]
        %v1382 = vld [vmem:[%s932 + $0x3b] sm:$0xff]
        %v1383 = vld [vmem:[%s932 + $0x4b] sm:$0xff]
        %v1384 = vld [vmem:[%s932 + $0x53] sm:$0xff]
        %v1385 = vld [vmem:[%s932 + $0x63] sm:$0xff]
        %v1386 = vld [vmem:[%s932 + $0x6b] sm:$0xff]
        %v1387 = vld [vmem:[%s932 + $0x7b] sm:$0xff]
        %v1388 = vld [vmem:[%s932 + $0x83] sm:$0xff]
        %v1389 = vld [vmem:[%s932 + $0x93] sm:$0xff]
        %v1390 = vld [vmem:[%s932 + $0x9b] sm:$0xff]
        %v1391 = vld [vmem:[%s932 + $0xab] sm:$0xff]
        %v1392 = vld [vmem:[%s932 + $0xb3] sm:$0xff]
        %v1393 = vld [vmem:[%s932 + $0xc3] sm:$0xff]
        %v1394 = vld [vmem:[%s932 + $0xcb] sm:$0xff]
        %v1395 = vld [vmem:[%s932 + $0xdb] sm:$0xff]
        %v1396 = vld [vmem:[%s932 + $0xe3] sm:$0xff]
        %v1397 = vld [vmem:[%s932 + $0xf3] sm:$0xff]
        %v1398 = vld [vmem:[%s932 + $0xfb] sm:$0xff]
        %v1399 = vld [vmem:[%s932 + $0x10b] sm:$0xff]
        %v1400 = vld [vmem:[%s932 + $0x113] sm:$0xff]
        %v1401 = vld [vmem:[%s932 + $0x123] sm:$0xff]
        %v1402 = vld [vmem:[%s932 + $0x12b] sm:$0xff]
        %v1403 = vld [vmem:[%s932 + $0x13b] sm:$0xff]
        %v1404 = vld [vmem:[%s932 + $0x143] sm:$0xff]
        %v1405 = vld [vmem:[%s932 + $0x153] sm:$0xff]
        %v1406 = vld [vmem:[%s932 + $0x15b] sm:$0xff]
        %v1407 = vld [vmem:[%s932 + $0x16b] sm:$0xff]
        %v1408 = vld [vmem:[%s932 + $0x173] sm:$0xff]
        %v1409 = vlaneseq
        %v1410 = vshrl.u32 %v1409, 7
        %v1411 = vsub.s32 0, %v1410
        %v1412 = vrot.slane %v1063, %v1411
        %v1413 = vmul.f32 %v1377, %v1412
        %v1414 = vmul.f32 %v1378, %v1412
        %v1415 = vmul.f32 %v1379, %v1412
        %v1416 = vmul.f32 %v1380, %v1412
        %v1417 = vmul.f32 %v1381, %v1412
        %v1418 = vmul.f32 %v1382, %v1412
        %v1419 = vmul.f32 %v1383, %v1412
        %v1420 = vmul.f32 %v1384, %v1412
        %v1421 = vmul.f32 %v1385, %v1412
        %v1422 = vmul.f32 %v1386, %v1412
        %v1423 = vmul.f32 %v1387, %v1412
        %v1424 = vmul.f32 %v1388, %v1412
        %v1425 = vmul.f32 %v1389, %v1412
        %v1426 = vmul.f32 %v1390, %v1412
        %v1427 = vmul.f32 %v1391, %v1412
        %v1428 = vmul.f32 %v1392, %v1412
        %v1429 = vmul.f32 %v1393, %v1412
        %v1430 = vmul.f32 %v1394, %v1412
        %v1431 = vmul.f32 %v1395, %v1412
        %v1432 = vmul.f32 %v1396, %v1412
        %v1433 = vmul.f32 %v1397, %v1412
        %v1434 = vmul.f32 %v1398, %v1412
        %v1435 = vmul.f32 %v1399, %v1412
        %v1436 = vmul.f32 %v1400, %v1412
        %v1437 = vmul.f32 %v1401, %v1412
        %v1438 = vmul.f32 %v1402, %v1412
        %v1439 = vmul.f32 %v1403, %v1412
        %v1440 = vmul.f32 %v1404, %v1412
        %v1441 = vmul.f32 %v1405, %v1412
        %v1442 = vmul.f32 %v1406, %v1412
        %v1443 = vmul.f32 %v1407, %v1412
        %v1444 = vmul.f32 %v1408, %v1412
        %v1445 = vadd.f32 %v1345, %v1413
        %v1446 = vadd.f32 %v1346, %v1414
        %v1447 = vadd.f32 %v1347, %v1415
        %v1448 = vadd.f32 %v1348, %v1416
        %v1449 = vadd.f32 %v1349, %v1417
        %v1450 = vadd.f32 %v1350, %v1418
        %v1451 = vadd.f32 %v1351, %v1419
        %v1452 = vadd.f32 %v1352, %v1420
        %v1453 = vadd.f32 %v1353, %v1421
        %v1454 = vadd.f32 %v1354, %v1422
        %v1455 = vadd.f32 %v1355, %v1423
        %v1456 = vadd.f32 %v1356, %v1424
        %v1457 = vadd.f32 %v1357, %v1425
        %v1458 = vadd.f32 %v1358, %v1426
        %v1459 = vadd.f32 %v1359, %v1427
        %v1460 = vadd.f32 %v1360, %v1428
        %v1461 = vadd.f32 %v1361, %v1429
        %v1462 = vadd.f32 %v1362, %v1430
        %v1463 = vadd.f32 %v1363, %v1431
        %v1464 = vadd.f32 %v1364, %v1432
        %v1465 = vadd.f32 %v1365, %v1433
        %v1466 = vadd.f32 %v1366, %v1434
        %v1467 = vadd.f32 %v1367, %v1435
        %v1468 = vadd.f32 %v1368, %v1436
        %v1469 = vadd.f32 %v1369, %v1437
        %v1470 = vadd.f32 %v1370, %v1438
        %v1471 = vadd.f32 %v1371, %v1439
        %v1472 = vadd.f32 %v1372, %v1440
        %v1473 = vadd.f32 %v1373, %v1441
        %v1474 = vadd.f32 %v1374, %v1442
        %v1475 = vadd.f32 %v1375, %v1443
        %v1476 = vadd.f32 %v1376, %v1444
        %v1477 = vld [vmem:[%s932 + $0x4] sm:$0xff]
        %v1478 = vld [vmem:[%s932 + $0xc] sm:$0xff]
        %v1479 = vld [vmem:[%s932 + $0x1c] sm:$0xff]
        %v1480 = vld [vmem:[%s932 + $0x24] sm:$0xff]
        %v1481 = vld [vmem:[%s932 + $0x34] sm:$0xff]
        %v1482 = vld [vmem:[%s932 + $0x3c] sm:$0xff]
        %v1483 = vld [vmem:[%s932 + $0x4c] sm:$0xff]
        %v1484 = vld [vmem:[%s932 + $0x54] sm:$0xff]
        %v1485 = vld [vmem:[%s932 + $0x64] sm:$0xff]
        %v1486 = vld [vmem:[%s932 + $0x6c] sm:$0xff]
        %v1487 = vld [vmem:[%s932 + $0x7c] sm:$0xff]
        %v1488 = vld [vmem:[%s932 + $0x84] sm:$0xff]
        %v1489 = vld [vmem:[%s932 + $0x94] sm:$0xff]
        %v1490 = vld [vmem:[%s932 + $0x9c] sm:$0xff]
        %v1491 = vld [vmem:[%s932 + $0xac] sm:$0xff]
        %v1492 = vld [vmem:[%s932 + $0xb4] sm:$0xff]
        %v1493 = vld [vmem:[%s932 + $0xc4] sm:$0xff]
        %v1494 = vld [vmem:[%s932 + $0xcc] sm:$0xff]
        %v1495 = vld [vmem:[%s932 + $0xdc] sm:$0xff]
        %v1496 = vld [vmem:[%s932 + $0xe4] sm:$0xff]
        %v1497 = vld [vmem:[%s932 + $0xf4] sm:$0xff]
        %v1498 = vld [vmem:[%s932 + $0xfc] sm:$0xff]
        %v1499 = vld [vmem:[%s932 + $0x10c] sm:$0xff]
        %v1500 = vld [vmem:[%s932 + $0x114] sm:$0xff]
        %v1501 = vld [vmem:[%s932 + $0x124] sm:$0xff]
        %v1502 = vld [vmem:[%s932 + $0x12c] sm:$0xff]
        %v1503 = vld [vmem:[%s932 + $0x13c] sm:$0xff]
        %v1504 = vld [vmem:[%s932 + $0x144] sm:$0xff]
        %v1505 = vld [vmem:[%s932 + $0x154] sm:$0xff]
        %v1506 = vld [vmem:[%s932 + $0x15c] sm:$0xff]
        %v1507 = vld [vmem:[%s932 + $0x16c] sm:$0xff]
        %v1508 = vld [vmem:[%s932 + $0x174] sm:$0xff]
        %v1509 = vlaneseq
        %v1510 = vshrl.u32 %v1509, 7
        %v1511 = vsub.s32 1, %v1510
        %v1512 = vrot.slane %v1063, %v1511
        %v1513 = vmul.f32 %v1477, %v1512
        %v1514 = vmul.f32 %v1478, %v1512
        %v1515 = vmul.f32 %v1479, %v1512
        %v1516 = vmul.f32 %v1480, %v1512
        %v1517 = vmul.f32 %v1481, %v1512
        %v1518 = vmul.f32 %v1482, %v1512
        %v1519 = vmul.f32 %v1483, %v1512
        %v1520 = vmul.f32 %v1484, %v1512
        %v1521 = vmul.f32 %v1485, %v1512
        %v1522 = vmul.f32 %v1486, %v1512
        %v1523 = vmul.f32 %v1487, %v1512
        %v1524 = vmul.f32 %v1488, %v1512
        %v1525 = vmul.f32 %v1489, %v1512
        %v1526 = vmul.f32 %v1490, %v1512
        %v1527 = vmul.f32 %v1491, %v1512
        %v1528 = vmul.f32 %v1492, %v1512
        %v1529 = vmul.f32 %v1493, %v1512
        %v1530 = vmul.f32 %v1494, %v1512
        %v1531 = vmul.f32 %v1495, %v1512
        %v1532 = vmul.f32 %v1496, %v1512
        %v1533 = vmul.f32 %v1497, %v1512
        %v1534 = vmul.f32 %v1498, %v1512
        %v1535 = vmul.f32 %v1499, %v1512
        %v1536 = vmul.f32 %v1500, %v1512
        %v1537 = vmul.f32 %v1501, %v1512
        %v1538 = vmul.f32 %v1502, %v1512
        %v1539 = vmul.f32 %v1503, %v1512
        %v1540 = vmul.f32 %v1504, %v1512
        %v1541 = vmul.f32 %v1505, %v1512
        %v1542 = vmul.f32 %v1506, %v1512
        %v1543 = vmul.f32 %v1507, %v1512
        %v1544 = vmul.f32 %v1508, %v1512
        %v1545 = vadd.f32 %v1445, %v1513
        %v1546 = vadd.f32 %v1446, %v1514
        %v1547 = vadd.f32 %v1447, %v1515
        %v1548 = vadd.f32 %v1448, %v1516
        %v1549 = vadd.f32 %v1449, %v1517
        %v1550 = vadd.f32 %v1450, %v1518
        %v1551 = vadd.f32 %v1451, %v1519
        %v1552 = vadd.f32 %v1452, %v1520
        %v1553 = vadd.f32 %v1453, %v1521
        %v1554 = vadd.f32 %v1454, %v1522
        %v1555 = vadd.f32 %v1455, %v1523
        %v1556 = vadd.f32 %v1456, %v1524
        %v1557 = vadd.f32 %v1457, %v1525
        %v1558 = vadd.f32 %v1458, %v1526
        %v1559 = vadd.f32 %v1459, %v1527
        %v1560 = vadd.f32 %v1460, %v1528
        %v1561 = vadd.f32 %v1461, %v1529
        %v1562 = vadd.f32 %v1462, %v1530
        %v1563 = vadd.f32 %v1463, %v1531
        %v1564 = vadd.f32 %v1464, %v1532
        %v1565 = vadd.f32 %v1465, %v1533
        %v1566 = vadd.f32 %v1466, %v1534
        %v1567 = vadd.f32 %v1467, %v1535
        %v1568 = vadd.f32 %v1468, %v1536
        %v1569 = vadd.f32 %v1469, %v1537
        %v1570 = vadd.f32 %v1470, %v1538
        %v1571 = vadd.f32 %v1471, %v1539
        %v1572 = vadd.f32 %v1472, %v1540
        %v1573 = vadd.f32 %v1473, %v1541
        %v1574 = vadd.f32 %v1474, %v1542
        %v1575 = vadd.f32 %v1475, %v1543
        %v1576 = vadd.f32 %v1476, %v1544
        %v1577 = vld [vmem:[%s932 + $0x5] sm:$0xff]
        %v1578 = vld [vmem:[%s932 + $0xd] sm:$0xff]
        %v1579 = vld [vmem:[%s932 + $0x1d] sm:$0xff]
        %v1580 = vld [vmem:[%s932 + $0x25] sm:$0xff]
        %v1581 = vld [vmem:[%s932 + $0x35] sm:$0xff]
        %v1582 = vld [vmem:[%s932 + $0x3d] sm:$0xff]
        %v1583 = vld [vmem:[%s932 + $0x4d] sm:$0xff]
        %v1584 = vld [vmem:[%s932 + $0x55] sm:$0xff]
        %v1585 = vld [vmem:[%s932 + $0x65] sm:$0xff]
        %v1586 = vld [vmem:[%s932 + $0x6d] sm:$0xff]
        %v1587 = vld [vmem:[%s932 + $0x7d] sm:$0xff]
        %v1588 = vld [vmem:[%s932 + $0x85] sm:$0xff]
        %v1589 = vld [vmem:[%s932 + $0x95] sm:$0xff]
        %v1590 = vld [vmem:[%s932 + $0x9d] sm:$0xff]
        %v1591 = vld [vmem:[%s932 + $0xad] sm:$0xff]
        %v1592 = vld [vmem:[%s932 + $0xb5] sm:$0xff]
        %v1593 = vld [vmem:[%s932 + $0xc5] sm:$0xff]
        %v1594 = vld [vmem:[%s932 + $0xcd] sm:$0xff]
        %v1595 = vld [vmem:[%s932 + $0xdd] sm:$0xff]
        %v1596 = vld [vmem:[%s932 + $0xe5] sm:$0xff]
        %v1597 = vld [vmem:[%s932 + $0xf5] sm:$0xff]
        %v1598 = vld [vmem:[%s932 + $0xfd] sm:$0xff]
        %v1599 = vld [vmem:[%s932 + $0x10d] sm:$0xff]
        %v1600 = vld [vmem:[%s932 + $0x115] sm:$0xff]
        %v1601 = vld [vmem:[%s932 + $0x125] sm:$0xff]
        %v1602 = vld [vmem:[%s932 + $0x12d] sm:$0xff]
        %v1603 = vld [vmem:[%s932 + $0x13d] sm:$0xff]
        %v1604 = vld [vmem:[%s932 + $0x145] sm:$0xff]
        %v1605 = vld [vmem:[%s932 + $0x155] sm:$0xff]
        %v1606 = vld [vmem:[%s932 + $0x15d] sm:$0xff]
        %v1607 = vld [vmem:[%s932 + $0x16d] sm:$0xff]
        %v1608 = vld [vmem:[%s932 + $0x175] sm:$0xff]
        %v1609 = vlaneseq
        %v1610 = vshrl.u32 %v1609, 7
        %v1611 = vsub.s32 2, %v1610
        %v1612 = vrot.slane %v1063, %v1611
        %v1613 = vmul.f32 %v1577, %v1612
        %v1614 = vmul.f32 %v1578, %v1612
        %v1615 = vmul.f32 %v1579, %v1612
        %v1616 = vmul.f32 %v1580, %v1612
        %v1617 = vmul.f32 %v1581, %v1612
        %v1618 = vmul.f32 %v1582, %v1612
        %v1619 = vmul.f32 %v1583, %v1612
        %v1620 = vmul.f32 %v1584, %v1612
        %v1621 = vmul.f32 %v1585, %v1612
        %v1622 = vmul.f32 %v1586, %v1612
        %v1623 = vmul.f32 %v1587, %v1612
        %v1624 = vmul.f32 %v1588, %v1612
        %v1625 = vmul.f32 %v1589, %v1612
        %v1626 = vmul.f32 %v1590, %v1612
        %v1627 = vmul.f32 %v1591, %v1612
        %v1628 = vmul.f32 %v1592, %v1612
        %v1629 = vmul.f32 %v1593, %v1612
        %v1630 = vmul.f32 %v1594, %v1612
        %v1631 = vmul.f32 %v1595, %v1612
        %v1632 = vmul.f32 %v1596, %v1612
        %v1633 = vmul.f32 %v1597, %v1612
        %v1634 = vmul.f32 %v1598, %v1612
        %v1635 = vmul.f32 %v1599, %v1612
        %v1636 = vmul.f32 %v1600, %v1612
        %v1637 = vmul.f32 %v1601, %v1612
        %v1638 = vmul.f32 %v1602, %v1612
        %v1639 = vmul.f32 %v1603, %v1612
        %v1640 = vmul.f32 %v1604, %v1612
        %v1641 = vmul.f32 %v1605, %v1612
        %v1642 = vmul.f32 %v1606, %v1612
        %v1643 = vmul.f32 %v1607, %v1612
        %v1644 = vmul.f32 %v1608, %v1612
        %v1645 = vadd.f32 %v1545, %v1613
        %v1646 = vadd.f32 %v1546, %v1614
        %v1647 = vadd.f32 %v1547, %v1615
        %v1648 = vadd.f32 %v1548, %v1616
        %v1649 = vadd.f32 %v1549, %v1617
        %v1650 = vadd.f32 %v1550, %v1618
        %v1651 = vadd.f32 %v1551, %v1619
        %v1652 = vadd.f32 %v1552, %v1620
        %v1653 = vadd.f32 %v1553, %v1621
        %v1654 = vadd.f32 %v1554, %v1622
        %v1655 = vadd.f32 %v1555, %v1623
        %v1656 = vadd.f32 %v1556, %v1624
        %v1657 = vadd.f32 %v1557, %v1625
        %v1658 = vadd.f32 %v1558, %v1626
        %v1659 = vadd.f32 %v1559, %v1627
        %v1660 = vadd.f32 %v1560, %v1628
        %v1661 = vadd.f32 %v1561, %v1629
        %v1662 = vadd.f32 %v1562, %v1630
        %v1663 = vadd.f32 %v1563, %v1631
        %v1664 = vadd.f32 %v1564, %v1632
        %v1665 = vadd.f32 %v1565, %v1633
        %v1666 = vadd.f32 %v1566, %v1634
        %v1667 = vadd.f32 %v1567, %v1635
        %v1668 = vadd.f32 %v1568, %v1636
        %v1669 = vadd.f32 %v1569, %v1637
        %v1670 = vadd.f32 %v1570, %v1638
        %v1671 = vadd.f32 %v1571, %v1639
        %v1672 = vadd.f32 %v1572, %v1640
        %v1673 = vadd.f32 %v1573, %v1641
        %v1674 = vadd.f32 %v1574, %v1642
        %v1675 = vadd.f32 %v1575, %v1643
        %v1676 = vadd.f32 %v1576, %v1644
        %s1677 = scalar_lea.vmem [#allocation2], 120
        %v1678 = vld [vmem:[%s1677 + $0x3] sm:$0xff]
        %v1679 = vld [vmem:[%s1677 + $0xb] sm:$0xff]
        %v1680 = vld [vmem:[%s1677 + $0x1b] sm:$0xff]
        %v1681 = vld [vmem:[%s1677 + $0x23] sm:$0xff]
        %v1682 = vld [vmem:[%s1677 + $0x33] sm:$0xff]
        %v1683 = vld [vmem:[%s1677 + $0x3b] sm:$0xff]
        %v1684 = vld [vmem:[%s1677 + $0x4b] sm:$0xff]
        %v1685 = vld [vmem:[%s1677 + $0x53] sm:$0xff]
        %v1686 = vld [vmem:[%s1677 + $0x63] sm:$0xff]
        %v1687 = vld [vmem:[%s1677 + $0x6b] sm:$0xff]
        %v1688 = vld [vmem:[%s1677 + $0x7b] sm:$0xff]
        %v1689 = vld [vmem:[%s1677 + $0x83] sm:$0xff]
        %v1690 = vld [vmem:[%s1677 + $0x93] sm:$0xff]
        %v1691 = vld [vmem:[%s1677 + $0x9b] sm:$0xff]
        %v1692 = vld [vmem:[%s1677 + $0xab] sm:$0xff]
        %v1693 = vld [vmem:[%s1677 + $0xb3] sm:$0xff]
        %v1694 = vld [vmem:[%s1677 + $0xc3] sm:$0xff]
        %v1695 = vld [vmem:[%s1677 + $0xcb] sm:$0xff]
        %v1696 = vld [vmem:[%s1677 + $0xdb] sm:$0xff]
        %v1697 = vld [vmem:[%s1677 + $0xe3] sm:$0xff]
        %v1698 = vld [vmem:[%s1677 + $0xf3] sm:$0xff]
        %v1699 = vld [vmem:[%s1677 + $0xfb] sm:$0xff]
        %v1700 = vld [vmem:[%s1677 + $0x10b] sm:$0xff]
        %v1701 = vld [vmem:[%s1677 + $0x113] sm:$0xff]
        %v1702 = vld [vmem:[%s1677 + $0x123] sm:$0xff]
        %v1703 = vld [vmem:[%s1677 + $0x12b] sm:$0xff]
        %v1704 = vld [vmem:[%s1677 + $0x13b] sm:$0xff]
        %v1705 = vld [vmem:[%s1677 + $0x143] sm:$0xff]
        %v1706 = vld [vmem:[%s1677 + $0x153] sm:$0xff]
        %v1707 = vld [vmem:[%s1677 + $0x15b] sm:$0xff]
        %v1708 = vld [vmem:[%s1677 + $0x16b] sm:$0xff]
        %v1709 = vld [vmem:[%s1677 + $0x173] sm:$0xff]
        %v1710 = vlaneseq
        %v1711 = vshrl.u32 %v1710, 7
        %v1712 = vsub.s32 0, %v1711
        %v1713 = vrot.slane %v1064, %v1712
        %v1714 = vmul.f32 %v1678, %v1713
        %v1715 = vmul.f32 %v1679, %v1713
        %v1716 = vmul.f32 %v1680, %v1713
        %v1717 = vmul.f32 %v1681, %v1713
        %v1718 = vmul.f32 %v1682, %v1713
        %v1719 = vmul.f32 %v1683, %v1713
        %v1720 = vmul.f32 %v1684, %v1713
        %v1721 = vmul.f32 %v1685, %v1713
        %v1722 = vmul.f32 %v1686, %v1713
        %v1723 = vmul.f32 %v1687, %v1713
        %v1724 = vmul.f32 %v1688, %v1713
        %v1725 = vmul.f32 %v1689, %v1713
        %v1726 = vmul.f32 %v1690, %v1713
        %v1727 = vmul.f32 %v1691, %v1713
        %v1728 = vmul.f32 %v1692, %v1713
        %v1729 = vmul.f32 %v1693, %v1713
        %v1730 = vmul.f32 %v1694, %v1713
        %v1731 = vmul.f32 %v1695, %v1713
        %v1732 = vmul.f32 %v1696, %v1713
        %v1733 = vmul.f32 %v1697, %v1713
        %v1734 = vmul.f32 %v1698, %v1713
        %v1735 = vmul.f32 %v1699, %v1713
        %v1736 = vmul.f32 %v1700, %v1713
        %v1737 = vmul.f32 %v1701, %v1713
        %v1738 = vmul.f32 %v1702, %v1713
        %v1739 = vmul.f32 %v1703, %v1713
        %v1740 = vmul.f32 %v1704, %v1713
        %v1741 = vmul.f32 %v1705, %v1713
        %v1742 = vmul.f32 %v1706, %v1713
        %v1743 = vmul.f32 %v1707, %v1713
        %v1744 = vmul.f32 %v1708, %v1713
        %v1745 = vmul.f32 %v1709, %v1713
        %v1746 = vadd.f32 %v1645, %v1714
        %v1747 = vadd.f32 %v1646, %v1715
        %v1748 = vadd.f32 %v1647, %v1716
        %v1749 = vadd.f32 %v1648, %v1717
        %v1750 = vadd.f32 %v1649, %v1718
        %v1751 = vadd.f32 %v1650, %v1719
        %v1752 = vadd.f32 %v1651, %v1720
        %v1753 = vadd.f32 %v1652, %v1721
        %v1754 = vadd.f32 %v1653, %v1722
        %v1755 = vadd.f32 %v1654, %v1723
        %v1756 = vadd.f32 %v1655, %v1724
        %v1757 = vadd.f32 %v1656, %v1725
        %v1758 = vadd.f32 %v1657, %v1726
        %v1759 = vadd.f32 %v1658, %v1727
        %v1760 = vadd.f32 %v1659, %v1728
        %v1761 = vadd.f32 %v1660, %v1729
        %v1762 = vadd.f32 %v1661, %v1730
        %v1763 = vadd.f32 %v1662, %v1731
        %v1764 = vadd.f32 %v1663, %v1732
        %v1765 = vadd.f32 %v1664, %v1733
        %v1766 = vadd.f32 %v1665, %v1734
        %v1767 = vadd.f32 %v1666, %v1735
        %v1768 = vadd.f32 %v1667, %v1736
        %v1769 = vadd.f32 %v1668, %v1737
        %v1770 = vadd.f32 %v1669, %v1738
        %v1771 = vadd.f32 %v1670, %v1739
        %v1772 = vadd.f32 %v1671, %v1740
        %v1773 = vadd.f32 %v1672, %v1741
        %v1774 = vadd.f32 %v1673, %v1742
        %v1775 = vadd.f32 %v1674, %v1743
        %v1776 = vadd.f32 %v1675, %v1744
        %v1777 = vadd.f32 %v1676, %v1745
        %v1778 = vld [vmem:[%s1677 + $0x4] sm:$0xff]
        %v1779 = vld [vmem:[%s1677 + $0xc] sm:$0xff]
        %v1780 = vld [vmem:[%s1677 + $0x1c] sm:$0xff]
        %v1781 = vld [vmem:[%s1677 + $0x24] sm:$0xff]
        %v1782 = vld [vmem:[%s1677 + $0x34] sm:$0xff]
        %v1783 = vld [vmem:[%s1677 + $0x3c] sm:$0xff]
        %v1784 = vld [vmem:[%s1677 + $0x4c] sm:$0xff]
        %v1785 = vld [vmem:[%s1677 + $0x54] sm:$0xff]
        %v1786 = vld [vmem:[%s1677 + $0x64] sm:$0xff]
        %v1787 = vld [vmem:[%s1677 + $0x6c] sm:$0xff]
        %v1788 = vld [vmem:[%s1677 + $0x7c] sm:$0xff]
        %v1789 = vld [vmem:[%s1677 + $0x84] sm:$0xff]
        %v1790 = vld [vmem:[%s1677 + $0x94] sm:$0xff]
        %v1791 = vld [vmem:[%s1677 + $0x9c] sm:$0xff]
        %v1792 = vld [vmem:[%s1677 + $0xac] sm:$0xff]
        %v1793 = vld [vmem:[%s1677 + $0xb4] sm:$0xff]
        %v1794 = vld [vmem:[%s1677 + $0xc4] sm:$0xff]
        %v1795 = vld [vmem:[%s1677 + $0xcc] sm:$0xff]
        %v1796 = vld [vmem:[%s1677 + $0xdc] sm:$0xff]
        %v1797 = vld [vmem:[%s1677 + $0xe4] sm:$0xff]
        %v1798 = vld [vmem:[%s1677 + $0xf4] sm:$0xff]
        %v1799 = vld [vmem:[%s1677 + $0xfc] sm:$0xff]
        %v1800 = vld [vmem:[%s1677 + $0x10c] sm:$0xff]
        %v1801 = vld [vmem:[%s1677 + $0x114] sm:$0xff]
        %v1802 = vld [vmem:[%s1677 + $0x124] sm:$0xff]
        %v1803 = vld [vmem:[%s1677 + $0x12c] sm:$0xff]
        %v1804 = vld [vmem:[%s1677 + $0x13c] sm:$0xff]
        %v1805 = vld [vmem:[%s1677 + $0x144] sm:$0xff]
        %v1806 = vld [vmem:[%s1677 + $0x154] sm:$0xff]
        %v1807 = vld [vmem:[%s1677 + $0x15c] sm:$0xff]
        %v1808 = vld [vmem:[%s1677 + $0x16c] sm:$0xff]
        %v1809 = vld [vmem:[%s1677 + $0x174] sm:$0xff]
        %v1810 = vlaneseq
        %v1811 = vshrl.u32 %v1810, 7
        %v1812 = vsub.s32 1, %v1811
        %v1813 = vrot.slane %v1064, %v1812
        %v1814 = vmul.f32 %v1778, %v1813
        %v1815 = vmul.f32 %v1779, %v1813
        %v1816 = vmul.f32 %v1780, %v1813
        %v1817 = vmul.f32 %v1781, %v1813
        %v1818 = vmul.f32 %v1782, %v1813
        %v1819 = vmul.f32 %v1783, %v1813
        %v1820 = vmul.f32 %v1784, %v1813
        %v1821 = vmul.f32 %v1785, %v1813
        %v1822 = vmul.f32 %v1786, %v1813
        %v1823 = vmul.f32 %v1787, %v1813
        %v1824 = vmul.f32 %v1788, %v1813
        %v1825 = vmul.f32 %v1789, %v1813
        %v1826 = vmul.f32 %v1790, %v1813
        %v1827 = vmul.f32 %v1791, %v1813
        %v1828 = vmul.f32 %v1792, %v1813
        %v1829 = vmul.f32 %v1793, %v1813
        %v1830 = vmul.f32 %v1794, %v1813
        %v1831 = vmul.f32 %v1795, %v1813
        %v1832 = vmul.f32 %v1796, %v1813
        %v1833 = vmul.f32 %v1797, %v1813
        %v1834 = vmul.f32 %v1798, %v1813
        %v1835 = vmul.f32 %v1799, %v1813
        %v1836 = vmul.f32 %v1800, %v1813
        %v1837 = vmul.f32 %v1801, %v1813
        %v1838 = vmul.f32 %v1802, %v1813
        %v1839 = vmul.f32 %v1803, %v1813
        %v1840 = vmul.f32 %v1804, %v1813
        %v1841 = vmul.f32 %v1805, %v1813
        %v1842 = vmul.f32 %v1806, %v1813
        %v1843 = vmul.f32 %v1807, %v1813
        %v1844 = vmul.f32 %v1808, %v1813
        %v1845 = vmul.f32 %v1809, %v1813
        %v1846 = vadd.f32 %v1746, %v1814
        %v1847 = vadd.f32 %v1747, %v1815
        %v1848 = vadd.f32 %v1748, %v1816
        %v1849 = vadd.f32 %v1749, %v1817
        %v1850 = vadd.f32 %v1750, %v1818
        %v1851 = vadd.f32 %v1751, %v1819
        %v1852 = vadd.f32 %v1752, %v1820
        %v1853 = vadd.f32 %v1753, %v1821
        %v1854 = vadd.f32 %v1754, %v1822
        %v1855 = vadd.f32 %v1755, %v1823
        %v1856 = vadd.f32 %v1756, %v1824
        %v1857 = vadd.f32 %v1757, %v1825
        %v1858 = vadd.f32 %v1758, %v1826
        %v1859 = vadd.f32 %v1759, %v1827
        %v1860 = vadd.f32 %v1760, %v1828
        %v1861 = vadd.f32 %v1761, %v1829
        %v1862 = vadd.f32 %v1762, %v1830
        %v1863 = vadd.f32 %v1763, %v1831
        %v1864 = vadd.f32 %v1764, %v1832
        %v1865 = vadd.f32 %v1765, %v1833
        %v1866 = vadd.f32 %v1766, %v1834
        %v1867 = vadd.f32 %v1767, %v1835
        %v1868 = vadd.f32 %v1768, %v1836
        %v1869 = vadd.f32 %v1769, %v1837
        %v1870 = vadd.f32 %v1770, %v1838
        %v1871 = vadd.f32 %v1771, %v1839
        %v1872 = vadd.f32 %v1772, %v1840
        %v1873 = vadd.f32 %v1773, %v1841
        %v1874 = vadd.f32 %v1774, %v1842
        %v1875 = vadd.f32 %v1775, %v1843
        %v1876 = vadd.f32 %v1776, %v1844
        %v1877 = vadd.f32 %v1777, %v1845
        %v1878 = vld [vmem:[%s1677 + $0x5] sm:$0xff]
        %v1879 = vld [vmem:[%s1677 + $0xd] sm:$0xff]
        %v1880 = vld [vmem:[%s1677 + $0x1d] sm:$0xff]
        %v1881 = vld [vmem:[%s1677 + $0x25] sm:$0xff]
        %v1882 = vld [vmem:[%s1677 + $0x35] sm:$0xff]
        %v1883 = vld [vmem:[%s1677 + $0x3d] sm:$0xff]
        %v1884 = vld [vmem:[%s1677 + $0x4d] sm:$0xff]
        %v1885 = vld [vmem:[%s1677 + $0x55] sm:$0xff]
        %v1886 = vld [vmem:[%s1677 + $0x65] sm:$0xff]
        %v1887 = vld [vmem:[%s1677 + $0x6d] sm:$0xff]
        %v1888 = vld [vmem:[%s1677 + $0x7d] sm:$0xff]
        %v1889 = vld [vmem:[%s1677 + $0x85] sm:$0xff]
        %v1890 = vld [vmem:[%s1677 + $0x95] sm:$0xff]
        %v1891 = vld [vmem:[%s1677 + $0x9d] sm:$0xff]
        %v1892 = vld [vmem:[%s1677 + $0xad] sm:$0xff]
        %v1893 = vld [vmem:[%s1677 + $0xb5] sm:$0xff]
        %v1894 = vld [vmem:[%s1677 + $0xc5] sm:$0xff]
        %v1895 = vld [vmem:[%s1677 + $0xcd] sm:$0xff]
        %v1896 = vld [vmem:[%s1677 + $0xdd] sm:$0xff]
        %v1897 = vld [vmem:[%s1677 + $0xe5] sm:$0xff]
        %v1898 = vld [vmem:[%s1677 + $0xf5] sm:$0xff]
        %v1899 = vld [vmem:[%s1677 + $0xfd] sm:$0xff]
        %v1900 = vld [vmem:[%s1677 + $0x10d] sm:$0xff]
        %v1901 = vld [vmem:[%s1677 + $0x115] sm:$0xff]
        %v1902 = vld [vmem:[%s1677 + $0x125] sm:$0xff]
        %v1903 = vld [vmem:[%s1677 + $0x12d] sm:$0xff]
        %v1904 = vld [vmem:[%s1677 + $0x13d] sm:$0xff]
        %v1905 = vld [vmem:[%s1677 + $0x145] sm:$0xff]
        %v1906 = vld [vmem:[%s1677 + $0x155] sm:$0xff]
        %v1907 = vld [vmem:[%s1677 + $0x15d] sm:$0xff]
        %v1908 = vld [vmem:[%s1677 + $0x16d] sm:$0xff]
        %v1909 = vld [vmem:[%s1677 + $0x175] sm:$0xff]
        %v1910 = vlaneseq
        %v1911 = vshrl.u32 %v1910, 7
        %v1912 = vsub.s32 2, %v1911
        %v1913 = vrot.slane %v1064, %v1912
        %v1914 = vmul.f32 %v1878, %v1913
        %v1915 = vmul.f32 %v1879, %v1913
        %v1916 = vmul.f32 %v1880, %v1913
        %v1917 = vmul.f32 %v1881, %v1913
        %v1918 = vmul.f32 %v1882, %v1913
        %v1919 = vmul.f32 %v1883, %v1913
        %v1920 = vmul.f32 %v1884, %v1913
        %v1921 = vmul.f32 %v1885, %v1913
        %v1922 = vmul.f32 %v1886, %v1913
        %v1923 = vmul.f32 %v1887, %v1913
        %v1924 = vmul.f32 %v1888, %v1913
        %v1925 = vmul.f32 %v1889, %v1913
        %v1926 = vmul.f32 %v1890, %v1913
        %v1927 = vmul.f32 %v1891, %v1913
        %v1928 = vmul.f32 %v1892, %v1913
        %v1929 = vmul.f32 %v1893, %v1913
        %v1930 = vmul.f32 %v1894, %v1913
        %v1931 = vmul.f32 %v1895, %v1913
        %v1932 = vmul.f32 %v1896, %v1913
        %v1933 = vmul.f32 %v1897, %v1913
        %v1934 = vmul.f32 %v1898, %v1913
        %v1935 = vmul.f32 %v1899, %v1913
        %v1936 = vmul.f32 %v1900, %v1913
        %v1937 = vmul.f32 %v1901, %v1913
        %v1938 = vmul.f32 %v1902, %v1913
        %v1939 = vmul.f32 %v1903, %v1913
        %v1940 = vmul.f32 %v1904, %v1913
        %v1941 = vmul.f32 %v1905, %v1913
        %v1942 = vmul.f32 %v1906, %v1913
        %v1943 = vmul.f32 %v1907, %v1913
        %v1944 = vmul.f32 %v1908, %v1913
        %v1945 = vmul.f32 %v1909, %v1913
        %v1946 = vadd.f32 %v1846, %v1914
        %v1947 = vadd.f32 %v1847, %v1915
        %v1948 = vadd.f32 %v1848, %v1916
        %v1949 = vadd.f32 %v1849, %v1917
        %v1950 = vadd.f32 %v1850, %v1918
        %v1951 = vadd.f32 %v1851, %v1919
        %v1952 = vadd.f32 %v1852, %v1920
        %v1953 = vadd.f32 %v1853, %v1921
        %v1954 = vadd.f32 %v1854, %v1922
        %v1955 = vadd.f32 %v1855, %v1923
        %v1956 = vadd.f32 %v1856, %v1924
        %v1957 = vadd.f32 %v1857, %v1925
        %v1958 = vadd.f32 %v1858, %v1926
        %v1959 = vadd.f32 %v1859, %v1927
        %v1960 = vadd.f32 %v1860, %v1928
        %v1961 = vadd.f32 %v1861, %v1929
        %v1962 = vadd.f32 %v1862, %v1930
        %v1963 = vadd.f32 %v1863, %v1931
        %v1964 = vadd.f32 %v1864, %v1932
        %v1965 = vadd.f32 %v1865, %v1933
        %v1966 = vadd.f32 %v1866, %v1934
        %v1967 = vadd.f32 %v1867, %v1935
        %v1968 = vadd.f32 %v1868, %v1936
        %v1969 = vadd.f32 %v1869, %v1937
        %v1970 = vadd.f32 %v1870, %v1938
        %v1971 = vadd.f32 %v1871, %v1939
        %v1972 = vadd.f32 %v1872, %v1940
        %v1973 = vadd.f32 %v1873, %v1941
        %v1974 = vadd.f32 %v1874, %v1942
        %v1975 = vadd.f32 %v1875, %v1943
        %v1976 = vadd.f32 %v1876, %v1944
        %v1977 = vadd.f32 %v1877, %v1945
        %v1978 = vlaneseq
        %v1979 = vshrl.u32 %v1978, 7
        %v1980 = vsub.s32 0, %v1979
        %v1981 = vrot.slane %v1074, %v1980
        %v1982 = vadd.f32 %v1946, %v1981
        %v1983 = vadd.f32 %v1947, %v1981
        %v1984 = vadd.f32 %v1948, %v1981
        %v1985 = vadd.f32 %v1949, %v1981
        %v1986 = vadd.f32 %v1950, %v1981
        %v1987 = vadd.f32 %v1951, %v1981
        %v1988 = vadd.f32 %v1952, %v1981
        %v1989 = vadd.f32 %v1953, %v1981
        %v1990 = vadd.f32 %v1954, %v1981
        %v1991 = vadd.f32 %v1955, %v1981
        %v1992 = vadd.f32 %v1956, %v1981
        %v1993 = vadd.f32 %v1957, %v1981
        %v1994 = vadd.f32 %v1958, %v1981
        %v1995 = vadd.f32 %v1959, %v1981
        %v1996 = vadd.f32 %v1960, %v1981
        %v1997 = vadd.f32 %v1961, %v1981
        %v1998 = vadd.f32 %v1962, %v1981
        %v1999 = vadd.f32 %v1963, %v1981
        %v2000 = vadd.f32 %v1964, %v1981
        %v2001 = vadd.f32 %v1965, %v1981
        %v2002 = vadd.f32 %v1966, %v1981
        %v2003 = vadd.f32 %v1967, %v1981
        %v2004 = vadd.f32 %v1968, %v1981
        %v2005 = vadd.f32 %v1969, %v1981
        %v2006 = vadd.f32 %v1970, %v1981
        %v2007 = vadd.f32 %v1971, %v1981
        %v2008 = vadd.f32 %v1972, %v1981
        %v2009 = vadd.f32 %v1973, %v1981
        %v2010 = vadd.f32 %v1974, %v1981
        %v2011 = vadd.f32 %v1975, %v1981
        %v2012 = vadd.f32 %v1976, %v1981
        %v2013 = vadd.f32 %v1977, %v1981
        %v2014 = vmax.f32 %v1982, 0.0
        %v2015 = vmax.f32 %v1983, 0.0
        %v2016 = vmax.f32 %v1984, 0.0
        %v2017 = vmax.f32 %v1985, 0.0
        %v2018 = vmax.f32 %v1986, 0.0
        %v2019 = vmax.f32 %v1987, 0.0
        %v2020 = vmax.f32 %v1988, 0.0
        %v2021 = vmax.f32 %v1989, 0.0
        %v2022 = vmax.f32 %v1990, 0.0
        %v2023 = vmax.f32 %v1991, 0.0
        %v2024 = vmax.f32 %v1992, 0.0
        %v2025 = vmax.f32 %v1993, 0.0
        %v2026 = vmax.f32 %v1994, 0.0
        %v2027 = vmax.f32 %v1995, 0.0
        %v2028 = vmax.f32 %v1996, 0.0
        %v2029 = vmax.f32 %v1997, 0.0
        %v2030 = vmax.f32 %v1998, 0.0
        %v2031 = vmax.f32 %v1999, 0.0
        %v2032 = vmax.f32 %v2000, 0.0
        %v2033 = vmax.f32 %v2001, 0.0
        %v2034 = vmax.f32 %v2002, 0.0
        %v2035 = vmax.f32 %v2003, 0.0
        %v2036 = vmax.f32 %v2004, 0.0
        %v2037 = vmax.f32 %v2005, 0.0
        %v2038 = vmax.f32 %v2006, 0.0
        %v2039 = vmax.f32 %v2007, 0.0
        %v2040 = vmax.f32 %v2008, 0.0
        %v2041 = vmax.f32 %v2009, 0.0
        %v2042 = vmax.f32 %v2010, 0.0
        %v2043 = vmax.f32 %v2011, 0.0
        %v2044 = vmax.f32 %v2012, 0.0
        %v2045 = vmax.f32 %v2013, 0.0
        %v2046 = vlaneseq
        %v2047 = vshrl.u32 %v2046, 7
        %v2048 = vsub.s32 0, %v2047
        %v2049 = vrot.slane %v1075, %v2048
        %v2050 = vmul.f32 %v2014, %v2049
        %v2051 = vmul.f32 %v2015, %v2049
        %v2052 = vmul.f32 %v2016, %v2049
        %v2053 = vmul.f32 %v2017, %v2049
        %v2054 = vmul.f32 %v2018, %v2049
        %v2055 = vmul.f32 %v2019, %v2049
        %v2056 = vmul.f32 %v2020, %v2049
        %v2057 = vmul.f32 %v2021, %v2049
        %v2058 = vmul.f32 %v2022, %v2049
        %v2059 = vmul.f32 %v2023, %v2049
        %v2060 = vmul.f32 %v2024, %v2049
        %v2061 = vmul.f32 %v2025, %v2049
        %v2062 = vmul.f32 %v2026, %v2049
        %v2063 = vmul.f32 %v2027, %v2049
        %v2064 = vmul.f32 %v2028, %v2049
        %v2065 = vmul.f32 %v2029, %v2049
        %v2066 = vmul.f32 %v2030, %v2049
        %v2067 = vmul.f32 %v2031, %v2049
        %v2068 = vmul.f32 %v2032, %v2049
        %v2069 = vmul.f32 %v2033, %v2049
        %v2070 = vmul.f32 %v2034, %v2049
        %v2071 = vmul.f32 %v2035, %v2049
        %v2072 = vmul.f32 %v2036, %v2049
        %v2073 = vmul.f32 %v2037, %v2049
        %v2074 = vmul.f32 %v2038, %v2049
        %v2075 = vmul.f32 %v2039, %v2049
        %v2076 = vmul.f32 %v2040, %v2049
        %v2077 = vmul.f32 %v2041, %v2049
        %v2078 = vmul.f32 %v2042, %v2049
        %v2079 = vmul.f32 %v2043, %v2049
        %v2080 = vmul.f32 %v2044, %v2049
        %v2081 = vmul.f32 %v2045, %v2049
        %v2082 = vsel %vm834, %v2050, 0.0
        %2083 = vadd.xlane.f32.xlu0 %v2082
        %v2084 = vpop.xlane.xlu0 %2083
        %v2085 = vsel %vm834, %v2051, 0.0
        %2086 = vadd.xlane.f32.xlu0 %v2085
        %v2087 = vpop.xlane.xlu0 %2086
        %v2088 = vsel %vm834, %v2052, 0.0
        %2089 = vadd.xlane.f32.xlu0 %v2088
        %v2090 = vpop.xlane.xlu0 %2089
        %v2091 = vsel %vm834, %v2053, 0.0
        %2092 = vadd.xlane.f32.xlu0 %v2091
        %v2093 = vpop.xlane.xlu0 %2092
        %v2094 = vsel %vm834, %v2054, 0.0
        %2095 = vadd.xlane.f32.xlu0 %v2094
        %v2096 = vpop.xlane.xlu0 %2095
        %v2097 = vsel %vm834, %v2055, 0.0
        %2098 = vadd.xlane.f32.xlu0 %v2097
        %v2099 = vpop.xlane.xlu0 %2098
        %v2100 = vsel %vm834, %v2056, 0.0
        %2101 = vadd.xlane.f32.xlu0 %v2100
        %v2102 = vpop.xlane.xlu0 %2101
        %v2103 = vsel %vm834, %v2057, 0.0
        %2104 = vadd.xlane.f32.xlu0 %v2103
        %v2105 = vpop.xlane.xlu0 %2104
        %v2106 = vsel %vm834, %v2058, 0.0
        %2107 = vadd.xlane.f32.xlu0 %v2106
        %v2108 = vpop.xlane.xlu0 %2107
        %v2109 = vsel %vm834, %v2059, 0.0
        %2110 = vadd.xlane.f32.xlu0 %v2109
        %v2111 = vpop.xlane.xlu0 %2110
        %v2112 = vsel %vm834, %v2060, 0.0
        %2113 = vadd.xlane.f32.xlu0 %v2112
        %v2114 = vpop.xlane.xlu0 %2113
        %v2115 = vsel %vm834, %v2061, 0.0
        %2116 = vadd.xlane.f32.xlu0 %v2115
        %v2117 = vpop.xlane.xlu0 %2116
        %v2118 = vsel %vm834, %v2062, 0.0
        %2119 = vadd.xlane.f32.xlu0 %v2118
        %v2120 = vpop.xlane.xlu0 %2119
        %v2121 = vsel %vm834, %v2063, 0.0
        %2122 = vadd.xlane.f32.xlu0 %v2121
        %v2123 = vpop.xlane.xlu0 %2122
        %v2124 = vsel %vm834, %v2064, 0.0
        %2125 = vadd.xlane.f32.xlu0 %v2124
        %v2126 = vpop.xlane.xlu0 %2125
        %v2127 = vsel %vm834, %v2065, 0.0
        %2128 = vadd.xlane.f32.xlu0 %v2127
        %v2129 = vpop.xlane.xlu0 %2128
        %v2130 = vsel %vm834, %v2066, 0.0
        %2131 = vadd.xlane.f32.xlu0 %v2130
        %v2132 = vpop.xlane.xlu0 %2131
        %v2133 = vsel %vm834, %v2067, 0.0
        %2134 = vadd.xlane.f32.xlu0 %v2133
        %v2135 = vpop.xlane.xlu0 %2134
        %v2136 = vsel %vm834, %v2068, 0.0
        %2137 = vadd.xlane.f32.xlu0 %v2136
        %v2138 = vpop.xlane.xlu0 %2137
        %v2139 = vsel %vm834, %v2069, 0.0
        %2140 = vadd.xlane.f32.xlu0 %v2139
        %v2141 = vpop.xlane.xlu0 %2140
        %v2142 = vsel %vm834, %v2070, 0.0
        %2143 = vadd.xlane.f32.xlu0 %v2142
        %v2144 = vpop.xlane.xlu0 %2143
        %v2145 = vsel %vm834, %v2071, 0.0
        %2146 = vadd.xlane.f32.xlu0 %v2145
        %v2147 = vpop.xlane.xlu0 %2146
        %v2148 = vsel %vm834, %v2072, 0.0
        %2149 = vadd.xlane.f32.xlu0 %v2148
        %v2150 = vpop.xlane.xlu0 %2149
        %v2151 = vsel %vm834, %v2073, 0.0
        %2152 = vadd.xlane.f32.xlu0 %v2151
        %v2153 = vpop.xlane.xlu0 %2152
        %v2154 = vsel %vm834, %v2074, 0.0
        %2155 = vadd.xlane.f32.xlu0 %v2154
        %v2156 = vpop.xlane.xlu0 %2155
        %v2157 = vsel %vm834, %v2075, 0.0
        %2158 = vadd.xlane.f32.xlu0 %v2157
        %v2159 = vpop.xlane.xlu0 %2158
        %v2160 = vsel %vm834, %v2076, 0.0
        %2161 = vadd.xlane.f32.xlu0 %v2160
        %v2162 = vpop.xlane.xlu0 %2161
        %v2163 = vsel %vm834, %v2077, 0.0
        %2164 = vadd.xlane.f32.xlu0 %v2163
        %v2165 = vpop.xlane.xlu0 %2164
        %v2166 = vsel %vm834, %v2078, 0.0
        %2167 = vadd.xlane.f32.xlu0 %v2166
        %v2168 = vpop.xlane.xlu0 %2167
        %v2169 = vsel %vm834, %v2079, 0.0
        %2170 = vadd.xlane.f32.xlu0 %v2169
        %v2171 = vpop.xlane.xlu0 %2170
        %v2172 = vsel %vm834, %v2080, 0.0
        %2173 = vadd.xlane.f32.xlu0 %v2172
        %v2174 = vpop.xlane.xlu0 %2173
        %v2175 = vsel %vm834, %v2081, 0.0
        %2176 = vadd.xlane.f32.xlu0 %v2175
        %v2177 = vpop.xlane.xlu0 %2176
        %v2178 = vadd.f32 %v2084, 0.0
        %v2179 = vadd.f32 %v2087, 0.0
        %v2180 = vadd.f32 %v2090, 0.0
        %v2181 = vadd.f32 %v2093, 0.0
        %v2182 = vadd.f32 %v2096, 0.0
        %v2183 = vadd.f32 %v2099, 0.0
        %v2184 = vadd.f32 %v2102, 0.0
        %v2185 = vadd.f32 %v2105, 0.0
        %v2186 = vadd.f32 %v2108, 0.0
        %v2187 = vadd.f32 %v2111, 0.0
        %v2188 = vadd.f32 %v2114, 0.0
        %v2189 = vadd.f32 %v2117, 0.0
        %v2190 = vadd.f32 %v2120, 0.0
        %v2191 = vadd.f32 %v2123, 0.0
        %v2192 = vadd.f32 %v2126, 0.0
        %v2193 = vadd.f32 %v2129, 0.0
        %v2194 = vadd.f32 %v2132, 0.0
        %v2195 = vadd.f32 %v2135, 0.0
        %v2196 = vadd.f32 %v2138, 0.0
        %v2197 = vadd.f32 %v2141, 0.0
        %v2198 = vadd.f32 %v2144, 0.0
        %v2199 = vadd.f32 %v2147, 0.0
        %v2200 = vadd.f32 %v2150, 0.0
        %v2201 = vadd.f32 %v2153, 0.0
        %v2202 = vadd.f32 %v2156, 0.0
        %v2203 = vadd.f32 %v2159, 0.0
        %v2204 = vadd.f32 %v2162, 0.0
        %v2205 = vadd.f32 %v2165, 0.0
        %v2206 = vadd.f32 %v2168, 0.0
        %v2207 = vadd.f32 %v2171, 0.0
        %v2208 = vadd.f32 %v2174, 0.0
        %v2209 = vadd.f32 %v2177, 0.0
        %2242 = vrot.lane.b32.xlu0 %v770, 64
        %v2243 = vpop.permute.xlu0 %2242
        %2244 = vrot.lane.b32.xlu0 %v772, 64
        %v2245 = vpop.permute.xlu0 %2244
        %2246 = vrot.lane.b32.xlu0 %v774, 64
        %v2247 = vpop.permute.xlu0 %2246
        %2248 = vrot.lane.b32.xlu0 %v776, 64
        %v2249 = vpop.permute.xlu0 %2248
        %2250 = vrot.lane.b32.xlu0 %v778, 64
        %v2251 = vpop.permute.xlu0 %2250
        %2252 = vrot.lane.b32.xlu0 %v780, 64
        %v2253 = vpop.permute.xlu0 %2252
        %2254 = vrot.lane.b32.xlu0 %v782, 64
        %v2255 = vpop.permute.xlu0 %2254
        %2256 = vrot.lane.b32.xlu0 %v784, 64
        %v2257 = vpop.permute.xlu0 %2256
        %2258 = vrot.lane.b32.xlu0 %v786, 64
        %v2259 = vpop.permute.xlu0 %2258
        %2260 = vrot.lane.b32.xlu0 %v788, 64
        %v2261 = vpop.permute.xlu0 %2260
        %2262 = vrot.lane.b32.xlu0 %v790, 64
        %v2263 = vpop.permute.xlu0 %2262
        %2264 = vrot.lane.b32.xlu0 %v792, 64
        %v2265 = vpop.permute.xlu0 %2264
        %2266 = vrot.lane.b32.xlu0 %v794, 64
        %v2267 = vpop.permute.xlu0 %2266
        %2268 = vrot.lane.b32.xlu0 %v796, 64
        %v2269 = vpop.permute.xlu0 %2268
        %2270 = vrot.lane.b32.xlu0 %v798, 64
        %v2271 = vpop.permute.xlu0 %2270
        %2272 = vrot.lane.b32.xlu0 %v800, 64
        %v2273 = vpop.permute.xlu0 %2272
        %2274 = vrot.lane.b32.xlu0 %v802, 64
        %v2275 = vpop.permute.xlu0 %2274
        %2276 = vrot.lane.b32.xlu0 %v804, 64
        %v2277 = vpop.permute.xlu0 %2276
        %2278 = vrot.lane.b32.xlu0 %v806, 64
        %v2279 = vpop.permute.xlu0 %2278
        %2280 = vrot.lane.b32.xlu0 %v808, 64
        %v2281 = vpop.permute.xlu0 %2280
        %2282 = vrot.lane.b32.xlu0 %v810, 64
        %v2283 = vpop.permute.xlu0 %2282
        %2284 = vrot.lane.b32.xlu0 %v812, 64
        %v2285 = vpop.permute.xlu0 %2284
        %2286 = vrot.lane.b32.xlu0 %v814, 64
        %v2287 = vpop.permute.xlu0 %2286
        %2288 = vrot.lane.b32.xlu0 %v816, 64
        %v2289 = vpop.permute.xlu0 %2288
        %2290 = vrot.lane.b32.xlu0 %v818, 64
        %v2291 = vpop.permute.xlu0 %2290
        %2292 = vrot.lane.b32.xlu0 %v820, 64
        %v2293 = vpop.permute.xlu0 %2292
        %2294 = vrot.lane.b32.xlu0 %v822, 64
        %v2295 = vpop.permute.xlu0 %2294
        %2296 = vrot.lane.b32.xlu0 %v824, 64
        %v2297 = vpop.permute.xlu0 %2296
        %2298 = vrot.lane.b32.xlu0 %v826, 64
        %v2299 = vpop.permute.xlu0 %2298
        %2300 = vrot.lane.b32.xlu0 %v828, 64
        %v2301 = vpop.permute.xlu0 %2300
        %2302 = vrot.lane.b32.xlu0 %v830, 64
        %v2303 = vpop.permute.xlu0 %2302
        %2304 = vrot.lane.b32.xlu0 %v832, 64
        %v2305 = vpop.permute.xlu0 %2304
        %s2338 = scalar_lea.vmem [#allocation2], 672
        %2339 = vst.msk [vmem:[%s2338 + $0x4] sm:$0xff] %vm834, %v2243
        %2340 = vst.msk [vmem:[%s2338 + $0xc] sm:$0xff] %vm834, %v2245
        %2341 = vst.msk [vmem:[%s2338 + $0x1c] sm:$0xff] %vm834, %v2247
        %2342 = vst.msk [vmem:[%s2338 + $0x24] sm:$0xff] %vm834, %v2249
        %2343 = vst.msk [vmem:[%s2338 + $0x34] sm:$0xff] %vm834, %v2251
        %2344 = vst.msk [vmem:[%s2338 + $0x3c] sm:$0xff] %vm834, %v2253
        %2345 = vst.msk [vmem:[%s2338 + $0x4c] sm:$0xff] %vm834, %v2255
        %2346 = vst.msk [vmem:[%s2338 + $0x54] sm:$0xff] %vm834, %v2257
        %2347 = vst.msk [vmem:[%s2338 + $0x64] sm:$0xff] %vm834, %v2259
        %2348 = vst.msk [vmem:[%s2338 + $0x6c] sm:$0xff] %vm834, %v2261
        %2349 = vst.msk [vmem:[%s2338 + $0x7c] sm:$0xff] %vm834, %v2263
        %2350 = vst.msk [vmem:[%s2338 + $0x84] sm:$0xff] %vm834, %v2265
        %2351 = vst.msk [vmem:[%s2338 + $0x94] sm:$0xff] %vm834, %v2267
        %2352 = vst.msk [vmem:[%s2338 + $0x9c] sm:$0xff] %vm834, %v2269
        %2353 = vst.msk [vmem:[%s2338 + $0xac] sm:$0xff] %vm834, %v2271
        %2354 = vst.msk [vmem:[%s2338 + $0xb4] sm:$0xff] %vm834, %v2273
        %2355 = vst.msk [vmem:[%s2338 + $0xc4] sm:$0xff] %vm834, %v2275
        %2356 = vst.msk [vmem:[%s2338 + $0xcc] sm:$0xff] %vm834, %v2277
        %2357 = vst.msk [vmem:[%s2338 + $0xdc] sm:$0xff] %vm834, %v2279
        %2358 = vst.msk [vmem:[%s2338 + $0xe4] sm:$0xff] %vm834, %v2281
        %2359 = vst.msk [vmem:[%s2338 + $0xf4] sm:$0xff] %vm834, %v2283
        %2360 = vst.msk [vmem:[%s2338 + $0xfc] sm:$0xff] %vm834, %v2285
        %2361 = vst.msk [vmem:[%s2338 + $0x10c] sm:$0xff] %vm834, %v2287
        %2362 = vst.msk [vmem:[%s2338 + $0x114] sm:$0xff] %vm834, %v2289
        %2363 = vst.msk [vmem:[%s2338 + $0x124] sm:$0xff] %vm834, %v2291
        %2364 = vst.msk [vmem:[%s2338 + $0x12c] sm:$0xff] %vm834, %v2293
        %2365 = vst.msk [vmem:[%s2338 + $0x13c] sm:$0xff] %vm834, %v2295
        %2366 = vst.msk [vmem:[%s2338 + $0x144] sm:$0xff] %vm834, %v2297
        %2367 = vst.msk [vmem:[%s2338 + $0x154] sm:$0xff] %vm834, %v2299
        %2368 = vst.msk [vmem:[%s2338 + $0x15c] sm:$0xff] %vm834, %v2301
        %2369 = vst.msk [vmem:[%s2338 + $0x16c] sm:$0xff] %vm834, %v2303
        %2370 = vst.msk [vmem:[%s2338 + $0x174] sm:$0xff] %vm834, %v2305
        %s2371 = scalar_lea.vmem [#allocation2], 624
        %v2372 = vld [vmem:[%s2371 + $0x2] sm:$0xff]
        %v2373 = vld [vmem:[%s2371 + $0xa] sm:$0xff]
        %v2374 = vld [vmem:[%s2371 + $0x1a] sm:$0xff]
        %v2375 = vld [vmem:[%s2371 + $0x22] sm:$0xff]
        %v2376 = vld [vmem:[%s2371 + $0x32] sm:$0xff]
        %v2377 = vld [vmem:[%s2371 + $0x3a] sm:$0xff]
        %v2378 = vld [vmem:[%s2371 + $0x4a] sm:$0xff]
        %v2379 = vld [vmem:[%s2371 + $0x52] sm:$0xff]
        %v2380 = vld [vmem:[%s2371 + $0x62] sm:$0xff]
        %v2381 = vld [vmem:[%s2371 + $0x6a] sm:$0xff]
        %v2382 = vld [vmem:[%s2371 + $0x7a] sm:$0xff]
        %v2383 = vld [vmem:[%s2371 + $0x82] sm:$0xff]
        %v2384 = vld [vmem:[%s2371 + $0x92] sm:$0xff]
        %v2385 = vld [vmem:[%s2371 + $0x9a] sm:$0xff]
        %v2386 = vld [vmem:[%s2371 + $0xaa] sm:$0xff]
        %v2387 = vld [vmem:[%s2371 + $0xb2] sm:$0xff]
        %v2388 = vld [vmem:[%s2371 + $0xc2] sm:$0xff]
        %v2389 = vld [vmem:[%s2371 + $0xca] sm:$0xff]
        %v2390 = vld [vmem:[%s2371 + $0xda] sm:$0xff]
        %v2391 = vld [vmem:[%s2371 + $0xe2] sm:$0xff]
        %v2392 = vld [vmem:[%s2371 + $0xf2] sm:$0xff]
        %v2393 = vld [vmem:[%s2371 + $0xfa] sm:$0xff]
        %v2394 = vld [vmem:[%s2371 + $0x10a] sm:$0xff]
        %v2395 = vld [vmem:[%s2371 + $0x112] sm:$0xff]
        %v2396 = vld [vmem:[%s2371 + $0x122] sm:$0xff]
        %v2397 = vld [vmem:[%s2371 + $0x12a] sm:$0xff]
        %v2398 = vld [vmem:[%s2371 + $0x13a] sm:$0xff]
        %v2399 = vld [vmem:[%s2371 + $0x142] sm:$0xff]
        %v2400 = vld [vmem:[%s2371 + $0x152] sm:$0xff]
        %v2401 = vld [vmem:[%s2371 + $0x15a] sm:$0xff]
        %v2402 = vld [vmem:[%s2371 + $0x16a] sm:$0xff]
        %v2403 = vld [vmem:[%s2371 + $0x172] sm:$0xff]
        %v2404 = vlaneseq
        %v2405 = vshrl.u32 %v2404, 7
        %v2406 = vsub.s32 0, %v2405
        %v2407 = vrot.slane %v1065, %v2406
        %v2408 = vmul.f32 %v2372, %v2407
        %v2409 = vmul.f32 %v2373, %v2407
        %v2410 = vmul.f32 %v2374, %v2407
        %v2411 = vmul.f32 %v2375, %v2407
        %v2412 = vmul.f32 %v2376, %v2407
        %v2413 = vmul.f32 %v2377, %v2407
        %v2414 = vmul.f32 %v2378, %v2407
        %v2415 = vmul.f32 %v2379, %v2407
        %v2416 = vmul.f32 %v2380, %v2407
        %v2417 = vmul.f32 %v2381, %v2407
        %v2418 = vmul.f32 %v2382, %v2407
        %v2419 = vmul.f32 %v2383, %v2407
        %v2420 = vmul.f32 %v2384, %v2407
        %v2421 = vmul.f32 %v2385, %v2407
        %v2422 = vmul.f32 %v2386, %v2407
        %v2423 = vmul.f32 %v2387, %v2407
        %v2424 = vmul.f32 %v2388, %v2407
        %v2425 = vmul.f32 %v2389, %v2407
        %v2426 = vmul.f32 %v2390, %v2407
        %v2427 = vmul.f32 %v2391, %v2407
        %v2428 = vmul.f32 %v2392, %v2407
        %v2429 = vmul.f32 %v2393, %v2407
        %v2430 = vmul.f32 %v2394, %v2407
        %v2431 = vmul.f32 %v2395, %v2407
        %v2432 = vmul.f32 %v2396, %v2407
        %v2433 = vmul.f32 %v2397, %v2407
        %v2434 = vmul.f32 %v2398, %v2407
        %v2435 = vmul.f32 %v2399, %v2407
        %v2436 = vmul.f32 %v2400, %v2407
        %v2437 = vmul.f32 %v2401, %v2407
        %v2438 = vmul.f32 %v2402, %v2407
        %v2439 = vmul.f32 %v2403, %v2407
        %v2440 = vld [vmem:[%s2371 + $0x4] sm:$0xff]
        %v2441 = vld [vmem:[%s2371 + $0xc] sm:$0xff]
        %v2442 = vld [vmem:[%s2371 + $0x1c] sm:$0xff]
        %v2443 = vld [vmem:[%s2371 + $0x24] sm:$0xff]
        %v2444 = vld [vmem:[%s2371 + $0x34] sm:$0xff]
        %v2445 = vld [vmem:[%s2371 + $0x3c] sm:$0xff]
        %v2446 = vld [vmem:[%s2371 + $0x4c] sm:$0xff]
        %v2447 = vld [vmem:[%s2371 + $0x54] sm:$0xff]
        %v2448 = vld [vmem:[%s2371 + $0x64] sm:$0xff]
        %v2449 = vld [vmem:[%s2371 + $0x6c] sm:$0xff]
        %v2450 = vld [vmem:[%s2371 + $0x7c] sm:$0xff]
        %v2451 = vld [vmem:[%s2371 + $0x84] sm:$0xff]
        %v2452 = vld [vmem:[%s2371 + $0x94] sm:$0xff]
        %v2453 = vld [vmem:[%s2371 + $0x9c] sm:$0xff]
        %v2454 = vld [vmem:[%s2371 + $0xac] sm:$0xff]
        %v2455 = vld [vmem:[%s2371 + $0xb4] sm:$0xff]
        %v2456 = vld [vmem:[%s2371 + $0xc4] sm:$0xff]
        %v2457 = vld [vmem:[%s2371 + $0xcc] sm:$0xff]
        %v2458 = vld [vmem:[%s2371 + $0xdc] sm:$0xff]
        %v2459 = vld [vmem:[%s2371 + $0xe4] sm:$0xff]
        %v2460 = vld [vmem:[%s2371 + $0xf4] sm:$0xff]
        %v2461 = vld [vmem:[%s2371 + $0xfc] sm:$0xff]
        %v2462 = vld [vmem:[%s2371 + $0x10c] sm:$0xff]
        %v2463 = vld [vmem:[%s2371 + $0x114] sm:$0xff]
        %v2464 = vld [vmem:[%s2371 + $0x124] sm:$0xff]
        %v2465 = vld [vmem:[%s2371 + $0x12c] sm:$0xff]
        %v2466 = vld [vmem:[%s2371 + $0x13c] sm:$0xff]
        %v2467 = vld [vmem:[%s2371 + $0x144] sm:$0xff]
        %v2468 = vld [vmem:[%s2371 + $0x154] sm:$0xff]
        %v2469 = vld [vmem:[%s2371 + $0x15c] sm:$0xff]
        %v2470 = vld [vmem:[%s2371 + $0x16c] sm:$0xff]
        %v2471 = vld [vmem:[%s2371 + $0x174] sm:$0xff]
        %v2472 = vlaneseq
        %v2473 = vshrl.u32 %v2472, 7
        %v2474 = vsub.s32 1, %v2473
        %v2475 = vrot.slane %v1065, %v2474
        %v2476 = vmul.f32 %v2440, %v2475
        %v2477 = vmul.f32 %v2441, %v2475
        %v2478 = vmul.f32 %v2442, %v2475
        %v2479 = vmul.f32 %v2443, %v2475
        %v2480 = vmul.f32 %v2444, %v2475
        %v2481 = vmul.f32 %v2445, %v2475
        %v2482 = vmul.f32 %v2446, %v2475
        %v2483 = vmul.f32 %v2447, %v2475
        %v2484 = vmul.f32 %v2448, %v2475
        %v2485 = vmul.f32 %v2449, %v2475
        %v2486 = vmul.f32 %v2450, %v2475
        %v2487 = vmul.f32 %v2451, %v2475
        %v2488 = vmul.f32 %v2452, %v2475
        %v2489 = vmul.f32 %v2453, %v2475
        %v2490 = vmul.f32 %v2454, %v2475
        %v2491 = vmul.f32 %v2455, %v2475
        %v2492 = vmul.f32 %v2456, %v2475
        %v2493 = vmul.f32 %v2457, %v2475
        %v2494 = vmul.f32 %v2458, %v2475
        %v2495 = vmul.f32 %v2459, %v2475
        %v2496 = vmul.f32 %v2460, %v2475
        %v2497 = vmul.f32 %v2461, %v2475
        %v2498 = vmul.f32 %v2462, %v2475
        %v2499 = vmul.f32 %v2463, %v2475
        %v2500 = vmul.f32 %v2464, %v2475
        %v2501 = vmul.f32 %v2465, %v2475
        %v2502 = vmul.f32 %v2466, %v2475
        %v2503 = vmul.f32 %v2467, %v2475
        %v2504 = vmul.f32 %v2468, %v2475
        %v2505 = vmul.f32 %v2469, %v2475
        %v2506 = vmul.f32 %v2470, %v2475
        %v2507 = vmul.f32 %v2471, %v2475
        %v2508 = vadd.f32 %v2408, %v2476
        %v2509 = vadd.f32 %v2409, %v2477
        %v2510 = vadd.f32 %v2410, %v2478
        %v2511 = vadd.f32 %v2411, %v2479
        %v2512 = vadd.f32 %v2412, %v2480
        %v2513 = vadd.f32 %v2413, %v2481
        %v2514 = vadd.f32 %v2414, %v2482
        %v2515 = vadd.f32 %v2415, %v2483
        %v2516 = vadd.f32 %v2416, %v2484
        %v2517 = vadd.f32 %v2417, %v2485
        %v2518 = vadd.f32 %v2418, %v2486
        %v2519 = vadd.f32 %v2419, %v2487
        %v2520 = vadd.f32 %v2420, %v2488
        %v2521 = vadd.f32 %v2421, %v2489
        %v2522 = vadd.f32 %v2422, %v2490
        %v2523 = vadd.f32 %v2423, %v2491
        %v2524 = vadd.f32 %v2424, %v2492
        %v2525 = vadd.f32 %v2425, %v2493
        %v2526 = vadd.f32 %v2426, %v2494
        %v2527 = vadd.f32 %v2427, %v2495
        %v2528 = vadd.f32 %v2428, %v2496
        %v2529 = vadd.f32 %v2429, %v2497
        %v2530 = vadd.f32 %v2430, %v2498
        %v2531 = vadd.f32 %v2431, %v2499
        %v2532 = vadd.f32 %v2432, %v2500
        %v2533 = vadd.f32 %v2433, %v2501
        %v2534 = vadd.f32 %v2434, %v2502
        %v2535 = vadd.f32 %v2435, %v2503
        %v2536 = vadd.f32 %v2436, %v2504
        %v2537 = vadd.f32 %v2437, %v2505
        %v2538 = vadd.f32 %v2438, %v2506
        %v2539 = vadd.f32 %v2439, %v2507
        %v2540 = vld [vmem:[%s2371 + $0x6] sm:$0xff]
        %v2541 = vld [vmem:[%s2371 + $0xe] sm:$0xff]
        %v2542 = vld [vmem:[%s2371 + $0x1e] sm:$0xff]
        %v2543 = vld [vmem:[%s2371 + $0x26] sm:$0xff]
        %v2544 = vld [vmem:[%s2371 + $0x36] sm:$0xff]
        %v2545 = vld [vmem:[%s2371 + $0x3e] sm:$0xff]
        %v2546 = vld [vmem:[%s2371 + $0x4e] sm:$0xff]
        %v2547 = vld [vmem:[%s2371 + $0x56] sm:$0xff]
        %v2548 = vld [vmem:[%s2371 + $0x66] sm:$0xff]
        %v2549 = vld [vmem:[%s2371 + $0x6e] sm:$0xff]
        %v2550 = vld [vmem:[%s2371 + $0x7e] sm:$0xff]
        %v2551 = vld [vmem:[%s2371 + $0x86] sm:$0xff]
        %v2552 = vld [vmem:[%s2371 + $0x96] sm:$0xff]
        %v2553 = vld [vmem:[%s2371 + $0x9e] sm:$0xff]
        %v2554 = vld [vmem:[%s2371 + $0xae] sm:$0xff]
        %v2555 = vld [vmem:[%s2371 + $0xb6] sm:$0xff]
        %v2556 = vld [vmem:[%s2371 + $0xc6] sm:$0xff]
        %v2557 = vld [vmem:[%s2371 + $0xce] sm:$0xff]
        %v2558 = vld [vmem:[%s2371 + $0xde] sm:$0xff]
        %v2559 = vld [vmem:[%s2371 + $0xe6] sm:$0xff]
        %v2560 = vld [vmem:[%s2371 + $0xf6] sm:$0xff]
        %v2561 = vld [vmem:[%s2371 + $0xfe] sm:$0xff]
        %v2562 = vld [vmem:[%s2371 + $0x10e] sm:$0xff]
        %v2563 = vld [vmem:[%s2371 + $0x116] sm:$0xff]
        %v2564 = vld [vmem:[%s2371 + $0x126] sm:$0xff]
        %v2565 = vld [vmem:[%s2371 + $0x12e] sm:$0xff]
        %v2566 = vld [vmem:[%s2371 + $0x13e] sm:$0xff]
        %v2567 = vld [vmem:[%s2371 + $0x146] sm:$0xff]
        %v2568 = vld [vmem:[%s2371 + $0x156] sm:$0xff]
        %v2569 = vld [vmem:[%s2371 + $0x15e] sm:$0xff]
        %v2570 = vld [vmem:[%s2371 + $0x16e] sm:$0xff]
        %v2571 = vld [vmem:[%s2371 + $0x176] sm:$0xff]
        %v2572 = vlaneseq
        %v2573 = vshrl.u32 %v2572, 7
        %v2574 = vsub.s32 2, %v2573
        %v2575 = vrot.slane %v1065, %v2574
        %v2576 = vmul.f32 %v2540, %v2575
        %v2577 = vmul.f32 %v2541, %v2575
        %v2578 = vmul.f32 %v2542, %v2575
        %v2579 = vmul.f32 %v2543, %v2575
        %v2580 = vmul.f32 %v2544, %v2575
        %v2581 = vmul.f32 %v2545, %v2575
        %v2582 = vmul.f32 %v2546, %v2575
        %v2583 = vmul.f32 %v2547, %v2575
        %v2584 = vmul.f32 %v2548, %v2575
        %v2585 = vmul.f32 %v2549, %v2575
        %v2586 = vmul.f32 %v2550, %v2575
        %v2587 = vmul.f32 %v2551, %v2575
        %v2588 = vmul.f32 %v2552, %v2575
        %v2589 = vmul.f32 %v2553, %v2575
        %v2590 = vmul.f32 %v2554, %v2575
        %v2591 = vmul.f32 %v2555, %v2575
        %v2592 = vmul.f32 %v2556, %v2575
        %v2593 = vmul.f32 %v2557, %v2575
        %v2594 = vmul.f32 %v2558, %v2575
        %v2595 = vmul.f32 %v2559, %v2575
        %v2596 = vmul.f32 %v2560, %v2575
        %v2597 = vmul.f32 %v2561, %v2575
        %v2598 = vmul.f32 %v2562, %v2575
        %v2599 = vmul.f32 %v2563, %v2575
        %v2600 = vmul.f32 %v2564, %v2575
        %v2601 = vmul.f32 %v2565, %v2575
        %v2602 = vmul.f32 %v2566, %v2575
        %v2603 = vmul.f32 %v2567, %v2575
        %v2604 = vmul.f32 %v2568, %v2575
        %v2605 = vmul.f32 %v2569, %v2575
        %v2606 = vmul.f32 %v2570, %v2575
        %v2607 = vmul.f32 %v2571, %v2575
        %v2608 = vadd.f32 %v2508, %v2576
        %v2609 = vadd.f32 %v2509, %v2577
        %v2610 = vadd.f32 %v2510, %v2578
        %v2611 = vadd.f32 %v2511, %v2579
        %v2612 = vadd.f32 %v2512, %v2580
        %v2613 = vadd.f32 %v2513, %v2581
        %v2614 = vadd.f32 %v2514, %v2582
        %v2615 = vadd.f32 %v2515, %v2583
        %v2616 = vadd.f32 %v2516, %v2584
        %v2617 = vadd.f32 %v2517, %v2585
        %v2618 = vadd.f32 %v2518, %v2586
        %v2619 = vadd.f32 %v2519, %v2587
        %v2620 = vadd.f32 %v2520, %v2588
        %v2621 = vadd.f32 %v2521, %v2589
        %v2622 = vadd.f32 %v2522, %v2590
        %v2623 = vadd.f32 %v2523, %v2591
        %v2624 = vadd.f32 %v2524, %v2592
        %v2625 = vadd.f32 %v2525, %v2593
        %v2626 = vadd.f32 %v2526, %v2594
        %v2627 = vadd.f32 %v2527, %v2595
        %v2628 = vadd.f32 %v2528, %v2596
        %v2629 = vadd.f32 %v2529, %v2597
        %v2630 = vadd.f32 %v2530, %v2598
        %v2631 = vadd.f32 %v2531, %v2599
        %v2632 = vadd.f32 %v2532, %v2600
        %v2633 = vadd.f32 %v2533, %v2601
        %v2634 = vadd.f32 %v2534, %v2602
        %v2635 = vadd.f32 %v2535, %v2603
        %v2636 = vadd.f32 %v2536, %v2604
        %v2637 = vadd.f32 %v2537, %v2605
        %v2638 = vadd.f32 %v2538, %v2606
        %v2639 = vadd.f32 %v2539, %v2607
        %v2640 = vld [vmem:[%s2338 + $0x2] sm:$0xff]
        %v2641 = vld [vmem:[%s2338 + $0xa] sm:$0xff]
        %v2642 = vld [vmem:[%s2338 + $0x1a] sm:$0xff]
        %v2643 = vld [vmem:[%s2338 + $0x22] sm:$0xff]
        %v2644 = vld [vmem:[%s2338 + $0x32] sm:$0xff]
        %v2645 = vld [vmem:[%s2338 + $0x3a] sm:$0xff]
        %v2646 = vld [vmem:[%s2338 + $0x4a] sm:$0xff]
        %v2647 = vld [vmem:[%s2338 + $0x52] sm:$0xff]
        %v2648 = vld [vmem:[%s2338 + $0x62] sm:$0xff]
        %v2649 = vld [vmem:[%s2338 + $0x6a] sm:$0xff]
        %v2650 = vld [vmem:[%s2338 + $0x7a] sm:$0xff]
        %v2651 = vld [vmem:[%s2338 + $0x82] sm:$0xff]
        %v2652 = vld [vmem:[%s2338 + $0x92] sm:$0xff]
        %v2653 = vld [vmem:[%s2338 + $0x9a] sm:$0xff]
        %v2654 = vld [vmem:[%s2338 + $0xaa] sm:$0xff]
        %v2655 = vld [vmem:[%s2338 + $0xb2] sm:$0xff]
        %v2656 = vld [vmem:[%s2338 + $0xc2] sm:$0xff]
        %v2657 = vld [vmem:[%s2338 + $0xca] sm:$0xff]
        %v2658 = vld [vmem:[%s2338 + $0xda] sm:$0xff]
        %v2659 = vld [vmem:[%s2338 + $0xe2] sm:$0xff]
        %v2660 = vld [vmem:[%s2338 + $0xf2] sm:$0xff]
        %v2661 = vld [vmem:[%s2338 + $0xfa] sm:$0xff]
        %v2662 = vld [vmem:[%s2338 + $0x10a] sm:$0xff]
        %v2663 = vld [vmem:[%s2338 + $0x112] sm:$0xff]
        %v2664 = vld [vmem:[%s2338 + $0x122] sm:$0xff]
        %v2665 = vld [vmem:[%s2338 + $0x12a] sm:$0xff]
        %v2666 = vld [vmem:[%s2338 + $0x13a] sm:$0xff]
        %v2667 = vld [vmem:[%s2338 + $0x142] sm:$0xff]
        %v2668 = vld [vmem:[%s2338 + $0x152] sm:$0xff]
        %v2669 = vld [vmem:[%s2338 + $0x15a] sm:$0xff]
        %v2670 = vld [vmem:[%s2338 + $0x16a] sm:$0xff]
        %v2671 = vld [vmem:[%s2338 + $0x172] sm:$0xff]
        %v2672 = vlaneseq
        %v2673 = vshrl.u32 %v2672, 7
        %v2674 = vsub.s32 0, %v2673
        %v2675 = vrot.slane %v1066, %v2674
        %v2676 = vmul.f32 %v2640, %v2675
        %v2677 = vmul.f32 %v2641, %v2675
        %v2678 = vmul.f32 %v2642, %v2675
        %v2679 = vmul.f32 %v2643, %v2675
        %v2680 = vmul.f32 %v2644, %v2675
        %v2681 = vmul.f32 %v2645, %v2675
        %v2682 = vmul.f32 %v2646, %v2675
        %v2683 = vmul.f32 %v2647, %v2675
        %v2684 = vmul.f32 %v2648, %v2675
        %v2685 = vmul.f32 %v2649, %v2675
        %v2686 = vmul.f32 %v2650, %v2675
        %v2687 = vmul.f32 %v2651, %v2675
        %v2688 = vmul.f32 %v2652, %v2675
        %v2689 = vmul.f32 %v2653, %v2675
        %v2690 = vmul.f32 %v2654, %v2675
        %v2691 = vmul.f32 %v2655, %v2675
        %v2692 = vmul.f32 %v2656, %v2675
        %v2693 = vmul.f32 %v2657, %v2675
        %v2694 = vmul.f32 %v2658, %v2675
        %v2695 = vmul.f32 %v2659, %v2675
        %v2696 = vmul.f32 %v2660, %v2675
        %v2697 = vmul.f32 %v2661, %v2675
        %v2698 = vmul.f32 %v2662, %v2675
        %v2699 = vmul.f32 %v2663, %v2675
        %v2700 = vmul.f32 %v2664, %v2675
        %v2701 = vmul.f32 %v2665, %v2675
        %v2702 = vmul.f32 %v2666, %v2675
        %v2703 = vmul.f32 %v2667, %v2675
        %v2704 = vmul.f32 %v2668, %v2675
        %v2705 = vmul.f32 %v2669, %v2675
        %v2706 = vmul.f32 %v2670, %v2675
        %v2707 = vmul.f32 %v2671, %v2675
        %v2708 = vadd.f32 %v2608, %v2676
        %v2709 = vadd.f32 %v2609, %v2677
        %v2710 = vadd.f32 %v2610, %v2678
        %v2711 = vadd.f32 %v2611, %v2679
        %v2712 = vadd.f32 %v2612, %v2680
        %v2713 = vadd.f32 %v2613, %v2681
        %v2714 = vadd.f32 %v2614, %v2682
        %v2715 = vadd.f32 %v2615, %v2683
        %v2716 = vadd.f32 %v2616, %v2684
        %v2717 = vadd.f32 %v2617, %v2685
        %v2718 = vadd.f32 %v2618, %v2686
        %v2719 = vadd.f32 %v2619, %v2687
        %v2720 = vadd.f32 %v2620, %v2688
        %v2721 = vadd.f32 %v2621, %v2689
        %v2722 = vadd.f32 %v2622, %v2690
        %v2723 = vadd.f32 %v2623, %v2691
        %v2724 = vadd.f32 %v2624, %v2692
        %v2725 = vadd.f32 %v2625, %v2693
        %v2726 = vadd.f32 %v2626, %v2694
        %v2727 = vadd.f32 %v2627, %v2695
        %v2728 = vadd.f32 %v2628, %v2696
        %v2729 = vadd.f32 %v2629, %v2697
        %v2730 = vadd.f32 %v2630, %v2698
        %v2731 = vadd.f32 %v2631, %v2699
        %v2732 = vadd.f32 %v2632, %v2700
        %v2733 = vadd.f32 %v2633, %v2701
        %v2734 = vadd.f32 %v2634, %v2702
        %v2735 = vadd.f32 %v2635, %v2703
        %v2736 = vadd.f32 %v2636, %v2704
        %v2737 = vadd.f32 %v2637, %v2705
        %v2738 = vadd.f32 %v2638, %v2706
        %v2739 = vadd.f32 %v2639, %v2707
        %v2740 = vld [vmem:[%s2338 + $0x4] sm:$0xff]
        %v2741 = vld [vmem:[%s2338 + $0xc] sm:$0xff]
        %v2742 = vld [vmem:[%s2338 + $0x1c] sm:$0xff]
        %v2743 = vld [vmem:[%s2338 + $0x24] sm:$0xff]
        %v2744 = vld [vmem:[%s2338 + $0x34] sm:$0xff]
        %v2745 = vld [vmem:[%s2338 + $0x3c] sm:$0xff]
        %v2746 = vld [vmem:[%s2338 + $0x4c] sm:$0xff]
        %v2747 = vld [vmem:[%s2338 + $0x54] sm:$0xff]
        %v2748 = vld [vmem:[%s2338 + $0x64] sm:$0xff]
        %v2749 = vld [vmem:[%s2338 + $0x6c] sm:$0xff]
        %v2750 = vld [vmem:[%s2338 + $0x7c] sm:$0xff]
        %v2751 = vld [vmem:[%s2338 + $0x84] sm:$0xff]
        %v2752 = vld [vmem:[%s2338 + $0x94] sm:$0xff]
        %v2753 = vld [vmem:[%s2338 + $0x9c] sm:$0xff]
        %v2754 = vld [vmem:[%s2338 + $0xac] sm:$0xff]
        %v2755 = vld [vmem:[%s2338 + $0xb4] sm:$0xff]
        %v2756 = vld [vmem:[%s2338 + $0xc4] sm:$0xff]
        %v2757 = vld [vmem:[%s2338 + $0xcc] sm:$0xff]
        %v2758 = vld [vmem:[%s2338 + $0xdc] sm:$0xff]
        %v2759 = vld [vmem:[%s2338 + $0xe4] sm:$0xff]
        %v2760 = vld [vmem:[%s2338 + $0xf4] sm:$0xff]
        %v2761 = vld [vmem:[%s2338 + $0xfc] sm:$0xff]
        %v2762 = vld [vmem:[%s2338 + $0x10c] sm:$0xff]
        %v2763 = vld [vmem:[%s2338 + $0x114] sm:$0xff]
        %v2764 = vld [vmem:[%s2338 + $0x124] sm:$0xff]
        %v2765 = vld [vmem:[%s2338 + $0x12c] sm:$0xff]
        %v2766 = vld [vmem:[%s2338 + $0x13c] sm:$0xff]
        %v2767 = vld [vmem:[%s2338 + $0x144] sm:$0xff]
        %v2768 = vld [vmem:[%s2338 + $0x154] sm:$0xff]
        %v2769 = vld [vmem:[%s2338 + $0x15c] sm:$0xff]
        %v2770 = vld [vmem:[%s2338 + $0x16c] sm:$0xff]
        %v2771 = vld [vmem:[%s2338 + $0x174] sm:$0xff]
        %v2772 = vlaneseq
        %v2773 = vshrl.u32 %v2772, 7
        %v2774 = vsub.s32 1, %v2773
        %v2775 = vrot.slane %v1066, %v2774
        %v2776 = vmul.f32 %v2740, %v2775
        %v2777 = vmul.f32 %v2741, %v2775
        %v2778 = vmul.f32 %v2742, %v2775
        %v2779 = vmul.f32 %v2743, %v2775
        %v2780 = vmul.f32 %v2744, %v2775
        %v2781 = vmul.f32 %v2745, %v2775
        %v2782 = vmul.f32 %v2746, %v2775
        %v2783 = vmul.f32 %v2747, %v2775
        %v2784 = vmul.f32 %v2748, %v2775
        %v2785 = vmul.f32 %v2749, %v2775
        %v2786 = vmul.f32 %v2750, %v2775
        %v2787 = vmul.f32 %v2751, %v2775
        %v2788 = vmul.f32 %v2752, %v2775
        %v2789 = vmul.f32 %v2753, %v2775
        %v2790 = vmul.f32 %v2754, %v2775
        %v2791 = vmul.f32 %v2755, %v2775
        %v2792 = vmul.f32 %v2756, %v2775
        %v2793 = vmul.f32 %v2757, %v2775
        %v2794 = vmul.f32 %v2758, %v2775
        %v2795 = vmul.f32 %v2759, %v2775
        %v2796 = vmul.f32 %v2760, %v2775
        %v2797 = vmul.f32 %v2761, %v2775
        %v2798 = vmul.f32 %v2762, %v2775
        %v2799 = vmul.f32 %v2763, %v2775
        %v2800 = vmul.f32 %v2764, %v2775
        %v2801 = vmul.f32 %v2765, %v2775
        %v2802 = vmul.f32 %v2766, %v2775
        %v2803 = vmul.f32 %v2767, %v2775
        %v2804 = vmul.f32 %v2768, %v2775
        %v2805 = vmul.f32 %v2769, %v2775
        %v2806 = vmul.f32 %v2770, %v2775
        %v2807 = vmul.f32 %v2771, %v2775
        %v2808 = vadd.f32 %v2708, %v2776
        %v2809 = vadd.f32 %v2709, %v2777
        %v2810 = vadd.f32 %v2710, %v2778
        %v2811 = vadd.f32 %v2711, %v2779
        %v2812 = vadd.f32 %v2712, %v2780
        %v2813 = vadd.f32 %v2713, %v2781
        %v2814 = vadd.f32 %v2714, %v2782
        %v2815 = vadd.f32 %v2715, %v2783
        %v2816 = vadd.f32 %v2716, %v2784
        %v2817 = vadd.f32 %v2717, %v2785
        %v2818 = vadd.f32 %v2718, %v2786
        %v2819 = vadd.f32 %v2719, %v2787
        %v2820 = vadd.f32 %v2720, %v2788
        %v2821 = vadd.f32 %v2721, %v2789
        %v2822 = vadd.f32 %v2722, %v2790
        %v2823 = vadd.f32 %v2723, %v2791
        %v2824 = vadd.f32 %v2724, %v2792
        %v2825 = vadd.f32 %v2725, %v2793
        %v2826 = vadd.f32 %v2726, %v2794
        %v2827 = vadd.f32 %v2727, %v2795
        %v2828 = vadd.f32 %v2728, %v2796
        %v2829 = vadd.f32 %v2729, %v2797
        %v2830 = vadd.f32 %v2730, %v2798
        %v2831 = vadd.f32 %v2731, %v2799
        %v2832 = vadd.f32 %v2732, %v2800
        %v2833 = vadd.f32 %v2733, %v2801
        %v2834 = vadd.f32 %v2734, %v2802
        %v2835 = vadd.f32 %v2735, %v2803
        %v2836 = vadd.f32 %v2736, %v2804
        %v2837 = vadd.f32 %v2737, %v2805
        %v2838 = vadd.f32 %v2738, %v2806
        %v2839 = vadd.f32 %v2739, %v2807
        %v2840 = vld [vmem:[%s2338 + $0x6] sm:$0xff]
        %v2841 = vld [vmem:[%s2338 + $0xe] sm:$0xff]
        %v2842 = vld [vmem:[%s2338 + $0x1e] sm:$0xff]
        %v2843 = vld [vmem:[%s2338 + $0x26] sm:$0xff]
        %v2844 = vld [vmem:[%s2338 + $0x36] sm:$0xff]
        %v2845 = vld [vmem:[%s2338 + $0x3e] sm:$0xff]
        %v2846 = vld [vmem:[%s2338 + $0x4e] sm:$0xff]
        %v2847 = vld [vmem:[%s2338 + $0x56] sm:$0xff]
        %v2848 = vld [vmem:[%s2338 + $0x66] sm:$0xff]
        %v2849 = vld [vmem:[%s2338 + $0x6e] sm:$0xff]
        %v2850 = vld [vmem:[%s2338 + $0x7e] sm:$0xff]
        %v2851 = vld [vmem:[%s2338 + $0x86] sm:$0xff]
        %v2852 = vld [vmem:[%s2338 + $0x96] sm:$0xff]
        %v2853 = vld [vmem:[%s2338 + $0x9e] sm:$0xff]
        %v2854 = vld [vmem:[%s2338 + $0xae] sm:$0xff]
        %v2855 = vld [vmem:[%s2338 + $0xb6] sm:$0xff]
        %v2856 = vld [vmem:[%s2338 + $0xc6] sm:$0xff]
        %v2857 = vld [vmem:[%s2338 + $0xce] sm:$0xff]
        %v2858 = vld [vmem:[%s2338 + $0xde] sm:$0xff]
        %v2859 = vld [vmem:[%s2338 + $0xe6] sm:$0xff]
        %v2860 = vld [vmem:[%s2338 + $0xf6] sm:$0xff]
        %v2861 = vld [vmem:[%s2338 + $0xfe] sm:$0xff]
        %v2862 = vld [vmem:[%s2338 + $0x10e] sm:$0xff]
        %v2863 = vld [vmem:[%s2338 + $0x116] sm:$0xff]
        %v2864 = vld [vmem:[%s2338 + $0x126] sm:$0xff]
        %v2865 = vld [vmem:[%s2338 + $0x12e] sm:$0xff]
        %v2866 = vld [vmem:[%s2338 + $0x13e] sm:$0xff]
        %v2867 = vld [vmem:[%s2338 + $0x146] sm:$0xff]
        %v2868 = vld [vmem:[%s2338 + $0x156] sm:$0xff]
        %v2869 = vld [vmem:[%s2338 + $0x15e] sm:$0xff]
        %v2870 = vld [vmem:[%s2338 + $0x16e] sm:$0xff]
        %v2871 = vld [vmem:[%s2338 + $0x176] sm:$0xff]
        %v2872 = vlaneseq
        %v2873 = vshrl.u32 %v2872, 7
        %v2874 = vsub.s32 2, %v2873
        %v2875 = vrot.slane %v1066, %v2874
        %v2876 = vmul.f32 %v2840, %v2875
        %v2877 = vmul.f32 %v2841, %v2875
        %v2878 = vmul.f32 %v2842, %v2875
        %v2879 = vmul.f32 %v2843, %v2875
        %v2880 = vmul.f32 %v2844, %v2875
        %v2881 = vmul.f32 %v2845, %v2875
        %v2882 = vmul.f32 %v2846, %v2875
        %v2883 = vmul.f32 %v2847, %v2875
        %v2884 = vmul.f32 %v2848, %v2875
        %v2885 = vmul.f32 %v2849, %v2875
        %v2886 = vmul.f32 %v2850, %v2875
        %v2887 = vmul.f32 %v2851, %v2875
        %v2888 = vmul.f32 %v2852, %v2875
        %v2889 = vmul.f32 %v2853, %v2875
        %v2890 = vmul.f32 %v2854, %v2875
        %v2891 = vmul.f32 %v2855, %v2875
        %v2892 = vmul.f32 %v2856, %v2875
        %v2893 = vmul.f32 %v2857, %v2875
        %v2894 = vmul.f32 %v2858, %v2875
        %v2895 = vmul.f32 %v2859, %v2875
        %v2896 = vmul.f32 %v2860, %v2875
        %v2897 = vmul.f32 %v2861, %v2875
        %v2898 = vmul.f32 %v2862, %v2875
        %v2899 = vmul.f32 %v2863, %v2875
        %v2900 = vmul.f32 %v2864, %v2875
        %v2901 = vmul.f32 %v2865, %v2875
        %v2902 = vmul.f32 %v2866, %v2875
        %v2903 = vmul.f32 %v2867, %v2875
        %v2904 = vmul.f32 %v2868, %v2875
        %v2905 = vmul.f32 %v2869, %v2875
        %v2906 = vmul.f32 %v2870, %v2875
        %v2907 = vmul.f32 %v2871, %v2875
        %v2908 = vadd.f32 %v2808, %v2876
        %v2909 = vadd.f32 %v2809, %v2877
        %v2910 = vadd.f32 %v2810, %v2878
        %v2911 = vadd.f32 %v2811, %v2879
        %v2912 = vadd.f32 %v2812, %v2880
        %v2913 = vadd.f32 %v2813, %v2881
        %v2914 = vadd.f32 %v2814, %v2882
        %v2915 = vadd.f32 %v2815, %v2883
        %v2916 = vadd.f32 %v2816, %v2884
        %v2917 = vadd.f32 %v2817, %v2885
        %v2918 = vadd.f32 %v2818, %v2886
        %v2919 = vadd.f32 %v2819, %v2887
        %v2920 = vadd.f32 %v2820, %v2888
        %v2921 = vadd.f32 %v2821, %v2889
        %v2922 = vadd.f32 %v2822, %v2890
        %v2923 = vadd.f32 %v2823, %v2891
        %v2924 = vadd.f32 %v2824, %v2892
        %v2925 = vadd.f32 %v2825, %v2893
        %v2926 = vadd.f32 %v2826, %v2894
        %v2927 = vadd.f32 %v2827, %v2895
        %v2928 = vadd.f32 %v2828, %v2896
        %v2929 = vadd.f32 %v2829, %v2897
        %v2930 = vadd.f32 %v2830, %v2898
        %v2931 = vadd.f32 %v2831, %v2899
        %v2932 = vadd.f32 %v2832, %v2900
        %v2933 = vadd.f32 %v2833, %v2901
        %v2934 = vadd.f32 %v2834, %v2902
        %v2935 = vadd.f32 %v2835, %v2903
        %v2936 = vadd.f32 %v2836, %v2904
        %v2937 = vadd.f32 %v2837, %v2905
        %v2938 = vadd.f32 %v2838, %v2906
        %v2939 = vadd.f32 %v2839, %v2907
        %s2940 = scalar_lea.vmem [#allocation2], 720
        %v2941 = vld [vmem:[%s2940 + $0x2] sm:$0xff]
        %v2942 = vld [vmem:[%s2940 + $0xa] sm:$0xff]
        %v2943 = vld [vmem:[%s2940 + $0x1a] sm:$0xff]
        %v2944 = vld [vmem:[%s2940 + $0x22] sm:$0xff]
        %v2945 = vld [vmem:[%s2940 + $0x32] sm:$0xff]
        %v2946 = vld [vmem:[%s2940 + $0x3a] sm:$0xff]
        %v2947 = vld [vmem:[%s2940 + $0x4a] sm:$0xff]
        %v2948 = vld [vmem:[%s2940 + $0x52] sm:$0xff]
        %v2949 = vld [vmem:[%s2940 + $0x62] sm:$0xff]
        %v2950 = vld [vmem:[%s2940 + $0x6a] sm:$0xff]
        %v2951 = vld [vmem:[%s2940 + $0x7a] sm:$0xff]
        %v2952 = vld [vmem:[%s2940 + $0x82] sm:$0xff]
        %v2953 = vld [vmem:[%s2940 + $0x92] sm:$0xff]
        %v2954 = vld [vmem:[%s2940 + $0x9a] sm:$0xff]
        %v2955 = vld [vmem:[%s2940 + $0xaa] sm:$0xff]
        %v2956 = vld [vmem:[%s2940 + $0xb2] sm:$0xff]
        %v2957 = vld [vmem:[%s2940 + $0xc2] sm:$0xff]
        %v2958 = vld [vmem:[%s2940 + $0xca] sm:$0xff]
        %v2959 = vld [vmem:[%s2940 + $0xda] sm:$0xff]
        %v2960 = vld [vmem:[%s2940 + $0xe2] sm:$0xff]
        %v2961 = vld [vmem:[%s2940 + $0xf2] sm:$0xff]
        %v2962 = vld [vmem:[%s2940 + $0xfa] sm:$0xff]
        %v2963 = vld [vmem:[%s2940 + $0x10a] sm:$0xff]
        %v2964 = vld [vmem:[%s2940 + $0x112] sm:$0xff]
        %v2965 = vld [vmem:[%s2940 + $0x122] sm:$0xff]
        %v2966 = vld [vmem:[%s2940 + $0x12a] sm:$0xff]
        %v2967 = vld [vmem:[%s2940 + $0x13a] sm:$0xff]
        %v2968 = vld [vmem:[%s2940 + $0x142] sm:$0xff]
        %v2969 = vld [vmem:[%s2940 + $0x152] sm:$0xff]
        %v2970 = vld [vmem:[%s2940 + $0x15a] sm:$0xff]
        %v2971 = vld [vmem:[%s2940 + $0x16a] sm:$0xff]
        %v2972 = vld [vmem:[%s2940 + $0x172] sm:$0xff]
        %v2973 = vlaneseq
        %v2974 = vshrl.u32 %v2973, 7
        %v2975 = vsub.s32 0, %v2974
        %v2976 = vrot.slane %v1067, %v2975
        %v2977 = vmul.f32 %v2941, %v2976
        %v2978 = vmul.f32 %v2942, %v2976
        %v2979 = vmul.f32 %v2943, %v2976
        %v2980 = vmul.f32 %v2944, %v2976
        %v2981 = vmul.f32 %v2945, %v2976
        %v2982 = vmul.f32 %v2946, %v2976
        %v2983 = vmul.f32 %v2947, %v2976
        %v2984 = vmul.f32 %v2948, %v2976
        %v2985 = vmul.f32 %v2949, %v2976
        %v2986 = vmul.f32 %v2950, %v2976
        %v2987 = vmul.f32 %v2951, %v2976
        %v2988 = vmul.f32 %v2952, %v2976
        %v2989 = vmul.f32 %v2953, %v2976
        %v2990 = vmul.f32 %v2954, %v2976
        %v2991 = vmul.f32 %v2955, %v2976
        %v2992 = vmul.f32 %v2956, %v2976
        %v2993 = vmul.f32 %v2957, %v2976
        %v2994 = vmul.f32 %v2958, %v2976
        %v2995 = vmul.f32 %v2959, %v2976
        %v2996 = vmul.f32 %v2960, %v2976
        %v2997 = vmul.f32 %v2961, %v2976
        %v2998 = vmul.f32 %v2962, %v2976
        %v2999 = vmul.f32 %v2963, %v2976
        %v3000 = vmul.f32 %v2964, %v2976
        %v3001 = vmul.f32 %v2965, %v2976
        %v3002 = vmul.f32 %v2966, %v2976
        %v3003 = vmul.f32 %v2967, %v2976
        %v3004 = vmul.f32 %v2968, %v2976
        %v3005 = vmul.f32 %v2969, %v2976
        %v3006 = vmul.f32 %v2970, %v2976
        %v3007 = vmul.f32 %v2971, %v2976
        %v3008 = vmul.f32 %v2972, %v2976
        %v3009 = vadd.f32 %v2908, %v2977
        %v3010 = vadd.f32 %v2909, %v2978
        %v3011 = vadd.f32 %v2910, %v2979
        %v3012 = vadd.f32 %v2911, %v2980
        %v3013 = vadd.f32 %v2912, %v2981
        %v3014 = vadd.f32 %v2913, %v2982
        %v3015 = vadd.f32 %v2914, %v2983
        %v3016 = vadd.f32 %v2915, %v2984
        %v3017 = vadd.f32 %v2916, %v2985
        %v3018 = vadd.f32 %v2917, %v2986
        %v3019 = vadd.f32 %v2918, %v2987
        %v3020 = vadd.f32 %v2919, %v2988
        %v3021 = vadd.f32 %v2920, %v2989
        %v3022 = vadd.f32 %v2921, %v2990
        %v3023 = vadd.f32 %v2922, %v2991
        %v3024 = vadd.f32 %v2923, %v2992
        %v3025 = vadd.f32 %v2924, %v2993
        %v3026 = vadd.f32 %v2925, %v2994
        %v3027 = vadd.f32 %v2926, %v2995
        %v3028 = vadd.f32 %v2927, %v2996
        %v3029 = vadd.f32 %v2928, %v2997
        %v3030 = vadd.f32 %v2929, %v2998
        %v3031 = vadd.f32 %v2930, %v2999
        %v3032 = vadd.f32 %v2931, %v3000
        %v3033 = vadd.f32 %v2932, %v3001
        %v3034 = vadd.f32 %v2933, %v3002
        %v3035 = vadd.f32 %v2934, %v3003
        %v3036 = vadd.f32 %v2935, %v3004
        %v3037 = vadd.f32 %v2936, %v3005
        %v3038 = vadd.f32 %v2937, %v3006
        %v3039 = vadd.f32 %v2938, %v3007
        %v3040 = vadd.f32 %v2939, %v3008
        %v3041 = vld [vmem:[%s2940 + $0x4] sm:$0xff]
        %v3042 = vld [vmem:[%s2940 + $0xc] sm:$0xff]
        %v3043 = vld [vmem:[%s2940 + $0x1c] sm:$0xff]
        %v3044 = vld [vmem:[%s2940 + $0x24] sm:$0xff]
        %v3045 = vld [vmem:[%s2940 + $0x34] sm:$0xff]
        %v3046 = vld [vmem:[%s2940 + $0x3c] sm:$0xff]
        %v3047 = vld [vmem:[%s2940 + $0x4c] sm:$0xff]
        %v3048 = vld [vmem:[%s2940 + $0x54] sm:$0xff]
        %v3049 = vld [vmem:[%s2940 + $0x64] sm:$0xff]
        %v3050 = vld [vmem:[%s2940 + $0x6c] sm:$0xff]
        %v3051 = vld [vmem:[%s2940 + $0x7c] sm:$0xff]
        %v3052 = vld [vmem:[%s2940 + $0x84] sm:$0xff]
        %v3053 = vld [vmem:[%s2940 + $0x94] sm:$0xff]
        %v3054 = vld [vmem:[%s2940 + $0x9c] sm:$0xff]
        %v3055 = vld [vmem:[%s2940 + $0xac] sm:$0xff]
        %v3056 = vld [vmem:[%s2940 + $0xb4] sm:$0xff]
        %v3057 = vld [vmem:[%s2940 + $0xc4] sm:$0xff]
        %v3058 = vld [vmem:[%s2940 + $0xcc] sm:$0xff]
        %v3059 = vld [vmem:[%s2940 + $0xdc] sm:$0xff]
        %v3060 = vld [vmem:[%s2940 + $0xe4] sm:$0xff]
        %v3061 = vld [vmem:[%s2940 + $0xf4] sm:$0xff]
        %v3062 = vld [vmem:[%s2940 + $0xfc] sm:$0xff]
        %v3063 = vld [vmem:[%s2940 + $0x10c] sm:$0xff]
        %v3064 = vld [vmem:[%s2940 + $0x114] sm:$0xff]
        %v3065 = vld [vmem:[%s2940 + $0x124] sm:$0xff]
        %v3066 = vld [vmem:[%s2940 + $0x12c] sm:$0xff]
        %v3067 = vld [vmem:[%s2940 + $0x13c] sm:$0xff]
        %v3068 = vld [vmem:[%s2940 + $0x144] sm:$0xff]
        %v3069 = vld [vmem:[%s2940 + $0x154] sm:$0xff]
        %v3070 = vld [vmem:[%s2940 + $0x15c] sm:$0xff]
        %v3071 = vld [vmem:[%s2940 + $0x16c] sm:$0xff]
        %v3072 = vld [vmem:[%s2940 + $0x174] sm:$0xff]
        %v3073 = vlaneseq
        %v3074 = vshrl.u32 %v3073, 7
        %v3075 = vsub.s32 1, %v3074
        %v3076 = vrot.slane %v1067, %v3075
        %v3077 = vmul.f32 %v3041, %v3076
        %v3078 = vmul.f32 %v3042, %v3076
        %v3079 = vmul.f32 %v3043, %v3076
        %v3080 = vmul.f32 %v3044, %v3076
        %v3081 = vmul.f32 %v3045, %v3076
        %v3082 = vmul.f32 %v3046, %v3076
        %v3083 = vmul.f32 %v3047, %v3076
        %v3084 = vmul.f32 %v3048, %v3076
        %v3085 = vmul.f32 %v3049, %v3076
        %v3086 = vmul.f32 %v3050, %v3076
        %v3087 = vmul.f32 %v3051, %v3076
        %v3088 = vmul.f32 %v3052, %v3076
        %v3089 = vmul.f32 %v3053, %v3076
        %v3090 = vmul.f32 %v3054, %v3076
        %v3091 = vmul.f32 %v3055, %v3076
        %v3092 = vmul.f32 %v3056, %v3076
        %v3093 = vmul.f32 %v3057, %v3076
        %v3094 = vmul.f32 %v3058, %v3076
        %v3095 = vmul.f32 %v3059, %v3076
        %v3096 = vmul.f32 %v3060, %v3076
        %v3097 = vmul.f32 %v3061, %v3076
        %v3098 = vmul.f32 %v3062, %v3076
        %v3099 = vmul.f32 %v3063, %v3076
        %v3100 = vmul.f32 %v3064, %v3076
        %v3101 = vmul.f32 %v3065, %v3076
        %v3102 = vmul.f32 %v3066, %v3076
        %v3103 = vmul.f32 %v3067, %v3076
        %v3104 = vmul.f32 %v3068, %v3076
        %v3105 = vmul.f32 %v3069, %v3076
        %v3106 = vmul.f32 %v3070, %v3076
        %v3107 = vmul.f32 %v3071, %v3076
        %v3108 = vmul.f32 %v3072, %v3076
        %v3109 = vadd.f32 %v3009, %v3077
        %v3110 = vadd.f32 %v3010, %v3078
        %v3111 = vadd.f32 %v3011, %v3079
        %v3112 = vadd.f32 %v3012, %v3080
        %v3113 = vadd.f32 %v3013, %v3081
        %v3114 = vadd.f32 %v3014, %v3082
        %v3115 = vadd.f32 %v3015, %v3083
        %v3116 = vadd.f32 %v3016, %v3084
        %v3117 = vadd.f32 %v3017, %v3085
        %v3118 = vadd.f32 %v3018, %v3086
        %v3119 = vadd.f32 %v3019, %v3087
        %v3120 = vadd.f32 %v3020, %v3088
        %v3121 = vadd.f32 %v3021, %v3089
        %v3122 = vadd.f32 %v3022, %v3090
        %v3123 = vadd.f32 %v3023, %v3091
        %v3124 = vadd.f32 %v3024, %v3092
        %v3125 = vadd.f32 %v3025, %v3093
        %v3126 = vadd.f32 %v3026, %v3094
        %v3127 = vadd.f32 %v3027, %v3095
        %v3128 = vadd.f32 %v3028, %v3096
        %v3129 = vadd.f32 %v3029, %v3097
        %v3130 = vadd.f32 %v3030, %v3098
        %v3131 = vadd.f32 %v3031, %v3099
        %v3132 = vadd.f32 %v3032, %v3100
        %v3133 = vadd.f32 %v3033, %v3101
        %v3134 = vadd.f32 %v3034, %v3102
        %v3135 = vadd.f32 %v3035, %v3103
        %v3136 = vadd.f32 %v3036, %v3104
        %v3137 = vadd.f32 %v3037, %v3105
        %v3138 = vadd.f32 %v3038, %v3106
        %v3139 = vadd.f32 %v3039, %v3107
        %v3140 = vadd.f32 %v3040, %v3108
        %v3141 = vld [vmem:[%s2940 + $0x6] sm:$0xff]
        %v3142 = vld [vmem:[%s2940 + $0xe] sm:$0xff]
        %v3143 = vld [vmem:[%s2940 + $0x1e] sm:$0xff]
        %v3144 = vld [vmem:[%s2940 + $0x26] sm:$0xff]
        %v3145 = vld [vmem:[%s2940 + $0x36] sm:$0xff]
        %v3146 = vld [vmem:[%s2940 + $0x3e] sm:$0xff]
        %v3147 = vld [vmem:[%s2940 + $0x4e] sm:$0xff]
        %v3148 = vld [vmem:[%s2940 + $0x56] sm:$0xff]
        %v3149 = vld [vmem:[%s2940 + $0x66] sm:$0xff]
        %v3150 = vld [vmem:[%s2940 + $0x6e] sm:$0xff]
        %v3151 = vld [vmem:[%s2940 + $0x7e] sm:$0xff]
        %v3152 = vld [vmem:[%s2940 + $0x86] sm:$0xff]
        %v3153 = vld [vmem:[%s2940 + $0x96] sm:$0xff]
        %v3154 = vld [vmem:[%s2940 + $0x9e] sm:$0xff]
        %v3155 = vld [vmem:[%s2940 + $0xae] sm:$0xff]
        %v3156 = vld [vmem:[%s2940 + $0xb6] sm:$0xff]
        %v3157 = vld [vmem:[%s2940 + $0xc6] sm:$0xff]
        %v3158 = vld [vmem:[%s2940 + $0xce] sm:$0xff]
        %v3159 = vld [vmem:[%s2940 + $0xde] sm:$0xff]
        %v3160 = vld [vmem:[%s2940 + $0xe6] sm:$0xff]
        %v3161 = vld [vmem:[%s2940 + $0xf6] sm:$0xff]
        %v3162 = vld [vmem:[%s2940 + $0xfe] sm:$0xff]
        %v3163 = vld [vmem:[%s2940 + $0x10e] sm:$0xff]
        %v3164 = vld [vmem:[%s2940 + $0x116] sm:$0xff]
        %v3165 = vld [vmem:[%s2940 + $0x126] sm:$0xff]
        %v3166 = vld [vmem:[%s2940 + $0x12e] sm:$0xff]
        %v3167 = vld [vmem:[%s2940 + $0x13e] sm:$0xff]
        %v3168 = vld [vmem:[%s2940 + $0x146] sm:$0xff]
        %v3169 = vld [vmem:[%s2940 + $0x156] sm:$0xff]
        %v3170 = vld [vmem:[%s2940 + $0x15e] sm:$0xff]
        %v3171 = vld [vmem:[%s2940 + $0x16e] sm:$0xff]
        %v3172 = vld [vmem:[%s2940 + $0x176] sm:$0xff]
        %v3173 = vlaneseq
        %v3174 = vshrl.u32 %v3173, 7
        %v3175 = vsub.s32 2, %v3174
        %v3176 = vrot.slane %v1067, %v3175
        %v3177 = vmul.f32 %v3141, %v3176
        %v3178 = vmul.f32 %v3142, %v3176
        %v3179 = vmul.f32 %v3143, %v3176
        %v3180 = vmul.f32 %v3144, %v3176
        %v3181 = vmul.f32 %v3145, %v3176
        %v3182 = vmul.f32 %v3146, %v3176
        %v3183 = vmul.f32 %v3147, %v3176
        %v3184 = vmul.f32 %v3148, %v3176
        %v3185 = vmul.f32 %v3149, %v3176
        %v3186 = vmul.f32 %v3150, %v3176
        %v3187 = vmul.f32 %v3151, %v3176
        %v3188 = vmul.f32 %v3152, %v3176
        %v3189 = vmul.f32 %v3153, %v3176
        %v3190 = vmul.f32 %v3154, %v3176
        %v3191 = vmul.f32 %v3155, %v3176
        %v3192 = vmul.f32 %v3156, %v3176
        %v3193 = vmul.f32 %v3157, %v3176
        %v3194 = vmul.f32 %v3158, %v3176
        %v3195 = vmul.f32 %v3159, %v3176
        %v3196 = vmul.f32 %v3160, %v3176
        %v3197 = vmul.f32 %v3161, %v3176
        %v3198 = vmul.f32 %v3162, %v3176
        %v3199 = vmul.f32 %v3163, %v3176
        %v3200 = vmul.f32 %v3164, %v3176
        %v3201 = vmul.f32 %v3165, %v3176
        %v3202 = vmul.f32 %v3166, %v3176
        %v3203 = vmul.f32 %v3167, %v3176
        %v3204 = vmul.f32 %v3168, %v3176
        %v3205 = vmul.f32 %v3169, %v3176
        %v3206 = vmul.f32 %v3170, %v3176
        %v3207 = vmul.f32 %v3171, %v3176
        %v3208 = vmul.f32 %v3172, %v3176
        %v3209 = vadd.f32 %v3109, %v3177
        %v3210 = vadd.f32 %v3110, %v3178
        %v3211 = vadd.f32 %v3111, %v3179
        %v3212 = vadd.f32 %v3112, %v3180
        %v3213 = vadd.f32 %v3113, %v3181
        %v3214 = vadd.f32 %v3114, %v3182
        %v3215 = vadd.f32 %v3115, %v3183
        %v3216 = vadd.f32 %v3116, %v3184
        %v3217 = vadd.f32 %v3117, %v3185
        %v3218 = vadd.f32 %v3118, %v3186
        %v3219 = vadd.f32 %v3119, %v3187
        %v3220 = vadd.f32 %v3120, %v3188
        %v3221 = vadd.f32 %v3121, %v3189
        %v3222 = vadd.f32 %v3122, %v3190
        %v3223 = vadd.f32 %v3123, %v3191
        %v3224 = vadd.f32 %v3124, %v3192
        %v3225 = vadd.f32 %v3125, %v3193
        %v3226 = vadd.f32 %v3126, %v3194
        %v3227 = vadd.f32 %v3127, %v3195
        %v3228 = vadd.f32 %v3128, %v3196
        %v3229 = vadd.f32 %v3129, %v3197
        %v3230 = vadd.f32 %v3130, %v3198
        %v3231 = vadd.f32 %v3131, %v3199
        %v3232 = vadd.f32 %v3132, %v3200
        %v3233 = vadd.f32 %v3133, %v3201
        %v3234 = vadd.f32 %v3134, %v3202
        %v3235 = vadd.f32 %v3135, %v3203
        %v3236 = vadd.f32 %v3136, %v3204
        %v3237 = vadd.f32 %v3137, %v3205
        %v3238 = vadd.f32 %v3138, %v3206
        %v3239 = vadd.f32 %v3139, %v3207
        %v3240 = vadd.f32 %v3140, %v3208
        %v3241 = vlaneseq
        %v3242 = vshrl.u32 %v3241, 7
        %v3243 = vsub.s32 1, %v3242
        %v3244 = vrot.slane %v1074, %v3243
        %v3245 = vadd.f32 %v3209, %v3244
        %v3246 = vadd.f32 %v3210, %v3244
        %v3247 = vadd.f32 %v3211, %v3244
        %v3248 = vadd.f32 %v3212, %v3244
        %v3249 = vadd.f32 %v3213, %v3244
        %v3250 = vadd.f32 %v3214, %v3244
        %v3251 = vadd.f32 %v3215, %v3244
        %v3252 = vadd.f32 %v3216, %v3244
        %v3253 = vadd.f32 %v3217, %v3244
        %v3254 = vadd.f32 %v3218, %v3244
        %v3255 = vadd.f32 %v3219, %v3244
        %v3256 = vadd.f32 %v3220, %v3244
        %v3257 = vadd.f32 %v3221, %v3244
        %v3258 = vadd.f32 %v3222, %v3244
        %v3259 = vadd.f32 %v3223, %v3244
        %v3260 = vadd.f32 %v3224, %v3244
        %v3261 = vadd.f32 %v3225, %v3244
        %v3262 = vadd.f32 %v3226, %v3244
        %v3263 = vadd.f32 %v3227, %v3244
        %v3264 = vadd.f32 %v3228, %v3244
        %v3265 = vadd.f32 %v3229, %v3244
        %v3266 = vadd.f32 %v3230, %v3244
        %v3267 = vadd.f32 %v3231, %v3244
        %v3268 = vadd.f32 %v3232, %v3244
        %v3269 = vadd.f32 %v3233, %v3244
        %v3270 = vadd.f32 %v3234, %v3244
        %v3271 = vadd.f32 %v3235, %v3244
        %v3272 = vadd.f32 %v3236, %v3244
        %v3273 = vadd.f32 %v3237, %v3244
        %v3274 = vadd.f32 %v3238, %v3244
        %v3275 = vadd.f32 %v3239, %v3244
        %v3276 = vadd.f32 %v3240, %v3244
        %v3277 = vmax.f32 %v3245, 0.0
        %v3278 = vmax.f32 %v3246, 0.0
        %v3279 = vmax.f32 %v3247, 0.0
        %v3280 = vmax.f32 %v3248, 0.0
        %v3281 = vmax.f32 %v3249, 0.0
        %v3282 = vmax.f32 %v3250, 0.0
        %v3283 = vmax.f32 %v3251, 0.0
        %v3284 = vmax.f32 %v3252, 0.0
        %v3285 = vmax.f32 %v3253, 0.0
        %v3286 = vmax.f32 %v3254, 0.0
        %v3287 = vmax.f32 %v3255, 0.0
        %v3288 = vmax.f32 %v3256, 0.0
        %v3289 = vmax.f32 %v3257, 0.0
        %v3290 = vmax.f32 %v3258, 0.0
        %v3291 = vmax.f32 %v3259, 0.0
        %v3292 = vmax.f32 %v3260, 0.0
        %v3293 = vmax.f32 %v3261, 0.0
        %v3294 = vmax.f32 %v3262, 0.0
        %v3295 = vmax.f32 %v3263, 0.0
        %v3296 = vmax.f32 %v3264, 0.0
        %v3297 = vmax.f32 %v3265, 0.0
        %v3298 = vmax.f32 %v3266, 0.0
        %v3299 = vmax.f32 %v3267, 0.0
        %v3300 = vmax.f32 %v3268, 0.0
        %v3301 = vmax.f32 %v3269, 0.0
        %v3302 = vmax.f32 %v3270, 0.0
        %v3303 = vmax.f32 %v3271, 0.0
        %v3304 = vmax.f32 %v3272, 0.0
        %v3305 = vmax.f32 %v3273, 0.0
        %v3306 = vmax.f32 %v3274, 0.0
        %v3307 = vmax.f32 %v3275, 0.0
        %v3308 = vmax.f32 %v3276, 0.0
        %v3309 = vlaneseq
        %v3310 = vshrl.u32 %v3309, 7
        %v3311 = vsub.s32 1, %v3310
        %v3312 = vrot.slane %v1075, %v3311
        %v3313 = vmul.f32 %v3277, %v3312
        %v3314 = vmul.f32 %v3278, %v3312
        %v3315 = vmul.f32 %v3279, %v3312
        %v3316 = vmul.f32 %v3280, %v3312
        %v3317 = vmul.f32 %v3281, %v3312
        %v3318 = vmul.f32 %v3282, %v3312
        %v3319 = vmul.f32 %v3283, %v3312
        %v3320 = vmul.f32 %v3284, %v3312
        %v3321 = vmul.f32 %v3285, %v3312
        %v3322 = vmul.f32 %v3286, %v3312
        %v3323 = vmul.f32 %v3287, %v3312
        %v3324 = vmul.f32 %v3288, %v3312
        %v3325 = vmul.f32 %v3289, %v3312
        %v3326 = vmul.f32 %v3290, %v3312
        %v3327 = vmul.f32 %v3291, %v3312
        %v3328 = vmul.f32 %v3292, %v3312
        %v3329 = vmul.f32 %v3293, %v3312
        %v3330 = vmul.f32 %v3294, %v3312
        %v3331 = vmul.f32 %v3295, %v3312
        %v3332 = vmul.f32 %v3296, %v3312
        %v3333 = vmul.f32 %v3297, %v3312
        %v3334 = vmul.f32 %v3298, %v3312
        %v3335 = vmul.f32 %v3299, %v3312
        %v3336 = vmul.f32 %v3300, %v3312
        %v3337 = vmul.f32 %v3301, %v3312
        %v3338 = vmul.f32 %v3302, %v3312
        %v3339 = vmul.f32 %v3303, %v3312
        %v3340 = vmul.f32 %v3304, %v3312
        %v3341 = vmul.f32 %v3305, %v3312
        %v3342 = vmul.f32 %v3306, %v3312
        %v3343 = vmul.f32 %v3307, %v3312
        %v3344 = vmul.f32 %v3308, %v3312
        %v3345 = vsel %vm834, %v3313, 0.0
        %3346 = vadd.xlane.f32.xlu0 %v3345
        %v3347 = vpop.xlane.xlu0 %3346
        %v3348 = vsel %vm834, %v3314, 0.0
        %3349 = vadd.xlane.f32.xlu0 %v3348
        %v3350 = vpop.xlane.xlu0 %3349
        %v3351 = vsel %vm834, %v3315, 0.0
        %3352 = vadd.xlane.f32.xlu0 %v3351
        %v3353 = vpop.xlane.xlu0 %3352
        %v3354 = vsel %vm834, %v3316, 0.0
        %3355 = vadd.xlane.f32.xlu0 %v3354
        %v3356 = vpop.xlane.xlu0 %3355
        %v3357 = vsel %vm834, %v3317, 0.0
        %3358 = vadd.xlane.f32.xlu0 %v3357
        %v3359 = vpop.xlane.xlu0 %3358
        %v3360 = vsel %vm834, %v3318, 0.0
        %3361 = vadd.xlane.f32.xlu0 %v3360
        %v3362 = vpop.xlane.xlu0 %3361
        %v3363 = vsel %vm834, %v3319, 0.0
        %3364 = vadd.xlane.f32.xlu0 %v3363
        %v3365 = vpop.xlane.xlu0 %3364
        %v3366 = vsel %vm834, %v3320, 0.0
        %3367 = vadd.xlane.f32.xlu0 %v3366
        %v3368 = vpop.xlane.xlu0 %3367
        %v3369 = vsel %vm834, %v3321, 0.0
        %3370 = vadd.xlane.f32.xlu0 %v3369
        %v3371 = vpop.xlane.xlu0 %3370
        %v3372 = vsel %vm834, %v3322, 0.0
        %3373 = vadd.xlane.f32.xlu0 %v3372
        %v3374 = vpop.xlane.xlu0 %3373
        %v3375 = vsel %vm834, %v3323, 0.0
        %3376 = vadd.xlane.f32.xlu0 %v3375
        %v3377 = vpop.xlane.xlu0 %3376
        %v3378 = vsel %vm834, %v3324, 0.0
        %3379 = vadd.xlane.f32.xlu0 %v3378
        %v3380 = vpop.xlane.xlu0 %3379
        %v3381 = vsel %vm834, %v3325, 0.0
        %3382 = vadd.xlane.f32.xlu0 %v3381
        %v3383 = vpop.xlane.xlu0 %3382
        %v3384 = vsel %vm834, %v3326, 0.0
        %3385 = vadd.xlane.f32.xlu0 %v3384
        %v3386 = vpop.xlane.xlu0 %3385
        %v3387 = vsel %vm834, %v3327, 0.0
        %3388 = vadd.xlane.f32.xlu0 %v3387
        %v3389 = vpop.xlane.xlu0 %3388
        %v3390 = vsel %vm834, %v3328, 0.0
        %3391 = vadd.xlane.f32.xlu0 %v3390
        %v3392 = vpop.xlane.xlu0 %3391
        %v3393 = vsel %vm834, %v3329, 0.0
        %3394 = vadd.xlane.f32.xlu0 %v3393
        %v3395 = vpop.xlane.xlu0 %3394
        %v3396 = vsel %vm834, %v3330, 0.0
        %3397 = vadd.xlane.f32.xlu0 %v3396
        %v3398 = vpop.xlane.xlu0 %3397
        %v3399 = vsel %vm834, %v3331, 0.0
        %3400 = vadd.xlane.f32.xlu0 %v3399
        %v3401 = vpop.xlane.xlu0 %3400
        %v3402 = vsel %vm834, %v3332, 0.0
        %3403 = vadd.xlane.f32.xlu0 %v3402
        %v3404 = vpop.xlane.xlu0 %3403
        %v3405 = vsel %vm834, %v3333, 0.0
        %3406 = vadd.xlane.f32.xlu0 %v3405
        %v3407 = vpop.xlane.xlu0 %3406
        %v3408 = vsel %vm834, %v3334, 0.0
        %3409 = vadd.xlane.f32.xlu0 %v3408
        %v3410 = vpop.xlane.xlu0 %3409
        %v3411 = vsel %vm834, %v3335, 0.0
        %3412 = vadd.xlane.f32.xlu0 %v3411
        %v3413 = vpop.xlane.xlu0 %3412
        %v3414 = vsel %vm834, %v3336, 0.0
        %3415 = vadd.xlane.f32.xlu0 %v3414
        %v3416 = vpop.xlane.xlu0 %3415
        %v3417 = vsel %vm834, %v3337, 0.0
        %3418 = vadd.xlane.f32.xlu0 %v3417
        %v3419 = vpop.xlane.xlu0 %3418
        %v3420 = vsel %vm834, %v3338, 0.0
        %3421 = vadd.xlane.f32.xlu0 %v3420
        %v3422 = vpop.xlane.xlu0 %3421
        %v3423 = vsel %vm834, %v3339, 0.0
        %3424 = vadd.xlane.f32.xlu0 %v3423
        %v3425 = vpop.xlane.xlu0 %3424
        %v3426 = vsel %vm834, %v3340, 0.0
        %3427 = vadd.xlane.f32.xlu0 %v3426
        %v3428 = vpop.xlane.xlu0 %3427
        %v3429 = vsel %vm834, %v3341, 0.0
        %3430 = vadd.xlane.f32.xlu0 %v3429
        %v3431 = vpop.xlane.xlu0 %3430
        %v3432 = vsel %vm834, %v3342, 0.0
        %3433 = vadd.xlane.f32.xlu0 %v3432
        %v3434 = vpop.xlane.xlu0 %3433
        %v3435 = vsel %vm834, %v3343, 0.0
        %3436 = vadd.xlane.f32.xlu0 %v3435
        %v3437 = vpop.xlane.xlu0 %3436
        %v3438 = vsel %vm834, %v3344, 0.0
        %3439 = vadd.xlane.f32.xlu0 %v3438
        %v3440 = vpop.xlane.xlu0 %3439
        %v3441 = vadd.f32 %v2178, %v3347
        %v3442 = vadd.f32 %v2179, %v3350
        %v3443 = vadd.f32 %v2180, %v3353
        %v3444 = vadd.f32 %v2181, %v3356
        %v3445 = vadd.f32 %v2182, %v3359
        %v3446 = vadd.f32 %v2183, %v3362
        %v3447 = vadd.f32 %v2184, %v3365
        %v3448 = vadd.f32 %v2185, %v3368
        %v3449 = vadd.f32 %v2186, %v3371
        %v3450 = vadd.f32 %v2187, %v3374
        %v3451 = vadd.f32 %v2188, %v3377
        %v3452 = vadd.f32 %v2189, %v3380
        %v3453 = vadd.f32 %v2190, %v3383
        %v3454 = vadd.f32 %v2191, %v3386
        %v3455 = vadd.f32 %v2192, %v3389
        %v3456 = vadd.f32 %v2193, %v3392
        %v3457 = vadd.f32 %v2194, %v3395
        %v3458 = vadd.f32 %v2195, %v3398
        %v3459 = vadd.f32 %v2196, %v3401
        %v3460 = vadd.f32 %v2197, %v3404
        %v3461 = vadd.f32 %v2198, %v3407
        %v3462 = vadd.f32 %v2199, %v3410
        %v3463 = vadd.f32 %v2200, %v3413
        %v3464 = vadd.f32 %v2201, %v3416
        %v3465 = vadd.f32 %v2202, %v3419
        %v3466 = vadd.f32 %v2203, %v3422
        %v3467 = vadd.f32 %v2204, %v3425
        %v3468 = vadd.f32 %v2205, %v3428
        %v3469 = vadd.f32 %v2206, %v3431
        %v3470 = vadd.f32 %v2207, %v3434
        %v3471 = vadd.f32 %v2208, %v3437
        %v3472 = vadd.f32 %v2209, %v3440
        %s3473 = scalar_lea.vmem [#allocation2], 1248
        %3474 = vst.msk [vmem:[%s3473 + $0x4] sm:$0xff] %vm834, %v771
        %3475 = vst.msk [vmem:[%s3473 + $0xc] sm:$0xff] %vm834, %v773
        %3476 = vst.msk [vmem:[%s3473 + $0x1c] sm:$0xff] %vm834, %v775
        %3477 = vst.msk [vmem:[%s3473 + $0x24] sm:$0xff] %vm834, %v777
        %3478 = vst.msk [vmem:[%s3473 + $0x34] sm:$0xff] %vm834, %v779
        %3479 = vst.msk [vmem:[%s3473 + $0x3c] sm:$0xff] %vm834, %v781
        %3480 = vst.msk [vmem:[%s3473 + $0x4c] sm:$0xff] %vm834, %v783
        %3481 = vst.msk [vmem:[%s3473 + $0x54] sm:$0xff] %vm834, %v785
        %3482 = vst.msk [vmem:[%s3473 + $0x64] sm:$0xff] %vm834, %v787
        %3483 = vst.msk [vmem:[%s3473 + $0x6c] sm:$0xff] %vm834, %v789
        %3484 = vst.msk [vmem:[%s3473 + $0x7c] sm:$0xff] %vm834, %v791
        %3485 = vst.msk [vmem:[%s3473 + $0x84] sm:$0xff] %vm834, %v793
        %3486 = vst.msk [vmem:[%s3473 + $0x94] sm:$0xff] %vm834, %v795
        %3487 = vst.msk [vmem:[%s3473 + $0x9c] sm:$0xff] %vm834, %v797
        %3488 = vst.msk [vmem:[%s3473 + $0xac] sm:$0xff] %vm834, %v799
        %3489 = vst.msk [vmem:[%s3473 + $0xb4] sm:$0xff] %vm834, %v801
        %3490 = vst.msk [vmem:[%s3473 + $0xc4] sm:$0xff] %vm834, %v803
        %3491 = vst.msk [vmem:[%s3473 + $0xcc] sm:$0xff] %vm834, %v805
        %3492 = vst.msk [vmem:[%s3473 + $0xdc] sm:$0xff] %vm834, %v807
        %3493 = vst.msk [vmem:[%s3473 + $0xe4] sm:$0xff] %vm834, %v809
        %3494 = vst.msk [vmem:[%s3473 + $0xf4] sm:$0xff] %vm834, %v811
        %3495 = vst.msk [vmem:[%s3473 + $0xfc] sm:$0xff] %vm834, %v813
        %3496 = vst.msk [vmem:[%s3473 + $0x10c] sm:$0xff] %vm834, %v815
        %3497 = vst.msk [vmem:[%s3473 + $0x114] sm:$0xff] %vm834, %v817
        %3498 = vst.msk [vmem:[%s3473 + $0x124] sm:$0xff] %vm834, %v819
        %3499 = vst.msk [vmem:[%s3473 + $0x12c] sm:$0xff] %vm834, %v821
        %3500 = vst.msk [vmem:[%s3473 + $0x13c] sm:$0xff] %vm834, %v823
        %3501 = vst.msk [vmem:[%s3473 + $0x144] sm:$0xff] %vm834, %v825
        %3502 = vst.msk [vmem:[%s3473 + $0x154] sm:$0xff] %vm834, %v827
        %3503 = vst.msk [vmem:[%s3473 + $0x15c] sm:$0xff] %vm834, %v829
        %3504 = vst.msk [vmem:[%s3473 + $0x16c] sm:$0xff] %vm834, %v831
        %3505 = vst.msk [vmem:[%s3473 + $0x174] sm:$0xff] %vm834, %v833
        %s3506 = scalar_lea.vmem [#allocation2], 1176
        %v3507 = vld [vmem:[%s3506 + $0x1] sm:$0xff]
        %v3508 = vld [vmem:[%s3506 + $0x9] sm:$0xff]
        %v3509 = vld [vmem:[%s3506 + $0x19] sm:$0xff]
        %v3510 = vld [vmem:[%s3506 + $0x21] sm:$0xff]
        %v3511 = vld [vmem:[%s3506 + $0x31] sm:$0xff]
        %v3512 = vld [vmem:[%s3506 + $0x39] sm:$0xff]
        %v3513 = vld [vmem:[%s3506 + $0x49] sm:$0xff]
        %v3514 = vld [vmem:[%s3506 + $0x51] sm:$0xff]
        %v3515 = vld [vmem:[%s3506 + $0x61] sm:$0xff]
        %v3516 = vld [vmem:[%s3506 + $0x69] sm:$0xff]
        %v3517 = vld [vmem:[%s3506 + $0x79] sm:$0xff]
        %v3518 = vld [vmem:[%s3506 + $0x81] sm:$0xff]
        %v3519 = vld [vmem:[%s3506 + $0x91] sm:$0xff]
        %v3520 = vld [vmem:[%s3506 + $0x99] sm:$0xff]
        %v3521 = vld [vmem:[%s3506 + $0xa9] sm:$0xff]
        %v3522 = vld [vmem:[%s3506 + $0xb1] sm:$0xff]
        %v3523 = vld [vmem:[%s3506 + $0xc1] sm:$0xff]
        %v3524 = vld [vmem:[%s3506 + $0xc9] sm:$0xff]
        %v3525 = vld [vmem:[%s3506 + $0xd9] sm:$0xff]
        %v3526 = vld [vmem:[%s3506 + $0xe1] sm:$0xff]
        %v3527 = vld [vmem:[%s3506 + $0xf1] sm:$0xff]
        %v3528 = vld [vmem:[%s3506 + $0xf9] sm:$0xff]
        %v3529 = vld [vmem:[%s3506 + $0x109] sm:$0xff]
        %v3530 = vld [vmem:[%s3506 + $0x111] sm:$0xff]
        %v3531 = vld [vmem:[%s3506 + $0x121] sm:$0xff]
        %v3532 = vld [vmem:[%s3506 + $0x129] sm:$0xff]
        %v3533 = vld [vmem:[%s3506 + $0x139] sm:$0xff]
        %v3534 = vld [vmem:[%s3506 + $0x141] sm:$0xff]
        %v3535 = vld [vmem:[%s3506 + $0x151] sm:$0xff]
        %v3536 = vld [vmem:[%s3506 + $0x159] sm:$0xff]
        %v3537 = vld [vmem:[%s3506 + $0x169] sm:$0xff]
        %v3538 = vld [vmem:[%s3506 + $0x171] sm:$0xff]
        %v3539 = vlaneseq
        %v3540 = vshrl.u32 %v3539, 7
        %v3541 = vsub.s32 0, %v3540
        %v3542 = vrot.slane %v1068, %v3541
        %v3543 = vmul.f32 %v3507, %v3542
        %v3544 = vmul.f32 %v3508, %v3542
        %v3545 = vmul.f32 %v3509, %v3542
        %v3546 = vmul.f32 %v3510, %v3542
        %v3547 = vmul.f32 %v3511, %v3542
        %v3548 = vmul.f32 %v3512, %v3542
        %v3549 = vmul.f32 %v3513, %v3542
        %v3550 = vmul.f32 %v3514, %v3542
        %v3551 = vmul.f32 %v3515, %v3542
        %v3552 = vmul.f32 %v3516, %v3542
        %v3553 = vmul.f32 %v3517, %v3542
        %v3554 = vmul.f32 %v3518, %v3542
        %v3555 = vmul.f32 %v3519, %v3542
        %v3556 = vmul.f32 %v3520, %v3542
        %v3557 = vmul.f32 %v3521, %v3542
        %v3558 = vmul.f32 %v3522, %v3542
        %v3559 = vmul.f32 %v3523, %v3542
        %v3560 = vmul.f32 %v3524, %v3542
        %v3561 = vmul.f32 %v3525, %v3542
        %v3562 = vmul.f32 %v3526, %v3542
        %v3563 = vmul.f32 %v3527, %v3542
        %v3564 = vmul.f32 %v3528, %v3542
        %v3565 = vmul.f32 %v3529, %v3542
        %v3566 = vmul.f32 %v3530, %v3542
        %v3567 = vmul.f32 %v3531, %v3542
        %v3568 = vmul.f32 %v3532, %v3542
        %v3569 = vmul.f32 %v3533, %v3542
        %v3570 = vmul.f32 %v3534, %v3542
        %v3571 = vmul.f32 %v3535, %v3542
        %v3572 = vmul.f32 %v3536, %v3542
        %v3573 = vmul.f32 %v3537, %v3542
        %v3574 = vmul.f32 %v3538, %v3542
        %v3575 = vld [vmem:[%s3506 + $0x4] sm:$0xff]
        %v3576 = vld [vmem:[%s3506 + $0xc] sm:$0xff]
        %v3577 = vld [vmem:[%s3506 + $0x1c] sm:$0xff]
        %v3578 = vld [vmem:[%s3506 + $0x24] sm:$0xff]
        %v3579 = vld [vmem:[%s3506 + $0x34] sm:$0xff]
        %v3580 = vld [vmem:[%s3506 + $0x3c] sm:$0xff]
        %v3581 = vld [vmem:[%s3506 + $0x4c] sm:$0xff]
        %v3582 = vld [vmem:[%s3506 + $0x54] sm:$0xff]
        %v3583 = vld [vmem:[%s3506 + $0x64] sm:$0xff]
        %v3584 = vld [vmem:[%s3506 + $0x6c] sm:$0xff]
        %v3585 = vld [vmem:[%s3506 + $0x7c] sm:$0xff]
        %v3586 = vld [vmem:[%s3506 + $0x84] sm:$0xff]
        %v3587 = vld [vmem:[%s3506 + $0x94] sm:$0xff]
        %v3588 = vld [vmem:[%s3506 + $0x9c] sm:$0xff]
        %v3589 = vld [vmem:[%s3506 + $0xac] sm:$0xff]
        %v3590 = vld [vmem:[%s3506 + $0xb4] sm:$0xff]
        %v3591 = vld [vmem:[%s3506 + $0xc4] sm:$0xff]
        %v3592 = vld [vmem:[%s3506 + $0xcc] sm:$0xff]
        %v3593 = vld [vmem:[%s3506 + $0xdc] sm:$0xff]
        %v3594 = vld [vmem:[%s3506 + $0xe4] sm:$0xff]
        %v3595 = vld [vmem:[%s3506 + $0xf4] sm:$0xff]
        %v3596 = vld [vmem:[%s3506 + $0xfc] sm:$0xff]
        %v3597 = vld [vmem:[%s3506 + $0x10c] sm:$0xff]
        %v3598 = vld [vmem:[%s3506 + $0x114] sm:$0xff]
        %v3599 = vld [vmem:[%s3506 + $0x124] sm:$0xff]
        %v3600 = vld [vmem:[%s3506 + $0x12c] sm:$0xff]
        %v3601 = vld [vmem:[%s3506 + $0x13c] sm:$0xff]
        %v3602 = vld [vmem:[%s3506 + $0x144] sm:$0xff]
        %v3603 = vld [vmem:[%s3506 + $0x154] sm:$0xff]
        %v3604 = vld [vmem:[%s3506 + $0x15c] sm:$0xff]
        %v3605 = vld [vmem:[%s3506 + $0x16c] sm:$0xff]
        %v3606 = vld [vmem:[%s3506 + $0x174] sm:$0xff]
        %v3607 = vlaneseq
        %v3608 = vshrl.u32 %v3607, 7
        %v3609 = vsub.s32 1, %v3608
        %v3610 = vrot.slane %v1068, %v3609
        %v3611 = vmul.f32 %v3575, %v3610
        %v3612 = vmul.f32 %v3576, %v3610
        %v3613 = vmul.f32 %v3577, %v3610
        %v3614 = vmul.f32 %v3578, %v3610
        %v3615 = vmul.f32 %v3579, %v3610
        %v3616 = vmul.f32 %v3580, %v3610
        %v3617 = vmul.f32 %v3581, %v3610
        %v3618 = vmul.f32 %v3582, %v3610
        %v3619 = vmul.f32 %v3583, %v3610
        %v3620 = vmul.f32 %v3584, %v3610
        %v3621 = vmul.f32 %v3585, %v3610
        %v3622 = vmul.f32 %v3586, %v3610
        %v3623 = vmul.f32 %v3587, %v3610
        %v3624 = vmul.f32 %v3588, %v3610
        %v3625 = vmul.f32 %v3589, %v3610
        %v3626 = vmul.f32 %v3590, %v3610
        %v3627 = vmul.f32 %v3591, %v3610
        %v3628 = vmul.f32 %v3592, %v3610
        %v3629 = vmul.f32 %v3593, %v3610
        %v3630 = vmul.f32 %v3594, %v3610
        %v3631 = vmul.f32 %v3595, %v3610
        %v3632 = vmul.f32 %v3596, %v3610
        %v3633 = vmul.f32 %v3597, %v3610
        %v3634 = vmul.f32 %v3598, %v3610
        %v3635 = vmul.f32 %v3599, %v3610
        %v3636 = vmul.f32 %v3600, %v3610
        %v3637 = vmul.f32 %v3601, %v3610
        %v3638 = vmul.f32 %v3602, %v3610
        %v3639 = vmul.f32 %v3603, %v3610
        %v3640 = vmul.f32 %v3604, %v3610
        %v3641 = vmul.f32 %v3605, %v3610
        %v3642 = vmul.f32 %v3606, %v3610
        %v3643 = vadd.f32 %v3543, %v3611
        %v3644 = vadd.f32 %v3544, %v3612
        %v3645 = vadd.f32 %v3545, %v3613
        %v3646 = vadd.f32 %v3546, %v3614
        %v3647 = vadd.f32 %v3547, %v3615
        %v3648 = vadd.f32 %v3548, %v3616
        %v3649 = vadd.f32 %v3549, %v3617
        %v3650 = vadd.f32 %v3550, %v3618
        %v3651 = vadd.f32 %v3551, %v3619
        %v3652 = vadd.f32 %v3552, %v3620
        %v3653 = vadd.f32 %v3553, %v3621
        %v3654 = vadd.f32 %v3554, %v3622
        %v3655 = vadd.f32 %v3555, %v3623
        %v3656 = vadd.f32 %v3556, %v3624
        %v3657 = vadd.f32 %v3557, %v3625
        %v3658 = vadd.f32 %v3558, %v3626
        %v3659 = vadd.f32 %v3559, %v3627
        %v3660 = vadd.f32 %v3560, %v3628
        %v3661 = vadd.f32 %v3561, %v3629
        %v3662 = vadd.f32 %v3562, %v3630
        %v3663 = vadd.f32 %v3563, %v3631
        %v3664 = vadd.f32 %v3564, %v3632
        %v3665 = vadd.f32 %v3565, %v3633
        %v3666 = vadd.f32 %v3566, %v3634
        %v3667 = vadd.f32 %v3567, %v3635
        %v3668 = vadd.f32 %v3568, %v3636
        %v3669 = vadd.f32 %v3569, %v3637
        %v3670 = vadd.f32 %v3570, %v3638
        %v3671 = vadd.f32 %v3571, %v3639
        %v3672 = vadd.f32 %v3572, %v3640
        %v3673 = vadd.f32 %v3573, %v3641
        %v3674 = vadd.f32 %v3574, %v3642
        %v3675 = vld [vmem:[%s3506 + $0x7] sm:$0xff]
        %v3676 = vld [vmem:[%s3506 + $0xf] sm:$0xff]
        %v3677 = vld [vmem:[%s3506 + $0x1f] sm:$0xff]
        %v3678 = vld [vmem:[%s3506 + $0x27] sm:$0xff]
        %v3679 = vld [vmem:[%s3506 + $0x37] sm:$0xff]
        %v3680 = vld [vmem:[%s3506 + $0x3f] sm:$0xff]
        %v3681 = vld [vmem:[%s3506 + $0x4f] sm:$0xff]
        %v3682 = vld [vmem:[%s3506 + $0x57] sm:$0xff]
        %v3683 = vld [vmem:[%s3506 + $0x67] sm:$0xff]
        %v3684 = vld [vmem:[%s3506 + $0x6f] sm:$0xff]
        %v3685 = vld [vmem:[%s3506 + $0x7f] sm:$0xff]
        %v3686 = vld [vmem:[%s3506 + $0x87] sm:$0xff]
        %v3687 = vld [vmem:[%s3506 + $0x97] sm:$0xff]
        %v3688 = vld [vmem:[%s3506 + $0x9f] sm:$0xff]
        %v3689 = vld [vmem:[%s3506 + $0xaf] sm:$0xff]
        %v3690 = vld [vmem:[%s3506 + $0xb7] sm:$0xff]
        %v3691 = vld [vmem:[%s3506 + $0xc7] sm:$0xff]
        %v3692 = vld [vmem:[%s3506 + $0xcf] sm:$0xff]
        %v3693 = vld [vmem:[%s3506 + $0xdf] sm:$0xff]
        %v3694 = vld [vmem:[%s3506 + $0xe7] sm:$0xff]
        %v3695 = vld [vmem:[%s3506 + $0xf7] sm:$0xff]
        %v3696 = vld [vmem:[%s3506 + $0xff] sm:$0xff]
        %v3697 = vld [vmem:[%s3506 + $0x10f] sm:$0xff]
        %v3698 = vld [vmem:[%s3506 + $0x117] sm:$0xff]
        %v3699 = vld [vmem:[%s3506 + $0x127] sm:$0xff]
        %v3700 = vld [vmem:[%s3506 + $0x12f] sm:$0xff]
        %v3701 = vld [vmem:[%s3506 + $0x13f] sm:$0xff]
        %v3702 = vld [vmem:[%s3506 + $0x147] sm:$0xff]
        %v3703 = vld [vmem:[%s3506 + $0x157] sm:$0xff]
        %v3704 = vld [vmem:[%s3506 + $0x15f] sm:$0xff]
        %v3705 = vld [vmem:[%s3506 + $0x16f] sm:$0xff]
        %v3706 = vld [vmem:[%s3506 + $0x177] sm:$0xff]
        %v3707 = vlaneseq
        %v3708 = vshrl.u32 %v3707, 7
        %v3709 = vsub.s32 2, %v3708
        %v3710 = vrot.slane %v1068, %v3709
        %v3711 = vmul.f32 %v3675, %v3710
        %v3712 = vmul.f32 %v3676, %v3710
        %v3713 = vmul.f32 %v3677, %v3710
        %v3714 = vmul.f32 %v3678, %v3710
        %v3715 = vmul.f32 %v3679, %v3710
        %v3716 = vmul.f32 %v3680, %v3710
        %v3717 = vmul.f32 %v3681, %v3710
        %v3718 = vmul.f32 %v3682, %v3710
        %v3719 = vmul.f32 %v3683, %v3710
        %v3720 = vmul.f32 %v3684, %v3710
        %v3721 = vmul.f32 %v3685, %v3710
        %v3722 = vmul.f32 %v3686, %v3710
        %v3723 = vmul.f32 %v3687, %v3710
        %v3724 = vmul.f32 %v3688, %v3710
        %v3725 = vmul.f32 %v3689, %v3710
        %v3726 = vmul.f32 %v3690, %v3710
        %v3727 = vmul.f32 %v3691, %v3710
        %v3728 = vmul.f32 %v3692, %v3710
        %v3729 = vmul.f32 %v3693, %v3710
        %v3730 = vmul.f32 %v3694, %v3710
        %v3731 = vmul.f32 %v3695, %v3710
        %v3732 = vmul.f32 %v3696, %v3710
        %v3733 = vmul.f32 %v3697, %v3710
        %v3734 = vmul.f32 %v3698, %v3710
        %v3735 = vmul.f32 %v3699, %v3710
        %v3736 = vmul.f32 %v3700, %v3710
        %v3737 = vmul.f32 %v3701, %v3710
        %v3738 = vmul.f32 %v3702, %v3710
        %v3739 = vmul.f32 %v3703, %v3710
        %v3740 = vmul.f32 %v3704, %v3710
        %v3741 = vmul.f32 %v3705, %v3710
        %v3742 = vmul.f32 %v3706, %v3710
        %v3743 = vadd.f32 %v3643, %v3711
        %v3744 = vadd.f32 %v3644, %v3712
        %v3745 = vadd.f32 %v3645, %v3713
        %v3746 = vadd.f32 %v3646, %v3714
        %v3747 = vadd.f32 %v3647, %v3715
        %v3748 = vadd.f32 %v3648, %v3716
        %v3749 = vadd.f32 %v3649, %v3717
        %v3750 = vadd.f32 %v3650, %v3718
        %v3751 = vadd.f32 %v3651, %v3719
        %v3752 = vadd.f32 %v3652, %v3720
        %v3753 = vadd.f32 %v3653, %v3721
        %v3754 = vadd.f32 %v3654, %v3722
        %v3755 = vadd.f32 %v3655, %v3723
        %v3756 = vadd.f32 %v3656, %v3724
        %v3757 = vadd.f32 %v3657, %v3725
        %v3758 = vadd.f32 %v3658, %v3726
        %v3759 = vadd.f32 %v3659, %v3727
        %v3760 = vadd.f32 %v3660, %v3728
        %v3761 = vadd.f32 %v3661, %v3729
        %v3762 = vadd.f32 %v3662, %v3730
        %v3763 = vadd.f32 %v3663, %v3731
        %v3764 = vadd.f32 %v3664, %v3732
        %v3765 = vadd.f32 %v3665, %v3733
        %v3766 = vadd.f32 %v3666, %v3734
        %v3767 = vadd.f32 %v3667, %v3735
        %v3768 = vadd.f32 %v3668, %v3736
        %v3769 = vadd.f32 %v3669, %v3737
        %v3770 = vadd.f32 %v3670, %v3738
        %v3771 = vadd.f32 %v3671, %v3739
        %v3772 = vadd.f32 %v3672, %v3740
        %v3773 = vadd.f32 %v3673, %v3741
        %v3774 = vadd.f32 %v3674, %v3742
        %v3775 = vld [vmem:[%s3473 + $0x1] sm:$0xff]
        %v3776 = vld [vmem:[%s3473 + $0x9] sm:$0xff]
        %v3777 = vld [vmem:[%s3473 + $0x19] sm:$0xff]
        %v3778 = vld [vmem:[%s3473 + $0x21] sm:$0xff]
        %v3779 = vld [vmem:[%s3473 + $0x31] sm:$0xff]
        %v3780 = vld [vmem:[%s3473 + $0x39] sm:$0xff]
        %v3781 = vld [vmem:[%s3473 + $0x49] sm:$0xff]
        %v3782 = vld [vmem:[%s3473 + $0x51] sm:$0xff]
        %v3783 = vld [vmem:[%s3473 + $0x61] sm:$0xff]
        %v3784 = vld [vmem:[%s3473 + $0x69] sm:$0xff]
        %v3785 = vld [vmem:[%s3473 + $0x79] sm:$0xff]
        %v3786 = vld [vmem:[%s3473 + $0x81] sm:$0xff]
        %v3787 = vld [vmem:[%s3473 + $0x91] sm:$0xff]
        %v3788 = vld [vmem:[%s3473 + $0x99] sm:$0xff]
        %v3789 = vld [vmem:[%s3473 + $0xa9] sm:$0xff]
        %v3790 = vld [vmem:[%s3473 + $0xb1] sm:$0xff]
        %v3791 = vld [vmem:[%s3473 + $0xc1] sm:$0xff]
        %v3792 = vld [vmem:[%s3473 + $0xc9] sm:$0xff]
        %v3793 = vld [vmem:[%s3473 + $0xd9] sm:$0xff]
        %v3794 = vld [vmem:[%s3473 + $0xe1] sm:$0xff]
        %v3795 = vld [vmem:[%s3473 + $0xf1] sm:$0xff]
        %v3796 = vld [vmem:[%s3473 + $0xf9] sm:$0xff]
        %v3797 = vld [vmem:[%s3473 + $0x109] sm:$0xff]
        %v3798 = vld [vmem:[%s3473 + $0x111] sm:$0xff]
        %v3799 = vld [vmem:[%s3473 + $0x121] sm:$0xff]
        %v3800 = vld [vmem:[%s3473 + $0x129] sm:$0xff]
        %v3801 = vld [vmem:[%s3473 + $0x139] sm:$0xff]
        %v3802 = vld [vmem:[%s3473 + $0x141] sm:$0xff]
        %v3803 = vld [vmem:[%s3473 + $0x151] sm:$0xff]
        %v3804 = vld [vmem:[%s3473 + $0x159] sm:$0xff]
        %v3805 = vld [vmem:[%s3473 + $0x169] sm:$0xff]
        %v3806 = vld [vmem:[%s3473 + $0x171] sm:$0xff]
        %v3807 = vlaneseq
        %v3808 = vshrl.u32 %v3807, 7
        %v3809 = vsub.s32 0, %v3808
        %v3810 = vrot.slane %v1069, %v3809
        %v3811 = vmul.f32 %v3775, %v3810
        %v3812 = vmul.f32 %v3776, %v3810
        %v3813 = vmul.f32 %v3777, %v3810
        %v3814 = vmul.f32 %v3778, %v3810
        %v3815 = vmul.f32 %v3779, %v3810
        %v3816 = vmul.f32 %v3780, %v3810
        %v3817 = vmul.f32 %v3781, %v3810
        %v3818 = vmul.f32 %v3782, %v3810
        %v3819 = vmul.f32 %v3783, %v3810
        %v3820 = vmul.f32 %v3784, %v3810
        %v3821 = vmul.f32 %v3785, %v3810
        %v3822 = vmul.f32 %v3786, %v3810
        %v3823 = vmul.f32 %v3787, %v3810
        %v3824 = vmul.f32 %v3788, %v3810
        %v3825 = vmul.f32 %v3789, %v3810
        %v3826 = vmul.f32 %v3790, %v3810
        %v3827 = vmul.f32 %v3791, %v3810
        %v3828 = vmul.f32 %v3792, %v3810
        %v3829 = vmul.f32 %v3793, %v3810
        %v3830 = vmul.f32 %v3794, %v3810
        %v3831 = vmul.f32 %v3795, %v3810
        %v3832 = vmul.f32 %v3796, %v3810
        %v3833 = vmul.f32 %v3797, %v3810
        %v3834 = vmul.f32 %v3798, %v3810
        %v3835 = vmul.f32 %v3799, %v3810
        %v3836 = vmul.f32 %v3800, %v3810
        %v3837 = vmul.f32 %v3801, %v3810
        %v3838 = vmul.f32 %v3802, %v3810
        %v3839 = vmul.f32 %v3803, %v3810
        %v3840 = vmul.f32 %v3804, %v3810
        %v3841 = vmul.f32 %v3805, %v3810
        %v3842 = vmul.f32 %v3806, %v3810
        %v3843 = vadd.f32 %v3743, %v3811
        %v3844 = vadd.f32 %v3744, %v3812
        %v3845 = vadd.f32 %v3745, %v3813
        %v3846 = vadd.f32 %v3746, %v3814
        %v3847 = vadd.f32 %v3747, %v3815
        %v3848 = vadd.f32 %v3748, %v3816
        %v3849 = vadd.f32 %v3749, %v3817
        %v3850 = vadd.f32 %v3750, %v3818
        %v3851 = vadd.f32 %v3751, %v3819
        %v3852 = vadd.f32 %v3752, %v3820
        %v3853 = vadd.f32 %v3753, %v3821
        %v3854 = vadd.f32 %v3754, %v3822
        %v3855 = vadd.f32 %v3755, %v3823
        %v3856 = vadd.f32 %v3756, %v3824
        %v3857 = vadd.f32 %v3757, %v3825
        %v3858 = vadd.f32 %v3758, %v3826
        %v3859 = vadd.f32 %v3759, %v3827
        %v3860 = vadd.f32 %v3760, %v3828
        %v3861 = vadd.f32 %v3761, %v3829
        %v3862 = vadd.f32 %v3762, %v3830
        %v3863 = vadd.f32 %v3763, %v3831
        %v3864 = vadd.f32 %v3764, %v3832
        %v3865 = vadd.f32 %v3765, %v3833
        %v3866 = vadd.f32 %v3766, %v3834
        %v3867 = vadd.f32 %v3767, %v3835
        %v3868 = vadd.f32 %v3768, %v3836
        %v3869 = vadd.f32 %v3769, %v3837
        %v3870 = vadd.f32 %v3770, %v3838
        %v3871 = vadd.f32 %v3771, %v3839
        %v3872 = vadd.f32 %v3772, %v3840
        %v3873 = vadd.f32 %v3773, %v3841
        %v3874 = vadd.f32 %v3774, %v3842
        %v3875 = vld [vmem:[%s3473 + $0x4] sm:$0xff]
        %v3876 = vld [vmem:[%s3473 + $0xc] sm:$0xff]
        %v3877 = vld [vmem:[%s3473 + $0x1c] sm:$0xff]
        %v3878 = vld [vmem:[%s3473 + $0x24] sm:$0xff]
        %v3879 = vld [vmem:[%s3473 + $0x34] sm:$0xff]
        %v3880 = vld [vmem:[%s3473 + $0x3c] sm:$0xff]
        %v3881 = vld [vmem:[%s3473 + $0x4c] sm:$0xff]
        %v3882 = vld [vmem:[%s3473 + $0x54] sm:$0xff]
        %v3883 = vld [vmem:[%s3473 + $0x64] sm:$0xff]
        %v3884 = vld [vmem:[%s3473 + $0x6c] sm:$0xff]
        %v3885 = vld [vmem:[%s3473 + $0x7c] sm:$0xff]
        %v3886 = vld [vmem:[%s3473 + $0x84] sm:$0xff]
        %v3887 = vld [vmem:[%s3473 + $0x94] sm:$0xff]
        %v3888 = vld [vmem:[%s3473 + $0x9c] sm:$0xff]
        %v3889 = vld [vmem:[%s3473 + $0xac] sm:$0xff]
        %v3890 = vld [vmem:[%s3473 + $0xb4] sm:$0xff]
        %v3891 = vld [vmem:[%s3473 + $0xc4] sm:$0xff]
        %v3892 = vld [vmem:[%s3473 + $0xcc] sm:$0xff]
        %v3893 = vld [vmem:[%s3473 + $0xdc] sm:$0xff]
        %v3894 = vld [vmem:[%s3473 + $0xe4] sm:$0xff]
        %v3895 = vld [vmem:[%s3473 + $0xf4] sm:$0xff]
        %v3896 = vld [vmem:[%s3473 + $0xfc] sm:$0xff]
        %v3897 = vld [vmem:[%s3473 + $0x10c] sm:$0xff]
        %v3898 = vld [vmem:[%s3473 + $0x114] sm:$0xff]
        %v3899 = vld [vmem:[%s3473 + $0x124] sm:$0xff]
        %v3900 = vld [vmem:[%s3473 + $0x12c] sm:$0xff]
        %v3901 = vld [vmem:[%s3473 + $0x13c] sm:$0xff]
        %v3902 = vld [vmem:[%s3473 + $0x144] sm:$0xff]
        %v3903 = vld [vmem:[%s3473 + $0x154] sm:$0xff]
        %v3904 = vld [vmem:[%s3473 + $0x15c] sm:$0xff]
        %v3905 = vld [vmem:[%s3473 + $0x16c] sm:$0xff]
        %v3906 = vld [vmem:[%s3473 + $0x174] sm:$0xff]
        %v3907 = vlaneseq
        %v3908 = vshrl.u32 %v3907, 7
        %v3909 = vsub.s32 1, %v3908
        %v3910 = vrot.slane %v1069, %v3909
        %v3911 = vmul.f32 %v3875, %v3910
        %v3912 = vmul.f32 %v3876, %v3910
        %v3913 = vmul.f32 %v3877, %v3910
        %v3914 = vmul.f32 %v3878, %v3910
        %v3915 = vmul.f32 %v3879, %v3910
        %v3916 = vmul.f32 %v3880, %v3910
        %v3917 = vmul.f32 %v3881, %v3910
        %v3918 = vmul.f32 %v3882, %v3910
        %v3919 = vmul.f32 %v3883, %v3910
        %v3920 = vmul.f32 %v3884, %v3910
        %v3921 = vmul.f32 %v3885, %v3910
        %v3922 = vmul.f32 %v3886, %v3910
        %v3923 = vmul.f32 %v3887, %v3910
        %v3924 = vmul.f32 %v3888, %v3910
        %v3925 = vmul.f32 %v3889, %v3910
        %v3926 = vmul.f32 %v3890, %v3910
        %v3927 = vmul.f32 %v3891, %v3910
        %v3928 = vmul.f32 %v3892, %v3910
        %v3929 = vmul.f32 %v3893, %v3910
        %v3930 = vmul.f32 %v3894, %v3910
        %v3931 = vmul.f32 %v3895, %v3910
        %v3932 = vmul.f32 %v3896, %v3910
        %v3933 = vmul.f32 %v3897, %v3910
        %v3934 = vmul.f32 %v3898, %v3910
        %v3935 = vmul.f32 %v3899, %v3910
        %v3936 = vmul.f32 %v3900, %v3910
        %v3937 = vmul.f32 %v3901, %v3910
        %v3938 = vmul.f32 %v3902, %v3910
        %v3939 = vmul.f32 %v3903, %v3910
        %v3940 = vmul.f32 %v3904, %v3910
        %v3941 = vmul.f32 %v3905, %v3910
        %v3942 = vmul.f32 %v3906, %v3910
        %v3943 = vadd.f32 %v3843, %v3911
        %v3944 = vadd.f32 %v3844, %v3912
        %v3945 = vadd.f32 %v3845, %v3913
        %v3946 = vadd.f32 %v3846, %v3914
        %v3947 = vadd.f32 %v3847, %v3915
        %v3948 = vadd.f32 %v3848, %v3916
        %v3949 = vadd.f32 %v3849, %v3917
        %v3950 = vadd.f32 %v3850, %v3918
        %v3951 = vadd.f32 %v3851, %v3919
        %v3952 = vadd.f32 %v3852, %v3920
        %v3953 = vadd.f32 %v3853, %v3921
        %v3954 = vadd.f32 %v3854, %v3922
        %v3955 = vadd.f32 %v3855, %v3923
        %v3956 = vadd.f32 %v3856, %v3924
        %v3957 = vadd.f32 %v3857, %v3925
        %v3958 = vadd.f32 %v3858, %v3926
        %v3959 = vadd.f32 %v3859, %v3927
        %v3960 = vadd.f32 %v3860, %v3928
        %v3961 = vadd.f32 %v3861, %v3929
        %v3962 = vadd.f32 %v3862, %v3930
        %v3963 = vadd.f32 %v3863, %v3931
        %v3964 = vadd.f32 %v3864, %v3932
        %v3965 = vadd.f32 %v3865, %v3933
        %v3966 = vadd.f32 %v3866, %v3934
        %v3967 = vadd.f32 %v3867, %v3935
        %v3968 = vadd.f32 %v3868, %v3936
        %v3969 = vadd.f32 %v3869, %v3937
        %v3970 = vadd.f32 %v3870, %v3938
        %v3971 = vadd.f32 %v3871, %v3939
        %v3972 = vadd.f32 %v3872, %v3940
        %v3973 = vadd.f32 %v3873, %v3941
        %v3974 = vadd.f32 %v3874, %v3942
        %v3975 = vld [vmem:[%s3473 + $0x7] sm:$0xff]
        %v3976 = vld [vmem:[%s3473 + $0xf] sm:$0xff]
        %v3977 = vld [vmem:[%s3473 + $0x1f] sm:$0xff]
        %v3978 = vld [vmem:[%s3473 + $0x27] sm:$0xff]
        %v3979 = vld [vmem:[%s3473 + $0x37] sm:$0xff]
        %v3980 = vld [vmem:[%s3473 + $0x3f] sm:$0xff]
        %v3981 = vld [vmem:[%s3473 + $0x4f] sm:$0xff]
        %v3982 = vld [vmem:[%s3473 + $0x57] sm:$0xff]
        %v3983 = vld [vmem:[%s3473 + $0x67] sm:$0xff]
        %v3984 = vld [vmem:[%s3473 + $0x6f] sm:$0xff]
        %v3985 = vld [vmem:[%s3473 + $0x7f] sm:$0xff]
        %v3986 = vld [vmem:[%s3473 + $0x87] sm:$0xff]
        %v3987 = vld [vmem:[%s3473 + $0x97] sm:$0xff]
        %v3988 = vld [vmem:[%s3473 + $0x9f] sm:$0xff]
        %v3989 = vld [vmem:[%s3473 + $0xaf] sm:$0xff]
        %v3990 = vld [vmem:[%s3473 + $0xb7] sm:$0xff]
        %v3991 = vld [vmem:[%s3473 + $0xc7] sm:$0xff]
        %v3992 = vld [vmem:[%s3473 + $0xcf] sm:$0xff]
        %v3993 = vld [vmem:[%s3473 + $0xdf] sm:$0xff]
        %v3994 = vld [vmem:[%s3473 + $0xe7] sm:$0xff]
        %v3995 = vld [vmem:[%s3473 + $0xf7] sm:$0xff]
        %v3996 = vld [vmem:[%s3473 + $0xff] sm:$0xff]
        %v3997 = vld [vmem:[%s3473 + $0x10f] sm:$0xff]
        %v3998 = vld [vmem:[%s3473 + $0x117] sm:$0xff]
        %v3999 = vld [vmem:[%s3473 + $0x127] sm:$0xff]
        %v4000 = vld [vmem:[%s3473 + $0x12f] sm:$0xff]
        %v4001 = vld [vmem:[%s3473 + $0x13f] sm:$0xff]
        %v4002 = vld [vmem:[%s3473 + $0x147] sm:$0xff]
        %v4003 = vld [vmem:[%s3473 + $0x157] sm:$0xff]
        %v4004 = vld [vmem:[%s3473 + $0x15f] sm:$0xff]
        %v4005 = vld [vmem:[%s3473 + $0x16f] sm:$0xff]
        %v4006 = vld [vmem:[%s3473 + $0x177] sm:$0xff]
        %v4007 = vlaneseq
        %v4008 = vshrl.u32 %v4007, 7
        %v4009 = vsub.s32 2, %v4008
        %v4010 = vrot.slane %v1069, %v4009
        %v4011 = vmul.f32 %v3975, %v4010
        %v4012 = vmul.f32 %v3976, %v4010
        %v4013 = vmul.f32 %v3977, %v4010
        %v4014 = vmul.f32 %v3978, %v4010
        %v4015 = vmul.f32 %v3979, %v4010
        %v4016 = vmul.f32 %v3980, %v4010
        %v4017 = vmul.f32 %v3981, %v4010
        %v4018 = vmul.f32 %v3982, %v4010
        %v4019 = vmul.f32 %v3983, %v4010
        %v4020 = vmul.f32 %v3984, %v4010
        %v4021 = vmul.f32 %v3985, %v4010
        %v4022 = vmul.f32 %v3986, %v4010
        %v4023 = vmul.f32 %v3987, %v4010
        %v4024 = vmul.f32 %v3988, %v4010
        %v4025 = vmul.f32 %v3989, %v4010
        %v4026 = vmul.f32 %v3990, %v4010
        %v4027 = vmul.f32 %v3991, %v4010
        %v4028 = vmul.f32 %v3992, %v4010
        %v4029 = vmul.f32 %v3993, %v4010
        %v4030 = vmul.f32 %v3994, %v4010
        %v4031 = vmul.f32 %v3995, %v4010
        %v4032 = vmul.f32 %v3996, %v4010
        %v4033 = vmul.f32 %v3997, %v4010
        %v4034 = vmul.f32 %v3998, %v4010
        %v4035 = vmul.f32 %v3999, %v4010
        %v4036 = vmul.f32 %v4000, %v4010
        %v4037 = vmul.f32 %v4001, %v4010
        %v4038 = vmul.f32 %v4002, %v4010
        %v4039 = vmul.f32 %v4003, %v4010
        %v4040 = vmul.f32 %v4004, %v4010
        %v4041 = vmul.f32 %v4005, %v4010
        %v4042 = vmul.f32 %v4006, %v4010
        %v4043 = vadd.f32 %v3943, %v4011
        %v4044 = vadd.f32 %v3944, %v4012
        %v4045 = vadd.f32 %v3945, %v4013
        %v4046 = vadd.f32 %v3946, %v4014
        %v4047 = vadd.f32 %v3947, %v4015
        %v4048 = vadd.f32 %v3948, %v4016
        %v4049 = vadd.f32 %v3949, %v4017
        %v4050 = vadd.f32 %v3950, %v4018
        %v4051 = vadd.f32 %v3951, %v4019
        %v4052 = vadd.f32 %v3952, %v4020
        %v4053 = vadd.f32 %v3953, %v4021
        %v4054 = vadd.f32 %v3954, %v4022
        %v4055 = vadd.f32 %v3955, %v4023
        %v4056 = vadd.f32 %v3956, %v4024
        %v4057 = vadd.f32 %v3957, %v4025
        %v4058 = vadd.f32 %v3958, %v4026
        %v4059 = vadd.f32 %v3959, %v4027
        %v4060 = vadd.f32 %v3960, %v4028
        %v4061 = vadd.f32 %v3961, %v4029
        %v4062 = vadd.f32 %v3962, %v4030
        %v4063 = vadd.f32 %v3963, %v4031
        %v4064 = vadd.f32 %v3964, %v4032
        %v4065 = vadd.f32 %v3965, %v4033
        %v4066 = vadd.f32 %v3966, %v4034
        %v4067 = vadd.f32 %v3967, %v4035
        %v4068 = vadd.f32 %v3968, %v4036
        %v4069 = vadd.f32 %v3969, %v4037
        %v4070 = vadd.f32 %v3970, %v4038
        %v4071 = vadd.f32 %v3971, %v4039
        %v4072 = vadd.f32 %v3972, %v4040
        %v4073 = vadd.f32 %v3973, %v4041
        %v4074 = vadd.f32 %v3974, %v4042
        %s4075 = scalar_lea.vmem [#allocation2], 1320
        %v4076 = vld [vmem:[%s4075 + $0x1] sm:$0xff]
        %v4077 = vld [vmem:[%s4075 + $0x9] sm:$0xff]
        %v4078 = vld [vmem:[%s4075 + $0x19] sm:$0xff]
        %v4079 = vld [vmem:[%s4075 + $0x21] sm:$0xff]
        %v4080 = vld [vmem:[%s4075 + $0x31] sm:$0xff]
        %v4081 = vld [vmem:[%s4075 + $0x39] sm:$0xff]
        %v4082 = vld [vmem:[%s4075 + $0x49] sm:$0xff]
        %v4083 = vld [vmem:[%s4075 + $0x51] sm:$0xff]
        %v4084 = vld [vmem:[%s4075 + $0x61] sm:$0xff]
        %v4085 = vld [vmem:[%s4075 + $0x69] sm:$0xff]
        %v4086 = vld [vmem:[%s4075 + $0x79] sm:$0xff]
        %v4087 = vld [vmem:[%s4075 + $0x81] sm:$0xff]
        %v4088 = vld [vmem:[%s4075 + $0x91] sm:$0xff]
        %v4089 = vld [vmem:[%s4075 + $0x99] sm:$0xff]
        %v4090 = vld [vmem:[%s4075 + $0xa9] sm:$0xff]
        %v4091 = vld [vmem:[%s4075 + $0xb1] sm:$0xff]
        %v4092 = vld [vmem:[%s4075 + $0xc1] sm:$0xff]
        %v4093 = vld [vmem:[%s4075 + $0xc9] sm:$0xff]
        %v4094 = vld [vmem:[%s4075 + $0xd9] sm:$0xff]
        %v4095 = vld [vmem:[%s4075 + $0xe1] sm:$0xff]
        %v4096 = vld [vmem:[%s4075 + $0xf1] sm:$0xff]
        %v4097 = vld [vmem:[%s4075 + $0xf9] sm:$0xff]
        %v4098 = vld [vmem:[%s4075 + $0x109] sm:$0xff]
        %v4099 = vld [vmem:[%s4075 + $0x111] sm:$0xff]
        %v4100 = vld [vmem:[%s4075 + $0x121] sm:$0xff]
        %v4101 = vld [vmem:[%s4075 + $0x129] sm:$0xff]
        %v4102 = vld [vmem:[%s4075 + $0x139] sm:$0xff]
        %v4103 = vld [vmem:[%s4075 + $0x141] sm:$0xff]
        %v4104 = vld [vmem:[%s4075 + $0x151] sm:$0xff]
        %v4105 = vld [vmem:[%s4075 + $0x159] sm:$0xff]
        %v4106 = vld [vmem:[%s4075 + $0x169] sm:$0xff]
        %v4107 = vld [vmem:[%s4075 + $0x171] sm:$0xff]
        %v4108 = vlaneseq
        %v4109 = vshrl.u32 %v4108, 7
        %v4110 = vsub.s32 0, %v4109
        %v4111 = vrot.slane %v1070, %v4110
        %v4112 = vmul.f32 %v4076, %v4111
        %v4113 = vmul.f32 %v4077, %v4111
        %v4114 = vmul.f32 %v4078, %v4111
        %v4115 = vmul.f32 %v4079, %v4111
        %v4116 = vmul.f32 %v4080, %v4111
        %v4117 = vmul.f32 %v4081, %v4111
        %v4118 = vmul.f32 %v4082, %v4111
        %v4119 = vmul.f32 %v4083, %v4111
        %v4120 = vmul.f32 %v4084, %v4111
        %v4121 = vmul.f32 %v4085, %v4111
        %v4122 = vmul.f32 %v4086, %v4111
        %v4123 = vmul.f32 %v4087, %v4111
        %v4124 = vmul.f32 %v4088, %v4111
        %v4125 = vmul.f32 %v4089, %v4111
        %v4126 = vmul.f32 %v4090, %v4111
        %v4127 = vmul.f32 %v4091, %v4111
        %v4128 = vmul.f32 %v4092, %v4111
        %v4129 = vmul.f32 %v4093, %v4111
        %v4130 = vmul.f32 %v4094, %v4111
        %v4131 = vmul.f32 %v4095, %v4111
        %v4132 = vmul.f32 %v4096, %v4111
        %v4133 = vmul.f32 %v4097, %v4111
        %v4134 = vmul.f32 %v4098, %v4111
        %v4135 = vmul.f32 %v4099, %v4111
        %v4136 = vmul.f32 %v4100, %v4111
        %v4137 = vmul.f32 %v4101, %v4111
        %v4138 = vmul.f32 %v4102, %v4111
        %v4139 = vmul.f32 %v4103, %v4111
        %v4140 = vmul.f32 %v4104, %v4111
        %v4141 = vmul.f32 %v4105, %v4111
        %v4142 = vmul.f32 %v4106, %v4111
        %v4143 = vmul.f32 %v4107, %v4111
        %v4144 = vadd.f32 %v4043, %v4112
        %v4145 = vadd.f32 %v4044, %v4113
        %v4146 = vadd.f32 %v4045, %v4114
        %v4147 = vadd.f32 %v4046, %v4115
        %v4148 = vadd.f32 %v4047, %v4116
        %v4149 = vadd.f32 %v4048, %v4117
        %v4150 = vadd.f32 %v4049, %v4118
        %v4151 = vadd.f32 %v4050, %v4119
        %v4152 = vadd.f32 %v4051, %v4120
        %v4153 = vadd.f32 %v4052, %v4121
        %v4154 = vadd.f32 %v4053, %v4122
        %v4155 = vadd.f32 %v4054, %v4123
        %v4156 = vadd.f32 %v4055, %v4124
        %v4157 = vadd.f32 %v4056, %v4125
        %v4158 = vadd.f32 %v4057, %v4126
        %v4159 = vadd.f32 %v4058, %v4127
        %v4160 = vadd.f32 %v4059, %v4128
        %v4161 = vadd.f32 %v4060, %v4129
        %v4162 = vadd.f32 %v4061, %v4130
        %v4163 = vadd.f32 %v4062, %v4131
        %v4164 = vadd.f32 %v4063, %v4132
        %v4165 = vadd.f32 %v4064, %v4133
        %v4166 = vadd.f32 %v4065, %v4134
        %v4167 = vadd.f32 %v4066, %v4135
        %v4168 = vadd.f32 %v4067, %v4136
        %v4169 = vadd.f32 %v4068, %v4137
        %v4170 = vadd.f32 %v4069, %v4138
        %v4171 = vadd.f32 %v4070, %v4139
        %v4172 = vadd.f32 %v4071, %v4140
        %v4173 = vadd.f32 %v4072, %v4141
        %v4174 = vadd.f32 %v4073, %v4142
        %v4175 = vadd.f32 %v4074, %v4143
        %v4176 = vld [vmem:[%s4075 + $0x4] sm:$0xff]
        %v4177 = vld [vmem:[%s4075 + $0xc] sm:$0xff]
        %v4178 = vld [vmem:[%s4075 + $0x1c] sm:$0xff]
        %v4179 = vld [vmem:[%s4075 + $0x24] sm:$0xff]
        %v4180 = vld [vmem:[%s4075 + $0x34] sm:$0xff]
        %v4181 = vld [vmem:[%s4075 + $0x3c] sm:$0xff]
        %v4182 = vld [vmem:[%s4075 + $0x4c] sm:$0xff]
        %v4183 = vld [vmem:[%s4075 + $0x54] sm:$0xff]
        %v4184 = vld [vmem:[%s4075 + $0x64] sm:$0xff]
        %v4185 = vld [vmem:[%s4075 + $0x6c] sm:$0xff]
        %v4186 = vld [vmem:[%s4075 + $0x7c] sm:$0xff]
        %v4187 = vld [vmem:[%s4075 + $0x84] sm:$0xff]
        %v4188 = vld [vmem:[%s4075 + $0x94] sm:$0xff]
        %v4189 = vld [vmem:[%s4075 + $0x9c] sm:$0xff]
        %v4190 = vld [vmem:[%s4075 + $0xac] sm:$0xff]
        %v4191 = vld [vmem:[%s4075 + $0xb4] sm:$0xff]
        %v4192 = vld [vmem:[%s4075 + $0xc4] sm:$0xff]
        %v4193 = vld [vmem:[%s4075 + $0xcc] sm:$0xff]
        %v4194 = vld [vmem:[%s4075 + $0xdc] sm:$0xff]
        %v4195 = vld [vmem:[%s4075 + $0xe4] sm:$0xff]
        %v4196 = vld [vmem:[%s4075 + $0xf4] sm:$0xff]
        %v4197 = vld [vmem:[%s4075 + $0xfc] sm:$0xff]
        %v4198 = vld [vmem:[%s4075 + $0x10c] sm:$0xff]
        %v4199 = vld [vmem:[%s4075 + $0x114] sm:$0xff]
        %v4200 = vld [vmem:[%s4075 + $0x124] sm:$0xff]
        %v4201 = vld [vmem:[%s4075 + $0x12c] sm:$0xff]
        %v4202 = vld [vmem:[%s4075 + $0x13c] sm:$0xff]
        %v4203 = vld [vmem:[%s4075 + $0x144] sm:$0xff]
        %v4204 = vld [vmem:[%s4075 + $0x154] sm:$0xff]
        %v4205 = vld [vmem:[%s4075 + $0x15c] sm:$0xff]
        %v4206 = vld [vmem:[%s4075 + $0x16c] sm:$0xff]
        %v4207 = vld [vmem:[%s4075 + $0x174] sm:$0xff]
        %v4208 = vlaneseq
        %v4209 = vshrl.u32 %v4208, 7
        %v4210 = vsub.s32 1, %v4209
        %v4211 = vrot.slane %v1070, %v4210
        %v4212 = vmul.f32 %v4176, %v4211
        %v4213 = vmul.f32 %v4177, %v4211
        %v4214 = vmul.f32 %v4178, %v4211
        %v4215 = vmul.f32 %v4179, %v4211
        %v4216 = vmul.f32 %v4180, %v4211
        %v4217 = vmul.f32 %v4181, %v4211
        %v4218 = vmul.f32 %v4182, %v4211
        %v4219 = vmul.f32 %v4183, %v4211
        %v4220 = vmul.f32 %v4184, %v4211
        %v4221 = vmul.f32 %v4185, %v4211
        %v4222 = vmul.f32 %v4186, %v4211
        %v4223 = vmul.f32 %v4187, %v4211
        %v4224 = vmul.f32 %v4188, %v4211
        %v4225 = vmul.f32 %v4189, %v4211
        %v4226 = vmul.f32 %v4190, %v4211
        %v4227 = vmul.f32 %v4191, %v4211
        %v4228 = vmul.f32 %v4192, %v4211
        %v4229 = vmul.f32 %v4193, %v4211
        %v4230 = vmul.f32 %v4194, %v4211
        %v4231 = vmul.f32 %v4195, %v4211
        %v4232 = vmul.f32 %v4196, %v4211
        %v4233 = vmul.f32 %v4197, %v4211
        %v4234 = vmul.f32 %v4198, %v4211
        %v4235 = vmul.f32 %v4199, %v4211
        %v4236 = vmul.f32 %v4200, %v4211
        %v4237 = vmul.f32 %v4201, %v4211
        %v4238 = vmul.f32 %v4202, %v4211
        %v4239 = vmul.f32 %v4203, %v4211
        %v4240 = vmul.f32 %v4204, %v4211
        %v4241 = vmul.f32 %v4205, %v4211
        %v4242 = vmul.f32 %v4206, %v4211
        %v4243 = vmul.f32 %v4207, %v4211
        %v4244 = vadd.f32 %v4144, %v4212
        %v4245 = vadd.f32 %v4145, %v4213
        %v4246 = vadd.f32 %v4146, %v4214
        %v4247 = vadd.f32 %v4147, %v4215
        %v4248 = vadd.f32 %v4148, %v4216
        %v4249 = vadd.f32 %v4149, %v4217
        %v4250 = vadd.f32 %v4150, %v4218
        %v4251 = vadd.f32 %v4151, %v4219
        %v4252 = vadd.f32 %v4152, %v4220
        %v4253 = vadd.f32 %v4153, %v4221
        %v4254 = vadd.f32 %v4154, %v4222
        %v4255 = vadd.f32 %v4155, %v4223
        %v4256 = vadd.f32 %v4156, %v4224
        %v4257 = vadd.f32 %v4157, %v4225
        %v4258 = vadd.f32 %v4158, %v4226
        %v4259 = vadd.f32 %v4159, %v4227
        %v4260 = vadd.f32 %v4160, %v4228
        %v4261 = vadd.f32 %v4161, %v4229
        %v4262 = vadd.f32 %v4162, %v4230
        %v4263 = vadd.f32 %v4163, %v4231
        %v4264 = vadd.f32 %v4164, %v4232
        %v4265 = vadd.f32 %v4165, %v4233
        %v4266 = vadd.f32 %v4166, %v4234
        %v4267 = vadd.f32 %v4167, %v4235
        %v4268 = vadd.f32 %v4168, %v4236
        %v4269 = vadd.f32 %v4169, %v4237
        %v4270 = vadd.f32 %v4170, %v4238
        %v4271 = vadd.f32 %v4171, %v4239
        %v4272 = vadd.f32 %v4172, %v4240
        %v4273 = vadd.f32 %v4173, %v4241
        %v4274 = vadd.f32 %v4174, %v4242
        %v4275 = vadd.f32 %v4175, %v4243
        %v4276 = vld [vmem:[%s4075 + $0x7] sm:$0xff]
        %v4277 = vld [vmem:[%s4075 + $0xf] sm:$0xff]
        %v4278 = vld [vmem:[%s4075 + $0x1f] sm:$0xff]
        %v4279 = vld [vmem:[%s4075 + $0x27] sm:$0xff]
        %v4280 = vld [vmem:[%s4075 + $0x37] sm:$0xff]
        %v4281 = vld [vmem:[%s4075 + $0x3f] sm:$0xff]
        %v4282 = vld [vmem:[%s4075 + $0x4f] sm:$0xff]
        %v4283 = vld [vmem:[%s4075 + $0x57] sm:$0xff]
        %v4284 = vld [vmem:[%s4075 + $0x67] sm:$0xff]
        %v4285 = vld [vmem:[%s4075 + $0x6f] sm:$0xff]
        %v4286 = vld [vmem:[%s4075 + $0x7f] sm:$0xff]
        %v4287 = vld [vmem:[%s4075 + $0x87] sm:$0xff]
        %v4288 = vld [vmem:[%s4075 + $0x97] sm:$0xff]
        %v4289 = vld [vmem:[%s4075 + $0x9f] sm:$0xff]
        %v4290 = vld [vmem:[%s4075 + $0xaf] sm:$0xff]
        %v4291 = vld [vmem:[%s4075 + $0xb7] sm:$0xff]
        %v4292 = vld [vmem:[%s4075 + $0xc7] sm:$0xff]
        %v4293 = vld [vmem:[%s4075 + $0xcf] sm:$0xff]
        %v4294 = vld [vmem:[%s4075 + $0xdf] sm:$0xff]
        %v4295 = vld [vmem:[%s4075 + $0xe7] sm:$0xff]
        %v4296 = vld [vmem:[%s4075 + $0xf7] sm:$0xff]
        %v4297 = vld [vmem:[%s4075 + $0xff] sm:$0xff]
        %v4298 = vld [vmem:[%s4075 + $0x10f] sm:$0xff]
        %v4299 = vld [vmem:[%s4075 + $0x117] sm:$0xff]
        %v4300 = vld [vmem:[%s4075 + $0x127] sm:$0xff]
        %v4301 = vld [vmem:[%s4075 + $0x12f] sm:$0xff]
        %v4302 = vld [vmem:[%s4075 + $0x13f] sm:$0xff]
        %v4303 = vld [vmem:[%s4075 + $0x147] sm:$0xff]
        %v4304 = vld [vmem:[%s4075 + $0x157] sm:$0xff]
        %v4305 = vld [vmem:[%s4075 + $0x15f] sm:$0xff]
        %v4306 = vld [vmem:[%s4075 + $0x16f] sm:$0xff]
        %v4307 = vld [vmem:[%s4075 + $0x177] sm:$0xff]
        %v4308 = vlaneseq
        %v4309 = vshrl.u32 %v4308, 7
        %v4310 = vsub.s32 2, %v4309
        %v4311 = vrot.slane %v1070, %v4310
        %v4312 = vmul.f32 %v4276, %v4311
        %v4313 = vmul.f32 %v4277, %v4311
        %v4314 = vmul.f32 %v4278, %v4311
        %v4315 = vmul.f32 %v4279, %v4311
        %v4316 = vmul.f32 %v4280, %v4311
        %v4317 = vmul.f32 %v4281, %v4311
        %v4318 = vmul.f32 %v4282, %v4311
        %v4319 = vmul.f32 %v4283, %v4311
        %v4320 = vmul.f32 %v4284, %v4311
        %v4321 = vmul.f32 %v4285, %v4311
        %v4322 = vmul.f32 %v4286, %v4311
        %v4323 = vmul.f32 %v4287, %v4311
        %v4324 = vmul.f32 %v4288, %v4311
        %v4325 = vmul.f32 %v4289, %v4311
        %v4326 = vmul.f32 %v4290, %v4311
        %v4327 = vmul.f32 %v4291, %v4311
        %v4328 = vmul.f32 %v4292, %v4311
        %v4329 = vmul.f32 %v4293, %v4311
        %v4330 = vmul.f32 %v4294, %v4311
        %v4331 = vmul.f32 %v4295, %v4311
        %v4332 = vmul.f32 %v4296, %v4311
        %v4333 = vmul.f32 %v4297, %v4311
        %v4334 = vmul.f32 %v4298, %v4311
        %v4335 = vmul.f32 %v4299, %v4311
        %v4336 = vmul.f32 %v4300, %v4311
        %v4337 = vmul.f32 %v4301, %v4311
        %v4338 = vmul.f32 %v4302, %v4311
        %v4339 = vmul.f32 %v4303, %v4311
        %v4340 = vmul.f32 %v4304, %v4311
        %v4341 = vmul.f32 %v4305, %v4311
        %v4342 = vmul.f32 %v4306, %v4311
        %v4343 = vmul.f32 %v4307, %v4311
        %v4344 = vadd.f32 %v4244, %v4312
        %v4345 = vadd.f32 %v4245, %v4313
        %v4346 = vadd.f32 %v4246, %v4314
        %v4347 = vadd.f32 %v4247, %v4315
        %v4348 = vadd.f32 %v4248, %v4316
        %v4349 = vadd.f32 %v4249, %v4317
        %v4350 = vadd.f32 %v4250, %v4318
        %v4351 = vadd.f32 %v4251, %v4319
        %v4352 = vadd.f32 %v4252, %v4320
        %v4353 = vadd.f32 %v4253, %v4321
        %v4354 = vadd.f32 %v4254, %v4322
        %v4355 = vadd.f32 %v4255, %v4323
        %v4356 = vadd.f32 %v4256, %v4324
        %v4357 = vadd.f32 %v4257, %v4325
        %v4358 = vadd.f32 %v4258, %v4326
        %v4359 = vadd.f32 %v4259, %v4327
        %v4360 = vadd.f32 %v4260, %v4328
        %v4361 = vadd.f32 %v4261, %v4329
        %v4362 = vadd.f32 %v4262, %v4330
        %v4363 = vadd.f32 %v4263, %v4331
        %v4364 = vadd.f32 %v4264, %v4332
        %v4365 = vadd.f32 %v4265, %v4333
        %v4366 = vadd.f32 %v4266, %v4334
        %v4367 = vadd.f32 %v4267, %v4335
        %v4368 = vadd.f32 %v4268, %v4336
        %v4369 = vadd.f32 %v4269, %v4337
        %v4370 = vadd.f32 %v4270, %v4338
        %v4371 = vadd.f32 %v4271, %v4339
        %v4372 = vadd.f32 %v4272, %v4340
        %v4373 = vadd.f32 %v4273, %v4341
        %v4374 = vadd.f32 %v4274, %v4342
        %v4375 = vadd.f32 %v4275, %v4343
        %v4376 = vlaneseq
        %v4377 = vshrl.u32 %v4376, 7
        %v4378 = vsub.s32 2, %v4377
        %v4379 = vrot.slane %v1074, %v4378
        %v4380 = vadd.f32 %v4344, %v4379
        %v4381 = vadd.f32 %v4345, %v4379
        %v4382 = vadd.f32 %v4346, %v4379
        %v4383 = vadd.f32 %v4347, %v4379
        %v4384 = vadd.f32 %v4348, %v4379
        %v4385 = vadd.f32 %v4349, %v4379
        %v4386 = vadd.f32 %v4350, %v4379
        %v4387 = vadd.f32 %v4351, %v4379
        %v4388 = vadd.f32 %v4352, %v4379
        %v4389 = vadd.f32 %v4353, %v4379
        %v4390 = vadd.f32 %v4354, %v4379
        %v4391 = vadd.f32 %v4355, %v4379
        %v4392 = vadd.f32 %v4356, %v4379
        %v4393 = vadd.f32 %v4357, %v4379
        %v4394 = vadd.f32 %v4358, %v4379
        %v4395 = vadd.f32 %v4359, %v4379
        %v4396 = vadd.f32 %v4360, %v4379
        %v4397 = vadd.f32 %v4361, %v4379
        %v4398 = vadd.f32 %v4362, %v4379
        %v4399 = vadd.f32 %v4363, %v4379
        %v4400 = vadd.f32 %v4364, %v4379
        %v4401 = vadd.f32 %v4365, %v4379
        %v4402 = vadd.f32 %v4366, %v4379
        %v4403 = vadd.f32 %v4367, %v4379
        %v4404 = vadd.f32 %v4368, %v4379
        %v4405 = vadd.f32 %v4369, %v4379
        %v4406 = vadd.f32 %v4370, %v4379
        %v4407 = vadd.f32 %v4371, %v4379
        %v4408 = vadd.f32 %v4372, %v4379
        %v4409 = vadd.f32 %v4373, %v4379
        %v4410 = vadd.f32 %v4374, %v4379
        %v4411 = vadd.f32 %v4375, %v4379
        %v4412 = vmax.f32 %v4380, 0.0
        %v4413 = vmax.f32 %v4381, 0.0
        %v4414 = vmax.f32 %v4382, 0.0
        %v4415 = vmax.f32 %v4383, 0.0
        %v4416 = vmax.f32 %v4384, 0.0
        %v4417 = vmax.f32 %v4385, 0.0
        %v4418 = vmax.f32 %v4386, 0.0
        %v4419 = vmax.f32 %v4387, 0.0
        %v4420 = vmax.f32 %v4388, 0.0
        %v4421 = vmax.f32 %v4389, 0.0
        %v4422 = vmax.f32 %v4390, 0.0
        %v4423 = vmax.f32 %v4391, 0.0
        %v4424 = vmax.f32 %v4392, 0.0
        %v4425 = vmax.f32 %v4393, 0.0
        %v4426 = vmax.f32 %v4394, 0.0
        %v4427 = vmax.f32 %v4395, 0.0
        %v4428 = vmax.f32 %v4396, 0.0
        %v4429 = vmax.f32 %v4397, 0.0
        %v4430 = vmax.f32 %v4398, 0.0
        %v4431 = vmax.f32 %v4399, 0.0
        %v4432 = vmax.f32 %v4400, 0.0
        %v4433 = vmax.f32 %v4401, 0.0
        %v4434 = vmax.f32 %v4402, 0.0
        %v4435 = vmax.f32 %v4403, 0.0
        %v4436 = vmax.f32 %v4404, 0.0
        %v4437 = vmax.f32 %v4405, 0.0
        %v4438 = vmax.f32 %v4406, 0.0
        %v4439 = vmax.f32 %v4407, 0.0
        %v4440 = vmax.f32 %v4408, 0.0
        %v4441 = vmax.f32 %v4409, 0.0
        %v4442 = vmax.f32 %v4410, 0.0
        %v4443 = vmax.f32 %v4411, 0.0
        %v4444 = vlaneseq
        %v4445 = vshrl.u32 %v4444, 7
        %v4446 = vsub.s32 2, %v4445
        %v4447 = vrot.slane %v1075, %v4446
        %v4448 = vmul.f32 %v4412, %v4447
        %v4449 = vmul.f32 %v4413, %v4447
        %v4450 = vmul.f32 %v4414, %v4447
        %v4451 = vmul.f32 %v4415, %v4447
        %v4452 = vmul.f32 %v4416, %v4447
        %v4453 = vmul.f32 %v4417, %v4447
        %v4454 = vmul.f32 %v4418, %v4447
        %v4455 = vmul.f32 %v4419, %v4447
        %v4456 = vmul.f32 %v4420, %v4447
        %v4457 = vmul.f32 %v4421, %v4447
        %v4458 = vmul.f32 %v4422, %v4447
        %v4459 = vmul.f32 %v4423, %v4447
        %v4460 = vmul.f32 %v4424, %v4447
        %v4461 = vmul.f32 %v4425, %v4447
        %v4462 = vmul.f32 %v4426, %v4447
        %v4463 = vmul.f32 %v4427, %v4447
        %v4464 = vmul.f32 %v4428, %v4447
        %v4465 = vmul.f32 %v4429, %v4447
        %v4466 = vmul.f32 %v4430, %v4447
        %v4467 = vmul.f32 %v4431, %v4447
        %v4468 = vmul.f32 %v4432, %v4447
        %v4469 = vmul.f32 %v4433, %v4447
        %v4470 = vmul.f32 %v4434, %v4447
        %v4471 = vmul.f32 %v4435, %v4447
        %v4472 = vmul.f32 %v4436, %v4447
        %v4473 = vmul.f32 %v4437, %v4447
        %v4474 = vmul.f32 %v4438, %v4447
        %v4475 = vmul.f32 %v4439, %v4447
        %v4476 = vmul.f32 %v4440, %v4447
        %v4477 = vmul.f32 %v4441, %v4447
        %v4478 = vmul.f32 %v4442, %v4447
        %v4479 = vmul.f32 %v4443, %v4447
        %v4480 = vsel %vm834, %v4448, 0.0
        %4481 = vadd.xlane.f32.xlu0 %v4480
        %v4482 = vpop.xlane.xlu0 %4481
        %v4483 = vsel %vm834, %v4449, 0.0
        %4484 = vadd.xlane.f32.xlu0 %v4483
        %v4485 = vpop.xlane.xlu0 %4484
        %v4486 = vsel %vm834, %v4450, 0.0
        %4487 = vadd.xlane.f32.xlu0 %v4486
        %v4488 = vpop.xlane.xlu0 %4487
        %v4489 = vsel %vm834, %v4451, 0.0
        %4490 = vadd.xlane.f32.xlu0 %v4489
        %v4491 = vpop.xlane.xlu0 %4490
        %v4492 = vsel %vm834, %v4452, 0.0
        %4493 = vadd.xlane.f32.xlu0 %v4492
        %v4494 = vpop.xlane.xlu0 %4493
        %v4495 = vsel %vm834, %v4453, 0.0
        %4496 = vadd.xlane.f32.xlu0 %v4495
        %v4497 = vpop.xlane.xlu0 %4496
        %v4498 = vsel %vm834, %v4454, 0.0
        %4499 = vadd.xlane.f32.xlu0 %v4498
        %v4500 = vpop.xlane.xlu0 %4499
        %v4501 = vsel %vm834, %v4455, 0.0
        %4502 = vadd.xlane.f32.xlu0 %v4501
        %v4503 = vpop.xlane.xlu0 %4502
        %v4504 = vsel %vm834, %v4456, 0.0
        %4505 = vadd.xlane.f32.xlu0 %v4504
        %v4506 = vpop.xlane.xlu0 %4505
        %v4507 = vsel %vm834, %v4457, 0.0
        %4508 = vadd.xlane.f32.xlu0 %v4507
        %v4509 = vpop.xlane.xlu0 %4508
        %v4510 = vsel %vm834, %v4458, 0.0
        %4511 = vadd.xlane.f32.xlu0 %v4510
        %v4512 = vpop.xlane.xlu0 %4511
        %v4513 = vsel %vm834, %v4459, 0.0
        %4514 = vadd.xlane.f32.xlu0 %v4513
        %v4515 = vpop.xlane.xlu0 %4514
        %v4516 = vsel %vm834, %v4460, 0.0
        %4517 = vadd.xlane.f32.xlu0 %v4516
        %v4518 = vpop.xlane.xlu0 %4517
        %v4519 = vsel %vm834, %v4461, 0.0
        %4520 = vadd.xlane.f32.xlu0 %v4519
        %v4521 = vpop.xlane.xlu0 %4520
        %v4522 = vsel %vm834, %v4462, 0.0
        %4523 = vadd.xlane.f32.xlu0 %v4522
        %v4524 = vpop.xlane.xlu0 %4523
        %v4525 = vsel %vm834, %v4463, 0.0
        %4526 = vadd.xlane.f32.xlu0 %v4525
        %v4527 = vpop.xlane.xlu0 %4526
        %v4528 = vsel %vm834, %v4464, 0.0
        %4529 = vadd.xlane.f32.xlu0 %v4528
        %v4530 = vpop.xlane.xlu0 %4529
        %v4531 = vsel %vm834, %v4465, 0.0
        %4532 = vadd.xlane.f32.xlu0 %v4531
        %v4533 = vpop.xlane.xlu0 %4532
        %v4534 = vsel %vm834, %v4466, 0.0
        %4535 = vadd.xlane.f32.xlu0 %v4534
        %v4536 = vpop.xlane.xlu0 %4535
        %v4537 = vsel %vm834, %v4467, 0.0
        %4538 = vadd.xlane.f32.xlu0 %v4537
        %v4539 = vpop.xlane.xlu0 %4538
        %v4540 = vsel %vm834, %v4468, 0.0
        %4541 = vadd.xlane.f32.xlu0 %v4540
        %v4542 = vpop.xlane.xlu0 %4541
        %v4543 = vsel %vm834, %v4469, 0.0
        %4544 = vadd.xlane.f32.xlu0 %v4543
        %v4545 = vpop.xlane.xlu0 %4544
        %v4546 = vsel %vm834, %v4470, 0.0
        %4547 = vadd.xlane.f32.xlu0 %v4546
        %v4548 = vpop.xlane.xlu0 %4547
        %v4549 = vsel %vm834, %v4471, 0.0
        %4550 = vadd.xlane.f32.xlu0 %v4549
        %v4551 = vpop.xlane.xlu0 %4550
        %v4552 = vsel %vm834, %v4472, 0.0
        %4553 = vadd.xlane.f32.xlu0 %v4552
        %v4554 = vpop.xlane.xlu0 %4553
        %v4555 = vsel %vm834, %v4473, 0.0
        %4556 = vadd.xlane.f32.xlu0 %v4555
        %v4557 = vpop.xlane.xlu0 %4556
        %v4558 = vsel %vm834, %v4474, 0.0
        %4559 = vadd.xlane.f32.xlu0 %v4558
        %v4560 = vpop.xlane.xlu0 %4559
        %v4561 = vsel %vm834, %v4475, 0.0
        %4562 = vadd.xlane.f32.xlu0 %v4561
        %v4563 = vpop.xlane.xlu0 %4562
        %v4564 = vsel %vm834, %v4476, 0.0
        %4565 = vadd.xlane.f32.xlu0 %v4564
        %v4566 = vpop.xlane.xlu0 %4565
        %v4567 = vsel %vm834, %v4477, 0.0
        %4568 = vadd.xlane.f32.xlu0 %v4567
        %v4569 = vpop.xlane.xlu0 %4568
        %v4570 = vsel %vm834, %v4478, 0.0
        %4571 = vadd.xlane.f32.xlu0 %v4570
        %v4572 = vpop.xlane.xlu0 %4571
        %v4573 = vsel %vm834, %v4479, 0.0
        %4574 = vadd.xlane.f32.xlu0 %v4573
        %v4575 = vpop.xlane.xlu0 %4574
        %v4576 = vadd.f32 %v3441, %v4482
        %v4577 = vadd.f32 %v3442, %v4485
        %v4578 = vadd.f32 %v3443, %v4488
        %v4579 = vadd.f32 %v3444, %v4491
        %v4580 = vadd.f32 %v3445, %v4494
        %v4581 = vadd.f32 %v3446, %v4497
        %v4582 = vadd.f32 %v3447, %v4500
        %v4583 = vadd.f32 %v3448, %v4503
        %v4584 = vadd.f32 %v3449, %v4506
        %v4585 = vadd.f32 %v3450, %v4509
        %v4586 = vadd.f32 %v3451, %v4512
        %v4587 = vadd.f32 %v3452, %v4515
        %v4588 = vadd.f32 %v3453, %v4518
        %v4589 = vadd.f32 %v3454, %v4521
        %v4590 = vadd.f32 %v3455, %v4524
        %v4591 = vadd.f32 %v3456, %v4527
        %v4592 = vadd.f32 %v3457, %v4530
        %v4593 = vadd.f32 %v3458, %v4533
        %v4594 = vadd.f32 %v3459, %v4536
        %v4595 = vadd.f32 %v3460, %v4539
        %v4596 = vadd.f32 %v3461, %v4542
        %v4597 = vadd.f32 %v3462, %v4545
        %v4598 = vadd.f32 %v3463, %v4548
        %v4599 = vadd.f32 %v3464, %v4551
        %v4600 = vadd.f32 %v3465, %v4554
        %v4601 = vadd.f32 %v3466, %v4557
        %v4602 = vadd.f32 %v3467, %v4560
        %v4603 = vadd.f32 %v3468, %v4563
        %v4604 = vadd.f32 %v3469, %v4566
        %v4605 = vadd.f32 %v3470, %v4569
        %v4606 = vadd.f32 %v3471, %v4572
        %v4607 = vadd.f32 %v3472, %v4575
        %4640 = vrot.lane.b32.xlu0 %v771, 64
        %v4641 = vpop.permute.xlu0 %4640
        %4642 = vrot.lane.b32.xlu0 %v773, 64
        %v4643 = vpop.permute.xlu0 %4642
        %4644 = vrot.lane.b32.xlu0 %v775, 64
        %v4645 = vpop.permute.xlu0 %4644
        %4646 = vrot.lane.b32.xlu0 %v777, 64
        %v4647 = vpop.permute.xlu0 %4646
        %4648 = vrot.lane.b32.xlu0 %v779, 64
        %v4649 = vpop.permute.xlu0 %4648
        %4650 = vrot.lane.b32.xlu0 %v781, 64
        %v4651 = vpop.permute.xlu0 %4650
        %4652 = vrot.lane.b32.xlu0 %v783, 64
        %v4653 = vpop.permute.xlu0 %4652
        %4654 = vrot.lane.b32.xlu0 %v785, 64
        %v4655 = vpop.permute.xlu0 %4654
        %4656 = vrot.lane.b32.xlu0 %v787, 64
        %v4657 = vpop.permute.xlu0 %4656
        %4658 = vrot.lane.b32.xlu0 %v789, 64
        %v4659 = vpop.permute.xlu0 %4658
        %4660 = vrot.lane.b32.xlu0 %v791, 64
        %v4661 = vpop.permute.xlu0 %4660
        %4662 = vrot.lane.b32.xlu0 %v793, 64
        %v4663 = vpop.permute.xlu0 %4662
        %4664 = vrot.lane.b32.xlu0 %v795, 64
        %v4665 = vpop.permute.xlu0 %4664
        %4666 = vrot.lane.b32.xlu0 %v797, 64
        %v4667 = vpop.permute.xlu0 %4666
        %4668 = vrot.lane.b32.xlu0 %v799, 64
        %v4669 = vpop.permute.xlu0 %4668
        %4670 = vrot.lane.b32.xlu0 %v801, 64
        %v4671 = vpop.permute.xlu0 %4670
        %4672 = vrot.lane.b32.xlu0 %v803, 64
        %v4673 = vpop.permute.xlu0 %4672
        %4674 = vrot.lane.b32.xlu0 %v805, 64
        %v4675 = vpop.permute.xlu0 %4674
        %4676 = vrot.lane.b32.xlu0 %v807, 64
        %v4677 = vpop.permute.xlu0 %4676
        %4678 = vrot.lane.b32.xlu0 %v809, 64
        %v4679 = vpop.permute.xlu0 %4678
        %4680 = vrot.lane.b32.xlu0 %v811, 64
        %v4681 = vpop.permute.xlu0 %4680
        %4682 = vrot.lane.b32.xlu0 %v813, 64
        %v4683 = vpop.permute.xlu0 %4682
        %4684 = vrot.lane.b32.xlu0 %v815, 64
        %v4685 = vpop.permute.xlu0 %4684
        %4686 = vrot.lane.b32.xlu0 %v817, 64
        %v4687 = vpop.permute.xlu0 %4686
        %4688 = vrot.lane.b32.xlu0 %v819, 64
        %v4689 = vpop.permute.xlu0 %4688
        %4690 = vrot.lane.b32.xlu0 %v821, 64
        %v4691 = vpop.permute.xlu0 %4690
        %4692 = vrot.lane.b32.xlu0 %v823, 64
        %v4693 = vpop.permute.xlu0 %4692
        %4694 = vrot.lane.b32.xlu0 %v825, 64
        %v4695 = vpop.permute.xlu0 %4694
        %4696 = vrot.lane.b32.xlu0 %v827, 64
        %v4697 = vpop.permute.xlu0 %4696
        %4698 = vrot.lane.b32.xlu0 %v829, 64
        %v4699 = vpop.permute.xlu0 %4698
        %4700 = vrot.lane.b32.xlu0 %v831, 64
        %v4701 = vpop.permute.xlu0 %4700
        %4702 = vrot.lane.b32.xlu0 %v833, 64
        %v4703 = vpop.permute.xlu0 %4702
        %s4736 = scalar_lea.vmem [#allocation2], 1824
        %4737 = vst.msk [vmem:[%s4736 + $0x4] sm:$0xff] %vm834, %v4641
        %4738 = vst.msk [vmem:[%s4736 + $0xc] sm:$0xff] %vm834, %v4643
        %4739 = vst.msk [vmem:[%s4736 + $0x1c] sm:$0xff] %vm834, %v4645
        %4740 = vst.msk [vmem:[%s4736 + $0x24] sm:$0xff] %vm834, %v4647
        %4741 = vst.msk [vmem:[%s4736 + $0x34] sm:$0xff] %vm834, %v4649
        %4742 = vst.msk [vmem:[%s4736 + $0x3c] sm:$0xff] %vm834, %v4651
        %4743 = vst.msk [vmem:[%s4736 + $0x4c] sm:$0xff] %vm834, %v4653
        %4744 = vst.msk [vmem:[%s4736 + $0x54] sm:$0xff] %vm834, %v4655
        %4745 = vst.msk [vmem:[%s4736 + $0x64] sm:$0xff] %vm834, %v4657
        %4746 = vst.msk [vmem:[%s4736 + $0x6c] sm:$0xff] %vm834, %v4659
        %4747 = vst.msk [vmem:[%s4736 + $0x7c] sm:$0xff] %vm834, %v4661
        %4748 = vst.msk [vmem:[%s4736 + $0x84] sm:$0xff] %vm834, %v4663
        %4749 = vst.msk [vmem:[%s4736 + $0x94] sm:$0xff] %vm834, %v4665
        %4750 = vst.msk [vmem:[%s4736 + $0x9c] sm:$0xff] %vm834, %v4667
        %4751 = vst.msk [vmem:[%s4736 + $0xac] sm:$0xff] %vm834, %v4669
        %4752 = vst.msk [vmem:[%s4736 + $0xb4] sm:$0xff] %vm834, %v4671
        %4753 = vst.msk [vmem:[%s4736 + $0xc4] sm:$0xff] %vm834, %v4673
        %4754 = vst.msk [vmem:[%s4736 + $0xcc] sm:$0xff] %vm834, %v4675
        %4755 = vst.msk [vmem:[%s4736 + $0xdc] sm:$0xff] %vm834, %v4677
        %4756 = vst.msk [vmem:[%s4736 + $0xe4] sm:$0xff] %vm834, %v4679
        %4757 = vst.msk [vmem:[%s4736 + $0xf4] sm:$0xff] %vm834, %v4681
        %4758 = vst.msk [vmem:[%s4736 + $0xfc] sm:$0xff] %vm834, %v4683
        %4759 = vst.msk [vmem:[%s4736 + $0x10c] sm:$0xff] %vm834, %v4685
        %4760 = vst.msk [vmem:[%s4736 + $0x114] sm:$0xff] %vm834, %v4687
        %4761 = vst.msk [vmem:[%s4736 + $0x124] sm:$0xff] %vm834, %v4689
        %4762 = vst.msk [vmem:[%s4736 + $0x12c] sm:$0xff] %vm834, %v4691
        %4763 = vst.msk [vmem:[%s4736 + $0x13c] sm:$0xff] %vm834, %v4693
        %4764 = vst.msk [vmem:[%s4736 + $0x144] sm:$0xff] %vm834, %v4695
        %4765 = vst.msk [vmem:[%s4736 + $0x154] sm:$0xff] %vm834, %v4697
        %4766 = vst.msk [vmem:[%s4736 + $0x15c] sm:$0xff] %vm834, %v4699
        %4767 = vst.msk [vmem:[%s4736 + $0x16c] sm:$0xff] %vm834, %v4701
        %4768 = vst.msk [vmem:[%s4736 + $0x174] sm:$0xff] %vm834, %v4703
        %s4769 = scalar_lea.vmem [#allocation2], 1728
        %v4770 = vld [vmem:[%s4769] sm:$0xff]
        %v4771 = vld [vmem:[%s4769 + $0x8] sm:$0xff]
        %v4772 = vld [vmem:[%s4769 + $0x18] sm:$0xff]
        %v4773 = vld [vmem:[%s4769 + $0x20] sm:$0xff]
        %v4774 = vld [vmem:[%s4769 + $0x30] sm:$0xff]
        %v4775 = vld [vmem:[%s4769 + $0x38] sm:$0xff]
        %v4776 = vld [vmem:[%s4769 + $0x48] sm:$0xff]
        %v4777 = vld [vmem:[%s4769 + $0x50] sm:$0xff]
        %v4778 = vld [vmem:[%s4769 + $0x60] sm:$0xff]
        %v4779 = vld [vmem:[%s4769 + $0x68] sm:$0xff]
        %v4780 = vld [vmem:[%s4769 + $0x78] sm:$0xff]
        %v4781 = vld [vmem:[%s4769 + $0x80] sm:$0xff]
        %v4782 = vld [vmem:[%s4769 + $0x90] sm:$0xff]
        %v4783 = vld [vmem:[%s4769 + $0x98] sm:$0xff]
        %v4784 = vld [vmem:[%s4769 + $0xa8] sm:$0xff]
        %v4785 = vld [vmem:[%s4769 + $0xb0] sm:$0xff]
        %v4786 = vld [vmem:[%s4769 + $0xc0] sm:$0xff]
        %v4787 = vld [vmem:[%s4769 + $0xc8] sm:$0xff]
        %v4788 = vld [vmem:[%s4769 + $0xd8] sm:$0xff]
        %v4789 = vld [vmem:[%s4769 + $0xe0] sm:$0xff]
        %v4790 = vld [vmem:[%s4769 + $0xf0] sm:$0xff]
        %v4791 = vld [vmem:[%s4769 + $0xf8] sm:$0xff]
        %v4792 = vld [vmem:[%s4769 + $0x108] sm:$0xff]
        %v4793 = vld [vmem:[%s4769 + $0x110] sm:$0xff]
        %v4794 = vld [vmem:[%s4769 + $0x120] sm:$0xff]
        %v4795 = vld [vmem:[%s4769 + $0x128] sm:$0xff]
        %v4796 = vld [vmem:[%s4769 + $0x138] sm:$0xff]
        %v4797 = vld [vmem:[%s4769 + $0x140] sm:$0xff]
        %v4798 = vld [vmem:[%s4769 + $0x150] sm:$0xff]
        %v4799 = vld [vmem:[%s4769 + $0x158] sm:$0xff]
        %v4800 = vld [vmem:[%s4769 + $0x168] sm:$0xff]
        %v4801 = vld [vmem:[%s4769 + $0x170] sm:$0xff]
        %v4802 = vlaneseq
        %v4803 = vshrl.u32 %v4802, 7
        %v4804 = vsub.s32 0, %v4803
        %v4805 = vrot.slane %v1071, %v4804
        %v4806 = vmul.f32 %v4770, %v4805
        %v4807 = vmul.f32 %v4771, %v4805
        %v4808 = vmul.f32 %v4772, %v4805
        %v4809 = vmul.f32 %v4773, %v4805
        %v4810 = vmul.f32 %v4774, %v4805
        %v4811 = vmul.f32 %v4775, %v4805
        %v4812 = vmul.f32 %v4776, %v4805
        %v4813 = vmul.f32 %v4777, %v4805
        %v4814 = vmul.f32 %v4778, %v4805
        %v4815 = vmul.f32 %v4779, %v4805
        %v4816 = vmul.f32 %v4780, %v4805
        %v4817 = vmul.f32 %v4781, %v4805
        %v4818 = vmul.f32 %v4782, %v4805
        %v4819 = vmul.f32 %v4783, %v4805
        %v4820 = vmul.f32 %v4784, %v4805
        %v4821 = vmul.f32 %v4785, %v4805
        %v4822 = vmul.f32 %v4786, %v4805
        %v4823 = vmul.f32 %v4787, %v4805
        %v4824 = vmul.f32 %v4788, %v4805
        %v4825 = vmul.f32 %v4789, %v4805
        %v4826 = vmul.f32 %v4790, %v4805
        %v4827 = vmul.f32 %v4791, %v4805
        %v4828 = vmul.f32 %v4792, %v4805
        %v4829 = vmul.f32 %v4793, %v4805
        %v4830 = vmul.f32 %v4794, %v4805
        %v4831 = vmul.f32 %v4795, %v4805
        %v4832 = vmul.f32 %v4796, %v4805
        %v4833 = vmul.f32 %v4797, %v4805
        %v4834 = vmul.f32 %v4798, %v4805
        %v4835 = vmul.f32 %v4799, %v4805
        %v4836 = vmul.f32 %v4800, %v4805
        %v4837 = vmul.f32 %v4801, %v4805
        %v4838 = vld [vmem:[%s4769 + $0x4] sm:$0xff]
        %v4839 = vld [vmem:[%s4769 + $0xc] sm:$0xff]
        %v4840 = vld [vmem:[%s4769 + $0x1c] sm:$0xff]
        %v4841 = vld [vmem:[%s4769 + $0x24] sm:$0xff]
        %v4842 = vld [vmem:[%s4769 + $0x34] sm:$0xff]
        %v4843 = vld [vmem:[%s4769 + $0x3c] sm:$0xff]
        %v4844 = vld [vmem:[%s4769 + $0x4c] sm:$0xff]
        %v4845 = vld [vmem:[%s4769 + $0x54] sm:$0xff]
        %v4846 = vld [vmem:[%s4769 + $0x64] sm:$0xff]
        %v4847 = vld [vmem:[%s4769 + $0x6c] sm:$0xff]
        %v4848 = vld [vmem:[%s4769 + $0x7c] sm:$0xff]
        %v4849 = vld [vmem:[%s4769 + $0x84] sm:$0xff]
        %v4850 = vld [vmem:[%s4769 + $0x94] sm:$0xff]
        %v4851 = vld [vmem:[%s4769 + $0x9c] sm:$0xff]
        %v4852 = vld [vmem:[%s4769 + $0xac] sm:$0xff]
        %v4853 = vld [vmem:[%s4769 + $0xb4] sm:$0xff]
        %v4854 = vld [vmem:[%s4769 + $0xc4] sm:$0xff]
        %v4855 = vld [vmem:[%s4769 + $0xcc] sm:$0xff]
        %v4856 = vld [vmem:[%s4769 + $0xdc] sm:$0xff]
        %v4857 = vld [vmem:[%s4769 + $0xe4] sm:$0xff]
        %v4858 = vld [vmem:[%s4769 + $0xf4] sm:$0xff]
        %v4859 = vld [vmem:[%s4769 + $0xfc] sm:$0xff]
        %v4860 = vld [vmem:[%s4769 + $0x10c] sm:$0xff]
        %v4861 = vld [vmem:[%s4769 + $0x114] sm:$0xff]
        %v4862 = vld [vmem:[%s4769 + $0x124] sm:$0xff]
        %v4863 = vld [vmem:[%s4769 + $0x12c] sm:$0xff]
        %v4864 = vld [vmem:[%s4769 + $0x13c] sm:$0xff]
        %v4865 = vld [vmem:[%s4769 + $0x144] sm:$0xff]
        %v4866 = vld [vmem:[%s4769 + $0x154] sm:$0xff]
        %v4867 = vld [vmem:[%s4769 + $0x15c] sm:$0xff]
        %v4868 = vld [vmem:[%s4769 + $0x16c] sm:$0xff]
        %v4869 = vld [vmem:[%s4769 + $0x174] sm:$0xff]
        %v4870 = vlaneseq
        %v4871 = vshrl.u32 %v4870, 7
        %v4872 = vsub.s32 1, %v4871
        %v4873 = vrot.slane %v1071, %v4872
        %v4874 = vmul.f32 %v4838, %v4873
        %v4875 = vmul.f32 %v4839, %v4873
        %v4876 = vmul.f32 %v4840, %v4873
        %v4877 = vmul.f32 %v4841, %v4873
        %v4878 = vmul.f32 %v4842, %v4873
        %v4879 = vmul.f32 %v4843, %v4873
        %v4880 = vmul.f32 %v4844, %v4873
        %v4881 = vmul.f32 %v4845, %v4873
        %v4882 = vmul.f32 %v4846, %v4873
        %v4883 = vmul.f32 %v4847, %v4873
        %v4884 = vmul.f32 %v4848, %v4873
        %v4885 = vmul.f32 %v4849, %v4873
        %v4886 = vmul.f32 %v4850, %v4873
        %v4887 = vmul.f32 %v4851, %v4873
        %v4888 = vmul.f32 %v4852, %v4873
        %v4889 = vmul.f32 %v4853, %v4873
        %v4890 = vmul.f32 %v4854, %v4873
        %v4891 = vmul.f32 %v4855, %v4873
        %v4892 = vmul.f32 %v4856, %v4873
        %v4893 = vmul.f32 %v4857, %v4873
        %v4894 = vmul.f32 %v4858, %v4873
        %v4895 = vmul.f32 %v4859, %v4873
        %v4896 = vmul.f32 %v4860, %v4873
        %v4897 = vmul.f32 %v4861, %v4873
        %v4898 = vmul.f32 %v4862, %v4873
        %v4899 = vmul.f32 %v4863, %v4873
        %v4900 = vmul.f32 %v4864, %v4873
        %v4901 = vmul.f32 %v4865, %v4873
        %v4902 = vmul.f32 %v4866, %v4873
        %v4903 = vmul.f32 %v4867, %v4873
        %v4904 = vmul.f32 %v4868, %v4873
        %v4905 = vmul.f32 %v4869, %v4873
        %v4906 = vadd.f32 %v4806, %v4874
        %v4907 = vadd.f32 %v4807, %v4875
        %v4908 = vadd.f32 %v4808, %v4876
        %v4909 = vadd.f32 %v4809, %v4877
        %v4910 = vadd.f32 %v4810, %v4878
        %v4911 = vadd.f32 %v4811, %v4879
        %v4912 = vadd.f32 %v4812, %v4880
        %v4913 = vadd.f32 %v4813, %v4881
        %v4914 = vadd.f32 %v4814, %v4882
        %v4915 = vadd.f32 %v4815, %v4883
        %v4916 = vadd.f32 %v4816, %v4884
        %v4917 = vadd.f32 %v4817, %v4885
        %v4918 = vadd.f32 %v4818, %v4886
        %v4919 = vadd.f32 %v4819, %v4887
        %v4920 = vadd.f32 %v4820, %v4888
        %v4921 = vadd.f32 %v4821, %v4889
        %v4922 = vadd.f32 %v4822, %v4890
        %v4923 = vadd.f32 %v4823, %v4891
        %v4924 = vadd.f32 %v4824, %v4892
        %v4925 = vadd.f32 %v4825, %v4893
        %v4926 = vadd.f32 %v4826, %v4894
        %v4927 = vadd.f32 %v4827, %v4895
        %v4928 = vadd.f32 %v4828, %v4896
        %v4929 = vadd.f32 %v4829, %v4897
        %v4930 = vadd.f32 %v4830, %v4898
        %v4931 = vadd.f32 %v4831, %v4899
        %v4932 = vadd.f32 %v4832, %v4900
        %v4933 = vadd.f32 %v4833, %v4901
        %v4934 = vadd.f32 %v4834, %v4902
        %v4935 = vadd.f32 %v4835, %v4903
        %v4936 = vadd.f32 %v4836, %v4904
        %v4937 = vadd.f32 %v4837, %v4905
        %v4938 = vld [vmem:[%s4769 + $0x10] sm:$0xff]
        %v4939 = vld [vmem:[%s4769 + $0x28] sm:$0xff]
        %v4940 = vld [vmem:[%s4769 + $0x40] sm:$0xff]
        %v4941 = vld [vmem:[%s4769 + $0x58] sm:$0xff]
        %v4942 = vld [vmem:[%s4769 + $0x70] sm:$0xff]
        %v4943 = vld [vmem:[%s4769 + $0x88] sm:$0xff]
        %v4944 = vld [vmem:[%s4769 + $0xa0] sm:$0xff]
        %v4945 = vld [vmem:[%s4769 + $0xb8] sm:$0xff]
        %v4946 = vld [vmem:[%s4769 + $0xd0] sm:$0xff]
        %v4947 = vld [vmem:[%s4769 + $0xe8] sm:$0xff]
        %v4948 = vld [vmem:[%s4769 + $0x100] sm:$0xff]
        %v4949 = vld [vmem:[%s4769 + $0x118] sm:$0xff]
        %v4950 = vld [vmem:[%s4769 + $0x130] sm:$0xff]
        %v4951 = vld [vmem:[%s4769 + $0x148] sm:$0xff]
        %v4952 = vld [vmem:[%s4769 + $0x160] sm:$0xff]
        %v4953 = vld [vmem:[%s4769 + $0x178] sm:$0xff]
        %v4954 = vlaneseq
        %v4955 = vshrl.u32 %v4954, 7
        %v4956 = vsub.s32 2, %v4955
        %v4957 = vrot.slane %v1071, %v4956
        %v4958 = vmul.f32 %v4771, %v4957
        %v4959 = vmul.f32 %v4938, %v4957
        %v4960 = vmul.f32 %v4773, %v4957
        %v4961 = vmul.f32 %v4939, %v4957
        %v4962 = vmul.f32 %v4775, %v4957
        %v4963 = vmul.f32 %v4940, %v4957
        %v4964 = vmul.f32 %v4777, %v4957
        %v4965 = vmul.f32 %v4941, %v4957
        %v4966 = vmul.f32 %v4779, %v4957
        %v4967 = vmul.f32 %v4942, %v4957
        %v4968 = vmul.f32 %v4781, %v4957
        %v4969 = vmul.f32 %v4943, %v4957
        %v4970 = vmul.f32 %v4783, %v4957
        %v4971 = vmul.f32 %v4944, %v4957
        %v4972 = vmul.f32 %v4785, %v4957
        %v4973 = vmul.f32 %v4945, %v4957
        %v4974 = vmul.f32 %v4787, %v4957
        %v4975 = vmul.f32 %v4946, %v4957
        %v4976 = vmul.f32 %v4789, %v4957
        %v4977 = vmul.f32 %v4947, %v4957
        %v4978 = vmul.f32 %v4791, %v4957
        %v4979 = vmul.f32 %v4948, %v4957
        %v4980 = vmul.f32 %v4793, %v4957
        %v4981 = vmul.f32 %v4949, %v4957
        %v4982 = vmul.f32 %v4795, %v4957
        %v4983 = vmul.f32 %v4950, %v4957
        %v4984 = vmul.f32 %v4797, %v4957
        %v4985 = vmul.f32 %v4951, %v4957
        %v4986 = vmul.f32 %v4799, %v4957
        %v4987 = vmul.f32 %v4952, %v4957
        %v4988 = vmul.f32 %v4801, %v4957
        %v4989 = vmul.f32 %v4953, %v4957
        %v4990 = vadd.f32 %v4906, %v4958
        %v4991 = vadd.f32 %v4907, %v4959
        %v4992 = vadd.f32 %v4908, %v4960
        %v4993 = vadd.f32 %v4909, %v4961
        %v4994 = vadd.f32 %v4910, %v4962
        %v4995 = vadd.f32 %v4911, %v4963
        %v4996 = vadd.f32 %v4912, %v4964
        %v4997 = vadd.f32 %v4913, %v4965
        %v4998 = vadd.f32 %v4914, %v4966
        %v4999 = vadd.f32 %v4915, %v4967
        %v5000 = vadd.f32 %v4916, %v4968
        %v5001 = vadd.f32 %v4917, %v4969
        %v5002 = vadd.f32 %v4918, %v4970
        %v5003 = vadd.f32 %v4919, %v4971
        %v5004 = vadd.f32 %v4920, %v4972
        %v5005 = vadd.f32 %v4921, %v4973
        %v5006 = vadd.f32 %v4922, %v4974
        %v5007 = vadd.f32 %v4923, %v4975
        %v5008 = vadd.f32 %v4924, %v4976
        %v5009 = vadd.f32 %v4925, %v4977
        %v5010 = vadd.f32 %v4926, %v4978
        %v5011 = vadd.f32 %v4927, %v4979
        %v5012 = vadd.f32 %v4928, %v4980
        %v5013 = vadd.f32 %v4929, %v4981
        %v5014 = vadd.f32 %v4930, %v4982
        %v5015 = vadd.f32 %v4931, %v4983
        %v5016 = vadd.f32 %v4932, %v4984
        %v5017 = vadd.f32 %v4933, %v4985
        %v5018 = vadd.f32 %v4934, %v4986
        %v5019 = vadd.f32 %v4935, %v4987
        %v5020 = vadd.f32 %v4936, %v4988
        %v5021 = vadd.f32 %v4937, %v4989
        %v5022 = vld [vmem:[%s4736] sm:$0xff]
        %v5023 = vld [vmem:[%s4736 + $0x8] sm:$0xff]
        %v5024 = vld [vmem:[%s4736 + $0x18] sm:$0xff]
        %v5025 = vld [vmem:[%s4736 + $0x20] sm:$0xff]
        %v5026 = vld [vmem:[%s4736 + $0x30] sm:$0xff]
        %v5027 = vld [vmem:[%s4736 + $0x38] sm:$0xff]
        %v5028 = vld [vmem:[%s4736 + $0x48] sm:$0xff]
        %v5029 = vld [vmem:[%s4736 + $0x50] sm:$0xff]
        %v5030 = vld [vmem:[%s4736 + $0x60] sm:$0xff]
        %v5031 = vld [vmem:[%s4736 + $0x68] sm:$0xff]
        %v5032 = vld [vmem:[%s4736 + $0x78] sm:$0xff]
        %v5033 = vld [vmem:[%s4736 + $0x80] sm:$0xff]
        %v5034 = vld [vmem:[%s4736 + $0x90] sm:$0xff]
        %v5035 = vld [vmem:[%s4736 + $0x98] sm:$0xff]
        %v5036 = vld [vmem:[%s4736 + $0xa8] sm:$0xff]
        %v5037 = vld [vmem:[%s4736 + $0xb0] sm:$0xff]
        %v5038 = vld [vmem:[%s4736 + $0xc0] sm:$0xff]
        %v5039 = vld [vmem:[%s4736 + $0xc8] sm:$0xff]
        %v5040 = vld [vmem:[%s4736 + $0xd8] sm:$0xff]
        %v5041 = vld [vmem:[%s4736 + $0xe0] sm:$0xff]
        %v5042 = vld [vmem:[%s4736 + $0xf0] sm:$0xff]
        %v5043 = vld [vmem:[%s4736 + $0xf8] sm:$0xff]
        %v5044 = vld [vmem:[%s4736 + $0x108] sm:$0xff]
        %v5045 = vld [vmem:[%s4736 + $0x110] sm:$0xff]
        %v5046 = vld [vmem:[%s4736 + $0x120] sm:$0xff]
        %v5047 = vld [vmem:[%s4736 + $0x128] sm:$0xff]
        %v5048 = vld [vmem:[%s4736 + $0x138] sm:$0xff]
        %v5049 = vld [vmem:[%s4736 + $0x140] sm:$0xff]
        %v5050 = vld [vmem:[%s4736 + $0x150] sm:$0xff]
        %v5051 = vld [vmem:[%s4736 + $0x158] sm:$0xff]
        %v5052 = vld [vmem:[%s4736 + $0x168] sm:$0xff]
        %v5053 = vld [vmem:[%s4736 + $0x170] sm:$0xff]
        %v5054 = vlaneseq
        %v5055 = vshrl.u32 %v5054, 7
        %v5056 = vsub.s32 0, %v5055
        %v5057 = vrot.slane %v1072, %v5056
        %v5058 = vmul.f32 %v5022, %v5057
        %v5059 = vmul.f32 %v5023, %v5057
        %v5060 = vmul.f32 %v5024, %v5057
        %v5061 = vmul.f32 %v5025, %v5057
        %v5062 = vmul.f32 %v5026, %v5057
        %v5063 = vmul.f32 %v5027, %v5057
        %v5064 = vmul.f32 %v5028, %v5057
        %v5065 = vmul.f32 %v5029, %v5057
        %v5066 = vmul.f32 %v5030, %v5057
        %v5067 = vmul.f32 %v5031, %v5057
        %v5068 = vmul.f32 %v5032, %v5057
        %v5069 = vmul.f32 %v5033, %v5057
        %v5070 = vmul.f32 %v5034, %v5057
        %v5071 = vmul.f32 %v5035, %v5057
        %v5072 = vmul.f32 %v5036, %v5057
        %v5073 = vmul.f32 %v5037, %v5057
        %v5074 = vmul.f32 %v5038, %v5057
        %v5075 = vmul.f32 %v5039, %v5057
        %v5076 = vmul.f32 %v5040, %v5057
        %v5077 = vmul.f32 %v5041, %v5057
        %v5078 = vmul.f32 %v5042, %v5057
        %v5079 = vmul.f32 %v5043, %v5057
        %v5080 = vmul.f32 %v5044, %v5057
        %v5081 = vmul.f32 %v5045, %v5057
        %v5082 = vmul.f32 %v5046, %v5057
        %v5083 = vmul.f32 %v5047, %v5057
        %v5084 = vmul.f32 %v5048, %v5057
        %v5085 = vmul.f32 %v5049, %v5057
        %v5086 = vmul.f32 %v5050, %v5057
        %v5087 = vmul.f32 %v5051, %v5057
        %v5088 = vmul.f32 %v5052, %v5057
        %v5089 = vmul.f32 %v5053, %v5057
        %v5090 = vadd.f32 %v4990, %v5058
        %v5091 = vadd.f32 %v4991, %v5059
        %v5092 = vadd.f32 %v4992, %v5060
        %v5093 = vadd.f32 %v4993, %v5061
        %v5094 = vadd.f32 %v4994, %v5062
        %v5095 = vadd.f32 %v4995, %v5063
        %v5096 = vadd.f32 %v4996, %v5064
        %v5097 = vadd.f32 %v4997, %v5065
        %v5098 = vadd.f32 %v4998, %v5066
        %v5099 = vadd.f32 %v4999, %v5067
        %v5100 = vadd.f32 %v5000, %v5068
        %v5101 = vadd.f32 %v5001, %v5069
        %v5102 = vadd.f32 %v5002, %v5070
        %v5103 = vadd.f32 %v5003, %v5071
        %v5104 = vadd.f32 %v5004, %v5072
        %v5105 = vadd.f32 %v5005, %v5073
        %v5106 = vadd.f32 %v5006, %v5074
        %v5107 = vadd.f32 %v5007, %v5075
        %v5108 = vadd.f32 %v5008, %v5076
        %v5109 = vadd.f32 %v5009, %v5077
        %v5110 = vadd.f32 %v5010, %v5078
        %v5111 = vadd.f32 %v5011, %v5079
        %v5112 = vadd.f32 %v5012, %v5080
        %v5113 = vadd.f32 %v5013, %v5081
        %v5114 = vadd.f32 %v5014, %v5082
        %v5115 = vadd.f32 %v5015, %v5083
        %v5116 = vadd.f32 %v5016, %v5084
        %v5117 = vadd.f32 %v5017, %v5085
        %v5118 = vadd.f32 %v5018, %v5086
        %v5119 = vadd.f32 %v5019, %v5087
        %v5120 = vadd.f32 %v5020, %v5088
        %v5121 = vadd.f32 %v5021, %v5089
        %v5122 = vld [vmem:[%s4736 + $0x4] sm:$0xff]
        %v5123 = vld [vmem:[%s4736 + $0xc] sm:$0xff]
        %v5124 = vld [vmem:[%s4736 + $0x1c] sm:$0xff]
        %v5125 = vld [vmem:[%s4736 + $0x24] sm:$0xff]
        %v5126 = vld [vmem:[%s4736 + $0x34] sm:$0xff]
        %v5127 = vld [vmem:[%s4736 + $0x3c] sm:$0xff]
        %v5128 = vld [vmem:[%s4736 + $0x4c] sm:$0xff]
        %v5129 = vld [vmem:[%s4736 + $0x54] sm:$0xff]
        %v5130 = vld [vmem:[%s4736 + $0x64] sm:$0xff]
        %v5131 = vld [vmem:[%s4736 + $0x6c] sm:$0xff]
        %v5132 = vld [vmem:[%s4736 + $0x7c] sm:$0xff]
        %v5133 = vld [vmem:[%s4736 + $0x84] sm:$0xff]
        %v5134 = vld [vmem:[%s4736 + $0x94] sm:$0xff]
        %v5135 = vld [vmem:[%s4736 + $0x9c] sm:$0xff]
        %v5136 = vld [vmem:[%s4736 + $0xac] sm:$0xff]
        %v5137 = vld [vmem:[%s4736 + $0xb4] sm:$0xff]
        %v5138 = vld [vmem:[%s4736 + $0xc4] sm:$0xff]
        %v5139 = vld [vmem:[%s4736 + $0xcc] sm:$0xff]
        %v5140 = vld [vmem:[%s4736 + $0xdc] sm:$0xff]
        %v5141 = vld [vmem:[%s4736 + $0xe4] sm:$0xff]
        %v5142 = vld [vmem:[%s4736 + $0xf4] sm:$0xff]
        %v5143 = vld [vmem:[%s4736 + $0xfc] sm:$0xff]
        %v5144 = vld [vmem:[%s4736 + $0x10c] sm:$0xff]
        %v5145 = vld [vmem:[%s4736 + $0x114] sm:$0xff]
        %v5146 = vld [vmem:[%s4736 + $0x124] sm:$0xff]
        %v5147 = vld [vmem:[%s4736 + $0x12c] sm:$0xff]
        %v5148 = vld [vmem:[%s4736 + $0x13c] sm:$0xff]
        %v5149 = vld [vmem:[%s4736 + $0x144] sm:$0xff]
        %v5150 = vld [vmem:[%s4736 + $0x154] sm:$0xff]
        %v5151 = vld [vmem:[%s4736 + $0x15c] sm:$0xff]
        %v5152 = vld [vmem:[%s4736 + $0x16c] sm:$0xff]
        %v5153 = vld [vmem:[%s4736 + $0x174] sm:$0xff]
        %v5154 = vlaneseq
        %v5155 = vshrl.u32 %v5154, 7
        %v5156 = vsub.s32 1, %v5155
        %v5157 = vrot.slane %v1072, %v5156
        %v5158 = vmul.f32 %v5122, %v5157
        %v5159 = vmul.f32 %v5123, %v5157
        %v5160 = vmul.f32 %v5124, %v5157
        %v5161 = vmul.f32 %v5125, %v5157
        %v5162 = vmul.f32 %v5126, %v5157
        %v5163 = vmul.f32 %v5127, %v5157
        %v5164 = vmul.f32 %v5128, %v5157
        %v5165 = vmul.f32 %v5129, %v5157
        %v5166 = vmul.f32 %v5130, %v5157
        %v5167 = vmul.f32 %v5131, %v5157
        %v5168 = vmul.f32 %v5132, %v5157
        %v5169 = vmul.f32 %v5133, %v5157
        %v5170 = vmul.f32 %v5134, %v5157
        %v5171 = vmul.f32 %v5135, %v5157
        %v5172 = vmul.f32 %v5136, %v5157
        %v5173 = vmul.f32 %v5137, %v5157
        %v5174 = vmul.f32 %v5138, %v5157
        %v5175 = vmul.f32 %v5139, %v5157
        %v5176 = vmul.f32 %v5140, %v5157
        %v5177 = vmul.f32 %v5141, %v5157
        %v5178 = vmul.f32 %v5142, %v5157
        %v5179 = vmul.f32 %v5143, %v5157
        %v5180 = vmul.f32 %v5144, %v5157
        %v5181 = vmul.f32 %v5145, %v5157
        %v5182 = vmul.f32 %v5146, %v5157
        %v5183 = vmul.f32 %v5147, %v5157
        %v5184 = vmul.f32 %v5148, %v5157
        %v5185 = vmul.f32 %v5149, %v5157
        %v5186 = vmul.f32 %v5150, %v5157
        %v5187 = vmul.f32 %v5151, %v5157
        %v5188 = vmul.f32 %v5152, %v5157
        %v5189 = vmul.f32 %v5153, %v5157
        %v5190 = vadd.f32 %v5090, %v5158
        %v5191 = vadd.f32 %v5091, %v5159
        %v5192 = vadd.f32 %v5092, %v5160
        %v5193 = vadd.f32 %v5093, %v5161
        %v5194 = vadd.f32 %v5094, %v5162
        %v5195 = vadd.f32 %v5095, %v5163
        %v5196 = vadd.f32 %v5096, %v5164
        %v5197 = vadd.f32 %v5097, %v5165
        %v5198 = vadd.f32 %v5098, %v5166
        %v5199 = vadd.f32 %v5099, %v5167
        %v5200 = vadd.f32 %v5100, %v5168
        %v5201 = vadd.f32 %v5101, %v5169
        %v5202 = vadd.f32 %v5102, %v5170
        %v5203 = vadd.f32 %v5103, %v5171
        %v5204 = vadd.f32 %v5104, %v5172
        %v5205 = vadd.f32 %v5105, %v5173
        %v5206 = vadd.f32 %v5106, %v5174
        %v5207 = vadd.f32 %v5107, %v5175
        %v5208 = vadd.f32 %v5108, %v5176
        %v5209 = vadd.f32 %v5109, %v5177
        %v5210 = vadd.f32 %v5110, %v5178
        %v5211 = vadd.f32 %v5111, %v5179
        %v5212 = vadd.f32 %v5112, %v5180
        %v5213 = vadd.f32 %v5113, %v5181
        %v5214 = vadd.f32 %v5114, %v5182
        %v5215 = vadd.f32 %v5115, %v5183
        %v5216 = vadd.f32 %v5116, %v5184
        %v5217 = vadd.f32 %v5117, %v5185
        %v5218 = vadd.f32 %v5118, %v5186
        %v5219 = vadd.f32 %v5119, %v5187
        %v5220 = vadd.f32 %v5120, %v5188
        %v5221 = vadd.f32 %v5121, %v5189
        %v5222 = vld [vmem:[%s4736 + $0x10] sm:$0xff]
        %v5223 = vld [vmem:[%s4736 + $0x28] sm:$0xff]
        %v5224 = vld [vmem:[%s4736 + $0x40] sm:$0xff]
        %v5225 = vld [vmem:[%s4736 + $0x58] sm:$0xff]
        %v5226 = vld [vmem:[%s4736 + $0x70] sm:$0xff]
        %v5227 = vld [vmem:[%s4736 + $0x88] sm:$0xff]
        %v5228 = vld [vmem:[%s4736 + $0xa0] sm:$0xff]
        %v5229 = vld [vmem:[%s4736 + $0xb8] sm:$0xff]
        %v5230 = vld [vmem:[%s4736 + $0xd0] sm:$0xff]
        %v5231 = vld [vmem:[%s4736 + $0xe8] sm:$0xff]
        %v5232 = vld [vmem:[%s4736 + $0x100] sm:$0xff]
        %v5233 = vld [vmem:[%s4736 + $0x118] sm:$0xff]
        %v5234 = vld [vmem:[%s4736 + $0x130] sm:$0xff]
        %v5235 = vld [vmem:[%s4736 + $0x148] sm:$0xff]
        %v5236 = vld [vmem:[%s4736 + $0x160] sm:$0xff]
        %v5237 = vld [vmem:[%s4736 + $0x178] sm:$0xff]
        %v5238 = vlaneseq
        %v5239 = vshrl.u32 %v5238, 7
        %v5240 = vsub.s32 2, %v5239
        %v5241 = vrot.slane %v1072, %v5240
        %v5242 = vmul.f32 %v5023, %v5241
        %v5243 = vmul.f32 %v5222, %v5241
        %v5244 = vmul.f32 %v5025, %v5241
        %v5245 = vmul.f32 %v5223, %v5241
        %v5246 = vmul.f32 %v5027, %v5241
        %v5247 = vmul.f32 %v5224, %v5241
        %v5248 = vmul.f32 %v5029, %v5241
        %v5249 = vmul.f32 %v5225, %v5241
        %v5250 = vmul.f32 %v5031, %v5241
        %v5251 = vmul.f32 %v5226, %v5241
        %v5252 = vmul.f32 %v5033, %v5241
        %v5253 = vmul.f32 %v5227, %v5241
        %v5254 = vmul.f32 %v5035, %v5241
        %v5255 = vmul.f32 %v5228, %v5241
        %v5256 = vmul.f32 %v5037, %v5241
        %v5257 = vmul.f32 %v5229, %v5241
        %v5258 = vmul.f32 %v5039, %v5241
        %v5259 = vmul.f32 %v5230, %v5241
        %v5260 = vmul.f32 %v5041, %v5241
        %v5261 = vmul.f32 %v5231, %v5241
        %v5262 = vmul.f32 %v5043, %v5241
        %v5263 = vmul.f32 %v5232, %v5241
        %v5264 = vmul.f32 %v5045, %v5241
        %v5265 = vmul.f32 %v5233, %v5241
        %v5266 = vmul.f32 %v5047, %v5241
        %v5267 = vmul.f32 %v5234, %v5241
        %v5268 = vmul.f32 %v5049, %v5241
        %v5269 = vmul.f32 %v5235, %v5241
        %v5270 = vmul.f32 %v5051, %v5241
        %v5271 = vmul.f32 %v5236, %v5241
        %v5272 = vmul.f32 %v5053, %v5241
        %v5273 = vmul.f32 %v5237, %v5241
        %v5274 = vadd.f32 %v5190, %v5242
        %v5275 = vadd.f32 %v5191, %v5243
        %v5276 = vadd.f32 %v5192, %v5244
        %v5277 = vadd.f32 %v5193, %v5245
        %v5278 = vadd.f32 %v5194, %v5246
        %v5279 = vadd.f32 %v5195, %v5247
        %v5280 = vadd.f32 %v5196, %v5248
        %v5281 = vadd.f32 %v5197, %v5249
        %v5282 = vadd.f32 %v5198, %v5250
        %v5283 = vadd.f32 %v5199, %v5251
        %v5284 = vadd.f32 %v5200, %v5252
        %v5285 = vadd.f32 %v5201, %v5253
        %v5286 = vadd.f32 %v5202, %v5254
        %v5287 = vadd.f32 %v5203, %v5255
        %v5288 = vadd.f32 %v5204, %v5256
        %v5289 = vadd.f32 %v5205, %v5257
        %v5290 = vadd.f32 %v5206, %v5258
        %v5291 = vadd.f32 %v5207, %v5259
        %v5292 = vadd.f32 %v5208, %v5260
        %v5293 = vadd.f32 %v5209, %v5261
        %v5294 = vadd.f32 %v5210, %v5262
        %v5295 = vadd.f32 %v5211, %v5263
        %v5296 = vadd.f32 %v5212, %v5264
        %v5297 = vadd.f32 %v5213, %v5265
        %v5298 = vadd.f32 %v5214, %v5266
        %v5299 = vadd.f32 %v5215, %v5267
        %v5300 = vadd.f32 %v5216, %v5268
        %v5301 = vadd.f32 %v5217, %v5269
        %v5302 = vadd.f32 %v5218, %v5270
        %v5303 = vadd.f32 %v5219, %v5271
        %v5304 = vadd.f32 %v5220, %v5272
        %v5305 = vadd.f32 %v5221, %v5273
        %s5306 = scalar_lea.vmem [#allocation2], 1920
        %v5307 = vld [vmem:[%s5306] sm:$0xff]
        %v5308 = vld [vmem:[%s5306 + $0x8] sm:$0xff]
        %v5309 = vld [vmem:[%s5306 + $0x18] sm:$0xff]
        %v5310 = vld [vmem:[%s5306 + $0x20] sm:$0xff]
        %v5311 = vld [vmem:[%s5306 + $0x30] sm:$0xff]
        %v5312 = vld [vmem:[%s5306 + $0x38] sm:$0xff]
        %v5313 = vld [vmem:[%s5306 + $0x48] sm:$0xff]
        %v5314 = vld [vmem:[%s5306 + $0x50] sm:$0xff]
        %v5315 = vld [vmem:[%s5306 + $0x60] sm:$0xff]
        %v5316 = vld [vmem:[%s5306 + $0x68] sm:$0xff]
        %v5317 = vld [vmem:[%s5306 + $0x78] sm:$0xff]
        %v5318 = vld [vmem:[%s5306 + $0x80] sm:$0xff]
        %v5319 = vld [vmem:[%s5306 + $0x90] sm:$0xff]
        %v5320 = vld [vmem:[%s5306 + $0x98] sm:$0xff]
        %v5321 = vld [vmem:[%s5306 + $0xa8] sm:$0xff]
        %v5322 = vld [vmem:[%s5306 + $0xb0] sm:$0xff]
        %v5323 = vld [vmem:[%s5306 + $0xc0] sm:$0xff]
        %v5324 = vld [vmem:[%s5306 + $0xc8] sm:$0xff]
        %v5325 = vld [vmem:[%s5306 + $0xd8] sm:$0xff]
        %v5326 = vld [vmem:[%s5306 + $0xe0] sm:$0xff]
        %v5327 = vld [vmem:[%s5306 + $0xf0] sm:$0xff]
        %v5328 = vld [vmem:[%s5306 + $0xf8] sm:$0xff]
        %v5329 = vld [vmem:[%s5306 + $0x108] sm:$0xff]
        %v5330 = vld [vmem:[%s5306 + $0x110] sm:$0xff]
        %v5331 = vld [vmem:[%s5306 + $0x120] sm:$0xff]
        %v5332 = vld [vmem:[%s5306 + $0x128] sm:$0xff]
        %v5333 = vld [vmem:[%s5306 + $0x138] sm:$0xff]
        %v5334 = vld [vmem:[%s5306 + $0x140] sm:$0xff]
        %v5335 = vld [vmem:[%s5306 + $0x150] sm:$0xff]
        %v5336 = vld [vmem:[%s5306 + $0x158] sm:$0xff]
        %v5337 = vld [vmem:[%s5306 + $0x168] sm:$0xff]
        %v5338 = vld [vmem:[%s5306 + $0x170] sm:$0xff]
        %v5339 = vlaneseq
        %v5340 = vshrl.u32 %v5339, 7
        %v5341 = vsub.s32 0, %v5340
        %v5342 = vrot.slane %v1073, %v5341
        %v5343 = vmul.f32 %v5307, %v5342
        %v5344 = vmul.f32 %v5308, %v5342
        %v5345 = vmul.f32 %v5309, %v5342
        %v5346 = vmul.f32 %v5310, %v5342
        %v5347 = vmul.f32 %v5311, %v5342
        %v5348 = vmul.f32 %v5312, %v5342
        %v5349 = vmul.f32 %v5313, %v5342
        %v5350 = vmul.f32 %v5314, %v5342
        %v5351 = vmul.f32 %v5315, %v5342
        %v5352 = vmul.f32 %v5316, %v5342
        %v5353 = vmul.f32 %v5317, %v5342
        %v5354 = vmul.f32 %v5318, %v5342
        %v5355 = vmul.f32 %v5319, %v5342
        %v5356 = vmul.f32 %v5320, %v5342
        %v5357 = vmul.f32 %v5321, %v5342
        %v5358 = vmul.f32 %v5322, %v5342
        %v5359 = vmul.f32 %v5323, %v5342
        %v5360 = vmul.f32 %v5324, %v5342
        %v5361 = vmul.f32 %v5325, %v5342
        %v5362 = vmul.f32 %v5326, %v5342
        %v5363 = vmul.f32 %v5327, %v5342
        %v5364 = vmul.f32 %v5328, %v5342
        %v5365 = vmul.f32 %v5329, %v5342
        %v5366 = vmul.f32 %v5330, %v5342
        %v5367 = vmul.f32 %v5331, %v5342
        %v5368 = vmul.f32 %v5332, %v5342
        %v5369 = vmul.f32 %v5333, %v5342
        %v5370 = vmul.f32 %v5334, %v5342
        %v5371 = vmul.f32 %v5335, %v5342
        %v5372 = vmul.f32 %v5336, %v5342
        %v5373 = vmul.f32 %v5337, %v5342
        %v5374 = vmul.f32 %v5338, %v5342
        %v5375 = vadd.f32 %v5274, %v5343
        %v5376 = vadd.f32 %v5275, %v5344
        %v5377 = vadd.f32 %v5276, %v5345
        %v5378 = vadd.f32 %v5277, %v5346
        %v5379 = vadd.f32 %v5278, %v5347
        %v5380 = vadd.f32 %v5279, %v5348
        %v5381 = vadd.f32 %v5280, %v5349
        %v5382 = vadd.f32 %v5281, %v5350
        %v5383 = vadd.f32 %v5282, %v5351
        %v5384 = vadd.f32 %v5283, %v5352
        %v5385 = vadd.f32 %v5284, %v5353
        %v5386 = vadd.f32 %v5285, %v5354
        %v5387 = vadd.f32 %v5286, %v5355
        %v5388 = vadd.f32 %v5287, %v5356
        %v5389 = vadd.f32 %v5288, %v5357
        %v5390 = vadd.f32 %v5289, %v5358
        %v5391 = vadd.f32 %v5290, %v5359
        %v5392 = vadd.f32 %v5291, %v5360
        %v5393 = vadd.f32 %v5292, %v5361
        %v5394 = vadd.f32 %v5293, %v5362
        %v5395 = vadd.f32 %v5294, %v5363
        %v5396 = vadd.f32 %v5295, %v5364
        %v5397 = vadd.f32 %v5296, %v5365
        %v5398 = vadd.f32 %v5297, %v5366
        %v5399 = vadd.f32 %v5298, %v5367
        %v5400 = vadd.f32 %v5299, %v5368
        %v5401 = vadd.f32 %v5300, %v5369
        %v5402 = vadd.f32 %v5301, %v5370
        %v5403 = vadd.f32 %v5302, %v5371
        %v5404 = vadd.f32 %v5303, %v5372
        %v5405 = vadd.f32 %v5304, %v5373
        %v5406 = vadd.f32 %v5305, %v5374
        %v5407 = vld [vmem:[%s5306 + $0x4] sm:$0xff]
        %v5408 = vld [vmem:[%s5306 + $0xc] sm:$0xff]
        %v5409 = vld [vmem:[%s5306 + $0x1c] sm:$0xff]
        %v5410 = vld [vmem:[%s5306 + $0x24] sm:$0xff]
        %v5411 = vld [vmem:[%s5306 + $0x34] sm:$0xff]
        %v5412 = vld [vmem:[%s5306 + $0x3c] sm:$0xff]
        %v5413 = vld [vmem:[%s5306 + $0x4c] sm:$0xff]
        %v5414 = vld [vmem:[%s5306 + $0x54] sm:$0xff]
        %v5415 = vld [vmem:[%s5306 + $0x64] sm:$0xff]
        %v5416 = vld [vmem:[%s5306 + $0x6c] sm:$0xff]
        %v5417 = vld [vmem:[%s5306 + $0x7c] sm:$0xff]
        %v5418 = vld [vmem:[%s5306 + $0x84] sm:$0xff]
        %v5419 = vld [vmem:[%s5306 + $0x94] sm:$0xff]
        %v5420 = vld [vmem:[%s5306 + $0x9c] sm:$0xff]
        %v5421 = vld [vmem:[%s5306 + $0xac] sm:$0xff]
        %v5422 = vld [vmem:[%s5306 + $0xb4] sm:$0xff]
        %v5423 = vld [vmem:[%s5306 + $0xc4] sm:$0xff]
        %v5424 = vld [vmem:[%s5306 + $0xcc] sm:$0xff]
        %v5425 = vld [vmem:[%s5306 + $0xdc] sm:$0xff]
        %v5426 = vld [vmem:[%s5306 + $0xe4] sm:$0xff]
        %v5427 = vld [vmem:[%s5306 + $0xf4] sm:$0xff]
        %v5428 = vld [vmem:[%s5306 + $0xfc] sm:$0xff]
        %v5429 = vld [vmem:[%s5306 + $0x10c] sm:$0xff]
        %v5430 = vld [vmem:[%s5306 + $0x114] sm:$0xff]
        %v5431 = vld [vmem:[%s5306 + $0x124] sm:$0xff]
        %v5432 = vld [vmem:[%s5306 + $0x12c] sm:$0xff]
        %v5433 = vld [vmem:[%s5306 + $0x13c] sm:$0xff]
        %v5434 = vld [vmem:[%s5306 + $0x144] sm:$0xff]
        %v5435 = vld [vmem:[%s5306 + $0x154] sm:$0xff]
        %v5436 = vld [vmem:[%s5306 + $0x15c] sm:$0xff]
        %v5437 = vld [vmem:[%s5306 + $0x16c] sm:$0xff]
        %v5438 = vld [vmem:[%s5306 + $0x174] sm:$0xff]
        %v5439 = vlaneseq
        %v5440 = vshrl.u32 %v5439, 7
        %v5441 = vsub.s32 1, %v5440
        %v5442 = vrot.slane %v1073, %v5441
        %v5443 = vmul.f32 %v5407, %v5442
        %v5444 = vmul.f32 %v5408, %v5442
        %v5445 = vmul.f32 %v5409, %v5442
        %v5446 = vmul.f32 %v5410, %v5442
        %v5447 = vmul.f32 %v5411, %v5442
        %v5448 = vmul.f32 %v5412, %v5442
        %v5449 = vmul.f32 %v5413, %v5442
        %v5450 = vmul.f32 %v5414, %v5442
        %v5451 = vmul.f32 %v5415, %v5442
        %v5452 = vmul.f32 %v5416, %v5442
        %v5453 = vmul.f32 %v5417, %v5442
        %v5454 = vmul.f32 %v5418, %v5442
        %v5455 = vmul.f32 %v5419, %v5442
        %v5456 = vmul.f32 %v5420, %v5442
        %v5457 = vmul.f32 %v5421, %v5442
        %v5458 = vmul.f32 %v5422, %v5442
        %v5459 = vmul.f32 %v5423, %v5442
        %v5460 = vmul.f32 %v5424, %v5442
        %v5461 = vmul.f32 %v5425, %v5442
        %v5462 = vmul.f32 %v5426, %v5442
        %v5463 = vmul.f32 %v5427, %v5442
        %v5464 = vmul.f32 %v5428, %v5442
        %v5465 = vmul.f32 %v5429, %v5442
        %v5466 = vmul.f32 %v5430, %v5442
        %v5467 = vmul.f32 %v5431, %v5442
        %v5468 = vmul.f32 %v5432, %v5442
        %v5469 = vmul.f32 %v5433, %v5442
        %v5470 = vmul.f32 %v5434, %v5442
        %v5471 = vmul.f32 %v5435, %v5442
        %v5472 = vmul.f32 %v5436, %v5442
        %v5473 = vmul.f32 %v5437, %v5442
        %v5474 = vmul.f32 %v5438, %v5442
        %v5475 = vadd.f32 %v5375, %v5443
        %v5476 = vadd.f32 %v5376, %v5444
        %v5477 = vadd.f32 %v5377, %v5445
        %v5478 = vadd.f32 %v5378, %v5446
        %v5479 = vadd.f32 %v5379, %v5447
        %v5480 = vadd.f32 %v5380, %v5448
        %v5481 = vadd.f32 %v5381, %v5449
        %v5482 = vadd.f32 %v5382, %v5450
        %v5483 = vadd.f32 %v5383, %v5451
        %v5484 = vadd.f32 %v5384, %v5452
        %v5485 = vadd.f32 %v5385, %v5453
        %v5486 = vadd.f32 %v5386, %v5454
        %v5487 = vadd.f32 %v5387, %v5455
        %v5488 = vadd.f32 %v5388, %v5456
        %v5489 = vadd.f32 %v5389, %v5457
        %v5490 = vadd.f32 %v5390, %v5458
        %v5491 = vadd.f32 %v5391, %v5459
        %v5492 = vadd.f32 %v5392, %v5460
        %v5493 = vadd.f32 %v5393, %v5461
        %v5494 = vadd.f32 %v5394, %v5462
        %v5495 = vadd.f32 %v5395, %v5463
        %v5496 = vadd.f32 %v5396, %v5464
        %v5497 = vadd.f32 %v5397, %v5465
        %v5498 = vadd.f32 %v5398, %v5466
        %v5499 = vadd.f32 %v5399, %v5467
        %v5500 = vadd.f32 %v5400, %v5468
        %v5501 = vadd.f32 %v5401, %v5469
        %v5502 = vadd.f32 %v5402, %v5470
        %v5503 = vadd.f32 %v5403, %v5471
        %v5504 = vadd.f32 %v5404, %v5472
        %v5505 = vadd.f32 %v5405, %v5473
        %v5506 = vadd.f32 %v5406, %v5474
        %v5507 = vld [vmem:[%s5306 + $0x10] sm:$0xff]
        %v5508 = vld [vmem:[%s5306 + $0x28] sm:$0xff]
        %v5509 = vld [vmem:[%s5306 + $0x40] sm:$0xff]
        %v5510 = vld [vmem:[%s5306 + $0x58] sm:$0xff]
        %v5511 = vld [vmem:[%s5306 + $0x70] sm:$0xff]
        %v5512 = vld [vmem:[%s5306 + $0x88] sm:$0xff]
        %v5513 = vld [vmem:[%s5306 + $0xa0] sm:$0xff]
        %v5514 = vld [vmem:[%s5306 + $0xb8] sm:$0xff]
        %v5515 = vld [vmem:[%s5306 + $0xd0] sm:$0xff]
        %v5516 = vld [vmem:[%s5306 + $0xe8] sm:$0xff]
        %v5517 = vld [vmem:[%s5306 + $0x100] sm:$0xff]
        %v5518 = vld [vmem:[%s5306 + $0x118] sm:$0xff]
        %v5519 = vld [vmem:[%s5306 + $0x130] sm:$0xff]
        %v5520 = vld [vmem:[%s5306 + $0x148] sm:$0xff]
        %v5521 = vld [vmem:[%s5306 + $0x160] sm:$0xff]
        %v5522 = vld [vmem:[%s5306 + $0x178] sm:$0xff]
        %v5523 = vlaneseq
        %v5524 = vshrl.u32 %v5523, 7
        %v5525 = vsub.s32 2, %v5524
        %v5526 = vrot.slane %v1073, %v5525
        %v5527 = vmul.f32 %v5308, %v5526
        %v5528 = vmul.f32 %v5507, %v5526
        %v5529 = vmul.f32 %v5310, %v5526
        %v5530 = vmul.f32 %v5508, %v5526
        %v5531 = vmul.f32 %v5312, %v5526
        %v5532 = vmul.f32 %v5509, %v5526
        %v5533 = vmul.f32 %v5314, %v5526
        %v5534 = vmul.f32 %v5510, %v5526
        %v5535 = vmul.f32 %v5316, %v5526
        %v5536 = vmul.f32 %v5511, %v5526
        %v5537 = vmul.f32 %v5318, %v5526
        %v5538 = vmul.f32 %v5512, %v5526
        %v5539 = vmul.f32 %v5320, %v5526
        %v5540 = vmul.f32 %v5513, %v5526
        %v5541 = vmul.f32 %v5322, %v5526
        %v5542 = vmul.f32 %v5514, %v5526
        %v5543 = vmul.f32 %v5324, %v5526
        %v5544 = vmul.f32 %v5515, %v5526
        %v5545 = vmul.f32 %v5326, %v5526
        %v5546 = vmul.f32 %v5516, %v5526
        %v5547 = vmul.f32 %v5328, %v5526
        %v5548 = vmul.f32 %v5517, %v5526
        %v5549 = vmul.f32 %v5330, %v5526
        %v5550 = vmul.f32 %v5518, %v5526
        %v5551 = vmul.f32 %v5332, %v5526
        %v5552 = vmul.f32 %v5519, %v5526
        %v5553 = vmul.f32 %v5334, %v5526
        %v5554 = vmul.f32 %v5520, %v5526
        %v5555 = vmul.f32 %v5336, %v5526
        %v5556 = vmul.f32 %v5521, %v5526
        %v5557 = vmul.f32 %v5338, %v5526
        %v5558 = vmul.f32 %v5522, %v5526
        %v5559 = vadd.f32 %v5475, %v5527
        %v5560 = vadd.f32 %v5476, %v5528
        %v5561 = vadd.f32 %v5477, %v5529
        %v5562 = vadd.f32 %v5478, %v5530
        %v5563 = vadd.f32 %v5479, %v5531
        %v5564 = vadd.f32 %v5480, %v5532
        %v5565 = vadd.f32 %v5481, %v5533
        %v5566 = vadd.f32 %v5482, %v5534
        %v5567 = vadd.f32 %v5483, %v5535
        %v5568 = vadd.f32 %v5484, %v5536
        %v5569 = vadd.f32 %v5485, %v5537
        %v5570 = vadd.f32 %v5486, %v5538
        %v5571 = vadd.f32 %v5487, %v5539
        %v5572 = vadd.f32 %v5488, %v5540
        %v5573 = vadd.f32 %v5489, %v5541
        %v5574 = vadd.f32 %v5490, %v5542
        %v5575 = vadd.f32 %v5491, %v5543
        %v5576 = vadd.f32 %v5492, %v5544
        %v5577 = vadd.f32 %v5493, %v5545
        %v5578 = vadd.f32 %v5494, %v5546
        %v5579 = vadd.f32 %v5495, %v5547
        %v5580 = vadd.f32 %v5496, %v5548
        %v5581 = vadd.f32 %v5497, %v5549
        %v5582 = vadd.f32 %v5498, %v5550
        %v5583 = vadd.f32 %v5499, %v5551
        %v5584 = vadd.f32 %v5500, %v5552
        %v5585 = vadd.f32 %v5501, %v5553
        %v5586 = vadd.f32 %v5502, %v5554
        %v5587 = vadd.f32 %v5503, %v5555
        %v5588 = vadd.f32 %v5504, %v5556
        %v5589 = vadd.f32 %v5505, %v5557
        %v5590 = vadd.f32 %v5506, %v5558
        %v5591 = vlaneseq
        %v5592 = vshrl.u32 %v5591, 7
        %v5593 = vsub.s32 3, %v5592
        %v5594 = vrot.slane %v1074, %v5593
        %v5595 = vadd.f32 %v5559, %v5594
        %v5596 = vadd.f32 %v5560, %v5594
        %v5597 = vadd.f32 %v5561, %v5594
        %v5598 = vadd.f32 %v5562, %v5594
        %v5599 = vadd.f32 %v5563, %v5594
        %v5600 = vadd.f32 %v5564, %v5594
        %v5601 = vadd.f32 %v5565, %v5594
        %v5602 = vadd.f32 %v5566, %v5594
        %v5603 = vadd.f32 %v5567, %v5594
        %v5604 = vadd.f32 %v5568, %v5594
        %v5605 = vadd.f32 %v5569, %v5594
        %v5606 = vadd.f32 %v5570, %v5594
        %v5607 = vadd.f32 %v5571, %v5594
        %v5608 = vadd.f32 %v5572, %v5594
        %v5609 = vadd.f32 %v5573, %v5594
        %v5610 = vadd.f32 %v5574, %v5594
        %v5611 = vadd.f32 %v5575, %v5594
        %v5612 = vadd.f32 %v5576, %v5594
        %v5613 = vadd.f32 %v5577, %v5594
        %v5614 = vadd.f32 %v5578, %v5594
        %v5615 = vadd.f32 %v5579, %v5594
        %v5616 = vadd.f32 %v5580, %v5594
        %v5617 = vadd.f32 %v5581, %v5594
        %v5618 = vadd.f32 %v5582, %v5594
        %v5619 = vadd.f32 %v5583, %v5594
        %v5620 = vadd.f32 %v5584, %v5594
        %v5621 = vadd.f32 %v5585, %v5594
        %v5622 = vadd.f32 %v5586, %v5594
        %v5623 = vadd.f32 %v5587, %v5594
        %v5624 = vadd.f32 %v5588, %v5594
        %v5625 = vadd.f32 %v5589, %v5594
        %v5626 = vadd.f32 %v5590, %v5594
        %v5627 = vmax.f32 %v5595, 0.0
        %v5628 = vmax.f32 %v5596, 0.0
        %v5629 = vmax.f32 %v5597, 0.0
        %v5630 = vmax.f32 %v5598, 0.0
        %v5631 = vmax.f32 %v5599, 0.0
        %v5632 = vmax.f32 %v5600, 0.0
        %v5633 = vmax.f32 %v5601, 0.0
        %v5634 = vmax.f32 %v5602, 0.0
        %v5635 = vmax.f32 %v5603, 0.0
        %v5636 = vmax.f32 %v5604, 0.0
        %v5637 = vmax.f32 %v5605, 0.0
        %v5638 = vmax.f32 %v5606, 0.0
        %v5639 = vmax.f32 %v5607, 0.0
        %v5640 = vmax.f32 %v5608, 0.0
        %v5641 = vmax.f32 %v5609, 0.0
        %v5642 = vmax.f32 %v5610, 0.0
        %v5643 = vmax.f32 %v5611, 0.0
        %v5644 = vmax.f32 %v5612, 0.0
        %v5645 = vmax.f32 %v5613, 0.0
        %v5646 = vmax.f32 %v5614, 0.0
        %v5647 = vmax.f32 %v5615, 0.0
        %v5648 = vmax.f32 %v5616, 0.0
        %v5649 = vmax.f32 %v5617, 0.0
        %v5650 = vmax.f32 %v5618, 0.0
        %v5651 = vmax.f32 %v5619, 0.0
        %v5652 = vmax.f32 %v5620, 0.0
        %v5653 = vmax.f32 %v5621, 0.0
        %v5654 = vmax.f32 %v5622, 0.0
        %v5655 = vmax.f32 %v5623, 0.0
        %v5656 = vmax.f32 %v5624, 0.0
        %v5657 = vmax.f32 %v5625, 0.0
        %v5658 = vmax.f32 %v5626, 0.0
        %v5659 = vlaneseq
        %v5660 = vshrl.u32 %v5659, 7
        %v5661 = vsub.s32 3, %v5660
        %v5662 = vrot.slane %v1075, %v5661
        %v5663 = vmul.f32 %v5627, %v5662
        %v5664 = vmul.f32 %v5628, %v5662
        %v5665 = vmul.f32 %v5629, %v5662
        %v5666 = vmul.f32 %v5630, %v5662
        %v5667 = vmul.f32 %v5631, %v5662
        %v5668 = vmul.f32 %v5632, %v5662
        %v5669 = vmul.f32 %v5633, %v5662
        %v5670 = vmul.f32 %v5634, %v5662
        %v5671 = vmul.f32 %v5635, %v5662
        %v5672 = vmul.f32 %v5636, %v5662
        %v5673 = vmul.f32 %v5637, %v5662
        %v5674 = vmul.f32 %v5638, %v5662
        %v5675 = vmul.f32 %v5639, %v5662
        %v5676 = vmul.f32 %v5640, %v5662
        %v5677 = vmul.f32 %v5641, %v5662
        %v5678 = vmul.f32 %v5642, %v5662
        %v5679 = vmul.f32 %v5643, %v5662
        %v5680 = vmul.f32 %v5644, %v5662
        %v5681 = vmul.f32 %v5645, %v5662
        %v5682 = vmul.f32 %v5646, %v5662
        %v5683 = vmul.f32 %v5647, %v5662
        %v5684 = vmul.f32 %v5648, %v5662
        %v5685 = vmul.f32 %v5649, %v5662
        %v5686 = vmul.f32 %v5650, %v5662
        %v5687 = vmul.f32 %v5651, %v5662
        %v5688 = vmul.f32 %v5652, %v5662
        %v5689 = vmul.f32 %v5653, %v5662
        %v5690 = vmul.f32 %v5654, %v5662
        %v5691 = vmul.f32 %v5655, %v5662
        %v5692 = vmul.f32 %v5656, %v5662
        %v5693 = vmul.f32 %v5657, %v5662
        %v5694 = vmul.f32 %v5658, %v5662
        %v5695 = vsel %vm834, %v5663, 0.0
        %5696 = vadd.xlane.f32.xlu0 %v5695
        %v5697 = vpop.xlane.xlu0 %5696
        %v5698 = vsel %vm834, %v5664, 0.0
        %5699 = vadd.xlane.f32.xlu0 %v5698
        %v5700 = vpop.xlane.xlu0 %5699
        %v5701 = vsel %vm834, %v5665, 0.0
        %5702 = vadd.xlane.f32.xlu0 %v5701
        %v5703 = vpop.xlane.xlu0 %5702
        %v5704 = vsel %vm834, %v5666, 0.0
        %5705 = vadd.xlane.f32.xlu0 %v5704
        %v5706 = vpop.xlane.xlu0 %5705
        %v5707 = vsel %vm834, %v5667, 0.0
        %5708 = vadd.xlane.f32.xlu0 %v5707
        %v5709 = vpop.xlane.xlu0 %5708
        %v5710 = vsel %vm834, %v5668, 0.0
        %5711 = vadd.xlane.f32.xlu0 %v5710
        %v5712 = vpop.xlane.xlu0 %5711
        %v5713 = vsel %vm834, %v5669, 0.0
        %5714 = vadd.xlane.f32.xlu0 %v5713
        %v5715 = vpop.xlane.xlu0 %5714
        %v5716 = vsel %vm834, %v5670, 0.0
        %5717 = vadd.xlane.f32.xlu0 %v5716
        %v5718 = vpop.xlane.xlu0 %5717
        %v5719 = vsel %vm834, %v5671, 0.0
        %5720 = vadd.xlane.f32.xlu0 %v5719
        %v5721 = vpop.xlane.xlu0 %5720
        %v5722 = vsel %vm834, %v5672, 0.0
        %5723 = vadd.xlane.f32.xlu0 %v5722
        %v5724 = vpop.xlane.xlu0 %5723
        %v5725 = vsel %vm834, %v5673, 0.0
        %5726 = vadd.xlane.f32.xlu0 %v5725
        %v5727 = vpop.xlane.xlu0 %5726
        %v5728 = vsel %vm834, %v5674, 0.0
        %5729 = vadd.xlane.f32.xlu0 %v5728
        %v5730 = vpop.xlane.xlu0 %5729
        %v5731 = vsel %vm834, %v5675, 0.0
        %5732 = vadd.xlane.f32.xlu0 %v5731
        %v5733 = vpop.xlane.xlu0 %5732
        %v5734 = vsel %vm834, %v5676, 0.0
        %5735 = vadd.xlane.f32.xlu0 %v5734
        %v5736 = vpop.xlane.xlu0 %5735
        %v5737 = vsel %vm834, %v5677, 0.0
        %5738 = vadd.xlane.f32.xlu0 %v5737
        %v5739 = vpop.xlane.xlu0 %5738
        %v5740 = vsel %vm834, %v5678, 0.0
        %5741 = vadd.xlane.f32.xlu0 %v5740
        %v5742 = vpop.xlane.xlu0 %5741
        %v5743 = vsel %vm834, %v5679, 0.0
        %5744 = vadd.xlane.f32.xlu0 %v5743
        %v5745 = vpop.xlane.xlu0 %5744
        %v5746 = vsel %vm834, %v5680, 0.0
        %5747 = vadd.xlane.f32.xlu0 %v5746
        %v5748 = vpop.xlane.xlu0 %5747
        %v5749 = vsel %vm834, %v5681, 0.0
        %5750 = vadd.xlane.f32.xlu0 %v5749
        %v5751 = vpop.xlane.xlu0 %5750
        %v5752 = vsel %vm834, %v5682, 0.0
        %5753 = vadd.xlane.f32.xlu0 %v5752
        %v5754 = vpop.xlane.xlu0 %5753
        %v5755 = vsel %vm834, %v5683, 0.0
        %5756 = vadd.xlane.f32.xlu0 %v5755
        %v5757 = vpop.xlane.xlu0 %5756
        %v5758 = vsel %vm834, %v5684, 0.0
        %5759 = vadd.xlane.f32.xlu0 %v5758
        %v5760 = vpop.xlane.xlu0 %5759
        %v5761 = vsel %vm834, %v5685, 0.0
        %5762 = vadd.xlane.f32.xlu0 %v5761
        %v5763 = vpop.xlane.xlu0 %5762
        %v5764 = vsel %vm834, %v5686, 0.0
        %5765 = vadd.xlane.f32.xlu0 %v5764
        %v5766 = vpop.xlane.xlu0 %5765
        %v5767 = vsel %vm834, %v5687, 0.0
        %5768 = vadd.xlane.f32.xlu0 %v5767
        %v5769 = vpop.xlane.xlu0 %5768
        %v5770 = vsel %vm834, %v5688, 0.0
        %5771 = vadd.xlane.f32.xlu0 %v5770
        %v5772 = vpop.xlane.xlu0 %5771
        %v5773 = vsel %vm834, %v5689, 0.0
        %5774 = vadd.xlane.f32.xlu0 %v5773
        %v5775 = vpop.xlane.xlu0 %5774
        %v5776 = vsel %vm834, %v5690, 0.0
        %5777 = vadd.xlane.f32.xlu0 %v5776
        %v5778 = vpop.xlane.xlu0 %5777
        %v5779 = vsel %vm834, %v5691, 0.0
        %5780 = vadd.xlane.f32.xlu0 %v5779
        %v5781 = vpop.xlane.xlu0 %5780
        %v5782 = vsel %vm834, %v5692, 0.0
        %5783 = vadd.xlane.f32.xlu0 %v5782
        %v5784 = vpop.xlane.xlu0 %5783
        %v5785 = vsel %vm834, %v5693, 0.0
        %5786 = vadd.xlane.f32.xlu0 %v5785
        %v5787 = vpop.xlane.xlu0 %5786
        %v5788 = vsel %vm834, %v5694, 0.0
        %5789 = vadd.xlane.f32.xlu0 %v5788
        %v5790 = vpop.xlane.xlu0 %5789
        %v5791 = vadd.f32 %v4576, %v5697
        %v5792 = vadd.f32 %v4577, %v5700
        %v5793 = vadd.f32 %v4578, %v5703
        %v5794 = vadd.f32 %v4579, %v5706
        %v5795 = vadd.f32 %v4580, %v5709
        %v5796 = vadd.f32 %v4581, %v5712
        %v5797 = vadd.f32 %v4582, %v5715
        %v5798 = vadd.f32 %v4583, %v5718
        %v5799 = vadd.f32 %v4584, %v5721
        %v5800 = vadd.f32 %v4585, %v5724
        %v5801 = vadd.f32 %v4586, %v5727
        %v5802 = vadd.f32 %v4587, %v5730
        %v5803 = vadd.f32 %v4588, %v5733
        %v5804 = vadd.f32 %v4589, %v5736
        %v5805 = vadd.f32 %v4590, %v5739
        %v5806 = vadd.f32 %v4591, %v5742
        %v5807 = vadd.f32 %v4592, %v5745
        %v5808 = vadd.f32 %v4593, %v5748
        %v5809 = vadd.f32 %v4594, %v5751
        %v5810 = vadd.f32 %v4595, %v5754
        %v5811 = vadd.f32 %v4596, %v5757
        %v5812 = vadd.f32 %v4597, %v5760
        %v5813 = vadd.f32 %v4598, %v5763
        %v5814 = vadd.f32 %v4599, %v5766
        %v5815 = vadd.f32 %v4600, %v5769
        %v5816 = vadd.f32 %v4601, %v5772
        %v5817 = vadd.f32 %v4602, %v5775
        %v5818 = vadd.f32 %v4603, %v5778
        %v5819 = vadd.f32 %v4604, %v5781
        %v5820 = vadd.f32 %v4605, %v5784
        %v5821 = vadd.f32 %v4606, %v5787
        %v5822 = vadd.f32 %v4607, %v5790
        %v5823 = vld [vmem:[#allocation3] sm:$0x1]
        %s5824 = vtos %v5823
        %v5825 = vstv %s5824
        %v5826 = vadd.f32 %v5791, %v5825
        %v5827 = vadd.f32 %v5792, %v5825
        %v5828 = vadd.f32 %v5793, %v5825
        %v5829 = vadd.f32 %v5794, %v5825
        %v5830 = vadd.f32 %v5795, %v5825
        %v5831 = vadd.f32 %v5796, %v5825
        %v5832 = vadd.f32 %v5797, %v5825
        %v5833 = vadd.f32 %v5798, %v5825
        %v5834 = vadd.f32 %v5799, %v5825
        %v5835 = vadd.f32 %v5800, %v5825
        %v5836 = vadd.f32 %v5801, %v5825
        %v5837 = vadd.f32 %v5802, %v5825
        %v5838 = vadd.f32 %v5803, %v5825
        %v5839 = vadd.f32 %v5804, %v5825
        %v5840 = vadd.f32 %v5805, %v5825
        %v5841 = vadd.f32 %v5806, %v5825
        %v5842 = vadd.f32 %v5807, %v5825
        %v5843 = vadd.f32 %v5808, %v5825
        %v5844 = vadd.f32 %v5809, %v5825
        %v5845 = vadd.f32 %v5810, %v5825
        %v5846 = vadd.f32 %v5811, %v5825
        %v5847 = vadd.f32 %v5812, %v5825
        %v5848 = vadd.f32 %v5813, %v5825
        %v5849 = vadd.f32 %v5814, %v5825
        %v5850 = vadd.f32 %v5815, %v5825
        %v5851 = vadd.f32 %v5816, %v5825
        %v5852 = vadd.f32 %v5817, %v5825
        %v5853 = vadd.f32 %v5818, %v5825
        %v5854 = vadd.f32 %v5819, %v5825
        %v5855 = vadd.f32 %v5820, %v5825
        %v5856 = vadd.f32 %v5821, %v5825
        %v5857 = vadd.f32 %v5822, %v5825
        %v5858 = vmax.f32 %v5826, 0.0
        %v5859 = vmax.f32 %v5827, 0.0
        %v5860 = vmax.f32 %v5828, 0.0
        %v5861 = vmax.f32 %v5829, 0.0
        %v5862 = vmax.f32 %v5830, 0.0
        %v5863 = vmax.f32 %v5831, 0.0
        %v5864 = vmax.f32 %v5832, 0.0
        %v5865 = vmax.f32 %v5833, 0.0
        %v5866 = vmax.f32 %v5834, 0.0
        %v5867 = vmax.f32 %v5835, 0.0
        %v5868 = vmax.f32 %v5836, 0.0
        %v5869 = vmax.f32 %v5837, 0.0
        %v5870 = vmax.f32 %v5838, 0.0
        %v5871 = vmax.f32 %v5839, 0.0
        %v5872 = vmax.f32 %v5840, 0.0
        %v5873 = vmax.f32 %v5841, 0.0
        %v5874 = vmax.f32 %v5842, 0.0
        %v5875 = vmax.f32 %v5843, 0.0
        %v5876 = vmax.f32 %v5844, 0.0
        %v5877 = vmax.f32 %v5845, 0.0
        %v5878 = vmax.f32 %v5846, 0.0
        %v5879 = vmax.f32 %v5847, 0.0
        %v5880 = vmax.f32 %v5848, 0.0
        %v5881 = vmax.f32 %v5849, 0.0
        %v5882 = vmax.f32 %v5850, 0.0
        %v5883 = vmax.f32 %v5851, 0.0
        %v5884 = vmax.f32 %v5852, 0.0
        %v5885 = vmax.f32 %v5853, 0.0
        %v5886 = vmax.f32 %v5854, 0.0
        %v5887 = vmax.f32 %v5855, 0.0
        %v5888 = vmax.f32 %v5856, 0.0
        %v5889 = vmax.f32 %v5857, 0.0
        %v5922 = vlaneseq
        %v5923 = vand.u32 %v5922, 127
        %v5924 = vlaneseq
        %v5925 = vshrl.u32 %v5924, 7
        %v5926 = vsub.s32 %v5923, %v5925
        %v5927 = vrot.slane %v5858, %v5926
        %v5928 = vadd.s32 %v5923, 4294967288
        %v5929 = vlaneseq
        %v5930 = vshrl.u32 %v5929, 7
        %v5931 = vsub.s32 %v5928, %v5930
        %v5932 = vrot.slane %v5859, %v5931
        %vm5933 = vcmask 130112
        %v5934 = vsel %vm5933, %v5932, %v5927
        %v5935 = vlaneseq
        %v5936 = vshrl.u32 %v5935, 7
        %v5937 = vsub.s32 %v5923, %v5936
        %v5938 = vrot.slane %v5860, %v5937
        %v5939 = vlaneseq
        %v5940 = vshrl.u32 %v5939, 7
        %v5941 = vsub.s32 %v5928, %v5940
        %v5942 = vrot.slane %v5861, %v5941
        %v5943 = vsel %vm5933, %v5942, %v5938
        %v5944 = vlaneseq
        %v5945 = vshrl.u32 %v5944, 7
        %v5946 = vsub.s32 %v5923, %v5945
        %v5947 = vrot.slane %v5862, %v5946
        %v5948 = vlaneseq
        %v5949 = vshrl.u32 %v5948, 7
        %v5950 = vsub.s32 %v5928, %v5949
        %v5951 = vrot.slane %v5863, %v5950
        %v5952 = vsel %vm5933, %v5951, %v5947
        %v5953 = vlaneseq
        %v5954 = vshrl.u32 %v5953, 7
        %v5955 = vsub.s32 %v5923, %v5954
        %v5956 = vrot.slane %v5864, %v5955
        %v5957 = vlaneseq
        %v5958 = vshrl.u32 %v5957, 7
        %v5959 = vsub.s32 %v5928, %v5958
        %v5960 = vrot.slane %v5865, %v5959
        %v5961 = vsel %vm5933, %v5960, %v5956
        %v5962 = vlaneseq
        %v5963 = vshrl.u32 %v5962, 7
        %v5964 = vsub.s32 %v5923, %v5963
        %v5965 = vrot.slane %v5866, %v5964
        %v5966 = vlaneseq
        %v5967 = vshrl.u32 %v5966, 7
        %v5968 = vsub.s32 %v5928, %v5967
        %v5969 = vrot.slane %v5867, %v5968
        %v5970 = vsel %vm5933, %v5969, %v5965
        %v5971 = vlaneseq
        %v5972 = vshrl.u32 %v5971, 7
        %v5973 = vsub.s32 %v5923, %v5972
        %v5974 = vrot.slane %v5868, %v5973
        %v5975 = vlaneseq
        %v5976 = vshrl.u32 %v5975, 7
        %v5977 = vsub.s32 %v5928, %v5976
        %v5978 = vrot.slane %v5869, %v5977
        %v5979 = vsel %vm5933, %v5978, %v5974
        %v5980 = vlaneseq
        %v5981 = vshrl.u32 %v5980, 7
        %v5982 = vsub.s32 %v5923, %v5981
        %v5983 = vrot.slane %v5870, %v5982
        %v5984 = vlaneseq
        %v5985 = vshrl.u32 %v5984, 7
        %v5986 = vsub.s32 %v5928, %v5985
        %v5987 = vrot.slane %v5871, %v5986
        %v5988 = vsel %vm5933, %v5987, %v5983
        %v5989 = vlaneseq
        %v5990 = vshrl.u32 %v5989, 7
        %v5991 = vsub.s32 %v5923, %v5990
        %v5992 = vrot.slane %v5872, %v5991
        %v5993 = vlaneseq
        %v5994 = vshrl.u32 %v5993, 7
        %v5995 = vsub.s32 %v5928, %v5994
        %v5996 = vrot.slane %v5873, %v5995
        %v5997 = vsel %vm5933, %v5996, %v5992
        %v5998 = vlaneseq
        %v5999 = vshrl.u32 %v5998, 7
        %v6000 = vsub.s32 %v5923, %v5999
        %v6001 = vrot.slane %v5874, %v6000
        %v6002 = vlaneseq
        %v6003 = vshrl.u32 %v6002, 7
        %v6004 = vsub.s32 %v5928, %v6003
        %v6005 = vrot.slane %v5875, %v6004
        %v6006 = vsel %vm5933, %v6005, %v6001
        %v6007 = vlaneseq
        %v6008 = vshrl.u32 %v6007, 7
        %v6009 = vsub.s32 %v5923, %v6008
        %v6010 = vrot.slane %v5876, %v6009
        %v6011 = vlaneseq
        %v6012 = vshrl.u32 %v6011, 7
        %v6013 = vsub.s32 %v5928, %v6012
        %v6014 = vrot.slane %v5877, %v6013
        %v6015 = vsel %vm5933, %v6014, %v6010
        %v6016 = vlaneseq
        %v6017 = vshrl.u32 %v6016, 7
        %v6018 = vsub.s32 %v5923, %v6017
        %v6019 = vrot.slane %v5878, %v6018
        %v6020 = vlaneseq
        %v6021 = vshrl.u32 %v6020, 7
        %v6022 = vsub.s32 %v5928, %v6021
        %v6023 = vrot.slane %v5879, %v6022
        %v6024 = vsel %vm5933, %v6023, %v6019
        %v6025 = vlaneseq
        %v6026 = vshrl.u32 %v6025, 7
        %v6027 = vsub.s32 %v5923, %v6026
        %v6028 = vrot.slane %v5880, %v6027
        %v6029 = vlaneseq
        %v6030 = vshrl.u32 %v6029, 7
        %v6031 = vsub.s32 %v5928, %v6030
        %v6032 = vrot.slane %v5881, %v6031
        %v6033 = vsel %vm5933, %v6032, %v6028
        %v6034 = vlaneseq
        %v6035 = vshrl.u32 %v6034, 7
        %v6036 = vsub.s32 %v5923, %v6035
        %v6037 = vrot.slane %v5882, %v6036
        %v6038 = vlaneseq
        %v6039 = vshrl.u32 %v6038, 7
        %v6040 = vsub.s32 %v5928, %v6039
        %v6041 = vrot.slane %v5883, %v6040
        %v6042 = vsel %vm5933, %v6041, %v6037
        %v6043 = vlaneseq
        %v6044 = vshrl.u32 %v6043, 7
        %v6045 = vsub.s32 %v5923, %v6044
        %v6046 = vrot.slane %v5884, %v6045
        %v6047 = vlaneseq
        %v6048 = vshrl.u32 %v6047, 7
        %v6049 = vsub.s32 %v5928, %v6048
        %v6050 = vrot.slane %v5885, %v6049
        %v6051 = vsel %vm5933, %v6050, %v6046
        %v6052 = vlaneseq
        %v6053 = vshrl.u32 %v6052, 7
        %v6054 = vsub.s32 %v5923, %v6053
        %v6055 = vrot.slane %v5886, %v6054
        %v6056 = vlaneseq
        %v6057 = vshrl.u32 %v6056, 7
        %v6058 = vsub.s32 %v5928, %v6057
        %v6059 = vrot.slane %v5887, %v6058
        %v6060 = vsel %vm5933, %v6059, %v6055
        %v6061 = vlaneseq
        %v6062 = vshrl.u32 %v6061, 7
        %v6063 = vsub.s32 %v5923, %v6062
        %v6064 = vrot.slane %v5888, %v6063
        %v6065 = vlaneseq
        %v6066 = vshrl.u32 %v6065, 7
        %v6067 = vsub.s32 %v5928, %v6066
        %v6068 = vrot.slane %v5889, %v6067
        %v6069 = vsel %vm5933, %v6068, %v6064
        %vm6070 = vcmask 1041409
        %v6071 = vsel %vm6070, %v5943, %v5934
        %vm6072 = vcmask 1042434
        %v6073 = vsel %vm6072, %v5952, %v6071
        %vm6074 = vcmask 1043459
        %v6075 = vsel %vm6074, %v5961, %v6073
        %vm6076 = vcmask 1044484
        %v6077 = vsel %vm6076, %v5970, %v6075
        %vm6078 = vcmask 1045509
        %v6079 = vsel %vm6078, %v5979, %v6077
        %vm6080 = vcmask 1046534
        %v6081 = vsel %vm6080, %v5988, %v6079
        %vm6082 = vcmask 1047559
        %v6083 = vsel %vm6082, %v5997, %v6081
        %v6084 = vsel %vm6070, %v6015, %v6006
        %v6085 = vsel %vm6072, %v6024, %v6084
        %v6086 = vsel %vm6074, %v6033, %v6085
        %v6087 = vsel %vm6076, %v6042, %v6086
        %v6088 = vsel %vm6078, %v6051, %v6087
        %v6089 = vsel %vm6080, %v6060, %v6088
        %v6090 = vsel %vm6082, %v6069, %v6089
        %vm6093 = vcmask 130048
        %6094 = vst.msk [vmem:[%s363] sm:$0xff] %vm6093, %v6083
        %6095 = vst.msk [vmem:[%s363 + $0x8] sm:$0xff] %vm6093, %v6090
        %s6096 = sand.u32 %s189, 1
        %s6097 = scalar_lea.sflag [#allocation6], %s6096
        %s6098 = sand.u32 %s189, 1
        %s6099 = smul.addr %s6098, 16
        %s6100 = scalar_lea.vmem [#allocation15], %s6099
        // Predicated region
        $region73: #{tpu_custom_call.1} parent=47 // pred_check
          %p6101 = pneg %p199
        $region74: #{tpu_custom_call.1} parent=47 // pred_check_branch
          %6103 = sbr.rel (%p6101) target = $region76
        $region75: #{tpu_custom_call.1} parent=47 // pred_region
          %s6105 = ssub.s32 256, 256
          %6106 = vsyncadd %s6097, %s6105
          %s6107 = smul.addr %s29, 2
          %s6108 = smul.addr %s6107, 128
          %s6109 = scalar_lea.hbm %s7, %s6108
          %s6110 = sshll.u32 %s6100, 4
          %s6111 = int_to_ptr.vmem [resolvable:$true] %s6110
          %6116 = dma.vmem_to_hbm [thread:$0]  %s6111, 256, %s6109, %s6097, 128, 128, 8
        $region76: #{tpu_custom_call.1} parent=47 // pred_fallthru
          _
      $region48: #{tpu_custom_call.1} parent=5 // pred_fallthru
        _
      %p6117 = scmp.le.s32.totalorder 2, %s24
      // Predicated region
      $region77: #{tpu_custom_call.1} parent=5 // pred_check
        %p6118 = pneg %p6117
      $region78: #{tpu_custom_call.1} parent=5 // pred_check_branch
        %6120 = sbr.rel (%p6118) target = $region80
      $region79: #{tpu_custom_call.1} parent=5 // pred_region
        %s6121 = ssub.s32 %s24, 2
        // Predicated region
        $region81: #{tpu_custom_call.1} parent=79 // pred_check
          %p6122 = pneg %p205
        $region82: #{tpu_custom_call.1} parent=79 // pred_check_branch
          %6124 = sbr.rel (%p6122) target = $region84
        $region83: #{tpu_custom_call.1} parent=79 // pred_region
          %s6125 = sand.u32 %s190, 1
          %s6126 = scalar_lea.sflag [#allocation6], %s6125
          %s6127 = sand.u32 %s190, 1
          %s6128 = smul.addr %s6127, 16
          %s6129 = scalar_lea.vmem [#allocation15], %s6128
          %6130 = dma.done %s6126, 256
        $region84: #{tpu_custom_call.1} parent=79 // pred_fallthru
          _
      $region80: #{tpu_custom_call.1} parent=5 // pred_fallthru
        _
    $region6: #{tpu_custom_call.1} parent=1 // loop_footer
      %s28 = sadd.s32 1, %s24
    $region7: #{tpu_custom_call.1} parent=1 // loop_footer_branch
      %23 = sbr.rel target = $region3
    $region8: #{tpu_custom_call.1} parent=1 // loop_exit
      _
    %6131 = vsyncpa [#allocation5], 1
    %s6132 = scalar_lea.sflag [#allocation5], 1
    %6133 = vsyncpa %s6132, 1
    %6134 = vsyncpa [#allocation8], 1
    %6135 = vsyncpa [#allocation11], 1
    %6136 = vsyncpa [#allocation14], 1
    %6137 = vsyncpa [#allocation6], 1
    %s6138 = scalar_lea.sflag [#allocation6], 1
    %6139 = vsyncpa %s6138, 1

</llo_original>
